<compile_context>
chip_gen: v7x
topology: tpu7x:2x2x1
jax: 0.10.0
libtpu: 0.0.40
codegen_flags: <defaults>
</compile_context>

<pallas_src>
import functools

import jax
import jax.numpy as jnp
from jax import lax
from jax.experimental import pallas as pl
from jax.experimental.pallas import tpu as pltpu

_VMEM_LIMIT = 48 * 1024 * 1024  # headroom on v7x's 64 MiB VMEM


def _round_up(x, m):
    return (x + m - 1) // m * m


# --------------------------------------------------------------------------
# Kernel 1: fused 3x3x3 conv (27 bf16 MXU taps, f32 acc) + BN partial stats.
# --------------------------------------------------------------------------
def _conv3x3x3_stats_kernel(xm_ref, x0_ref, xp_ref, w_ref, y_ref, stats_ref,
                            *, H, W):
    # xm/x0/xp: (1, 1, H+2, W+2, Cin_p) bf16 -- padded-depth slabs d, d+1, d+2
    # w_ref:    (27, Cin_p, Cout_p) bf16, resident across the grid
    # y_ref:    (1, 1, H*W, Cout_p) f32   raw conv output for this slice
    # stats_ref:(1, 1, 2, Cout_p) f32     per-tile [sum, sum-of-squares]
    cout_p = w_ref.shape[-1]
    acc = jnp.zeros((H * W, cout_p), jnp.float32)
    slab_refs = (xm_ref, x0_ref, xp_ref)
    for kd in range(3):
        for kh in range(3):
            for kw in range(3):
                win = slab_refs[kd][0, 0, pl.ds(kh, H), pl.ds(kw, W), :]
                win = win.reshape(H * W, win.shape[-1])
                acc = acc + jnp.dot(win, w_ref[kd * 9 + kh * 3 + kw],
                                    preferred_element_type=jnp.float32)
    y_ref[0, 0] = acc
    s1 = jnp.sum(acc, axis=0, keepdims=True)
    s2 = jnp.sum(acc * acc, axis=0, keepdims=True)
    stats_ref[0, 0] = jnp.concatenate([s1, s2], axis=0)


# --------------------------------------------------------------------------
# Kernel 2: per-channel affine (folded BN) + ReLU, lane-dense elementwise.
# --------------------------------------------------------------------------
def _bn_relu_kernel(y_ref, scale_ref, shift_ref, o_ref):
    o_ref[...] = jnp.maximum(
        y_ref[...] * scale_ref[...] + shift_ref[...], 0.0).astype(o_ref.dtype)


def _pick_block_rows(total_rows, row_unit, cout_p, max_bytes=2 << 20):
    """Largest block of rows that (a) divides total_rows, (b) keeps the
    (8,128) tiling constraint satisfied, (c) fits a modest VMEM budget."""
    nd = total_rows // row_unit
    best = None
    for k in range(1, nd + 1):
        if nd % k:
            continue
        rows = row_unit * k
        if rows != total_rows and rows % 8 != 0:
            continue
        if rows * cout_p * 4 > max_bytes:
            continue
        best = rows
    if best is None:
        best = row_unit if row_unit % 8 == 0 else total_rows
    return best


# --------------------------------------------------------------------------
# One stage: conv3d(k=3, pad=1, no bias) -> BatchNorm3d(train) -> ReLU.
# --------------------------------------------------------------------------
def _conv_bn_relu_stage(x_ndhwc, w_oidhw, gamma, beta, *, out_dtype,
                        eps=1e-5):
    """x: (N, D, H, W, Cx) with Cx >= w.shape[1]; extra channels must be 0.
    Returns (N, D, H, W, Cout_p) with output channels zero-padded to Cout_p.
    """
    N, D, H, W, Cx = x_ndhwc.shape
    Cout, Cin_w = w_oidhw.shape[0], w_oidhw.shape[1]
    Cin_p = _round_up(max(Cx, Cin_w), 128)
    Cout_p = _round_up(Cout, 128)

    # Halo (+1 voxel) and channel padding; bf16 operands for the MXU.
    xp = jnp.pad(x_ndhwc, ((0, 0), (1, 1), (1, 1), (1, 1), (0, Cin_p - Cx)))
    xp = xp.astype(jnp.bfloat16)

    # Fold torch weights (Cout, Cin, kd, kh, kw) -> (27, Cin_p, Cout_p) bf16.
    w = jnp.transpose(w_oidhw, (2, 3, 4, 1, 0)).reshape(27, Cin_w, Cout)
    w = jnp.pad(w, ((0, 0), (0, Cin_p - Cin_w), (0, Cout_p - Cout)))
    w = w.astype(jnp.bfloat16)

    conv_kernel = functools.partial(_conv3x3x3_stats_kernel, H=H, W=W)
    y_raw, stats = pl.pallas_call(
        conv_kernel,
        grid=(N, D),
        in_specs=[
            # overlapping depth slabs of the padded input: d, d+1, d+2
            pl.BlockSpec((1, 1, H + 2, W + 2, Cin_p),
                         lambda n, d: (n, d, 0, 0, 0)),
            pl.BlockSpec((1, 1, H + 2, W + 2, Cin_p),
                         lambda n, d: (n, d + 1, 0, 0, 0)),
            pl.BlockSpec((1, 1, H + 2, W + 2, Cin_p),
                         lambda n, d: (n, d + 2, 0, 0, 0)),
            # folded weights stay resident across the grid
            pl.BlockSpec((27, Cin_p, Cout_p), lambda n, d: (0, 0, 0)),
        ],
        out_specs=[
            pl.BlockSpec((1, 1, H * W, Cout_p), lambda n, d: (n, d, 0, 0)),
            pl.BlockSpec((1, 1, 2, Cout_p), lambda n, d: (n, d, 0, 0)),
        ],
        out_shape=[
            jax.ShapeDtypeStruct((N, D, H * W, Cout_p), jnp.float32),
            jax.ShapeDtypeStruct((N, D, 2, Cout_p), jnp.float32),
        ],
        compiler_params=pltpu.CompilerParams(
            dimension_semantics=("parallel", "parallel"),
            vmem_limit_bytes=_VMEM_LIMIT),
    )(xp, xp, xp, w)

    # Finalize BN stats (tiny per-channel reduction) and fold gamma / rsqrt /
    # mean / beta into a single per-channel scale & shift (computed once).
    m = float(N * D * H * W)
    total = jnp.sum(stats, axis=(0, 1))               # (2, Cout_p)
    mean = total[0] / m
    var = jnp.maximum(total[1] / m - mean * mean, 0.0)
    gamma_p = jnp.pad(gamma.astype(jnp.float32), (0, Cout_p - Cout))
    beta_p = jnp.pad(beta.astype(jnp.float32), (0, Cout_p - Cout))
    scale = gamma_p * lax.rsqrt(var + eps)
    shift = beta_p - mean * scale

    # Flattened, large-block elementwise pass (few grid steps, lane-dense).
    total_rows = N * D * H * W
    block_rows = _pick_block_rows(total_rows, H * W, Cout_p)
    y_flat = y_raw.reshape(total_rows, Cout_p)
    z = pl.pallas_call(
        _bn_relu_kernel,
        grid=(total_rows // block_rows,),
        in_specs=[
            pl.BlockSpec((block_rows, Cout_p), lambda i: (i, 0)),
            pl.BlockSpec((1, Cout_p), lambda i: (0, 0)),
            pl.BlockSpec((1, Cout_p), lambda i: (0, 0)),
        ],
        out_specs=pl.BlockSpec((block_rows, Cout_p), lambda i: (i, 0)),
        out_shape=jax.ShapeDtypeStruct((total_rows, Cout_p), out_dtype),
        compiler_params=pltpu.CompilerParams(
            dimension_semantics=("parallel",),
            vmem_limit_bytes=_VMEM_LIMIT),
    )(y_flat, scale.reshape(1, Cout_p), shift.reshape(1, Cout_p))

    return z.reshape(N, D, H, W, Cout_p)


# --------------------------------------------------------------------------
# Full ResidualBlock.forward (input/output in PyTorch NCDHW layout).
# --------------------------------------------------------------------------
def residual_block_forward(x_ncdhw, params):
    N, Cin, D, H, W = x_ncdhw.shape
    Cout = params["w1"].shape[0]
    x = jnp.transpose(x_ncdhw, (0, 2, 3, 4, 1))            # -> NDHWC

    # Conv biases b1/b2 are intentionally unused: training-mode BatchNorm's
    # mean subtraction cancels them exactly.
    # Stage 1: bf16 output feeds stage 2's MXU directly; its padded channels
    # are exactly zero, so no slicing is needed in between.
    z1 = _conv_bn_relu_stage(x, params["w1"], params["gamma1"],
                             params["beta1"], out_dtype=jnp.bfloat16)
    # Stage 2: f32 output to match PyTorch.
    z2 = _conv_bn_relu_stage(z1, params["w2"], params["gamma2"],
                             params["beta2"], out_dtype=jnp.float32)

    z2 = z2[..., :Cout]                                    # drop channel pad
    return jnp.transpose(z2, (0, 4, 1, 2, 3))              # -> NCDHW


# --------------------------------------------------------------------------
# Pure-JAX f32 reference (includes the bias, proving the cancellation).
# --------------------------------------------------------------------------
def _reference_stage(x_ncdhw, w, b, gamma, beta, eps=1e-5):
    y = lax.conv_general_dilated(
        x_ncdhw, w, window_strides=(1, 1, 1),
        padding=((1, 1), (1, 1), (1, 1)),
        dimension_numbers=("NCDHW", "OIDHW", "NCDHW"))
    y = y + b.reshape(1, -1, 1, 1, 1)
    mean = jnp.mean(y, axis=(0, 2, 3, 4), keepdims=True)
    var = jnp.mean((y - mean) ** 2, axis=(0, 2, 3, 4), keepdims=True)
    y = (y - mean) * lax.rsqrt(var + eps) * gamma.reshape(1, -1, 1, 1, 1) \
        + beta.reshape(1, -1, 1, 1, 1)
    return jnp.maximum(y, 0.0)


def _reference_forward(x, params):
    y = _reference_stage(x, params["w1"], params["b1"],
                         params["gamma1"], params["beta1"])
    y = _reference_stage(y, params["w2"], params["b2"],
                         params["gamma2"], params["beta2"])
    return y


# --------------------------------------------------------------------------
def init_params(key, in_channels, out_channels):
    k1, k2, k3, k4 = jax.random.split(key, 4)
    fan1 = in_channels * 27
    fan2 = out_channels * 27
    bound1 = 1.0 / jnp.sqrt(fan1)
    bound2 = 1.0 / jnp.sqrt(fan2)
    return {
        "w1": jax.random.uniform(k1, (out_channels, in_channels, 3, 3, 3),
                                 jnp.float32, -bound1, bound1),
        "b1": jax.random.uniform(k2, (out_channels,), jnp.float32,
                                 -bound1, bound1),
        "gamma1": jnp.ones((out_channels,), jnp.float32),
        "beta1": jnp.zeros((out_channels,), jnp.float32),
        "w2": jax.random.uniform(k3, (out_channels, out_channels, 3, 3, 3),
                                 jnp.float32, -bound2, bound2),
        "b2": jax.random.uniform(k4, (out_channels,), jnp.float32,
                                 -bound2, bound2),
        "gamma2": jnp.ones((out_channels,), jnp.float32),
        "beta2": jnp.zeros((out_channels,), jnp.float32),
    }


if __name__ == "__main__":
    key = jax.random.PRNGKey(0)
    kx, kp = jax.random.split(key)

    N, Cin, Cout, D, H, W = 2, 4, 8, 8, 8, 8
    x = jax.random.normal(kx, (N, Cin, D, H, W), jnp.float32)
    params = init_params(kp, Cin, Cout)

    out = jax.jit(residual_block_forward)(x, params)
    out = jax.block_until_ready(out)
    assert out.shape == (N, Cout, D, H, W), out.shape

    ref = jax.block_until_ready(jax.jit(_reference_forward)(x, params))
    # bf16 MXU operands vs f32 reference -> modest tolerance.
    assert jnp.allclose(out, ref, atol=5e-2, rtol=5e-2), \
        float(jnp.max(jnp.abs(out - ref)))

    print("KERNEL_OK")
</pallas_src>

<mosaic_0001>
module attributes {stable_mosaic.version = 11 : i64} {
  func.func @_conv3x3x3_stats_kernel(%arg0: i32, %arg1: i32, %arg2: memref<1x1x10x10x128xbf16, #tpu.memory_space<vmem>>, %arg3: memref<1x1x10x10x128xbf16, #tpu.memory_space<vmem>>, %arg4: memref<1x1x10x10x128xbf16, #tpu.memory_space<vmem>>, %arg5: memref<27x128x128xbf16, #tpu.memory_space<vmem>>, %arg6: memref<1x1x64x128xf32, #tpu.memory_space<vmem>>, %arg7: memref<1x1x2x128xf32, #tpu.memory_space<vmem>>) attributes {dimension_semantics = [#tpu.dimension_semantics<parallel>, #tpu.dimension_semantics<parallel>], iteration_bounds = array<i64: 2, 8>, scalar_prefetch = 0 : i64, scratch_operands = 0 : i64, tpu.core_type = #tpu.core_type<tc>, window_params = [{transform_indices = @transform_0, window_bounds = array<i64: 1, 1, 10, 10, 128>}, {transform_indices = @transform_1, window_bounds = array<i64: 1, 1, 10, 10, 128>}, {transform_indices = @transform_2, window_bounds = array<i64: 1, 1, 10, 10, 128>}, {pipeline_mode = #tpu.pipeline_mode<synchronous>, transform_indices = @transform_3, window_bounds = array<i64: 27, 128, 128>}, {transform_indices = @transform_4, window_bounds = array<i64: 1, 1, 64, 128>}, {transform_indices = @transform_5, window_bounds = array<i64: 1, 1, 2, 128>}]} {
    %cst = arith.constant 0.000000e+00 : f32
    %0 = vector.broadcast %cst : f32 to vector<64x128xf32>
    %c0 = arith.constant 0 : index
    %c0_0 = arith.constant 0 : index
    %c0_1 = arith.constant 0 : index
    %c0_2 = arith.constant 0 : index
    %c0_3 = arith.constant 0 : index
    %1 = vector.load %arg2[%c0, %c0_0, %c0_1, %c0_2, %c0_3] : memref<1x1x10x10x128xbf16, #tpu.memory_space<vmem>>, vector<1x1x8x8x128xbf16>
    %2 = vector.shape_cast %1 : vector<1x1x8x8x128xbf16> to vector<8x8x128xbf16>
    %3 = vector.shape_cast %2 : vector<8x8x128xbf16> to vector<64x128xbf16>
    %c0_4 = arith.constant 0 : index
    %c0_5 = arith.constant 0 : index
    %c0_6 = arith.constant 0 : index
    %4 = vector.load %arg5[%c0_4, %c0_5, %c0_6] : memref<27x128x128xbf16, #tpu.memory_space<vmem>>, vector<1x128x128xbf16>
    %5 = vector.shape_cast %4 : vector<1x128x128xbf16> to vector<128x128xbf16>
    %cst_7 = arith.constant dense<0.000000e+00> : vector<64x128xf32>
    %6 = tpu.matmul %3, %5, %cst_7 {dimension_numbers = #tpu.dot_dimension_numbers<[1], [0], [0], [1], [0, 0, 1, 1], [], []>} : vector<64x128xbf16>, vector<128x128xbf16>, vector<64x128xf32> -> vector<64x128xf32>
    %7 = arith.addf %0, %6 : vector<64x128xf32>
    %c0_8 = arith.constant 0 : index
    %c0_9 = arith.constant 0 : index
    %c0_10 = arith.constant 0 : index
    %c1 = arith.constant 1 : index
    %c0_11 = arith.constant 0 : index
    %8 = vector.load %arg2[%c0_8, %c0_9, %c0_10, %c1, %c0_11] : memref<1x1x10x10x128xbf16, #tpu.memory_space<vmem>>, vector<1x1x8x8x128xbf16>
    %9 = vector.shape_cast %8 : vector<1x1x8x8x128xbf16> to vector<8x8x128xbf16>
    %10 = vector.shape_cast %9 : vector<8x8x128xbf16> to vector<64x128xbf16>
    %c1_12 = arith.constant 1 : index
    %c0_13 = arith.constant 0 : index
    %c0_14 = arith.constant 0 : index
    %11 = vector.load %arg5[%c1_12, %c0_13, %c0_14] : memref<27x128x128xbf16, #tpu.memory_space<vmem>>, vector<1x128x128xbf16>
    %12 = vector.shape_cast %11 : vector<1x128x128xbf16> to vector<128x128xbf16>
    %cst_15 = arith.constant dense<0.000000e+00> : vector<64x128xf32>
    %13 = tpu.matmul %10, %12, %cst_15 {dimension_numbers = #tpu.dot_dimension_numbers<[1], [0], [0], [1], [0, 0, 1, 1], [], []>} : vector<64x128xbf16>, vector<128x128xbf16>, vector<64x128xf32> -> vector<64x128xf32>
    %14 = arith.addf %7, %13 : vector<64x128xf32>
    %c0_16 = arith.constant 0 : index
    %c0_17 = arith.constant 0 : index
    %c0_18 = arith.constant 0 : index
    %c2 = arith.constant 2 : index
    %c0_19 = arith.constant 0 : index
    %15 = vector.load %arg2[%c0_16, %c0_17, %c0_18, %c2, %c0_19] : memref<1x1x10x10x128xbf16, #tpu.memory_space<vmem>>, vector<1x1x8x8x128xbf16>
    %16 = vector.shape_cast %15 : vector<1x1x8x8x128xbf16> to vector<8x8x128xbf16>
    %17 = vector.shape_cast %16 : vector<8x8x128xbf16> to vector<64x128xbf16>
    %c2_20 = arith.constant 2 : index
    %c0_21 = arith.constant 0 : index
    %c0_22 = arith.constant 0 : index
    %18 = vector.load %arg5[%c2_20, %c0_21, %c0_22] : memref<27x128x128xbf16, #tpu.memory_space<vmem>>, vector<1x128x128xbf16>
    %19 = vector.shape_cast %18 : vector<1x128x128xbf16> to vector<128x128xbf16>
    %cst_23 = arith.constant dense<0.000000e+00> : vector<64x128xf32>
    %20 = tpu.matmul %17, %19, %cst_23 {dimension_numbers = #tpu.dot_dimension_numbers<[1], [0], [0], [1], [0, 0, 1, 1], [], []>} : vector<64x128xbf16>, vector<128x128xbf16>, vector<64x128xf32> -> vector<64x128xf32>
    %21 = arith.addf %14, %20 : vector<64x128xf32>
    %c0_24 = arith.constant 0 : index
    %c0_25 = arith.constant 0 : index
    %c1_26 = arith.constant 1 : index
    %c0_27 = arith.constant 0 : index
    %c0_28 = arith.constant 0 : index
    %22 = vector.load %arg2[%c0_24, %c0_25, %c1_26, %c0_27, %c0_28] : memref<1x1x10x10x128xbf16, #tpu.memory_space<vmem>>, vector<1x1x8x8x128xbf16>
    %23 = vector.shape_cast %22 : vector<1x1x8x8x128xbf16> to vector<8x8x128xbf16>
    %24 = vector.shape_cast %23 : vector<8x8x128xbf16> to vector<64x128xbf16>
    %c3 = arith.constant 3 : index
    %c0_29 = arith.constant 0 : index
    %c0_30 = arith.constant 0 : index
    %25 = vector.load %arg5[%c3, %c0_29, %c0_30] : memref<27x128x128xbf16, #tpu.memory_space<vmem>>, vector<1x128x128xbf16>
    %26 = vector.shape_cast %25 : vector<1x128x128xbf16> to vector<128x128xbf16>
    %cst_31 = arith.constant dense<0.000000e+00> : vector<64x128xf32>
    %27 = tpu.matmul %24, %26, %cst_31 {dimension_numbers = #tpu.dot_dimension_numbers<[1], [0], [0], [1], [0, 0, 1, 1], [], []>} : vector<64x128xbf16>, vector<128x128xbf16>, vector<64x128xf32> -> vector<64x128xf32>
    %28 = arith.addf %21, %27 : vector<64x128xf32>
    %c0_32 = arith.constant 0 : index
    %c0_33 = arith.constant 0 : index
    %c1_34 = arith.constant 1 : index
    %c1_35 = arith.constant 1 : index
    %c0_36 = arith.constant 0 : index
    %29 = vector.load %arg2[%c0_32, %c0_33, %c1_34, %c1_35, %c0_36] : memref<1x1x10x10x128xbf16, #tpu.memory_space<vmem>>, vector<1x1x8x8x128xbf16>
    %30 = vector.shape_cast %29 : vector<1x1x8x8x128xbf16> to vector<8x8x128xbf16>
    %31 = vector.shape_cast %30 : vector<8x8x128xbf16> to vector<64x128xbf16>
    %c4 = arith.constant 4 : index
    %c0_37 = arith.constant 0 : index
    %c0_38 = arith.constant 0 : index
    %32 = vector.load %arg5[%c4, %c0_37, %c0_38] : memref<27x128x128xbf16, #tpu.memory_space<vmem>>, vector<1x128x128xbf16>
    %33 = vector.shape_cast %32 : vector<1x128x128xbf16> to vector<128x128xbf16>
    %cst_39 = arith.constant dense<0.000000e+00> : vector<64x128xf32>
    %34 = tpu.matmul %31, %33, %cst_39 {dimension_numbers = #tpu.dot_dimension_numbers<[1], [0], [0], [1], [0, 0, 1, 1], [], []>} : vector<64x128xbf16>, vector<128x128xbf16>, vector<64x128xf32> -> vector<64x128xf32>
    %35 = arith.addf %28, %34 : vector<64x128xf32>
    %c0_40 = arith.constant 0 : index
    %c0_41 = arith.constant 0 : index
    %c1_42 = arith.constant 1 : index
    %c2_43 = arith.constant 2 : index
    %c0_44 = arith.constant 0 : index
    %36 = vector.load %arg2[%c0_40, %c0_41, %c1_42, %c2_43, %c0_44] : memref<1x1x10x10x128xbf16, #tpu.memory_space<vmem>>, vector<1x1x8x8x128xbf16>
    %37 = vector.shape_cast %36 : vector<1x1x8x8x128xbf16> to vector<8x8x128xbf16>
    %38 = vector.shape_cast %37 : vector<8x8x128xbf16> to vector<64x128xbf16>
    %c5 = arith.constant 5 : index
    %c0_45 = arith.constant 0 : index
    %c0_46 = arith.constant 0 : index
    %39 = vector.load %arg5[%c5, %c0_45, %c0_46] : memref<27x128x128xbf16, #tpu.memory_space<vmem>>, vector<1x128x128xbf16>
    %40 = vector.shape_cast %39 : vector<1x128x128xbf16> to vector<128x128xbf16>
    %cst_47 = arith.constant dense<0.000000e+00> : vector<64x128xf32>
    %41 = tpu.matmul %38, %40, %cst_47 {dimension_numbers = #tpu.dot_dimension_numbers<[1], [0], [0], [1], [0, 0, 1, 1], [], []>} : vector<64x128xbf16>, vector<128x128xbf16>, vector<64x128xf32> -> vector<64x128xf32>
    %42 = arith.addf %35, %41 : vector<64x128xf32>
    %c0_48 = arith.constant 0 : index
    %c0_49 = arith.constant 0 : index
    %c2_50 = arith.constant 2 : index
    %c0_51 = arith.constant 0 : index
    %c0_52 = arith.constant 0 : index
    %43 = vector.load %arg2[%c0_48, %c0_49, %c2_50, %c0_51, %c0_52] : memref<1x1x10x10x128xbf16, #tpu.memory_space<vmem>>, vector<1x1x8x8x128xbf16>
    %44 = vector.shape_cast %43 : vector<1x1x8x8x128xbf16> to vector<8x8x128xbf16>
    %45 = vector.shape_cast %44 : vector<8x8x128xbf16> to vector<64x128xbf16>
    %c6 = arith.constant 6 : index
    %c0_53 = arith.constant 0 : index
    %c0_54 = arith.constant 0 : index
    %46 = vector.load %arg5[%c6, %c0_53, %c0_54] : memref<27x128x128xbf16, #tpu.memory_space<vmem>>, vector<1x128x128xbf16>
    %47 = vector.shape_cast %46 : vector<1x128x128xbf16> to vector<128x128xbf16>
    %cst_55 = arith.constant dense<0.000000e+00> : vector<64x128xf32>
    %48 = tpu.matmul %45, %47, %cst_55 {dimension_numbers = #tpu.dot_dimension_numbers<[1], [0], [0], [1], [0, 0, 1, 1], [], []>} : vector<64x128xbf16>, vector<128x128xbf16>, vector<64x128xf32> -> vector<64x128xf32>
    %49 = arith.addf %42, %48 : vector<64x128xf32>
    %c0_56 = arith.constant 0 : index
    %c0_57 = arith.constant 0 : index
    %c2_58 = arith.constant 2 : index
    %c1_59 = arith.constant 1 : index
    %c0_60 = arith.constant 0 : index
    %50 = vector.load %arg2[%c0_56, %c0_57, %c2_58, %c1_59, %c0_60] : memref<1x1x10x10x128xbf16, #tpu.memory_space<vmem>>, vector<1x1x8x8x128xbf16>
    %51 = vector.shape_cast %50 : vector<1x1x8x8x128xbf16> to vector<8x8x128xbf16>
    %52 = vector.shape_cast %51 : vector<8x8x128xbf16> to vector<64x128xbf16>
    %c7 = arith.constant 7 : index
    %c0_61 = arith.constant 0 : index
    %c0_62 = arith.constant 0 : index
    %53 = vector.load %arg5[%c7, %c0_61, %c0_62] : memref<27x128x128xbf16, #tpu.memory_space<vmem>>, vector<1x128x128xbf16>
    %54 = vector.shape_cast %53 : vector<1x128x128xbf16> to vector<128x128xbf16>
    %cst_63 = arith.constant dense<0.000000e+00> : vector<64x128xf32>
    %55 = tpu.matmul %52, %54, %cst_63 {dimension_numbers = #tpu.dot_dimension_numbers<[1], [0], [0], [1], [0, 0, 1, 1], [], []>} : vector<64x128xbf16>, vector<128x128xbf16>, vector<64x128xf32> -> vector<64x128xf32>
    %56 = arith.addf %49, %55 : vector<64x128xf32>
    %c0_64 = arith.constant 0 : index
    %c0_65 = arith.constant 0 : index
    %c2_66 = arith.constant 2 : index
    %c2_67 = arith.constant 2 : index
    %c0_68 = arith.constant 0 : index
    %57 = vector.load %arg2[%c0_64, %c0_65, %c2_66, %c2_67, %c0_68] : memref<1x1x10x10x128xbf16, #tpu.memory_space<vmem>>, vector<1x1x8x8x128xbf16>
    %58 = vector.shape_cast %57 : vector<1x1x8x8x128xbf16> to vector<8x8x128xbf16>
    %59 = vector.shape_cast %58 : vector<8x8x128xbf16> to vector<64x128xbf16>
    %c8 = arith.constant 8 : index
    %c0_69 = arith.constant 0 : index
    %c0_70 = arith.constant 0 : index
    %60 = vector.load %arg5[%c8, %c0_69, %c0_70] : memref<27x128x128xbf16, #tpu.memory_space<vmem>>, vector<1x128x128xbf16>
    %61 = vector.shape_cast %60 : vector<1x128x128xbf16> to vector<128x128xbf16>
    %cst_71 = arith.constant dense<0.000000e+00> : vector<64x128xf32>
    %62 = tpu.matmul %59, %61, %cst_71 {dimension_numbers = #tpu.dot_dimension_numbers<[1], [0], [0], [1], [0, 0, 1, 1], [], []>} : vector<64x128xbf16>, vector<128x128xbf16>, vector<64x128xf32> -> vector<64x128xf32>
    %63 = arith.addf %56, %62 : vector<64x128xf32>
    %c0_72 = arith.constant 0 : index
    %c0_73 = arith.constant 0 : index
    %c0_74 = arith.constant 0 : index
    %c0_75 = arith.constant 0 : index
    %c0_76 = arith.constant 0 : index
    %64 = vector.load %arg3[%c0_72, %c0_73, %c0_74, %c0_75, %c0_76] : memref<1x1x10x10x128xbf16, #tpu.memory_space<vmem>>, vector<1x1x8x8x128xbf16>
    %65 = vector.shape_cast %64 : vector<1x1x8x8x128xbf16> to vector<8x8x128xbf16>
    %66 = vector.shape_cast %65 : vector<8x8x128xbf16> to vector<64x128xbf16>
    %c9 = arith.constant 9 : index
    %c0_77 = arith.constant 0 : index
    %c0_78 = arith.constant 0 : index
    %67 = vector.load %arg5[%c9, %c0_77, %c0_78] : memref<27x128x128xbf16, #tpu.memory_space<vmem>>, vector<1x128x128xbf16>
    %68 = vector.shape_cast %67 : vector<1x128x128xbf16> to vector<128x128xbf16>
    %cst_79 = arith.constant dense<0.000000e+00> : vector<64x128xf32>
    %69 = tpu.matmul %66, %68, %cst_79 {dimension_numbers = #tpu.dot_dimension_numbers<[1], [0], [0], [1], [0, 0, 1, 1], [], []>} : vector<64x128xbf16>, vector<128x128xbf16>, vector<64x128xf32> -> vector<64x128xf32>
    %70 = arith.addf %63, %69 : vector<64x128xf32>
    %c0_80 = arith.constant 0 : index
    %c0_81 = arith.constant 0 : index
    %c0_82 = arith.constant 0 : index
    %c1_83 = arith.constant 1 : index
    %c0_84 = arith.constant 0 : index
    %71 = vector.load %arg3[%c0_80, %c0_81, %c0_82, %c1_83, %c0_84] : memref<1x1x10x10x128xbf16, #tpu.memory_space<vmem>>, vector<1x1x8x8x128xbf16>
    %72 = vector.shape_cast %71 : vector<1x1x8x8x128xbf16> to vector<8x8x128xbf16>
    %73 = vector.shape_cast %72 : vector<8x8x128xbf16> to vector<64x128xbf16>
    %c10 = arith.constant 10 : index
    %c0_85 = arith.constant 0 : index
    %c0_86 = arith.constant 0 : index
    %74 = vector.load %arg5[%c10, %c0_85, %c0_86] : memref<27x128x128xbf16, #tpu.memory_space<vmem>>, vector<1x128x128xbf16>
    %75 = vector.shape_cast %74 : vector<1x128x128xbf16> to vector<128x128xbf16>
    %cst_87 = arith.constant dense<0.000000e+00> : vector<64x128xf32>
    %76 = tpu.matmul %73, %75, %cst_87 {dimension_numbers = #tpu.dot_dimension_numbers<[1], [0], [0], [1], [0, 0, 1, 1], [], []>} : vector<64x128xbf16>, vector<128x128xbf16>, vector<64x128xf32> -> vector<64x128xf32>
    %77 = arith.addf %70, %76 : vector<64x128xf32>
    %c0_88 = arith.constant 0 : index
    %c0_89 = arith.constant 0 : index
    %c0_90 = arith.constant 0 : index
    %c2_91 = arith.constant 2 : index
    %c0_92 = arith.constant 0 : index
    %78 = vector.load %arg3[%c0_88, %c0_89, %c0_90, %c2_91, %c0_92] : memref<1x1x10x10x128xbf16, #tpu.memory_space<vmem>>, vector<1x1x8x8x128xbf16>
    %79 = vector.shape_cast %78 : vector<1x1x8x8x128xbf16> to vector<8x8x128xbf16>
    %80 = vector.shape_cast %79 : vector<8x8x128xbf16> to vector<64x128xbf16>
    %c11 = arith.constant 11 : index
    %c0_93 = arith.constant 0 : index
    %c0_94 = arith.constant 0 : index
    %81 = vector.load %arg5[%c11, %c0_93, %c0_94] : memref<27x128x128xbf16, #tpu.memory_space<vmem>>, vector<1x128x128xbf16>
    %82 = vector.shape_cast %81 : vector<1x128x128xbf16> to vector<128x128xbf16>
    %cst_95 = arith.constant dense<0.000000e+00> : vector<64x128xf32>
    %83 = tpu.matmul %80, %82, %cst_95 {dimension_numbers = #tpu.dot_dimension_numbers<[1], [0], [0], [1], [0, 0, 1, 1], [], []>} : vector<64x128xbf16>, vector<128x128xbf16>, vector<64x128xf32> -> vector<64x128xf32>
    %84 = arith.addf %77, %83 : vector<64x128xf32>
    %c0_96 = arith.constant 0 : index
    %c0_97 = arith.constant 0 : index
    %c1_98 = arith.constant 1 : index
    %c0_99 = arith.constant 0 : index
    %c0_100 = arith.constant 0 : index
    %85 = vector.load %arg3[%c0_96, %c0_97, %c1_98, %c0_99, %c0_100] : memref<1x1x10x10x128xbf16, #tpu.memory_space<vmem>>, vector<1x1x8x8x128xbf16>
    %86 = vector.shape_cast %85 : vector<1x1x8x8x128xbf16> to vector<8x8x128xbf16>
    %87 = vector.shape_cast %86 : vector<8x8x128xbf16> to vector<64x128xbf16>
    %c12 = arith.constant 12 : index
    %c0_101 = arith.constant 0 : index
    %c0_102 = arith.constant 0 : index
    %88 = vector.load %arg5[%c12, %c0_101, %c0_102] : memref<27x128x128xbf16, #tpu.memory_space<vmem>>, vector<1x128x128xbf16>
    %89 = vector.shape_cast %88 : vector<1x128x128xbf16> to vector<128x128xbf16>
    %cst_103 = arith.constant dense<0.000000e+00> : vector<64x128xf32>
    %90 = tpu.matmul %87, %89, %cst_103 {dimension_numbers = #tpu.dot_dimension_numbers<[1], [0], [0], [1], [0, 0, 1, 1], [], []>} : vector<64x128xbf16>, vector<128x128xbf16>, vector<64x128xf32> -> vector<64x128xf32>
    %91 = arith.addf %84, %90 : vector<64x128xf32>
    %c0_104 = arith.constant 0 : index
    %c0_105 = arith.constant 0 : index
    %c1_106 = arith.constant 1 : index
    %c1_107 = arith.constant 1 : index
    %c0_108 = arith.constant 0 : index
    %92 = vector.load %arg3[%c0_104, %c0_105, %c1_106, %c1_107, %c0_108] : memref<1x1x10x10x128xbf16, #tpu.memory_space<vmem>>, vector<1x1x8x8x128xbf16>
    %93 = vector.shape_cast %92 : vector<1x1x8x8x128xbf16> to vector<8x8x128xbf16>
    %94 = vector.shape_cast %93 : vector<8x8x128xbf16> to vector<64x128xbf16>
    %c13 = arith.constant 13 : index
    %c0_109 = arith.constant 0 : index
    %c0_110 = arith.constant 0 : index
    %95 = vector.load %arg5[%c13, %c0_109, %c0_110] : memref<27x128x128xbf16, #tpu.memory_space<vmem>>, vector<1x128x128xbf16>
    %96 = vector.shape_cast %95 : vector<1x128x128xbf16> to vector<128x128xbf16>
    %cst_111 = arith.constant dense<0.000000e+00> : vector<64x128xf32>
    %97 = tpu.matmul %94, %96, %cst_111 {dimension_numbers = #tpu.dot_dimension_numbers<[1], [0], [0], [1], [0, 0, 1, 1], [], []>} : vector<64x128xbf16>, vector<128x128xbf16>, vector<64x128xf32> -> vector<64x128xf32>
    %98 = arith.addf %91, %97 : vector<64x128xf32>
    %c0_112 = arith.constant 0 : index
    %c0_113 = arith.constant 0 : index
    %c1_114 = arith.constant 1 : index
    %c2_115 = arith.constant 2 : index
    %c0_116 = arith.constant 0 : index
    %99 = vector.load %arg3[%c0_112, %c0_113, %c1_114, %c2_115, %c0_116] : memref<1x1x10x10x128xbf16, #tpu.memory_space<vmem>>, vector<1x1x8x8x128xbf16>
    %100 = vector.shape_cast %99 : vector<1x1x8x8x128xbf16> to vector<8x8x128xbf16>
    %101 = vector.shape_cast %100 : vector<8x8x128xbf16> to vector<64x128xbf16>
    %c14 = arith.constant 14 : index
    %c0_117 = arith.constant 0 : index
    %c0_118 = arith.constant 0 : index
    %102 = vector.load %arg5[%c14, %c0_117, %c0_118] : memref<27x128x128xbf16, #tpu.memory_space<vmem>>, vector<1x128x128xbf16>
    %103 = vector.shape_cast %102 : vector<1x128x128xbf16> to vector<128x128xbf16>
    %cst_119 = arith.constant dense<0.000000e+00> : vector<64x128xf32>
    %104 = tpu.matmul %101, %103, %cst_119 {dimension_numbers = #tpu.dot_dimension_numbers<[1], [0], [0], [1], [0, 0, 1, 1], [], []>} : vector<64x128xbf16>, vector<128x128xbf16>, vector<64x128xf32> -> vector<64x128xf32>
    %105 = arith.addf %98, %104 : vector<64x128xf32>
    %c0_120 = arith.constant 0 : index
    %c0_121 = arith.constant 0 : index
    %c2_122 = arith.constant 2 : index
    %c0_123 = arith.constant 0 : index
    %c0_124 = arith.constant 0 : index
    %106 = vector.load %arg3[%c0_120, %c0_121, %c2_122, %c0_123, %c0_124] : memref<1x1x10x10x128xbf16, #tpu.memory_space<vmem>>, vector<1x1x8x8x128xbf16>
    %107 = vector.shape_cast %106 : vector<1x1x8x8x128xbf16> to vector<8x8x128xbf16>
    %108 = vector.shape_cast %107 : vector<8x8x128xbf16> to vector<64x128xbf16>
    %c15 = arith.constant 15 : index
    %c0_125 = arith.constant 0 : index
    %c0_126 = arith.constant 0 : index
    %109 = vector.load %arg5[%c15, %c0_125, %c0_126] : memref<27x128x128xbf16, #tpu.memory_space<vmem>>, vector<1x128x128xbf16>
    %110 = vector.shape_cast %109 : vector<1x128x128xbf16> to vector<128x128xbf16>
    %cst_127 = arith.constant dense<0.000000e+00> : vector<64x128xf32>
    %111 = tpu.matmul %108, %110, %cst_127 {dimension_numbers = #tpu.dot_dimension_numbers<[1], [0], [0], [1], [0, 0, 1, 1], [], []>} : vector<64x128xbf16>, vector<128x128xbf16>, vector<64x128xf32> -> vector<64x128xf32>
    %112 = arith.addf %105, %111 : vector<64x128xf32>
    %c0_128 = arith.constant 0 : index
    %c0_129 = arith.constant 0 : index
    %c2_130 = arith.constant 2 : index
    %c1_131 = arith.constant 1 : index
    %c0_132 = arith.constant 0 : index
    %113 = vector.load %arg3[%c0_128, %c0_129, %c2_130, %c1_131, %c0_132] : memref<1x1x10x10x128xbf16, #tpu.memory_space<vmem>>, vector<1x1x8x8x128xbf16>
    %114 = vector.shape_cast %113 : vector<1x1x8x8x128xbf16> to vector<8x8x128xbf16>
    %115 = vector.shape_cast %114 : vector<8x8x128xbf16> to vector<64x128xbf16>
    %c16 = arith.constant 16 : index
    %c0_133 = arith.constant 0 : index
    %c0_134 = arith.constant 0 : index
    %116 = vector.load %arg5[%c16, %c0_133, %c0_134] : memref<27x128x128xbf16, #tpu.memory_space<vmem>>, vector<1x128x128xbf16>
    %117 = vector.shape_cast %116 : vector<1x128x128xbf16> to vector<128x128xbf16>
    %cst_135 = arith.constant dense<0.000000e+00> : vector<64x128xf32>
    %118 = tpu.matmul %115, %117, %cst_135 {dimension_numbers = #tpu.dot_dimension_numbers<[1], [0], [0], [1], [0, 0, 1, 1], [], []>} : vector<64x128xbf16>, vector<128x128xbf16>, vector<64x128xf32> -> vector<64x128xf32>
    %119 = arith.addf %112, %118 : vector<64x128xf32>
    %c0_136 = arith.constant 0 : index
    %c0_137 = arith.constant 0 : index
    %c2_138 = arith.constant 2 : index
    %c2_139 = arith.constant 2 : index
    %c0_140 = arith.constant 0 : index
    %120 = vector.load %arg3[%c0_136, %c0_137, %c2_138, %c2_139, %c0_140] : memref<1x1x10x10x128xbf16, #tpu.memory_space<vmem>>, vector<1x1x8x8x128xbf16>
    %121 = vector.shape_cast %120 : vector<1x1x8x8x128xbf16> to vector<8x8x128xbf16>
    %122 = vector.shape_cast %121 : vector<8x8x128xbf16> to vector<64x128xbf16>
    %c17 = arith.constant 17 : index
    %c0_141 = arith.constant 0 : index
    %c0_142 = arith.constant 0 : index
    %123 = vector.load %arg5[%c17, %c0_141, %c0_142] : memref<27x128x128xbf16, #tpu.memory_space<vmem>>, vector<1x128x128xbf16>
    %124 = vector.shape_cast %123 : vector<1x128x128xbf16> to vector<128x128xbf16>
    %cst_143 = arith.constant dense<0.000000e+00> : vector<64x128xf32>
    %125 = tpu.matmul %122, %124, %cst_143 {dimension_numbers = #tpu.dot_dimension_numbers<[1], [0], [0], [1], [0, 0, 1, 1], [], []>} : vector<64x128xbf16>, vector<128x128xbf16>, vector<64x128xf32> -> vector<64x128xf32>
    %126 = arith.addf %119, %125 : vector<64x128xf32>
    %c0_144 = arith.constant 0 : index
    %c0_145 = arith.constant 0 : index
    %c0_146 = arith.constant 0 : index
    %c0_147 = arith.constant 0 : index
    %c0_148 = arith.constant 0 : index
    %127 = vector.load %arg4[%c0_144, %c0_145, %c0_146, %c0_147, %c0_148] : memref<1x1x10x10x128xbf16, #tpu.memory_space<vmem>>, vector<1x1x8x8x128xbf16>
    %128 = vector.shape_cast %127 : vector<1x1x8x8x128xbf16> to vector<8x8x128xbf16>
    %129 = vector.shape_cast %128 : vector<8x8x128xbf16> to vector<64x128xbf16>
    %c18 = arith.constant 18 : index
    %c0_149 = arith.constant 0 : index
    %c0_150 = arith.constant 0 : index
    %130 = vector.load %arg5[%c18, %c0_149, %c0_150] : memref<27x128x128xbf16, #tpu.memory_space<vmem>>, vector<1x128x128xbf16>
    %131 = vector.shape_cast %130 : vector<1x128x128xbf16> to vector<128x128xbf16>
    %cst_151 = arith.constant dense<0.000000e+00> : vector<64x128xf32>
    %132 = tpu.matmul %129, %131, %cst_151 {dimension_numbers = #tpu.dot_dimension_numbers<[1], [0], [0], [1], [0, 0, 1, 1], [], []>} : vector<64x128xbf16>, vector<128x128xbf16>, vector<64x128xf32> -> vector<64x128xf32>
    %133 = arith.addf %126, %132 : vector<64x128xf32>
    %c0_152 = arith.constant 0 : index
    %c0_153 = arith.constant 0 : index
    %c0_154 = arith.constant 0 : index
    %c1_155 = arith.constant 1 : index
    %c0_156 = arith.constant 0 : index
    %134 = vector.load %arg4[%c0_152, %c0_153, %c0_154, %c1_155, %c0_156] : memref<1x1x10x10x128xbf16, #tpu.memory_space<vmem>>, vector<1x1x8x8x128xbf16>
    %135 = vector.shape_cast %134 : vector<1x1x8x8x128xbf16> to vector<8x8x128xbf16>
    %136 = vector.shape_cast %135 : vector<8x8x128xbf16> to vector<64x128xbf16>
    %c19 = arith.constant 19 : index
    %c0_157 = arith.constant 0 : index
    %c0_158 = arith.constant 0 : index
    %137 = vector.load %arg5[%c19, %c0_157, %c0_158] : memref<27x128x128xbf16, #tpu.memory_space<vmem>>, vector<1x128x128xbf16>
    %138 = vector.shape_cast %137 : vector<1x128x128xbf16> to vector<128x128xbf16>
    %cst_159 = arith.constant dense<0.000000e+00> : vector<64x128xf32>
    %139 = tpu.matmul %136, %138, %cst_159 {dimension_numbers = #tpu.dot_dimension_numbers<[1], [0], [0], [1], [0, 0, 1, 1], [], []>} : vector<64x128xbf16>, vector<128x128xbf16>, vector<64x128xf32> -> vector<64x128xf32>
    %140 = arith.addf %133, %139 : vector<64x128xf32>
    %c0_160 = arith.constant 0 : index
    %c0_161 = arith.constant 0 : index
    %c0_162 = arith.constant 0 : index
    %c2_163 = arith.constant 2 : index
    %c0_164 = arith.constant 0 : index
    %141 = vector.load %arg4[%c0_160, %c0_161, %c0_162, %c2_163, %c0_164] : memref<1x1x10x10x128xbf16, #tpu.memory_space<vmem>>, vector<1x1x8x8x128xbf16>
    %142 = vector.shape_cast %141 : vector<1x1x8x8x128xbf16> to vector<8x8x128xbf16>
    %143 = vector.shape_cast %142 : vector<8x8x128xbf16> to vector<64x128xbf16>
    %c20 = arith.constant 20 : index
    %c0_165 = arith.constant 0 : index
    %c0_166 = arith.constant 0 : index
    %144 = vector.load %arg5[%c20, %c0_165, %c0_166] : memref<27x128x128xbf16, #tpu.memory_space<vmem>>, vector<1x128x128xbf16>
    %145 = vector.shape_cast %144 : vector<1x128x128xbf16> to vector<128x128xbf16>
    %cst_167 = arith.constant dense<0.000000e+00> : vector<64x128xf32>
    %146 = tpu.matmul %143, %145, %cst_167 {dimension_numbers = #tpu.dot_dimension_numbers<[1], [0], [0], [1], [0, 0, 1, 1], [], []>} : vector<64x128xbf16>, vector<128x128xbf16>, vector<64x128xf32> -> vector<64x128xf32>
    %147 = arith.addf %140, %146 : vector<64x128xf32>
    %c0_168 = arith.constant 0 : index
    %c0_169 = arith.constant 0 : index
    %c1_170 = arith.constant 1 : index
    %c0_171 = arith.constant 0 : index
    %c0_172 = arith.constant 0 : index
    %148 = vector.load %arg4[%c0_168, %c0_169, %c1_170, %c0_171, %c0_172] : memref<1x1x10x10x128xbf16, #tpu.memory_space<vmem>>, vector<1x1x8x8x128xbf16>
    %149 = vector.shape_cast %148 : vector<1x1x8x8x128xbf16> to vector<8x8x128xbf16>
    %150 = vector.shape_cast %149 : vector<8x8x128xbf16> to vector<64x128xbf16>
    %c21 = arith.constant 21 : index
    %c0_173 = arith.constant 0 : index
    %c0_174 = arith.constant 0 : index
    %151 = vector.load %arg5[%c21, %c0_173, %c0_174] : memref<27x128x128xbf16, #tpu.memory_space<vmem>>, vector<1x128x128xbf16>
    %152 = vector.shape_cast %151 : vector<1x128x128xbf16> to vector<128x128xbf16>
    %cst_175 = arith.constant dense<0.000000e+00> : vector<64x128xf32>
    %153 = tpu.matmul %150, %152, %cst_175 {dimension_numbers = #tpu.dot_dimension_numbers<[1], [0], [0], [1], [0, 0, 1, 1], [], []>} : vector<64x128xbf16>, vector<128x128xbf16>, vector<64x128xf32> -> vector<64x128xf32>
    %154 = arith.addf %147, %153 : vector<64x128xf32>
    %c0_176 = arith.constant 0 : index
    %c0_177 = arith.constant 0 : index
    %c1_178 = arith.constant 1 : index
    %c1_179 = arith.constant 1 : index
    %c0_180 = arith.constant 0 : index
    %155 = vector.load %arg4[%c0_176, %c0_177, %c1_178, %c1_179, %c0_180] : memref<1x1x10x10x128xbf16, #tpu.memory_space<vmem>>, vector<1x1x8x8x128xbf16>
    %156 = vector.shape_cast %155 : vector<1x1x8x8x128xbf16> to vector<8x8x128xbf16>
    %157 = vector.shape_cast %156 : vector<8x8x128xbf16> to vector<64x128xbf16>
    %c22 = arith.constant 22 : index
    %c0_181 = arith.constant 0 : index
    %c0_182 = arith.constant 0 : index
    %158 = vector.load %arg5[%c22, %c0_181, %c0_182] : memref<27x128x128xbf16, #tpu.memory_space<vmem>>, vector<1x128x128xbf16>
    %159 = vector.shape_cast %158 : vector<1x128x128xbf16> to vector<128x128xbf16>
    %cst_183 = arith.constant dense<0.000000e+00> : vector<64x128xf32>
    %160 = tpu.matmul %157, %159, %cst_183 {dimension_numbers = #tpu.dot_dimension_numbers<[1], [0], [0], [1], [0, 0, 1, 1], [], []>} : vector<64x128xbf16>, vector<128x128xbf16>, vector<64x128xf32> -> vector<64x128xf32>
    %161 = arith.addf %154, %160 : vector<64x128xf32>
    %c0_184 = arith.constant 0 : index
    %c0_185 = arith.constant 0 : index
    %c1_186 = arith.constant 1 : index
    %c2_187 = arith.constant 2 : index
    %c0_188 = arith.constant 0 : index
    %162 = vector.load %arg4[%c0_184, %c0_185, %c1_186, %c2_187, %c0_188] : memref<1x1x10x10x128xbf16, #tpu.memory_space<vmem>>, vector<1x1x8x8x128xbf16>
    %163 = vector.shape_cast %162 : vector<1x1x8x8x128xbf16> to vector<8x8x128xbf16>
    %164 = vector.shape_cast %163 : vector<8x8x128xbf16> to vector<64x128xbf16>
    %c23 = arith.constant 23 : index
    %c0_189 = arith.constant 0 : index
    %c0_190 = arith.constant 0 : index
    %165 = vector.load %arg5[%c23, %c0_189, %c0_190] : memref<27x128x128xbf16, #tpu.memory_space<vmem>>, vector<1x128x128xbf16>
    %166 = vector.shape_cast %165 : vector<1x128x128xbf16> to vector<128x128xbf16>
    %cst_191 = arith.constant dense<0.000000e+00> : vector<64x128xf32>
    %167 = tpu.matmul %164, %166, %cst_191 {dimension_numbers = #tpu.dot_dimension_numbers<[1], [0], [0], [1], [0, 0, 1, 1], [], []>} : vector<64x128xbf16>, vector<128x128xbf16>, vector<64x128xf32> -> vector<64x128xf32>
    %168 = arith.addf %161, %167 : vector<64x128xf32>
    %c0_192 = arith.constant 0 : index
    %c0_193 = arith.constant 0 : index
    %c2_194 = arith.constant 2 : index
    %c0_195 = arith.constant 0 : index
    %c0_196 = arith.constant 0 : index
    %169 = vector.load %arg4[%c0_192, %c0_193, %c2_194, %c0_195, %c0_196] : memref<1x1x10x10x128xbf16, #tpu.memory_space<vmem>>, vector<1x1x8x8x128xbf16>
    %170 = vector.shape_cast %169 : vector<1x1x8x8x128xbf16> to vector<8x8x128xbf16>
    %171 = vector.shape_cast %170 : vector<8x8x128xbf16> to vector<64x128xbf16>
    %c24 = arith.constant 24 : index
    %c0_197 = arith.constant 0 : index
    %c0_198 = arith.constant 0 : index
    %172 = vector.load %arg5[%c24, %c0_197, %c0_198] : memref<27x128x128xbf16, #tpu.memory_space<vmem>>, vector<1x128x128xbf16>
    %173 = vector.shape_cast %172 : vector<1x128x128xbf16> to vector<128x128xbf16>
    %cst_199 = arith.constant dense<0.000000e+00> : vector<64x128xf32>
    %174 = tpu.matmul %171, %173, %cst_199 {dimension_numbers = #tpu.dot_dimension_numbers<[1], [0], [0], [1], [0, 0, 1, 1], [], []>} : vector<64x128xbf16>, vector<128x128xbf16>, vector<64x128xf32> -> vector<64x128xf32>
    %175 = arith.addf %168, %174 : vector<64x128xf32>
    %c0_200 = arith.constant 0 : index
    %c0_201 = arith.constant 0 : index
    %c2_202 = arith.constant 2 : index
    %c1_203 = arith.constant 1 : index
    %c0_204 = arith.constant 0 : index
    %176 = vector.load %arg4[%c0_200, %c0_201, %c2_202, %c1_203, %c0_204] : memref<1x1x10x10x128xbf16, #tpu.memory_space<vmem>>, vector<1x1x8x8x128xbf16>
    %177 = vector.shape_cast %176 : vector<1x1x8x8x128xbf16> to vector<8x8x128xbf16>
    %178 = vector.shape_cast %177 : vector<8x8x128xbf16> to vector<64x128xbf16>
    %c25 = arith.constant 25 : index
    %c0_205 = arith.constant 0 : index
    %c0_206 = arith.constant 0 : index
    %179 = vector.load %arg5[%c25, %c0_205, %c0_206] : memref<27x128x128xbf16, #tpu.memory_space<vmem>>, vector<1x128x128xbf16>
    %180 = vector.shape_cast %179 : vector<1x128x128xbf16> to vector<128x128xbf16>
    %cst_207 = arith.constant dense<0.000000e+00> : vector<64x128xf32>
    %181 = tpu.matmul %178, %180, %cst_207 {dimension_numbers = #tpu.dot_dimension_numbers<[1], [0], [0], [1], [0, 0, 1, 1], [], []>} : vector<64x128xbf16>, vector<128x128xbf16>, vector<64x128xf32> -> vector<64x128xf32>
    %182 = arith.addf %175, %181 : vector<64x128xf32>
    %c0_208 = arith.constant 0 : index
    %c0_209 = arith.constant 0 : index
    %c2_210 = arith.constant 2 : index
    %c2_211 = arith.constant 2 : index
    %c0_212 = arith.constant 0 : index
    %183 = vector.load %arg4[%c0_208, %c0_209, %c2_210, %c2_211, %c0_212] : memref<1x1x10x10x128xbf16, #tpu.memory_space<vmem>>, vector<1x1x8x8x128xbf16>
    %184 = vector.shape_cast %183 : vector<1x1x8x8x128xbf16> to vector<8x8x128xbf16>
    %185 = vector.shape_cast %184 : vector<8x8x128xbf16> to vector<64x128xbf16>
    %c26 = arith.constant 26 : index
    %c0_213 = arith.constant 0 : index
    %c0_214 = arith.constant 0 : index
    %186 = vector.load %arg5[%c26, %c0_213, %c0_214] : memref<27x128x128xbf16, #tpu.memory_space<vmem>>, vector<1x128x128xbf16>
    %187 = vector.shape_cast %186 : vector<1x128x128xbf16> to vector<128x128xbf16>
    %cst_215 = arith.constant dense<0.000000e+00> : vector<64x128xf32>
    %188 = tpu.matmul %185, %187, %cst_215 {dimension_numbers = #tpu.dot_dimension_numbers<[1], [0], [0], [1], [0, 0, 1, 1], [], []>} : vector<64x128xbf16>, vector<128x128xbf16>, vector<64x128xf32> -> vector<64x128xf32>
    %189 = arith.addf %182, %188 : vector<64x128xf32>
    %c0_216 = arith.constant 0 : index
    %c0_217 = arith.constant 0 : index
    %c0_218 = arith.constant 0 : index
    %c0_219 = arith.constant 0 : index
    %190 = vector.load %arg6[%c0_216, %c0_217, %c0_218, %c0_219] : memref<1x1x64x128xf32, #tpu.memory_space<vmem>>, vector<1x1x64x128xf32>
    %191 = vector.shape_cast %190 : vector<1x1x64x128xf32> to vector<64x128xf32>
    %192 = vector.shape_cast %189 : vector<64x128xf32> to vector<1x1x64x128xf32>
    tpu.vector_store %arg6[%c0_216, %c0_217, %c0_218, %c0_219], %192 {strides = array<i32>} : memref<1x1x64x128xf32, #tpu.memory_space<vmem>>, vector<1x1x64x128xf32>,
    %cst_220 = arith.constant dense<0.000000e+00> : vector<128xf32>
    %193 = vector.multi_reduction <add>, %189, %cst_220 [0] : vector<64x128xf32> to vector<128xf32>
    %194 = vector.shape_cast %193 : vector<128xf32> to vector<1x128xf32>
    %195 = arith.mulf %189, %189 : vector<64x128xf32>
    %cst_221 = arith.constant dense<0.000000e+00> : vector<128xf32>
    %196 = vector.multi_reduction <add>, %195, %cst_221 [0] : vector<64x128xf32> to vector<128xf32>
    %197 = vector.shape_cast %196 : vector<128xf32> to vector<1x128xf32>
    %198 = tpu.concatenate %194, %197 in 0 : vector<1x128xf32>, vector<1x128xf32> -> vector<2x128xf32>
    %c0_222 = arith.constant 0 : index
    %c0_223 = arith.constant 0 : index
    %c0_224 = arith.constant 0 : index
    %c0_225 = arith.constant 0 : index
    %199 = vector.load %arg7[%c0_222, %c0_223, %c0_224, %c0_225] : memref<1x1x2x128xf32, #tpu.memory_space<vmem>>, vector<1x1x2x128xf32>
    %200 = vector.shape_cast %199 : vector<1x1x2x128xf32> to vector<2x128xf32>
    %201 = vector.shape_cast %198 : vector<2x128xf32> to vector<1x1x2x128xf32>
    tpu.vector_store %arg7[%c0_222, %c0_223, %c0_224, %c0_225], %201 {strides = array<i32>} : memref<1x1x2x128xf32, #tpu.memory_space<vmem>>, vector<1x1x2x128xf32>,
    return
  }
  func.func @transform_0(%arg0: i32, %arg1: i32) -> (i32, i32, i32, i32, i32) {
    %c0_i32 = arith.constant 0 : i32
    %c0_i32_0 = arith.constant 0 : i32
    %c0_i32_1 = arith.constant 0 : i32
    %c0_i32_2 = arith.constant 0 : i32
    return %arg0, %arg1, %c0_i32, %c0_i32_0, %c0_i32_1 : i32, i32, i32, i32, i32
  }
  func.func @transform_1(%arg0: i32, %arg1: i32) -> (i32, i32, i32, i32, i32) {
    %c1_i32 = arith.constant 1 : i32
    %0 = arith.addi %arg1, %c1_i32 : i32
    %c0_i32 = arith.constant 0 : i32
    %c0_i32_0 = arith.constant 0 : i32
    %c0_i32_1 = arith.constant 0 : i32
    %c0_i32_2 = arith.constant 0 : i32
    return %arg0, %0, %c0_i32, %c0_i32_0, %c0_i32_1 : i32, i32, i32, i32, i32
  }
  func.func @transform_2(%arg0: i32, %arg1: i32) -> (i32, i32, i32, i32, i32) {
    %c2_i32 = arith.constant 2 : i32
    %0 = arith.addi %arg1, %c2_i32 : i32
    %c0_i32 = arith.constant 0 : i32
    %c0_i32_0 = arith.constant 0 : i32
    %c0_i32_1 = arith.constant 0 : i32
    %c0_i32_2 = arith.constant 0 : i32
    return %arg0, %0, %c0_i32, %c0_i32_0, %c0_i32_1 : i32, i32, i32, i32, i32
  }
  func.func @transform_3(%arg0: i32, %arg1: i32) -> (i32, i32, i32) {
    %c0_i32 = arith.constant 0 : i32
    %c0_i32_0 = arith.constant 0 : i32
    %c0_i32_1 = arith.constant 0 : i32
    %c0_i32_2 = arith.constant 0 : i32
    return %c0_i32, %c0_i32_0, %c0_i32_1 : i32, i32, i32
  }
  func.func @transform_4(%arg0: i32, %arg1: i32) -> (i32, i32, i32, i32) {
    %c0_i32 = arith.constant 0 : i32
    %c0_i32_0 = arith.constant 0 : i32
    %c0_i32_1 = arith.constant 0 : i32
    return %arg0, %arg1, %c0_i32, %c0_i32_0 : i32, i32, i32, i32
  }
  func.func @transform_5(%arg0: i32, %arg1: i32) -> (i32, i32, i32, i32) {
    %c0_i32 = arith.constant 0 : i32
    %c0_i32_0 = arith.constant 0 : i32
    %c0_i32_1 = arith.constant 0 : i32
    return %arg0, %arg1, %c0_i32, %c0_i32_0 : i32, i32, i32, i32
  }
}

module attributes {stable_mosaic.version = 11 : i64} {
  func.func @_bn_relu_kernel(%arg0: i32, %arg1: memref<1024x128xf32, #tpu.memory_space<vmem>>, %arg2: memref<1x128xf32, #tpu.memory_space<vmem>>, %arg3: memref<1x128xf32, #tpu.memory_space<vmem>>, %arg4: memref<1024x128xbf16, #tpu.memory_space<vmem>>) attributes {dimension_semantics = [#tpu.dimension_semantics<parallel>], iteration_bounds = array<i64: 1>, scalar_prefetch = 0 : i64, scratch_operands = 0 : i64, tpu.core_type = #tpu.core_type<tc>, window_params = [{transform_indices = @transform_0, window_bounds = array<i64: 1024, 128>}, {pipeline_mode = #tpu.pipeline_mode<synchronous>, transform_indices = @transform_1, window_bounds = array<i64: 1, 128>}, {pipeline_mode = #tpu.pipeline_mode<synchronous>, transform_indices = @transform_2, window_bounds = array<i64: 1, 128>}, {transform_indices = @transform_3, window_bounds = array<i64: 1024, 128>}]} {
    %c0 = arith.constant 0 : index
    %c0_0 = arith.constant 0 : index
    %0 = vector.load %arg1[%c0, %c0_0] : memref<1024x128xf32, #tpu.memory_space<vmem>>, vector<1024x128xf32>
    %c0_1 = arith.constant 0 : index
    %c0_2 = arith.constant 0 : index
    %1 = vector.load %arg2[%c0_1, %c0_2] : memref<1x128xf32, #tpu.memory_space<vmem>>, vector<1x128xf32>
    %2 = vector.broadcast %1 : vector<1x128xf32> to vector<1024x128xf32>
    %3 = arith.mulf %0, %2 : vector<1024x128xf32>
    %c0_3 = arith.constant 0 : index
    %c0_4 = arith.constant 0 : index
    %4 = vector.load %arg3[%c0_3, %c0_4] : memref<1x128xf32, #tpu.memory_space<vmem>>, vector<1x128xf32>
    %5 = vector.broadcast %4 : vector<1x128xf32> to vector<1024x128xf32>
    %6 = arith.addf %3, %5 : vector<1024x128xf32>
    %cst = arith.constant 0.000000e+00 : f32
    %7 = vector.broadcast %cst : f32 to vector<1024x128xf32>
    %8 = arith.maximumf %6, %7 : vector<1024x128xf32>
    %9 = arith.truncf %8 : vector<1024x128xf32> to vector<1024x128xbf16>
    %c0_5 = arith.constant 0 : index
    %c0_6 = arith.constant 0 : index
    %10 = vector.load %arg4[%c0_5, %c0_6] : memref<1024x128xbf16, #tpu.memory_space<vmem>>, vector<1024x128xbf16>
    tpu.vector_store %arg4[%c0_5, %c0_6], %9 {strides = array<i32>} : memref<1024x128xbf16, #tpu.memory_space<vmem>>, vector<1024x128xbf16>,
    return
  }
  func.func @transform_0(%arg0: i32) -> (i32, i32) {
    %c0_i32 = arith.constant 0 : i32
    %c0_i32_0 = arith.constant 0 : i32
    return %arg0, %c0_i32 : i32, i32
  }
  func.func @transform_1(%arg0: i32) -> (i32, i32) {
    %c0_i32 = arith.constant 0 : i32
    %c0_i32_0 = arith.constant 0 : i32
    %c0_i32_1 = arith.constant 0 : i32
    return %c0_i32, %c0_i32_0 : i32, i32
  }
  func.func @transform_2(%arg0: i32) -> (i32, i32) {
    %c0_i32 = arith.constant 0 : i32
    %c0_i32_0 = arith.constant 0 : i32
    %c0_i32_1 = arith.constant 0 : i32
    return %c0_i32, %c0_i32_0 : i32, i32
  }
  func.func @transform_3(%arg0: i32) -> (i32, i32) {
    %c0_i32 = arith.constant 0 : i32
    %c0_i32_0 = arith.constant 0 : i32
    return %arg0, %c0_i32 : i32, i32
  }
}

module attributes {stable_mosaic.version = 11 : i64} {
  func.func @_bn_relu_kernel(%arg0: i32, %arg1: memref<1024x128xf32, #tpu.memory_space<vmem>>, %arg2: memref<1x128xf32, #tpu.memory_space<vmem>>, %arg3: memref<1x128xf32, #tpu.memory_space<vmem>>, %arg4: memref<1024x128xf32, #tpu.memory_space<vmem>>) attributes {dimension_semantics = [#tpu.dimension_semantics<parallel>], iteration_bounds = array<i64: 1>, scalar_prefetch = 0 : i64, scratch_operands = 0 : i64, tpu.core_type = #tpu.core_type<tc>, window_params = [{transform_indices = @transform_0, window_bounds = array<i64: 1024, 128>}, {pipeline_mode = #tpu.pipeline_mode<synchronous>, transform_indices = @transform_1, window_bounds = array<i64: 1, 128>}, {pipeline_mode = #tpu.pipeline_mode<synchronous>, transform_indices = @transform_2, window_bounds = array<i64: 1, 128>}, {transform_indices = @transform_3, window_bounds = array<i64: 1024, 128>}]} {
    %c0 = arith.constant 0 : index
    %c0_0 = arith.constant 0 : index
    %0 = vector.load %arg1[%c0, %c0_0] : memref<1024x128xf32, #tpu.memory_space<vmem>>, vector<1024x128xf32>
    %c0_1 = arith.constant 0 : index
    %c0_2 = arith.constant 0 : index
    %1 = vector.load %arg2[%c0_1, %c0_2] : memref<1x128xf32, #tpu.memory_space<vmem>>, vector<1x128xf32>
    %2 = vector.broadcast %1 : vector<1x128xf32> to vector<1024x128xf32>
    %3 = arith.mulf %0, %2 : vector<1024x128xf32>
    %c0_3 = arith.constant 0 : index
    %c0_4 = arith.constant 0 : index
    %4 = vector.load %arg3[%c0_3, %c0_4] : memref<1x128xf32, #tpu.memory_space<vmem>>, vector<1x128xf32>
    %5 = vector.broadcast %4 : vector<1x128xf32> to vector<1024x128xf32>
    %6 = arith.addf %3, %5 : vector<1024x128xf32>
    %cst = arith.constant 0.000000e+00 : f32
    %7 = vector.broadcast %cst : f32 to vector<1024x128xf32>
    %8 = arith.maximumf %6, %7 : vector<1024x128xf32>
    %c0_5 = arith.constant 0 : index
    %c0_6 = arith.constant 0 : index
    %9 = vector.load %arg4[%c0_5, %c0_6] : memref<1024x128xf32, #tpu.memory_space<vmem>>, vector<1024x128xf32>
    tpu.vector_store %arg4[%c0_5, %c0_6], %8 {strides = array<i32>} : memref<1024x128xf32, #tpu.memory_space<vmem>>, vector<1024x128xf32>,
    return
  }
  func.func @transform_0(%arg0: i32) -> (i32, i32) {
    %c0_i32 = arith.constant 0 : i32
    %c0_i32_0 = arith.constant 0 : i32
    return %arg0, %c0_i32 : i32, i32
  }
  func.func @transform_1(%arg0: i32) -> (i32, i32) {
    %c0_i32 = arith.constant 0 : i32
    %c0_i32_0 = arith.constant 0 : i32
    %c0_i32_1 = arith.constant 0 : i32
    return %c0_i32, %c0_i32_0 : i32, i32
  }
  func.func @transform_2(%arg0: i32) -> (i32, i32) {
    %c0_i32 = arith.constant 0 : i32
    %c0_i32_0 = arith.constant 0 : i32
    %c0_i32_1 = arith.constant 0 : i32
    return %c0_i32, %c0_i32_0 : i32, i32
  }
  func.func @transform_3(%arg0: i32) -> (i32, i32) {
    %c0_i32 = arith.constant 0 : i32
    %c0_i32_0 = arith.constant 0 : i32
    return %arg0, %c0_i32 : i32, i32
  }
}

</mosaic_0001>

<llo_original>
// kernel: residual_block_forward.5
$region0: #{residual_block_forward.5}
  #allocation0 [shape = 'u32[]', space=smem, size = 0x4, offset = 0x4, fixed_abs, tag = 'smem constant byte address 0x4 - core index']
  #allocation1 [shape = 'u32[144,128]{1,0:T(1,128)}', space=vmem, size = 0x12000, scoped, tag = 'internal scratch']
  %s0 = inlined_call_operand.vmem [shape: f32[1024,128], index: 0, kind: input, shape index: {}]
  %s1 = inlined_call_operand.vmem [shape: f32[1,128], index: 1, kind: input, shape index: {}]
  %s2 = inlined_call_operand.vmem [shape: f32[1,128], index: 2, kind: input, shape index: {}]
  %s3 = inlined_call_operand.vmem [shape: bf16[1024,128], index: 3, kind: output, shape index: {}]
  %s4 = sld [smem:[#allocation0]]
  $region22: #{residual_block_forward.5} parent=0
    _
  %s6 = ssub.s32 1, %s4
  %s7 = scalar_select 0, %s6, %s4
  // Predicated region
  $region2: #{residual_block_forward.5} parent=0 // pred_check
    _
  $region3: #{residual_block_forward.5} parent=0 // pred_check_branch
    %9 = sbr.rel (0) target = $region5
  $region4: #{residual_block_forward.5} parent=0 // pred_region
    _
  $region5: #{residual_block_forward.5} parent=0 // pred_fallthru
    _
  // Predicated region
  $region6: #{residual_block_forward.5} parent=0 // pred_check
    _
  $region7: #{residual_block_forward.5} parent=0 // pred_check_branch
    %11 = sbr.rel (0) target = $region9
  $region8: #{residual_block_forward.5} parent=0 // pred_region
    _
  $region9: #{residual_block_forward.5} parent=0 // pred_fallthru
    _
  // Predicated region
  $region10: #{residual_block_forward.5} parent=0 // pred_check
    _
  $region11: #{residual_block_forward.5} parent=0 // pred_check_branch
    %13 = sbr.rel (0) target = $region13
  $region12: #{residual_block_forward.5} parent=0 // pred_region
    _
  $region13: #{residual_block_forward.5} parent=0 // pred_fallthru
    _
  %v14 = vld [vmem:[%s0] sm:$0xff]
  %v15 = vld [vmem:[%s0 + $0x8] sm:$0xff]
  %v16 = vld [vmem:[%s0 + $0x10] sm:$0xff]
  %v17 = vld [vmem:[%s0 + $0x18] sm:$0xff]
  %v18 = vld [vmem:[%s0 + $0x20] sm:$0xff]
  %v19 = vld [vmem:[%s0 + $0x28] sm:$0xff]
  %v20 = vld [vmem:[%s0 + $0x30] sm:$0xff]
  %v21 = vld [vmem:[%s0 + $0x38] sm:$0xff]
  %v22 = vld [vmem:[%s0 + $0x40] sm:$0xff]
  %v23 = vld [vmem:[%s0 + $0x48] sm:$0xff]
  %v24 = vld [vmem:[%s0 + $0x50] sm:$0xff]
  %v25 = vld [vmem:[%s0 + $0x58] sm:$0xff]
  %v26 = vld [vmem:[%s0 + $0x60] sm:$0xff]
  %v27 = vld [vmem:[%s0 + $0x68] sm:$0xff]
  %v28 = vld [vmem:[%s0 + $0x70] sm:$0xff]
  %v29 = vld [vmem:[%s0 + $0x78] sm:$0xff]
  %v30 = vld [vmem:[%s0 + $0x80] sm:$0xff]
  %v31 = vld [vmem:[%s0 + $0x88] sm:$0xff]
  %v32 = vld [vmem:[%s0 + $0x90] sm:$0xff]
  %v33 = vld [vmem:[%s0 + $0x98] sm:$0xff]
  %v34 = vld [vmem:[%s0 + $0xa0] sm:$0xff]
  %v35 = vld [vmem:[%s0 + $0xa8] sm:$0xff]
  %v36 = vld [vmem:[%s0 + $0xb0] sm:$0xff]
  %v37 = vld [vmem:[%s0 + $0xb8] sm:$0xff]
  %v38 = vld [vmem:[%s0 + $0xc0] sm:$0xff]
  %v39 = vld [vmem:[%s0 + $0xc8] sm:$0xff]
  %v40 = vld [vmem:[%s0 + $0xd0] sm:$0xff]
  %v41 = vld [vmem:[%s0 + $0xd8] sm:$0xff]
  %v42 = vld [vmem:[%s0 + $0xe0] sm:$0xff]
  %v43 = vld [vmem:[%s0 + $0xe8] sm:$0xff]
  %v44 = vld [vmem:[%s0 + $0xf0] sm:$0xff]
  %v45 = vld [vmem:[%s0 + $0xf8] sm:$0xff]
  %v46 = vld [vmem:[%s0 + $0x100] sm:$0xff]
  %v47 = vld [vmem:[%s0 + $0x108] sm:$0xff]
  %v48 = vld [vmem:[%s0 + $0x110] sm:$0xff]
  %v49 = vld [vmem:[%s0 + $0x118] sm:$0xff]
  %v50 = vld [vmem:[%s0 + $0x120] sm:$0xff]
  %v51 = vld [vmem:[%s0 + $0x128] sm:$0xff]
  %v52 = vld [vmem:[%s0 + $0x130] sm:$0xff]
  %v53 = vld [vmem:[%s0 + $0x138] sm:$0xff]
  %v54 = vld [vmem:[%s0 + $0x140] sm:$0xff]
  %v55 = vld [vmem:[%s0 + $0x148] sm:$0xff]
  %v56 = vld [vmem:[%s0 + $0x150] sm:$0xff]
  %v57 = vld [vmem:[%s0 + $0x158] sm:$0xff]
  %v58 = vld [vmem:[%s0 + $0x160] sm:$0xff]
  %v59 = vld [vmem:[%s0 + $0x168] sm:$0xff]
  %v60 = vld [vmem:[%s0 + $0x170] sm:$0xff]
  %v61 = vld [vmem:[%s0 + $0x178] sm:$0xff]
  %v62 = vld [vmem:[%s0 + $0x180] sm:$0xff]
  %v63 = vld [vmem:[%s0 + $0x188] sm:$0xff]
  %v64 = vld [vmem:[%s0 + $0x190] sm:$0xff]
  %v65 = vld [vmem:[%s0 + $0x198] sm:$0xff]
  %v66 = vld [vmem:[%s0 + $0x1a0] sm:$0xff]
  %v67 = vld [vmem:[%s0 + $0x1a8] sm:$0xff]
  %v68 = vld [vmem:[%s0 + $0x1b0] sm:$0xff]
  %v69 = vld [vmem:[%s0 + $0x1b8] sm:$0xff]
  %v70 = vld [vmem:[%s0 + $0x1c0] sm:$0xff]
  %v71 = vld [vmem:[%s0 + $0x1c8] sm:$0xff]
  %v72 = vld [vmem:[%s0 + $0x1d0] sm:$0xff]
  %v73 = vld [vmem:[%s0 + $0x1d8] sm:$0xff]
  %v74 = vld [vmem:[%s0 + $0x1e0] sm:$0xff]
  %v75 = vld [vmem:[%s0 + $0x1e8] sm:$0xff]
  %v76 = vld [vmem:[%s0 + $0x1f0] sm:$0xff]
  %v77 = vld [vmem:[%s0 + $0x1f8] sm:$0xff]
  %v78 = vld [vmem:[%s0 + $0x200] sm:$0xff]
  %v79 = vld [vmem:[%s0 + $0x208] sm:$0xff]
  %v80 = vld [vmem:[%s0 + $0x210] sm:$0xff]
  %v81 = vld [vmem:[%s0 + $0x218] sm:$0xff]
  %v82 = vld [vmem:[%s0 + $0x220] sm:$0xff]
  %v83 = vld [vmem:[%s0 + $0x228] sm:$0xff]
  %v84 = vld [vmem:[%s0 + $0x230] sm:$0xff]
  %v85 = vld [vmem:[%s0 + $0x238] sm:$0xff]
  %v86 = vld [vmem:[%s0 + $0x240] sm:$0xff]
  %v87 = vld [vmem:[%s0 + $0x248] sm:$0xff]
  %v88 = vld [vmem:[%s0 + $0x250] sm:$0xff]
  %v89 = vld [vmem:[%s0 + $0x258] sm:$0xff]
  %v90 = vld [vmem:[%s0 + $0x260] sm:$0xff]
  %v91 = vld [vmem:[%s0 + $0x268] sm:$0xff]
  %v92 = vld [vmem:[%s0 + $0x270] sm:$0xff]
  %v93 = vld [vmem:[%s0 + $0x278] sm:$0xff]
  %v94 = vld [vmem:[%s0 + $0x280] sm:$0xff]
  %v95 = vld [vmem:[%s0 + $0x288] sm:$0xff]
  %v96 = vld [vmem:[%s0 + $0x290] sm:$0xff]
  %v97 = vld [vmem:[%s0 + $0x298] sm:$0xff]
  %v98 = vld [vmem:[%s0 + $0x2a0] sm:$0xff]
  %v99 = vld [vmem:[%s0 + $0x2a8] sm:$0xff]
  %v100 = vld [vmem:[%s0 + $0x2b0] sm:$0xff]
  %v101 = vld [vmem:[%s0 + $0x2b8] sm:$0xff]
  %v102 = vld [vmem:[%s0 + $0x2c0] sm:$0xff]
  %v103 = vld [vmem:[%s0 + $0x2c8] sm:$0xff]
  %v104 = vld [vmem:[%s0 + $0x2d0] sm:$0xff]
  %v105 = vld [vmem:[%s0 + $0x2d8] sm:$0xff]
  %v106 = vld [vmem:[%s0 + $0x2e0] sm:$0xff]
  %v107 = vld [vmem:[%s0 + $0x2e8] sm:$0xff]
  %v108 = vld [vmem:[%s0 + $0x2f0] sm:$0xff]
  %v109 = vld [vmem:[%s0 + $0x2f8] sm:$0xff]
  %v110 = vld [vmem:[%s0 + $0x300] sm:$0xff]
  %v111 = vld [vmem:[%s0 + $0x308] sm:$0xff]
  %v112 = vld [vmem:[%s0 + $0x310] sm:$0xff]
  %v113 = vld [vmem:[%s0 + $0x318] sm:$0xff]
  %v114 = vld [vmem:[%s0 + $0x320] sm:$0xff]
  %v115 = vld [vmem:[%s0 + $0x328] sm:$0xff]
  %v116 = vld [vmem:[%s0 + $0x330] sm:$0xff]
  %v117 = vld [vmem:[%s0 + $0x338] sm:$0xff]
  %v118 = vld [vmem:[%s0 + $0x340] sm:$0xff]
  %v119 = vld [vmem:[%s0 + $0x348] sm:$0xff]
  %v120 = vld [vmem:[%s0 + $0x350] sm:$0xff]
  %v121 = vld [vmem:[%s0 + $0x358] sm:$0xff]
  %v122 = vld [vmem:[%s0 + $0x360] sm:$0xff]
  %v123 = vld [vmem:[%s0 + $0x368] sm:$0xff]
  %v124 = vld [vmem:[%s0 + $0x370] sm:$0xff]
  %v125 = vld [vmem:[%s0 + $0x378] sm:$0xff]
  %v126 = vld [vmem:[%s0 + $0x380] sm:$0xff]
  %v127 = vld [vmem:[%s0 + $0x388] sm:$0xff]
  %v128 = vld [vmem:[%s0 + $0x390] sm:$0xff]
  %v129 = vld [vmem:[%s0 + $0x398] sm:$0xff]
  %v130 = vld [vmem:[%s0 + $0x3a0] sm:$0xff]
  %v131 = vld [vmem:[%s0 + $0x3a8] sm:$0xff]
  %v132 = vld [vmem:[%s0 + $0x3b0] sm:$0xff]
  %v133 = vld [vmem:[%s0 + $0x3b8] sm:$0xff]
  %v134 = vld [vmem:[%s0 + $0x3c0] sm:$0xff]
  %v135 = vld [vmem:[%s0 + $0x3c8] sm:$0xff]
  %v136 = vld [vmem:[%s0 + $0x3d0] sm:$0xff]
  %v137 = vld [vmem:[%s0 + $0x3d8] sm:$0xff]
  %v138 = vld [vmem:[%s0 + $0x3e0] sm:$0xff]
  %v139 = vld [vmem:[%s0 + $0x3e8] sm:$0xff]
  %v140 = vld [vmem:[%s0 + $0x3f0] sm:$0xff]
  %v141 = vld [vmem:[%s0 + $0x3f8] sm:$0xff]
  %v142 = vld [vmem:[%s1] sm:$0x1]
  %v144 = vlaneseq
  %v145 = vshrl.u32 %v144, 7
  %v146 = vsub.s32 0, %v145
  %v147 = vrot.slane %v142, %v146
  %v149 = vmul.f32 %v14, %v147
  %v150 = vmul.f32 %v15, %v147
  %v151 = vmul.f32 %v16, %v147
  %v152 = vmul.f32 %v17, %v147
  %v153 = vmul.f32 %v18, %v147
  %v154 = vmul.f32 %v19, %v147
  %v155 = vmul.f32 %v20, %v147
  %v156 = vmul.f32 %v21, %v147
  %v157 = vmul.f32 %v22, %v147
  %v158 = vmul.f32 %v23, %v147
  %v159 = vmul.f32 %v24, %v147
  %v160 = vmul.f32 %v25, %v147
  %v161 = vmul.f32 %v26, %v147
  %v162 = vmul.f32 %v27, %v147
  %v163 = vmul.f32 %v28, %v147
  %v164 = vmul.f32 %v29, %v147
  %v165 = vmul.f32 %v30, %v147
  %v166 = vmul.f32 %v31, %v147
  %v167 = vmul.f32 %v32, %v147
  %v168 = vmul.f32 %v33, %v147
  %v169 = vmul.f32 %v34, %v147
  %v170 = vmul.f32 %v35, %v147
  %v171 = vmul.f32 %v36, %v147
  %v172 = vmul.f32 %v37, %v147
  %v173 = vmul.f32 %v38, %v147
  %v174 = vmul.f32 %v39, %v147
  %v175 = vmul.f32 %v40, %v147
  %v176 = vmul.f32 %v41, %v147
  %v177 = vmul.f32 %v42, %v147
  %v178 = vmul.f32 %v43, %v147
  %v179 = vmul.f32 %v44, %v147
  %v180 = vmul.f32 %v45, %v147
  %v181 = vmul.f32 %v46, %v147
  %v182 = vmul.f32 %v47, %v147
  %v183 = vmul.f32 %v48, %v147
  %v184 = vmul.f32 %v49, %v147
  %v185 = vmul.f32 %v50, %v147
  %v186 = vmul.f32 %v51, %v147
  %v187 = vmul.f32 %v52, %v147
  %v188 = vmul.f32 %v53, %v147
  %v189 = vmul.f32 %v54, %v147
  %v190 = vmul.f32 %v55, %v147
  %v191 = vmul.f32 %v56, %v147
  %v192 = vmul.f32 %v57, %v147
  %v193 = vmul.f32 %v58, %v147
  %v194 = vmul.f32 %v59, %v147
  %v195 = vmul.f32 %v60, %v147
  %v196 = vmul.f32 %v61, %v147
  %v197 = vmul.f32 %v62, %v147
  %v198 = vmul.f32 %v63, %v147
  %v199 = vmul.f32 %v64, %v147
  %v200 = vmul.f32 %v65, %v147
  %v201 = vmul.f32 %v66, %v147
  %v202 = vmul.f32 %v67, %v147
  %v203 = vmul.f32 %v68, %v147
  %v204 = vmul.f32 %v69, %v147
  %v205 = vmul.f32 %v70, %v147
  %v206 = vmul.f32 %v71, %v147
  %v207 = vmul.f32 %v72, %v147
  %v208 = vmul.f32 %v73, %v147
  %v209 = vmul.f32 %v74, %v147
  %v210 = vmul.f32 %v75, %v147
  %v211 = vmul.f32 %v76, %v147
  %v212 = vmul.f32 %v77, %v147
  %v213 = vmul.f32 %v78, %v147
  %v214 = vmul.f32 %v79, %v147
  %v215 = vmul.f32 %v80, %v147
  %v216 = vmul.f32 %v81, %v147
  %v217 = vmul.f32 %v82, %v147
  %v218 = vmul.f32 %v83, %v147
  %v219 = vmul.f32 %v84, %v147
  %v220 = vmul.f32 %v85, %v147
  %v221 = vmul.f32 %v86, %v147
  %v222 = vmul.f32 %v87, %v147
  %v223 = vmul.f32 %v88, %v147
  %v224 = vmul.f32 %v89, %v147
  %v225 = vmul.f32 %v90, %v147
  %v226 = vmul.f32 %v91, %v147
  %v227 = vmul.f32 %v92, %v147
  %v228 = vmul.f32 %v93, %v147
  %v229 = vmul.f32 %v94, %v147
  %v230 = vmul.f32 %v95, %v147
  %v231 = vmul.f32 %v96, %v147
  %v232 = vmul.f32 %v97, %v147
  %v233 = vmul.f32 %v98, %v147
  %v234 = vmul.f32 %v99, %v147
  %v235 = vmul.f32 %v100, %v147
  %v236 = vmul.f32 %v101, %v147
  %v237 = vmul.f32 %v102, %v147
  %v238 = vmul.f32 %v103, %v147
  %v239 = vmul.f32 %v104, %v147
  %v240 = vmul.f32 %v105, %v147
  %v241 = vmul.f32 %v106, %v147
  %v242 = vmul.f32 %v107, %v147
  %v243 = vmul.f32 %v108, %v147
  %v244 = vmul.f32 %v109, %v147
  %v245 = vmul.f32 %v110, %v147
  %v246 = vmul.f32 %v111, %v147
  %v247 = vmul.f32 %v112, %v147
  %v248 = vmul.f32 %v113, %v147
  %v249 = vmul.f32 %v114, %v147
  %v250 = vmul.f32 %v115, %v147
  %v251 = vmul.f32 %v116, %v147
  %v252 = vmul.f32 %v117, %v147
  %v253 = vmul.f32 %v118, %v147
  %v254 = vmul.f32 %v119, %v147
  %v255 = vmul.f32 %v120, %v147
  %v256 = vmul.f32 %v121, %v147
  %v257 = vmul.f32 %v122, %v147
  %v258 = vmul.f32 %v123, %v147
  %v259 = vmul.f32 %v124, %v147
  %v260 = vmul.f32 %v125, %v147
  %v261 = vmul.f32 %v126, %v147
  %v262 = vmul.f32 %v127, %v147
  %v263 = vmul.f32 %v128, %v147
  %v264 = vmul.f32 %v129, %v147
  %v265 = vmul.f32 %v130, %v147
  %v266 = vmul.f32 %v131, %v147
  %v267 = vmul.f32 %v132, %v147
  %v268 = vmul.f32 %v133, %v147
  %v269 = vmul.f32 %v134, %v147
  %v270 = vmul.f32 %v135, %v147
  %v271 = vmul.f32 %v136, %v147
  %v272 = vmul.f32 %v137, %v147
  %v273 = vmul.f32 %v138, %v147
  %v274 = vmul.f32 %v139, %v147
  %v275 = vmul.f32 %v140, %v147
  %v276 = vmul.f32 %v141, %v147
  %v277 = vld [vmem:[%s2] sm:$0x1]
  %v279 = vlaneseq
  %v280 = vshrl.u32 %v279, 7
  %v281 = vsub.s32 0, %v280
  %v282 = vrot.slane %v277, %v281
  %v284 = vadd.f32 %v149, %v282
  %v285 = vadd.f32 %v150, %v282
  %v286 = vadd.f32 %v151, %v282
  %v287 = vadd.f32 %v152, %v282
  %v288 = vadd.f32 %v153, %v282
  %v289 = vadd.f32 %v154, %v282
  %v290 = vadd.f32 %v155, %v282
  %v291 = vadd.f32 %v156, %v282
  %v292 = vadd.f32 %v157, %v282
  %v293 = vadd.f32 %v158, %v282
  %v294 = vadd.f32 %v159, %v282
  %v295 = vadd.f32 %v160, %v282
  %v296 = vadd.f32 %v161, %v282
  %v297 = vadd.f32 %v162, %v282
  %v298 = vadd.f32 %v163, %v282
  %v299 = vadd.f32 %v164, %v282
  %v300 = vadd.f32 %v165, %v282
  %v301 = vadd.f32 %v166, %v282
  %v302 = vadd.f32 %v167, %v282
  %v303 = vadd.f32 %v168, %v282
  %v304 = vadd.f32 %v169, %v282
  %v305 = vadd.f32 %v170, %v282
  %v306 = vadd.f32 %v171, %v282
  %v307 = vadd.f32 %v172, %v282
  %v308 = vadd.f32 %v173, %v282
  %v309 = vadd.f32 %v174, %v282
  %v310 = vadd.f32 %v175, %v282
  %v311 = vadd.f32 %v176, %v282
  %v312 = vadd.f32 %v177, %v282
  %v313 = vadd.f32 %v178, %v282
  %v314 = vadd.f32 %v179, %v282
  %v315 = vadd.f32 %v180, %v282
  %v316 = vadd.f32 %v181, %v282
  %v317 = vadd.f32 %v182, %v282
  %v318 = vadd.f32 %v183, %v282
  %v319 = vadd.f32 %v184, %v282
  %v320 = vadd.f32 %v185, %v282
  %v321 = vadd.f32 %v186, %v282
  %v322 = vadd.f32 %v187, %v282
  %v323 = vadd.f32 %v188, %v282
  %v324 = vadd.f32 %v189, %v282
  %v325 = vadd.f32 %v190, %v282
  %v326 = vadd.f32 %v191, %v282
  %v327 = vadd.f32 %v192, %v282
  %v328 = vadd.f32 %v193, %v282
  %v329 = vadd.f32 %v194, %v282
  %v330 = vadd.f32 %v195, %v282
  %v331 = vadd.f32 %v196, %v282
  %v332 = vadd.f32 %v197, %v282
  %v333 = vadd.f32 %v198, %v282
  %v334 = vadd.f32 %v199, %v282
  %v335 = vadd.f32 %v200, %v282
  %v336 = vadd.f32 %v201, %v282
  %v337 = vadd.f32 %v202, %v282
  %v338 = vadd.f32 %v203, %v282
  %v339 = vadd.f32 %v204, %v282
  %v340 = vadd.f32 %v205, %v282
  %v341 = vadd.f32 %v206, %v282
  %v342 = vadd.f32 %v207, %v282
  %v343 = vadd.f32 %v208, %v282
  %v344 = vadd.f32 %v209, %v282
  %v345 = vadd.f32 %v210, %v282
  %v346 = vadd.f32 %v211, %v282
  %v347 = vadd.f32 %v212, %v282
  %v348 = vadd.f32 %v213, %v282
  %v349 = vadd.f32 %v214, %v282
  %v350 = vadd.f32 %v215, %v282
  %v351 = vadd.f32 %v216, %v282
  %v352 = vadd.f32 %v217, %v282
  %v353 = vadd.f32 %v218, %v282
  %v354 = vadd.f32 %v219, %v282
  %v355 = vadd.f32 %v220, %v282
  %v356 = vadd.f32 %v221, %v282
  %v357 = vadd.f32 %v222, %v282
  %v358 = vadd.f32 %v223, %v282
  %v359 = vadd.f32 %v224, %v282
  %v360 = vadd.f32 %v225, %v282
  %v361 = vadd.f32 %v226, %v282
  %v362 = vadd.f32 %v227, %v282
  %v363 = vadd.f32 %v228, %v282
  %v364 = vadd.f32 %v229, %v282
  %v365 = vadd.f32 %v230, %v282
  %v366 = vadd.f32 %v231, %v282
  %v367 = vadd.f32 %v232, %v282
  %v368 = vadd.f32 %v233, %v282
  %v369 = vadd.f32 %v234, %v282
  %v370 = vadd.f32 %v235, %v282
  %v371 = vadd.f32 %v236, %v282
  %v372 = vadd.f32 %v237, %v282
  %v373 = vadd.f32 %v238, %v282
  %v374 = vadd.f32 %v239, %v282
  %v375 = vadd.f32 %v240, %v282
  %v376 = vadd.f32 %v241, %v282
  %v377 = vadd.f32 %v242, %v282
  %v378 = vadd.f32 %v243, %v282
  %v379 = vadd.f32 %v244, %v282
  %v380 = vadd.f32 %v245, %v282
  %v381 = vadd.f32 %v246, %v282
  %v382 = vadd.f32 %v247, %v282
  %v383 = vadd.f32 %v248, %v282
  %v384 = vadd.f32 %v249, %v282
  %v385 = vadd.f32 %v250, %v282
  %v386 = vadd.f32 %v251, %v282
  %v387 = vadd.f32 %v252, %v282
  %v388 = vadd.f32 %v253, %v282
  %v389 = vadd.f32 %v254, %v282
  %v390 = vadd.f32 %v255, %v282
  %v391 = vadd.f32 %v256, %v282
  %v392 = vadd.f32 %v257, %v282
  %v393 = vadd.f32 %v258, %v282
  %v394 = vadd.f32 %v259, %v282
  %v395 = vadd.f32 %v260, %v282
  %v396 = vadd.f32 %v261, %v282
  %v397 = vadd.f32 %v262, %v282
  %v398 = vadd.f32 %v263, %v282
  %v399 = vadd.f32 %v264, %v282
  %v400 = vadd.f32 %v265, %v282
  %v401 = vadd.f32 %v266, %v282
  %v402 = vadd.f32 %v267, %v282
  %v403 = vadd.f32 %v268, %v282
  %v404 = vadd.f32 %v269, %v282
  %v405 = vadd.f32 %v270, %v282
  %v406 = vadd.f32 %v271, %v282
  %v407 = vadd.f32 %v272, %v282
  %v408 = vadd.f32 %v273, %v282
  %v409 = vadd.f32 %v274, %v282
  %v410 = vadd.f32 %v275, %v282
  %v411 = vadd.f32 %v276, %v282
  %v412 = vmax.f32 %v284, 0.0
  %v413 = vmax.f32 %v285, 0.0
  %v414 = vmax.f32 %v286, 0.0
  %v415 = vmax.f32 %v287, 0.0
  %v416 = vmax.f32 %v288, 0.0
  %v417 = vmax.f32 %v289, 0.0
  %v418 = vmax.f32 %v290, 0.0
  %v419 = vmax.f32 %v291, 0.0
  %v420 = vmax.f32 %v292, 0.0
  %v421 = vmax.f32 %v293, 0.0
  %v422 = vmax.f32 %v294, 0.0
  %v423 = vmax.f32 %v295, 0.0
  %v424 = vmax.f32 %v296, 0.0
  %v425 = vmax.f32 %v297, 0.0
  %v426 = vmax.f32 %v298, 0.0
  %v427 = vmax.f32 %v299, 0.0
  %v428 = vmax.f32 %v300, 0.0
  %v429 = vmax.f32 %v301, 0.0
  %v430 = vmax.f32 %v302, 0.0
  %v431 = vmax.f32 %v303, 0.0
  %v432 = vmax.f32 %v304, 0.0
  %v433 = vmax.f32 %v305, 0.0
  %v434 = vmax.f32 %v306, 0.0
  %v435 = vmax.f32 %v307, 0.0
  %v436 = vmax.f32 %v308, 0.0
  %v437 = vmax.f32 %v309, 0.0
  %v438 = vmax.f32 %v310, 0.0
  %v439 = vmax.f32 %v311, 0.0
  %v440 = vmax.f32 %v312, 0.0
  %v441 = vmax.f32 %v313, 0.0
  %v442 = vmax.f32 %v314, 0.0
  %v443 = vmax.f32 %v315, 0.0
  %v444 = vmax.f32 %v316, 0.0
  %v445 = vmax.f32 %v317, 0.0
  %v446 = vmax.f32 %v318, 0.0
  %v447 = vmax.f32 %v319, 0.0
  %v448 = vmax.f32 %v320, 0.0
  %v449 = vmax.f32 %v321, 0.0
  %v450 = vmax.f32 %v322, 0.0
  %v451 = vmax.f32 %v323, 0.0
  %v452 = vmax.f32 %v324, 0.0
  %v453 = vmax.f32 %v325, 0.0
  %v454 = vmax.f32 %v326, 0.0
  %v455 = vmax.f32 %v327, 0.0
  %v456 = vmax.f32 %v328, 0.0
  %v457 = vmax.f32 %v329, 0.0
  %v458 = vmax.f32 %v330, 0.0
  %v459 = vmax.f32 %v331, 0.0
  %v460 = vmax.f32 %v332, 0.0
  %v461 = vmax.f32 %v333, 0.0
  %v462 = vmax.f32 %v334, 0.0
  %v463 = vmax.f32 %v335, 0.0
  %v464 = vmax.f32 %v336, 0.0
  %v465 = vmax.f32 %v337, 0.0
  %v466 = vmax.f32 %v338, 0.0
  %v467 = vmax.f32 %v339, 0.0
  %v468 = vmax.f32 %v340, 0.0
  %v469 = vmax.f32 %v341, 0.0
  %v470 = vmax.f32 %v342, 0.0
  %v471 = vmax.f32 %v343, 0.0
  %v472 = vmax.f32 %v344, 0.0
  %v473 = vmax.f32 %v345, 0.0
  %v474 = vmax.f32 %v346, 0.0
  %v475 = vmax.f32 %v347, 0.0
  %v476 = vmax.f32 %v348, 0.0
  %v477 = vmax.f32 %v349, 0.0
  %v478 = vmax.f32 %v350, 0.0
  %v479 = vmax.f32 %v351, 0.0
  %v480 = vmax.f32 %v352, 0.0
  %v481 = vmax.f32 %v353, 0.0
  %v482 = vmax.f32 %v354, 0.0
  %v483 = vmax.f32 %v355, 0.0
  %v484 = vmax.f32 %v356, 0.0
  %v485 = vmax.f32 %v357, 0.0
  %v486 = vmax.f32 %v358, 0.0
  %v487 = vmax.f32 %v359, 0.0
  %v488 = vmax.f32 %v360, 0.0
  %v489 = vmax.f32 %v361, 0.0
  %v490 = vmax.f32 %v362, 0.0
  %v491 = vmax.f32 %v363, 0.0
  %v492 = vmax.f32 %v364, 0.0
  %v493 = vmax.f32 %v365, 0.0
  %v494 = vmax.f32 %v366, 0.0
  %v495 = vmax.f32 %v367, 0.0
  %v496 = vmax.f32 %v368, 0.0
  %v497 = vmax.f32 %v369, 0.0
  %v498 = vmax.f32 %v370, 0.0
  %v499 = vmax.f32 %v371, 0.0
  %v500 = vmax.f32 %v372, 0.0
  %v501 = vmax.f32 %v373, 0.0
  %v502 = vmax.f32 %v374, 0.0
  %v503 = vmax.f32 %v375, 0.0
  %v504 = vmax.f32 %v376, 0.0
  %v505 = vmax.f32 %v377, 0.0
  %v506 = vmax.f32 %v378, 0.0
  %v507 = vmax.f32 %v379, 0.0
  %v508 = vmax.f32 %v380, 0.0
  %v509 = vmax.f32 %v381, 0.0
  %v510 = vmax.f32 %v382, 0.0
  %v511 = vmax.f32 %v383, 0.0
  %v512 = vmax.f32 %v384, 0.0
  %v513 = vmax.f32 %v385, 0.0
  %v514 = vmax.f32 %v386, 0.0
  %v515 = vmax.f32 %v387, 0.0
  %v516 = vmax.f32 %v388, 0.0
  %v517 = vmax.f32 %v389, 0.0
  %v518 = vmax.f32 %v390, 0.0
  %v519 = vmax.f32 %v391, 0.0
  %v520 = vmax.f32 %v392, 0.0
  %v521 = vmax.f32 %v393, 0.0
  %v522 = vmax.f32 %v394, 0.0
  %v523 = vmax.f32 %v395, 0.0
  %v524 = vmax.f32 %v396, 0.0
  %v525 = vmax.f32 %v397, 0.0
  %v526 = vmax.f32 %v398, 0.0
  %v527 = vmax.f32 %v399, 0.0
  %v528 = vmax.f32 %v400, 0.0
  %v529 = vmax.f32 %v401, 0.0
  %v530 = vmax.f32 %v402, 0.0
  %v531 = vmax.f32 %v403, 0.0
  %v532 = vmax.f32 %v404, 0.0
  %v533 = vmax.f32 %v405, 0.0
  %v534 = vmax.f32 %v406, 0.0
  %v535 = vmax.f32 %v407, 0.0
  %v536 = vmax.f32 %v408, 0.0
  %v537 = vmax.f32 %v409, 0.0
  %v538 = vmax.f32 %v410, 0.0
  %v539 = vmax.f32 %v411, 0.0
  %v540 = vpack.c.bf16 %v413, %v412
  %v541 = vpack.c.bf16 %v415, %v414
  %v542 = vpack.c.bf16 %v417, %v416
  %v543 = vpack.c.bf16 %v419, %v418
  %v544 = vpack.c.bf16 %v421, %v420
  %v545 = vpack.c.bf16 %v423, %v422
  %v546 = vpack.c.bf16 %v425, %v424
  %v547 = vpack.c.bf16 %v427, %v426
  %v548 = vpack.c.bf16 %v429, %v428
  %v549 = vpack.c.bf16 %v431, %v430
  %v550 = vpack.c.bf16 %v433, %v432
  %v551 = vpack.c.bf16 %v435, %v434
  %v552 = vpack.c.bf16 %v437, %v436
  %v553 = vpack.c.bf16 %v439, %v438
  %v554 = vpack.c.bf16 %v441, %v440
  %v555 = vpack.c.bf16 %v443, %v442
  %v556 = vpack.c.bf16 %v445, %v444
  %v557 = vpack.c.bf16 %v447, %v446
  %v558 = vpack.c.bf16 %v449, %v448
  %v559 = vpack.c.bf16 %v451, %v450
  %v560 = vpack.c.bf16 %v453, %v452
  %v561 = vpack.c.bf16 %v455, %v454
  %v562 = vpack.c.bf16 %v457, %v456
  %v563 = vpack.c.bf16 %v459, %v458
  %v564 = vpack.c.bf16 %v461, %v460
  %v565 = vpack.c.bf16 %v463, %v462
  %v566 = vpack.c.bf16 %v465, %v464
  %v567 = vpack.c.bf16 %v467, %v466
  %v568 = vpack.c.bf16 %v469, %v468
  %v569 = vpack.c.bf16 %v471, %v470
  %v570 = vpack.c.bf16 %v473, %v472
  %v571 = vpack.c.bf16 %v475, %v474
  %v572 = vpack.c.bf16 %v477, %v476
  %v573 = vpack.c.bf16 %v479, %v478
  %v574 = vpack.c.bf16 %v481, %v480
  %v575 = vpack.c.bf16 %v483, %v482
  %v576 = vpack.c.bf16 %v485, %v484
  %v577 = vpack.c.bf16 %v487, %v486
  %v578 = vpack.c.bf16 %v489, %v488
  %v579 = vpack.c.bf16 %v491, %v490
  %v580 = vpack.c.bf16 %v493, %v492
  %v581 = vpack.c.bf16 %v495, %v494
  %v582 = vpack.c.bf16 %v497, %v496
  %v583 = vpack.c.bf16 %v499, %v498
  %v584 = vpack.c.bf16 %v501, %v500
  %v585 = vpack.c.bf16 %v503, %v502
  %v586 = vpack.c.bf16 %v505, %v504
  %v587 = vpack.c.bf16 %v507, %v506
  %v588 = vpack.c.bf16 %v509, %v508
  %v589 = vpack.c.bf16 %v511, %v510
  %v590 = vpack.c.bf16 %v513, %v512
  %v591 = vpack.c.bf16 %v515, %v514
  %v592 = vpack.c.bf16 %v517, %v516
  %v593 = vpack.c.bf16 %v519, %v518
  %v594 = vpack.c.bf16 %v521, %v520
  %v595 = vpack.c.bf16 %v523, %v522
  %v596 = vpack.c.bf16 %v525, %v524
  %v597 = vpack.c.bf16 %v527, %v526
  %v598 = vpack.c.bf16 %v529, %v528
  %v599 = vpack.c.bf16 %v531, %v530
  %v600 = vpack.c.bf16 %v533, %v532
  %v601 = vpack.c.bf16 %v535, %v534
  %v602 = vpack.c.bf16 %v537, %v536
  %v603 = vpack.c.bf16 %v539, %v538
  %v668 = vunpack.c.l.b16 %v540
  %v669 = vunpack.c.h.b16 %v540
  %v670 = vunpack.c.l.b16 %v541
  %v671 = vunpack.c.h.b16 %v541
  %v672 = vunpack.c.l.b16 %v542
  %v673 = vunpack.c.h.b16 %v542
  %v674 = vunpack.c.l.b16 %v543
  %v675 = vunpack.c.h.b16 %v543
  %v676 = vunpack.c.l.b16 %v544
  %v677 = vunpack.c.h.b16 %v544
  %v678 = vunpack.c.l.b16 %v545
  %v679 = vunpack.c.h.b16 %v545
  %v680 = vunpack.c.l.b16 %v546
  %v681 = vunpack.c.h.b16 %v546
  %v682 = vunpack.c.l.b16 %v547
  %v683 = vunpack.c.h.b16 %v547
  %v684 = vunpack.c.l.b16 %v548
  %v685 = vunpack.c.h.b16 %v548
  %v686 = vunpack.c.l.b16 %v549
  %v687 = vunpack.c.h.b16 %v549
  %v688 = vunpack.c.l.b16 %v550
  %v689 = vunpack.c.h.b16 %v550
  %v690 = vunpack.c.l.b16 %v551
  %v691 = vunpack.c.h.b16 %v551
  %v692 = vunpack.c.l.b16 %v552
  %v693 = vunpack.c.h.b16 %v552
  %v694 = vunpack.c.l.b16 %v553
  %v695 = vunpack.c.h.b16 %v553
  %v696 = vunpack.c.l.b16 %v554
  %v697 = vunpack.c.h.b16 %v554
  %v698 = vunpack.c.l.b16 %v555
  %v699 = vunpack.c.h.b16 %v555
  %v700 = vunpack.c.l.b16 %v556
  %v701 = vunpack.c.h.b16 %v556
  %v702 = vunpack.c.l.b16 %v557
  %v703 = vunpack.c.h.b16 %v557
  %v704 = vunpack.c.l.b16 %v558
  %v705 = vunpack.c.h.b16 %v558
  %v706 = vunpack.c.l.b16 %v559
  %v707 = vunpack.c.h.b16 %v559
  %v708 = vunpack.c.l.b16 %v560
  %v709 = vunpack.c.h.b16 %v560
  %v710 = vunpack.c.l.b16 %v561
  %v711 = vunpack.c.h.b16 %v561
  %v712 = vunpack.c.l.b16 %v562
  %v713 = vunpack.c.h.b16 %v562
  %v714 = vunpack.c.l.b16 %v563
  %v715 = vunpack.c.h.b16 %v563
  %v716 = vunpack.c.l.b16 %v564
  %v717 = vunpack.c.h.b16 %v564
  %v718 = vunpack.c.l.b16 %v565
  %v719 = vunpack.c.h.b16 %v565
  %v720 = vunpack.c.l.b16 %v566
  %v721 = vunpack.c.h.b16 %v566
  %v722 = vunpack.c.l.b16 %v567
  %v723 = vunpack.c.h.b16 %v567
  %v724 = vunpack.c.l.b16 %v568
  %v725 = vunpack.c.h.b16 %v568
  %v726 = vunpack.c.l.b16 %v569
  %v727 = vunpack.c.h.b16 %v569
  %v728 = vunpack.c.l.b16 %v570
  %v729 = vunpack.c.h.b16 %v570
  %v730 = vunpack.c.l.b16 %v571
  %v731 = vunpack.c.h.b16 %v571
  %v732 = vunpack.c.l.b16 %v572
  %v733 = vunpack.c.h.b16 %v572
  %v734 = vunpack.c.l.b16 %v573
  %v735 = vunpack.c.h.b16 %v573
  %v736 = vunpack.c.l.b16 %v574
  %v737 = vunpack.c.h.b16 %v574
  %v738 = vunpack.c.l.b16 %v575
  %v739 = vunpack.c.h.b16 %v575
  %v740 = vunpack.c.l.b16 %v576
  %v741 = vunpack.c.h.b16 %v576
  %v742 = vunpack.c.l.b16 %v577
  %v743 = vunpack.c.h.b16 %v577
  %v744 = vunpack.c.l.b16 %v578
  %v745 = vunpack.c.h.b16 %v578
  %v746 = vunpack.c.l.b16 %v579
  %v747 = vunpack.c.h.b16 %v579
  %v748 = vunpack.c.l.b16 %v580
  %v749 = vunpack.c.h.b16 %v580
  %v750 = vunpack.c.l.b16 %v581
  %v751 = vunpack.c.h.b16 %v581
  %v752 = vunpack.c.l.b16 %v582
  %v753 = vunpack.c.h.b16 %v582
  %v754 = vunpack.c.l.b16 %v583
  %v755 = vunpack.c.h.b16 %v583
  %v756 = vunpack.c.l.b16 %v584
  %v757 = vunpack.c.h.b16 %v584
  %v758 = vunpack.c.l.b16 %v585
  %v759 = vunpack.c.h.b16 %v585
  %v760 = vunpack.c.l.b16 %v586
  %v761 = vunpack.c.h.b16 %v586
  %v762 = vunpack.c.l.b16 %v587
  %v763 = vunpack.c.h.b16 %v587
  %v764 = vunpack.c.l.b16 %v588
  %v765 = vunpack.c.h.b16 %v588
  %v766 = vunpack.c.l.b16 %v589
  %v767 = vunpack.c.h.b16 %v589
  %v768 = vunpack.c.l.b16 %v590
  %v769 = vunpack.c.h.b16 %v590
  %v770 = vunpack.c.l.b16 %v591
  %v771 = vunpack.c.h.b16 %v591
  %v772 = vunpack.c.l.b16 %v592
  %v773 = vunpack.c.h.b16 %v592
  %v774 = vunpack.c.l.b16 %v593
  %v775 = vunpack.c.h.b16 %v593
  %v776 = vunpack.c.l.b16 %v594
  %v777 = vunpack.c.h.b16 %v594
  %v778 = vunpack.c.l.b16 %v595
  %v779 = vunpack.c.h.b16 %v595
  %v780 = vunpack.c.l.b16 %v596
  %v781 = vunpack.c.h.b16 %v596
  %v782 = vunpack.c.l.b16 %v597
  %v783 = vunpack.c.h.b16 %v597
  %v784 = vunpack.c.l.b16 %v598
  %v785 = vunpack.c.h.b16 %v598
  %v786 = vunpack.c.l.b16 %v599
  %v787 = vunpack.c.h.b16 %v599
  %v788 = vunpack.c.l.b16 %v600
  %v789 = vunpack.c.h.b16 %v600
  %v790 = vunpack.c.l.b16 %v601
  %v791 = vunpack.c.h.b16 %v601
  %v792 = vunpack.c.l.b16 %v602
  %v793 = vunpack.c.h.b16 %v602
  %v794 = vunpack.c.l.b16 %v603
  %v795 = vunpack.c.h.b16 %v603
  %v796 = vpack.c.b16 %v668, %v668
  %v797 = vpack.c.b16 %v669, %v669
  %v798 = vpack.c.b16 %v670, %v670
  %v799 = vpack.c.b16 %v671, %v671
  %v800 = vpack.c.b16 %v672, %v672
  %v801 = vpack.c.b16 %v673, %v673
  %v802 = vpack.c.b16 %v674, %v674
  %v803 = vpack.c.b16 %v675, %v675
  %v804 = vpack.c.b16 %v676, %v676
  %v805 = vpack.c.b16 %v677, %v677
  %v806 = vpack.c.b16 %v678, %v678
  %v807 = vpack.c.b16 %v679, %v679
  %v808 = vpack.c.b16 %v680, %v680
  %v809 = vpack.c.b16 %v681, %v681
  %v810 = vpack.c.b16 %v682, %v682
  %v811 = vpack.c.b16 %v683, %v683
  %v812 = vpack.c.b16 %v684, %v684
  %v813 = vpack.c.b16 %v685, %v685
  %v814 = vpack.c.b16 %v686, %v686
  %v815 = vpack.c.b16 %v687, %v687
  %v816 = vpack.c.b16 %v688, %v688
  %v817 = vpack.c.b16 %v689, %v689
  %v818 = vpack.c.b16 %v690, %v690
  %v819 = vpack.c.b16 %v691, %v691
  %v820 = vpack.c.b16 %v692, %v692
  %v821 = vpack.c.b16 %v693, %v693
  %v822 = vpack.c.b16 %v694, %v694
  %v823 = vpack.c.b16 %v695, %v695
  %v824 = vpack.c.b16 %v696, %v696
  %v825 = vpack.c.b16 %v697, %v697
  %v826 = vpack.c.b16 %v698, %v698
  %v827 = vpack.c.b16 %v699, %v699
  %v828 = vpack.c.b16 %v700, %v700
  %v829 = vpack.c.b16 %v701, %v701
  %v830 = vpack.c.b16 %v702, %v702
  %v831 = vpack.c.b16 %v703, %v703
  %v832 = vpack.c.b16 %v704, %v704
  %v833 = vpack.c.b16 %v705, %v705
  %v834 = vpack.c.b16 %v706, %v706
  %v835 = vpack.c.b16 %v707, %v707
  %v836 = vpack.c.b16 %v708, %v708
  %v837 = vpack.c.b16 %v709, %v709
  %v838 = vpack.c.b16 %v710, %v710
  %v839 = vpack.c.b16 %v711, %v711
  %v840 = vpack.c.b16 %v712, %v712
  %v841 = vpack.c.b16 %v713, %v713
  %v842 = vpack.c.b16 %v714, %v714
  %v843 = vpack.c.b16 %v715, %v715
  %v844 = vpack.c.b16 %v716, %v716
  %v845 = vpack.c.b16 %v717, %v717
  %v846 = vpack.c.b16 %v718, %v718
  %v847 = vpack.c.b16 %v719, %v719
  %v848 = vpack.c.b16 %v720, %v720
  %v849 = vpack.c.b16 %v721, %v721
  %v850 = vpack.c.b16 %v722, %v722
  %v851 = vpack.c.b16 %v723, %v723
  %v852 = vpack.c.b16 %v724, %v724
  %v853 = vpack.c.b16 %v725, %v725
  %v854 = vpack.c.b16 %v726, %v726
  %v855 = vpack.c.b16 %v727, %v727
  %v856 = vpack.c.b16 %v728, %v728
  %v857 = vpack.c.b16 %v729, %v729
  %v858 = vpack.c.b16 %v730, %v730
  %v859 = vpack.c.b16 %v731, %v731
  %v860 = vpack.c.b16 %v732, %v732
  %v861 = vpack.c.b16 %v733, %v733
  %v862 = vpack.c.b16 %v734, %v734
  %v863 = vpack.c.b16 %v735, %v735
  %v864 = vpack.c.b16 %v736, %v736
  %v865 = vpack.c.b16 %v737, %v737
  %v866 = vpack.c.b16 %v738, %v738
  %v867 = vpack.c.b16 %v739, %v739
  %v868 = vpack.c.b16 %v740, %v740
  %v869 = vpack.c.b16 %v741, %v741
  %v870 = vpack.c.b16 %v742, %v742
  %v871 = vpack.c.b16 %v743, %v743
  %v872 = vpack.c.b16 %v744, %v744
  %v873 = vpack.c.b16 %v745, %v745
  %v874 = vpack.c.b16 %v746, %v746
  %v875 = vpack.c.b16 %v747, %v747
  %v876 = vpack.c.b16 %v748, %v748
  %v877 = vpack.c.b16 %v749, %v749
  %v878 = vpack.c.b16 %v750, %v750
  %v879 = vpack.c.b16 %v751, %v751
  %v880 = vpack.c.b16 %v752, %v752
  %v881 = vpack.c.b16 %v753, %v753
  %v882 = vpack.c.b16 %v754, %v754
  %v883 = vpack.c.b16 %v755, %v755
  %v884 = vpack.c.b16 %v756, %v756
  %v885 = vpack.c.b16 %v757, %v757
  %v886 = vpack.c.b16 %v758, %v758
  %v887 = vpack.c.b16 %v759, %v759
  %v888 = vpack.c.b16 %v760, %v760
  %v889 = vpack.c.b16 %v761, %v761
  %v890 = vpack.c.b16 %v762, %v762
  %v891 = vpack.c.b16 %v763, %v763
  %v892 = vpack.c.b16 %v764, %v764
  %v893 = vpack.c.b16 %v765, %v765
  %v894 = vpack.c.b16 %v766, %v766
  %v895 = vpack.c.b16 %v767, %v767
  %v896 = vpack.c.b16 %v768, %v768
  %v897 = vpack.c.b16 %v769, %v769
  %v898 = vpack.c.b16 %v770, %v770
  %v899 = vpack.c.b16 %v771, %v771
  %v900 = vpack.c.b16 %v772, %v772
  %v901 = vpack.c.b16 %v773, %v773
  %v902 = vpack.c.b16 %v774, %v774
  %v903 = vpack.c.b16 %v775, %v775
  %v904 = vpack.c.b16 %v776, %v776
  %v905 = vpack.c.b16 %v777, %v777
  %v906 = vpack.c.b16 %v778, %v778
  %v907 = vpack.c.b16 %v779, %v779
  %v908 = vpack.c.b16 %v780, %v780
  %v909 = vpack.c.b16 %v781, %v781
  %v910 = vpack.c.b16 %v782, %v782
  %v911 = vpack.c.b16 %v783, %v783
  %v912 = vpack.c.b16 %v784, %v784
  %v913 = vpack.c.b16 %v785, %v785
  %v914 = vpack.c.b16 %v786, %v786
  %v915 = vpack.c.b16 %v787, %v787
  %v916 = vpack.c.b16 %v788, %v788
  %v917 = vpack.c.b16 %v789, %v789
  %v918 = vpack.c.b16 %v790, %v790
  %v919 = vpack.c.b16 %v791, %v791
  %v920 = vpack.c.b16 %v792, %v792
  %v921 = vpack.c.b16 %v793, %v793
  %v922 = vpack.c.b16 %v794, %v794
  %v923 = vpack.c.b16 %v795, %v795
  %1052 = vst [vmem:[%s3] sm:$0xf] %v796
  %1053 = vst [vmem:[%s3 + $0x4] sm:$0xf] %v797
  %1054 = vst [vmem:[%s3 + $0x8] sm:$0xf] %v798
  %1055 = vst [vmem:[%s3 + $0xc] sm:$0xf] %v799
  %1056 = vst [vmem:[%s3 + $0x10] sm:$0xf] %v800
  %1057 = vst [vmem:[%s3 + $0x14] sm:$0xf] %v801
  %1058 = vst [vmem:[%s3 + $0x18] sm:$0xf] %v802
  %1059 = vst [vmem:[%s3 + $0x1c] sm:$0xf] %v803
  %1060 = vst [vmem:[%s3 + $0x20] sm:$0xf] %v804
  %1061 = vst [vmem:[%s3 + $0x24] sm:$0xf] %v805
  %1062 = vst [vmem:[%s3 + $0x28] sm:$0xf] %v806
  %1063 = vst [vmem:[%s3 + $0x2c] sm:$0xf] %v807
  %1064 = vst [vmem:[%s3 + $0x30] sm:$0xf] %v808
  %1065 = vst [vmem:[%s3 + $0x34] sm:$0xf] %v809
  %1066 = vst [vmem:[%s3 + $0x38] sm:$0xf] %v810
  %1067 = vst [vmem:[%s3 + $0x3c] sm:$0xf] %v811
  %1068 = vst [vmem:[%s3 + $0x40] sm:$0xf] %v812
  %1069 = vst [vmem:[%s3 + $0x44] sm:$0xf] %v813
  %1070 = vst [vmem:[%s3 + $0x48] sm:$0xf] %v814
  %1071 = vst [vmem:[%s3 + $0x4c] sm:$0xf] %v815
  %1072 = vst [vmem:[%s3 + $0x50] sm:$0xf] %v816
  %1073 = vst [vmem:[%s3 + $0x54] sm:$0xf] %v817
  %1074 = vst [vmem:[%s3 + $0x58] sm:$0xf] %v818
  %1075 = vst [vmem:[%s3 + $0x5c] sm:$0xf] %v819
  %1076 = vst [vmem:[%s3 + $0x60] sm:$0xf] %v820
  %1077 = vst [vmem:[%s3 + $0x64] sm:$0xf] %v821
  %1078 = vst [vmem:[%s3 + $0x68] sm:$0xf] %v822
  %1079 = vst [vmem:[%s3 + $0x6c] sm:$0xf] %v823
  %1080 = vst [vmem:[%s3 + $0x70] sm:$0xf] %v824
  %1081 = vst [vmem:[%s3 + $0x74] sm:$0xf] %v825
  %1082 = vst [vmem:[%s3 + $0x78] sm:$0xf] %v826
  %1083 = vst [vmem:[%s3 + $0x7c] sm:$0xf] %v827
  %1084 = vst [vmem:[%s3 + $0x80] sm:$0xf] %v828
  %1085 = vst [vmem:[%s3 + $0x84] sm:$0xf] %v829
  %1086 = vst [vmem:[%s3 + $0x88] sm:$0xf] %v830
  %1087 = vst [vmem:[%s3 + $0x8c] sm:$0xf] %v831
  %1088 = vst [vmem:[%s3 + $0x90] sm:$0xf] %v832
  %1089 = vst [vmem:[%s3 + $0x94] sm:$0xf] %v833
  %1090 = vst [vmem:[%s3 + $0x98] sm:$0xf] %v834
  %1091 = vst [vmem:[%s3 + $0x9c] sm:$0xf] %v835
  %1092 = vst [vmem:[%s3 + $0xa0] sm:$0xf] %v836
  %1093 = vst [vmem:[%s3 + $0xa4] sm:$0xf] %v837
  %1094 = vst [vmem:[%s3 + $0xa8] sm:$0xf] %v838
  %1095 = vst [vmem:[%s3 + $0xac] sm:$0xf] %v839
  %1096 = vst [vmem:[%s3 + $0xb0] sm:$0xf] %v840
  %1097 = vst [vmem:[%s3 + $0xb4] sm:$0xf] %v841
  %1098 = vst [vmem:[%s3 + $0xb8] sm:$0xf] %v842
  %1099 = vst [vmem:[%s3 + $0xbc] sm:$0xf] %v843
  %1100 = vst [vmem:[%s3 + $0xc0] sm:$0xf] %v844
  %1101 = vst [vmem:[%s3 + $0xc4] sm:$0xf] %v845
  %1102 = vst [vmem:[%s3 + $0xc8] sm:$0xf] %v846
  %1103 = vst [vmem:[%s3 + $0xcc] sm:$0xf] %v847
  %1104 = vst [vmem:[%s3 + $0xd0] sm:$0xf] %v848
  %1105 = vst [vmem:[%s3 + $0xd4] sm:$0xf] %v849
  %1106 = vst [vmem:[%s3 + $0xd8] sm:$0xf] %v850
  %1107 = vst [vmem:[%s3 + $0xdc] sm:$0xf] %v851
  %1108 = vst [vmem:[%s3 + $0xe0] sm:$0xf] %v852
  %1109 = vst [vmem:[%s3 + $0xe4] sm:$0xf] %v853
  %1110 = vst [vmem:[%s3 + $0xe8] sm:$0xf] %v854
  %1111 = vst [vmem:[%s3 + $0xec] sm:$0xf] %v855
  %1112 = vst [vmem:[%s3 + $0xf0] sm:$0xf] %v856
  %1113 = vst [vmem:[%s3 + $0xf4] sm:$0xf] %v857
  %1114 = vst [vmem:[%s3 + $0xf8] sm:$0xf] %v858
  %1115 = vst [vmem:[%s3 + $0xfc] sm:$0xf] %v859
  %1116 = vst [vmem:[%s3 + $0x100] sm:$0xf] %v860
  %1117 = vst [vmem:[%s3 + $0x104] sm:$0xf] %v861
  %1118 = vst [vmem:[%s3 + $0x108] sm:$0xf] %v862
  %1119 = vst [vmem:[%s3 + $0x10c] sm:$0xf] %v863
  %1120 = vst [vmem:[%s3 + $0x110] sm:$0xf] %v864
  %1121 = vst [vmem:[%s3 + $0x114] sm:$0xf] %v865
  %1122 = vst [vmem:[%s3 + $0x118] sm:$0xf] %v866
  %1123 = vst [vmem:[%s3 + $0x11c] sm:$0xf] %v867
  %1124 = vst [vmem:[%s3 + $0x120] sm:$0xf] %v868
  %1125 = vst [vmem:[%s3 + $0x124] sm:$0xf] %v869
  %1126 = vst [vmem:[%s3 + $0x128] sm:$0xf] %v870
  %1127 = vst [vmem:[%s3 + $0x12c] sm:$0xf] %v871
  %1128 = vst [vmem:[%s3 + $0x130] sm:$0xf] %v872
  %1129 = vst [vmem:[%s3 + $0x134] sm:$0xf] %v873
  %1130 = vst [vmem:[%s3 + $0x138] sm:$0xf] %v874
  %1131 = vst [vmem:[%s3 + $0x13c] sm:$0xf] %v875
  %1132 = vst [vmem:[%s3 + $0x140] sm:$0xf] %v876
  %1133 = vst [vmem:[%s3 + $0x144] sm:$0xf] %v877
  %1134 = vst [vmem:[%s3 + $0x148] sm:$0xf] %v878
  %1135 = vst [vmem:[%s3 + $0x14c] sm:$0xf] %v879
  %1136 = vst [vmem:[%s3 + $0x150] sm:$0xf] %v880
  %1137 = vst [vmem:[%s3 + $0x154] sm:$0xf] %v881
  %1138 = vst [vmem:[%s3 + $0x158] sm:$0xf] %v882
  %1139 = vst [vmem:[%s3 + $0x15c] sm:$0xf] %v883
  %1140 = vst [vmem:[%s3 + $0x160] sm:$0xf] %v884
  %1141 = vst [vmem:[%s3 + $0x164] sm:$0xf] %v885
  %1142 = vst [vmem:[%s3 + $0x168] sm:$0xf] %v886
  %1143 = vst [vmem:[%s3 + $0x16c] sm:$0xf] %v887
  %1144 = vst [vmem:[%s3 + $0x170] sm:$0xf] %v888
  %1145 = vst [vmem:[%s3 + $0x174] sm:$0xf] %v889
  %1146 = vst [vmem:[%s3 + $0x178] sm:$0xf] %v890
  %1147 = vst [vmem:[%s3 + $0x17c] sm:$0xf] %v891
  %1148 = vst [vmem:[%s3 + $0x180] sm:$0xf] %v892
  %1149 = vst [vmem:[%s3 + $0x184] sm:$0xf] %v893
  %1150 = vst [vmem:[%s3 + $0x188] sm:$0xf] %v894
  %1151 = vst [vmem:[%s3 + $0x18c] sm:$0xf] %v895
  %1152 = vst [vmem:[%s3 + $0x190] sm:$0xf] %v896
  %1153 = vst [vmem:[%s3 + $0x194] sm:$0xf] %v897
  %1154 = vst [vmem:[%s3 + $0x198] sm:$0xf] %v898
  %1155 = vst [vmem:[%s3 + $0x19c] sm:$0xf] %v899
  %1156 = vst [vmem:[%s3 + $0x1a0] sm:$0xf] %v900
  %1157 = vst [vmem:[%s3 + $0x1a4] sm:$0xf] %v901
  %1158 = vst [vmem:[%s3 + $0x1a8] sm:$0xf] %v902
  %1159 = vst [vmem:[%s3 + $0x1ac] sm:$0xf] %v903
  %1160 = vst [vmem:[%s3 + $0x1b0] sm:$0xf] %v904
  %1161 = vst [vmem:[%s3 + $0x1b4] sm:$0xf] %v905
  %1162 = vst [vmem:[%s3 + $0x1b8] sm:$0xf] %v906
  %1163 = vst [vmem:[%s3 + $0x1bc] sm:$0xf] %v907
  %1164 = vst [vmem:[%s3 + $0x1c0] sm:$0xf] %v908
  %1165 = vst [vmem:[%s3 + $0x1c4] sm:$0xf] %v909
  %1166 = vst [vmem:[%s3 + $0x1c8] sm:$0xf] %v910
  %1167 = vst [vmem:[%s3 + $0x1cc] sm:$0xf] %v911
  %1168 = vst [vmem:[%s3 + $0x1d0] sm:$0xf] %v912
  %1169 = vst [vmem:[%s3 + $0x1d4] sm:$0xf] %v913
  %1170 = vst [vmem:[%s3 + $0x1d8] sm:$0xf] %v914
  %1171 = vst [vmem:[%s3 + $0x1dc] sm:$0xf] %v915
  %1172 = vst [vmem:[%s3 + $0x1e0] sm:$0xf] %v916
  %1173 = vst [vmem:[%s3 + $0x1e4] sm:$0xf] %v917
  %1174 = vst [vmem:[%s3 + $0x1e8] sm:$0xf] %v918
  %1175 = vst [vmem:[%s3 + $0x1ec] sm:$0xf] %v919
  %1176 = vst [vmem:[%s3 + $0x1f0] sm:$0xf] %v920
  %1177 = vst [vmem:[%s3 + $0x1f4] sm:$0xf] %v921
  %1178 = vst [vmem:[%s3 + $0x1f8] sm:$0xf] %v922
  %1179 = vst [vmem:[%s3 + $0x1fc] sm:$0xf] %v923
  // Predicated region
  $region14: #{residual_block_forward.5} parent=0 // pred_check
    _
  $region15: #{residual_block_forward.5} parent=0 // pred_check_branch
    %1181 = sbr.rel (0) target = $region17
  $region16: #{residual_block_forward.5} parent=0 // pred_region
    _
  $region17: #{residual_block_forward.5} parent=0 // pred_fallthru
    _
  // Predicated region
  $region18: #{residual_block_forward.5} parent=0 // pred_check
    _
  $region19: #{residual_block_forward.5} parent=0 // pred_check_branch
    %1183 = sbr.rel (0) target = $region21
  $region20: #{residual_block_forward.5} parent=0 // pred_region
    _
  $region21: #{residual_block_forward.5} parent=0 // pred_fallthru
    _

// kernel: residual_block_forward.7
$region0: #{residual_block_forward.7}
  #allocation0 [shape = 'u32[]', space=smem, size = 0x4, offset = 0x4, fixed_abs, tag = 'smem constant byte address 0x4 - core index']
  #allocation1 [shape = 'u32[144,128]{1,0:T(1,128)}', space=vmem, size = 0x12000, scoped, tag = 'internal scratch']
  %s0 = inlined_call_operand.vmem [shape: f32[1024,128], index: 0, kind: input, shape index: {}]
  %s1 = inlined_call_operand.vmem [shape: f32[1,128], index: 1, kind: input, shape index: {}]
  %s2 = inlined_call_operand.vmem [shape: f32[1,128], index: 2, kind: input, shape index: {}]
  %s3 = inlined_call_operand.vmem [shape: f32[1024,128], index: 3, kind: output, shape index: {}]
  %s4 = sld [smem:[#allocation0]]
  $region22: #{residual_block_forward.7} parent=0
    _
  %s6 = ssub.s32 1, %s4
  %s7 = scalar_select 0, %s6, %s4
  // Predicated region
  $region2: #{residual_block_forward.7} parent=0 // pred_check
    _
  $region3: #{residual_block_forward.7} parent=0 // pred_check_branch
    %9 = sbr.rel (0) target = $region5
  $region4: #{residual_block_forward.7} parent=0 // pred_region
    _
  $region5: #{residual_block_forward.7} parent=0 // pred_fallthru
    _
  // Predicated region
  $region6: #{residual_block_forward.7} parent=0 // pred_check
    _
  $region7: #{residual_block_forward.7} parent=0 // pred_check_branch
    %11 = sbr.rel (0) target = $region9
  $region8: #{residual_block_forward.7} parent=0 // pred_region
    _
  $region9: #{residual_block_forward.7} parent=0 // pred_fallthru
    _
  // Predicated region
  $region10: #{residual_block_forward.7} parent=0 // pred_check
    _
  $region11: #{residual_block_forward.7} parent=0 // pred_check_branch
    %13 = sbr.rel (0) target = $region13
  $region12: #{residual_block_forward.7} parent=0 // pred_region
    _
  $region13: #{residual_block_forward.7} parent=0 // pred_fallthru
    _
  %v14 = vld [vmem:[%s0] sm:$0xff]
  %v15 = vld [vmem:[%s0 + $0x8] sm:$0xff]
  %v16 = vld [vmem:[%s0 + $0x10] sm:$0xff]
  %v17 = vld [vmem:[%s0 + $0x18] sm:$0xff]
  %v18 = vld [vmem:[%s0 + $0x20] sm:$0xff]
  %v19 = vld [vmem:[%s0 + $0x28] sm:$0xff]
  %v20 = vld [vmem:[%s0 + $0x30] sm:$0xff]
  %v21 = vld [vmem:[%s0 + $0x38] sm:$0xff]
  %v22 = vld [vmem:[%s0 + $0x40] sm:$0xff]
  %v23 = vld [vmem:[%s0 + $0x48] sm:$0xff]
  %v24 = vld [vmem:[%s0 + $0x50] sm:$0xff]
  %v25 = vld [vmem:[%s0 + $0x58] sm:$0xff]
  %v26 = vld [vmem:[%s0 + $0x60] sm:$0xff]
  %v27 = vld [vmem:[%s0 + $0x68] sm:$0xff]
  %v28 = vld [vmem:[%s0 + $0x70] sm:$0xff]
  %v29 = vld [vmem:[%s0 + $0x78] sm:$0xff]
  %v30 = vld [vmem:[%s0 + $0x80] sm:$0xff]
  %v31 = vld [vmem:[%s0 + $0x88] sm:$0xff]
  %v32 = vld [vmem:[%s0 + $0x90] sm:$0xff]
  %v33 = vld [vmem:[%s0 + $0x98] sm:$0xff]
  %v34 = vld [vmem:[%s0 + $0xa0] sm:$0xff]
  %v35 = vld [vmem:[%s0 + $0xa8] sm:$0xff]
  %v36 = vld [vmem:[%s0 + $0xb0] sm:$0xff]
  %v37 = vld [vmem:[%s0 + $0xb8] sm:$0xff]
  %v38 = vld [vmem:[%s0 + $0xc0] sm:$0xff]
  %v39 = vld [vmem:[%s0 + $0xc8] sm:$0xff]
  %v40 = vld [vmem:[%s0 + $0xd0] sm:$0xff]
  %v41 = vld [vmem:[%s0 + $0xd8] sm:$0xff]
  %v42 = vld [vmem:[%s0 + $0xe0] sm:$0xff]
  %v43 = vld [vmem:[%s0 + $0xe8] sm:$0xff]
  %v44 = vld [vmem:[%s0 + $0xf0] sm:$0xff]
  %v45 = vld [vmem:[%s0 + $0xf8] sm:$0xff]
  %v46 = vld [vmem:[%s0 + $0x100] sm:$0xff]
  %v47 = vld [vmem:[%s0 + $0x108] sm:$0xff]
  %v48 = vld [vmem:[%s0 + $0x110] sm:$0xff]
  %v49 = vld [vmem:[%s0 + $0x118] sm:$0xff]
  %v50 = vld [vmem:[%s0 + $0x120] sm:$0xff]
  %v51 = vld [vmem:[%s0 + $0x128] sm:$0xff]
  %v52 = vld [vmem:[%s0 + $0x130] sm:$0xff]
  %v53 = vld [vmem:[%s0 + $0x138] sm:$0xff]
  %v54 = vld [vmem:[%s0 + $0x140] sm:$0xff]
  %v55 = vld [vmem:[%s0 + $0x148] sm:$0xff]
  %v56 = vld [vmem:[%s0 + $0x150] sm:$0xff]
  %v57 = vld [vmem:[%s0 + $0x158] sm:$0xff]
  %v58 = vld [vmem:[%s0 + $0x160] sm:$0xff]
  %v59 = vld [vmem:[%s0 + $0x168] sm:$0xff]
  %v60 = vld [vmem:[%s0 + $0x170] sm:$0xff]
  %v61 = vld [vmem:[%s0 + $0x178] sm:$0xff]
  %v62 = vld [vmem:[%s0 + $0x180] sm:$0xff]
  %v63 = vld [vmem:[%s0 + $0x188] sm:$0xff]
  %v64 = vld [vmem:[%s0 + $0x190] sm:$0xff]
  %v65 = vld [vmem:[%s0 + $0x198] sm:$0xff]
  %v66 = vld [vmem:[%s0 + $0x1a0] sm:$0xff]
  %v67 = vld [vmem:[%s0 + $0x1a8] sm:$0xff]
  %v68 = vld [vmem:[%s0 + $0x1b0] sm:$0xff]
  %v69 = vld [vmem:[%s0 + $0x1b8] sm:$0xff]
  %v70 = vld [vmem:[%s0 + $0x1c0] sm:$0xff]
  %v71 = vld [vmem:[%s0 + $0x1c8] sm:$0xff]
  %v72 = vld [vmem:[%s0 + $0x1d0] sm:$0xff]
  %v73 = vld [vmem:[%s0 + $0x1d8] sm:$0xff]
  %v74 = vld [vmem:[%s0 + $0x1e0] sm:$0xff]
  %v75 = vld [vmem:[%s0 + $0x1e8] sm:$0xff]
  %v76 = vld [vmem:[%s0 + $0x1f0] sm:$0xff]
  %v77 = vld [vmem:[%s0 + $0x1f8] sm:$0xff]
  %v78 = vld [vmem:[%s0 + $0x200] sm:$0xff]
  %v79 = vld [vmem:[%s0 + $0x208] sm:$0xff]
  %v80 = vld [vmem:[%s0 + $0x210] sm:$0xff]
  %v81 = vld [vmem:[%s0 + $0x218] sm:$0xff]
  %v82 = vld [vmem:[%s0 + $0x220] sm:$0xff]
  %v83 = vld [vmem:[%s0 + $0x228] sm:$0xff]
  %v84 = vld [vmem:[%s0 + $0x230] sm:$0xff]
  %v85 = vld [vmem:[%s0 + $0x238] sm:$0xff]
  %v86 = vld [vmem:[%s0 + $0x240] sm:$0xff]
  %v87 = vld [vmem:[%s0 + $0x248] sm:$0xff]
  %v88 = vld [vmem:[%s0 + $0x250] sm:$0xff]
  %v89 = vld [vmem:[%s0 + $0x258] sm:$0xff]
  %v90 = vld [vmem:[%s0 + $0x260] sm:$0xff]
  %v91 = vld [vmem:[%s0 + $0x268] sm:$0xff]
  %v92 = vld [vmem:[%s0 + $0x270] sm:$0xff]
  %v93 = vld [vmem:[%s0 + $0x278] sm:$0xff]
  %v94 = vld [vmem:[%s0 + $0x280] sm:$0xff]
  %v95 = vld [vmem:[%s0 + $0x288] sm:$0xff]
  %v96 = vld [vmem:[%s0 + $0x290] sm:$0xff]
  %v97 = vld [vmem:[%s0 + $0x298] sm:$0xff]
  %v98 = vld [vmem:[%s0 + $0x2a0] sm:$0xff]
  %v99 = vld [vmem:[%s0 + $0x2a8] sm:$0xff]
  %v100 = vld [vmem:[%s0 + $0x2b0] sm:$0xff]
  %v101 = vld [vmem:[%s0 + $0x2b8] sm:$0xff]
  %v102 = vld [vmem:[%s0 + $0x2c0] sm:$0xff]
  %v103 = vld [vmem:[%s0 + $0x2c8] sm:$0xff]
  %v104 = vld [vmem:[%s0 + $0x2d0] sm:$0xff]
  %v105 = vld [vmem:[%s0 + $0x2d8] sm:$0xff]
  %v106 = vld [vmem:[%s0 + $0x2e0] sm:$0xff]
  %v107 = vld [vmem:[%s0 + $0x2e8] sm:$0xff]
  %v108 = vld [vmem:[%s0 + $0x2f0] sm:$0xff]
  %v109 = vld [vmem:[%s0 + $0x2f8] sm:$0xff]
  %v110 = vld [vmem:[%s0 + $0x300] sm:$0xff]
  %v111 = vld [vmem:[%s0 + $0x308] sm:$0xff]
  %v112 = vld [vmem:[%s0 + $0x310] sm:$0xff]
  %v113 = vld [vmem:[%s0 + $0x318] sm:$0xff]
  %v114 = vld [vmem:[%s0 + $0x320] sm:$0xff]
  %v115 = vld [vmem:[%s0 + $0x328] sm:$0xff]
  %v116 = vld [vmem:[%s0 + $0x330] sm:$0xff]
  %v117 = vld [vmem:[%s0 + $0x338] sm:$0xff]
  %v118 = vld [vmem:[%s0 + $0x340] sm:$0xff]
  %v119 = vld [vmem:[%s0 + $0x348] sm:$0xff]
  %v120 = vld [vmem:[%s0 + $0x350] sm:$0xff]
  %v121 = vld [vmem:[%s0 + $0x358] sm:$0xff]
  %v122 = vld [vmem:[%s0 + $0x360] sm:$0xff]
  %v123 = vld [vmem:[%s0 + $0x368] sm:$0xff]
  %v124 = vld [vmem:[%s0 + $0x370] sm:$0xff]
  %v125 = vld [vmem:[%s0 + $0x378] sm:$0xff]
  %v126 = vld [vmem:[%s0 + $0x380] sm:$0xff]
  %v127 = vld [vmem:[%s0 + $0x388] sm:$0xff]
  %v128 = vld [vmem:[%s0 + $0x390] sm:$0xff]
  %v129 = vld [vmem:[%s0 + $0x398] sm:$0xff]
  %v130 = vld [vmem:[%s0 + $0x3a0] sm:$0xff]
  %v131 = vld [vmem:[%s0 + $0x3a8] sm:$0xff]
  %v132 = vld [vmem:[%s0 + $0x3b0] sm:$0xff]
  %v133 = vld [vmem:[%s0 + $0x3b8] sm:$0xff]
  %v134 = vld [vmem:[%s0 + $0x3c0] sm:$0xff]
  %v135 = vld [vmem:[%s0 + $0x3c8] sm:$0xff]
  %v136 = vld [vmem:[%s0 + $0x3d0] sm:$0xff]
  %v137 = vld [vmem:[%s0 + $0x3d8] sm:$0xff]
  %v138 = vld [vmem:[%s0 + $0x3e0] sm:$0xff]
  %v139 = vld [vmem:[%s0 + $0x3e8] sm:$0xff]
  %v140 = vld [vmem:[%s0 + $0x3f0] sm:$0xff]
  %v141 = vld [vmem:[%s0 + $0x3f8] sm:$0xff]
  %v142 = vld [vmem:[%s1] sm:$0x1]
  %v144 = vlaneseq
  %v145 = vshrl.u32 %v144, 7
  %v146 = vsub.s32 0, %v145
  %v147 = vrot.slane %v142, %v146
  %v149 = vmul.f32 %v14, %v147
  %v150 = vmul.f32 %v15, %v147
  %v151 = vmul.f32 %v16, %v147
  %v152 = vmul.f32 %v17, %v147
  %v153 = vmul.f32 %v18, %v147
  %v154 = vmul.f32 %v19, %v147
  %v155 = vmul.f32 %v20, %v147
  %v156 = vmul.f32 %v21, %v147
  %v157 = vmul.f32 %v22, %v147
  %v158 = vmul.f32 %v23, %v147
  %v159 = vmul.f32 %v24, %v147
  %v160 = vmul.f32 %v25, %v147
  %v161 = vmul.f32 %v26, %v147
  %v162 = vmul.f32 %v27, %v147
  %v163 = vmul.f32 %v28, %v147
  %v164 = vmul.f32 %v29, %v147
  %v165 = vmul.f32 %v30, %v147
  %v166 = vmul.f32 %v31, %v147
  %v167 = vmul.f32 %v32, %v147
  %v168 = vmul.f32 %v33, %v147
  %v169 = vmul.f32 %v34, %v147
  %v170 = vmul.f32 %v35, %v147
  %v171 = vmul.f32 %v36, %v147
  %v172 = vmul.f32 %v37, %v147
  %v173 = vmul.f32 %v38, %v147
  %v174 = vmul.f32 %v39, %v147
  %v175 = vmul.f32 %v40, %v147
  %v176 = vmul.f32 %v41, %v147
  %v177 = vmul.f32 %v42, %v147
  %v178 = vmul.f32 %v43, %v147
  %v179 = vmul.f32 %v44, %v147
  %v180 = vmul.f32 %v45, %v147
  %v181 = vmul.f32 %v46, %v147
  %v182 = vmul.f32 %v47, %v147
  %v183 = vmul.f32 %v48, %v147
  %v184 = vmul.f32 %v49, %v147
  %v185 = vmul.f32 %v50, %v147
  %v186 = vmul.f32 %v51, %v147
  %v187 = vmul.f32 %v52, %v147
  %v188 = vmul.f32 %v53, %v147
  %v189 = vmul.f32 %v54, %v147
  %v190 = vmul.f32 %v55, %v147
  %v191 = vmul.f32 %v56, %v147
  %v192 = vmul.f32 %v57, %v147
  %v193 = vmul.f32 %v58, %v147
  %v194 = vmul.f32 %v59, %v147
  %v195 = vmul.f32 %v60, %v147
  %v196 = vmul.f32 %v61, %v147
  %v197 = vmul.f32 %v62, %v147
  %v198 = vmul.f32 %v63, %v147
  %v199 = vmul.f32 %v64, %v147
  %v200 = vmul.f32 %v65, %v147
  %v201 = vmul.f32 %v66, %v147
  %v202 = vmul.f32 %v67, %v147
  %v203 = vmul.f32 %v68, %v147
  %v204 = vmul.f32 %v69, %v147
  %v205 = vmul.f32 %v70, %v147
  %v206 = vmul.f32 %v71, %v147
  %v207 = vmul.f32 %v72, %v147
  %v208 = vmul.f32 %v73, %v147
  %v209 = vmul.f32 %v74, %v147
  %v210 = vmul.f32 %v75, %v147
  %v211 = vmul.f32 %v76, %v147
  %v212 = vmul.f32 %v77, %v147
  %v213 = vmul.f32 %v78, %v147
  %v214 = vmul.f32 %v79, %v147
  %v215 = vmul.f32 %v80, %v147
  %v216 = vmul.f32 %v81, %v147
  %v217 = vmul.f32 %v82, %v147
  %v218 = vmul.f32 %v83, %v147
  %v219 = vmul.f32 %v84, %v147
  %v220 = vmul.f32 %v85, %v147
  %v221 = vmul.f32 %v86, %v147
  %v222 = vmul.f32 %v87, %v147
  %v223 = vmul.f32 %v88, %v147
  %v224 = vmul.f32 %v89, %v147
  %v225 = vmul.f32 %v90, %v147
  %v226 = vmul.f32 %v91, %v147
  %v227 = vmul.f32 %v92, %v147
  %v228 = vmul.f32 %v93, %v147
  %v229 = vmul.f32 %v94, %v147
  %v230 = vmul.f32 %v95, %v147
  %v231 = vmul.f32 %v96, %v147
  %v232 = vmul.f32 %v97, %v147
  %v233 = vmul.f32 %v98, %v147
  %v234 = vmul.f32 %v99, %v147
  %v235 = vmul.f32 %v100, %v147
  %v236 = vmul.f32 %v101, %v147
  %v237 = vmul.f32 %v102, %v147
  %v238 = vmul.f32 %v103, %v147
  %v239 = vmul.f32 %v104, %v147
  %v240 = vmul.f32 %v105, %v147
  %v241 = vmul.f32 %v106, %v147
  %v242 = vmul.f32 %v107, %v147
  %v243 = vmul.f32 %v108, %v147
  %v244 = vmul.f32 %v109, %v147
  %v245 = vmul.f32 %v110, %v147
  %v246 = vmul.f32 %v111, %v147
  %v247 = vmul.f32 %v112, %v147
  %v248 = vmul.f32 %v113, %v147
  %v249 = vmul.f32 %v114, %v147
  %v250 = vmul.f32 %v115, %v147
  %v251 = vmul.f32 %v116, %v147
  %v252 = vmul.f32 %v117, %v147
  %v253 = vmul.f32 %v118, %v147
  %v254 = vmul.f32 %v119, %v147
  %v255 = vmul.f32 %v120, %v147
  %v256 = vmul.f32 %v121, %v147
  %v257 = vmul.f32 %v122, %v147
  %v258 = vmul.f32 %v123, %v147
  %v259 = vmul.f32 %v124, %v147
  %v260 = vmul.f32 %v125, %v147
  %v261 = vmul.f32 %v126, %v147
  %v262 = vmul.f32 %v127, %v147
  %v263 = vmul.f32 %v128, %v147
  %v264 = vmul.f32 %v129, %v147
  %v265 = vmul.f32 %v130, %v147
  %v266 = vmul.f32 %v131, %v147
  %v267 = vmul.f32 %v132, %v147
  %v268 = vmul.f32 %v133, %v147
  %v269 = vmul.f32 %v134, %v147
  %v270 = vmul.f32 %v135, %v147
  %v271 = vmul.f32 %v136, %v147
  %v272 = vmul.f32 %v137, %v147
  %v273 = vmul.f32 %v138, %v147
  %v274 = vmul.f32 %v139, %v147
  %v275 = vmul.f32 %v140, %v147
  %v276 = vmul.f32 %v141, %v147
  %v277 = vld [vmem:[%s2] sm:$0x1]
  %v279 = vlaneseq
  %v280 = vshrl.u32 %v279, 7
  %v281 = vsub.s32 0, %v280
  %v282 = vrot.slane %v277, %v281
  %v284 = vadd.f32 %v149, %v282
  %v285 = vadd.f32 %v150, %v282
  %v286 = vadd.f32 %v151, %v282
  %v287 = vadd.f32 %v152, %v282
  %v288 = vadd.f32 %v153, %v282
  %v289 = vadd.f32 %v154, %v282
  %v290 = vadd.f32 %v155, %v282
  %v291 = vadd.f32 %v156, %v282
  %v292 = vadd.f32 %v157, %v282
  %v293 = vadd.f32 %v158, %v282
  %v294 = vadd.f32 %v159, %v282
  %v295 = vadd.f32 %v160, %v282
  %v296 = vadd.f32 %v161, %v282
  %v297 = vadd.f32 %v162, %v282
  %v298 = vadd.f32 %v163, %v282
  %v299 = vadd.f32 %v164, %v282
  %v300 = vadd.f32 %v165, %v282
  %v301 = vadd.f32 %v166, %v282
  %v302 = vadd.f32 %v167, %v282
  %v303 = vadd.f32 %v168, %v282
  %v304 = vadd.f32 %v169, %v282
  %v305 = vadd.f32 %v170, %v282
  %v306 = vadd.f32 %v171, %v282
  %v307 = vadd.f32 %v172, %v282
  %v308 = vadd.f32 %v173, %v282
  %v309 = vadd.f32 %v174, %v282
  %v310 = vadd.f32 %v175, %v282
  %v311 = vadd.f32 %v176, %v282
  %v312 = vadd.f32 %v177, %v282
  %v313 = vadd.f32 %v178, %v282
  %v314 = vadd.f32 %v179, %v282
  %v315 = vadd.f32 %v180, %v282
  %v316 = vadd.f32 %v181, %v282
  %v317 = vadd.f32 %v182, %v282
  %v318 = vadd.f32 %v183, %v282
  %v319 = vadd.f32 %v184, %v282
  %v320 = vadd.f32 %v185, %v282
  %v321 = vadd.f32 %v186, %v282
  %v322 = vadd.f32 %v187, %v282
  %v323 = vadd.f32 %v188, %v282
  %v324 = vadd.f32 %v189, %v282
  %v325 = vadd.f32 %v190, %v282
  %v326 = vadd.f32 %v191, %v282
  %v327 = vadd.f32 %v192, %v282
  %v328 = vadd.f32 %v193, %v282
  %v329 = vadd.f32 %v194, %v282
  %v330 = vadd.f32 %v195, %v282
  %v331 = vadd.f32 %v196, %v282
  %v332 = vadd.f32 %v197, %v282
  %v333 = vadd.f32 %v198, %v282
  %v334 = vadd.f32 %v199, %v282
  %v335 = vadd.f32 %v200, %v282
  %v336 = vadd.f32 %v201, %v282
  %v337 = vadd.f32 %v202, %v282
  %v338 = vadd.f32 %v203, %v282
  %v339 = vadd.f32 %v204, %v282
  %v340 = vadd.f32 %v205, %v282
  %v341 = vadd.f32 %v206, %v282
  %v342 = vadd.f32 %v207, %v282
  %v343 = vadd.f32 %v208, %v282
  %v344 = vadd.f32 %v209, %v282
  %v345 = vadd.f32 %v210, %v282
  %v346 = vadd.f32 %v211, %v282
  %v347 = vadd.f32 %v212, %v282
  %v348 = vadd.f32 %v213, %v282
  %v349 = vadd.f32 %v214, %v282
  %v350 = vadd.f32 %v215, %v282
  %v351 = vadd.f32 %v216, %v282
  %v352 = vadd.f32 %v217, %v282
  %v353 = vadd.f32 %v218, %v282
  %v354 = vadd.f32 %v219, %v282
  %v355 = vadd.f32 %v220, %v282
  %v356 = vadd.f32 %v221, %v282
  %v357 = vadd.f32 %v222, %v282
  %v358 = vadd.f32 %v223, %v282
  %v359 = vadd.f32 %v224, %v282
  %v360 = vadd.f32 %v225, %v282
  %v361 = vadd.f32 %v226, %v282
  %v362 = vadd.f32 %v227, %v282
  %v363 = vadd.f32 %v228, %v282
  %v364 = vadd.f32 %v229, %v282
  %v365 = vadd.f32 %v230, %v282
  %v366 = vadd.f32 %v231, %v282
  %v367 = vadd.f32 %v232, %v282
  %v368 = vadd.f32 %v233, %v282
  %v369 = vadd.f32 %v234, %v282
  %v370 = vadd.f32 %v235, %v282
  %v371 = vadd.f32 %v236, %v282
  %v372 = vadd.f32 %v237, %v282
  %v373 = vadd.f32 %v238, %v282
  %v374 = vadd.f32 %v239, %v282
  %v375 = vadd.f32 %v240, %v282
  %v376 = vadd.f32 %v241, %v282
  %v377 = vadd.f32 %v242, %v282
  %v378 = vadd.f32 %v243, %v282
  %v379 = vadd.f32 %v244, %v282
  %v380 = vadd.f32 %v245, %v282
  %v381 = vadd.f32 %v246, %v282
  %v382 = vadd.f32 %v247, %v282
  %v383 = vadd.f32 %v248, %v282
  %v384 = vadd.f32 %v249, %v282
  %v385 = vadd.f32 %v250, %v282
  %v386 = vadd.f32 %v251, %v282
  %v387 = vadd.f32 %v252, %v282
  %v388 = vadd.f32 %v253, %v282
  %v389 = vadd.f32 %v254, %v282
  %v390 = vadd.f32 %v255, %v282
  %v391 = vadd.f32 %v256, %v282
  %v392 = vadd.f32 %v257, %v282
  %v393 = vadd.f32 %v258, %v282
  %v394 = vadd.f32 %v259, %v282
  %v395 = vadd.f32 %v260, %v282
  %v396 = vadd.f32 %v261, %v282
  %v397 = vadd.f32 %v262, %v282
  %v398 = vadd.f32 %v263, %v282
  %v399 = vadd.f32 %v264, %v282
  %v400 = vadd.f32 %v265, %v282
  %v401 = vadd.f32 %v266, %v282
  %v402 = vadd.f32 %v267, %v282
  %v403 = vadd.f32 %v268, %v282
  %v404 = vadd.f32 %v269, %v282
  %v405 = vadd.f32 %v270, %v282
  %v406 = vadd.f32 %v271, %v282
  %v407 = vadd.f32 %v272, %v282
  %v408 = vadd.f32 %v273, %v282
  %v409 = vadd.f32 %v274, %v282
  %v410 = vadd.f32 %v275, %v282
  %v411 = vadd.f32 %v276, %v282
  %v412 = vmax.f32 %v284, 0.0
  %v413 = vmax.f32 %v285, 0.0
  %v414 = vmax.f32 %v286, 0.0
  %v415 = vmax.f32 %v287, 0.0
  %v416 = vmax.f32 %v288, 0.0
  %v417 = vmax.f32 %v289, 0.0
  %v418 = vmax.f32 %v290, 0.0
  %v419 = vmax.f32 %v291, 0.0
  %v420 = vmax.f32 %v292, 0.0
  %v421 = vmax.f32 %v293, 0.0
  %v422 = vmax.f32 %v294, 0.0
  %v423 = vmax.f32 %v295, 0.0
  %v424 = vmax.f32 %v296, 0.0
  %v425 = vmax.f32 %v297, 0.0
  %v426 = vmax.f32 %v298, 0.0
  %v427 = vmax.f32 %v299, 0.0
  %v428 = vmax.f32 %v300, 0.0
  %v429 = vmax.f32 %v301, 0.0
  %v430 = vmax.f32 %v302, 0.0
  %v431 = vmax.f32 %v303, 0.0
  %v432 = vmax.f32 %v304, 0.0
  %v433 = vmax.f32 %v305, 0.0
  %v434 = vmax.f32 %v306, 0.0
  %v435 = vmax.f32 %v307, 0.0
  %v436 = vmax.f32 %v308, 0.0
  %v437 = vmax.f32 %v309, 0.0
  %v438 = vmax.f32 %v310, 0.0
  %v439 = vmax.f32 %v311, 0.0
  %v440 = vmax.f32 %v312, 0.0
  %v441 = vmax.f32 %v313, 0.0
  %v442 = vmax.f32 %v314, 0.0
  %v443 = vmax.f32 %v315, 0.0
  %v444 = vmax.f32 %v316, 0.0
  %v445 = vmax.f32 %v317, 0.0
  %v446 = vmax.f32 %v318, 0.0
  %v447 = vmax.f32 %v319, 0.0
  %v448 = vmax.f32 %v320, 0.0
  %v449 = vmax.f32 %v321, 0.0
  %v450 = vmax.f32 %v322, 0.0
  %v451 = vmax.f32 %v323, 0.0
  %v452 = vmax.f32 %v324, 0.0
  %v453 = vmax.f32 %v325, 0.0
  %v454 = vmax.f32 %v326, 0.0
  %v455 = vmax.f32 %v327, 0.0
  %v456 = vmax.f32 %v328, 0.0
  %v457 = vmax.f32 %v329, 0.0
  %v458 = vmax.f32 %v330, 0.0
  %v459 = vmax.f32 %v331, 0.0
  %v460 = vmax.f32 %v332, 0.0
  %v461 = vmax.f32 %v333, 0.0
  %v462 = vmax.f32 %v334, 0.0
  %v463 = vmax.f32 %v335, 0.0
  %v464 = vmax.f32 %v336, 0.0
  %v465 = vmax.f32 %v337, 0.0
  %v466 = vmax.f32 %v338, 0.0
  %v467 = vmax.f32 %v339, 0.0
  %v468 = vmax.f32 %v340, 0.0
  %v469 = vmax.f32 %v341, 0.0
  %v470 = vmax.f32 %v342, 0.0
  %v471 = vmax.f32 %v343, 0.0
  %v472 = vmax.f32 %v344, 0.0
  %v473 = vmax.f32 %v345, 0.0
  %v474 = vmax.f32 %v346, 0.0
  %v475 = vmax.f32 %v347, 0.0
  %v476 = vmax.f32 %v348, 0.0
  %v477 = vmax.f32 %v349, 0.0
  %v478 = vmax.f32 %v350, 0.0
  %v479 = vmax.f32 %v351, 0.0
  %v480 = vmax.f32 %v352, 0.0
  %v481 = vmax.f32 %v353, 0.0
  %v482 = vmax.f32 %v354, 0.0
  %v483 = vmax.f32 %v355, 0.0
  %v484 = vmax.f32 %v356, 0.0
  %v485 = vmax.f32 %v357, 0.0
  %v486 = vmax.f32 %v358, 0.0
  %v487 = vmax.f32 %v359, 0.0
  %v488 = vmax.f32 %v360, 0.0
  %v489 = vmax.f32 %v361, 0.0
  %v490 = vmax.f32 %v362, 0.0
  %v491 = vmax.f32 %v363, 0.0
  %v492 = vmax.f32 %v364, 0.0
  %v493 = vmax.f32 %v365, 0.0
  %v494 = vmax.f32 %v366, 0.0
  %v495 = vmax.f32 %v367, 0.0
  %v496 = vmax.f32 %v368, 0.0
  %v497 = vmax.f32 %v369, 0.0
  %v498 = vmax.f32 %v370, 0.0
  %v499 = vmax.f32 %v371, 0.0
  %v500 = vmax.f32 %v372, 0.0
  %v501 = vmax.f32 %v373, 0.0
  %v502 = vmax.f32 %v374, 0.0
  %v503 = vmax.f32 %v375, 0.0
  %v504 = vmax.f32 %v376, 0.0
  %v505 = vmax.f32 %v377, 0.0
  %v506 = vmax.f32 %v378, 0.0
  %v507 = vmax.f32 %v379, 0.0
  %v508 = vmax.f32 %v380, 0.0
  %v509 = vmax.f32 %v381, 0.0
  %v510 = vmax.f32 %v382, 0.0
  %v511 = vmax.f32 %v383, 0.0
  %v512 = vmax.f32 %v384, 0.0
  %v513 = vmax.f32 %v385, 0.0
  %v514 = vmax.f32 %v386, 0.0
  %v515 = vmax.f32 %v387, 0.0
  %v516 = vmax.f32 %v388, 0.0
  %v517 = vmax.f32 %v389, 0.0
  %v518 = vmax.f32 %v390, 0.0
  %v519 = vmax.f32 %v391, 0.0
  %v520 = vmax.f32 %v392, 0.0
  %v521 = vmax.f32 %v393, 0.0
  %v522 = vmax.f32 %v394, 0.0
  %v523 = vmax.f32 %v395, 0.0
  %v524 = vmax.f32 %v396, 0.0
  %v525 = vmax.f32 %v397, 0.0
  %v526 = vmax.f32 %v398, 0.0
  %v527 = vmax.f32 %v399, 0.0
  %v528 = vmax.f32 %v400, 0.0
  %v529 = vmax.f32 %v401, 0.0
  %v530 = vmax.f32 %v402, 0.0
  %v531 = vmax.f32 %v403, 0.0
  %v532 = vmax.f32 %v404, 0.0
  %v533 = vmax.f32 %v405, 0.0
  %v534 = vmax.f32 %v406, 0.0
  %v535 = vmax.f32 %v407, 0.0
  %v536 = vmax.f32 %v408, 0.0
  %v537 = vmax.f32 %v409, 0.0
  %v538 = vmax.f32 %v410, 0.0
  %v539 = vmax.f32 %v411, 0.0
  %540 = vst [vmem:[%s3] sm:$0xff] %v412
  %541 = vst [vmem:[%s3 + $0x8] sm:$0xff] %v413
  %542 = vst [vmem:[%s3 + $0x10] sm:$0xff] %v414
  %543 = vst [vmem:[%s3 + $0x18] sm:$0xff] %v415
  %544 = vst [vmem:[%s3 + $0x20] sm:$0xff] %v416
  %545 = vst [vmem:[%s3 + $0x28] sm:$0xff] %v417
  %546 = vst [vmem:[%s3 + $0x30] sm:$0xff] %v418
  %547 = vst [vmem:[%s3 + $0x38] sm:$0xff] %v419
  %548 = vst [vmem:[%s3 + $0x40] sm:$0xff] %v420
  %549 = vst [vmem:[%s3 + $0x48] sm:$0xff] %v421
  %550 = vst [vmem:[%s3 + $0x50] sm:$0xff] %v422
  %551 = vst [vmem:[%s3 + $0x58] sm:$0xff] %v423
  %552 = vst [vmem:[%s3 + $0x60] sm:$0xff] %v424
  %553 = vst [vmem:[%s3 + $0x68] sm:$0xff] %v425
  %554 = vst [vmem:[%s3 + $0x70] sm:$0xff] %v426
  %555 = vst [vmem:[%s3 + $0x78] sm:$0xff] %v427
  %556 = vst [vmem:[%s3 + $0x80] sm:$0xff] %v428
  %557 = vst [vmem:[%s3 + $0x88] sm:$0xff] %v429
  %558 = vst [vmem:[%s3 + $0x90] sm:$0xff] %v430
  %559 = vst [vmem:[%s3 + $0x98] sm:$0xff] %v431
  %560 = vst [vmem:[%s3 + $0xa0] sm:$0xff] %v432
  %561 = vst [vmem:[%s3 + $0xa8] sm:$0xff] %v433
  %562 = vst [vmem:[%s3 + $0xb0] sm:$0xff] %v434
  %563 = vst [vmem:[%s3 + $0xb8] sm:$0xff] %v435
  %564 = vst [vmem:[%s3 + $0xc0] sm:$0xff] %v436
  %565 = vst [vmem:[%s3 + $0xc8] sm:$0xff] %v437
  %566 = vst [vmem:[%s3 + $0xd0] sm:$0xff] %v438
  %567 = vst [vmem:[%s3 + $0xd8] sm:$0xff] %v439
  %568 = vst [vmem:[%s3 + $0xe0] sm:$0xff] %v440
  %569 = vst [vmem:[%s3 + $0xe8] sm:$0xff] %v441
  %570 = vst [vmem:[%s3 + $0xf0] sm:$0xff] %v442
  %571 = vst [vmem:[%s3 + $0xf8] sm:$0xff] %v443
  %572 = vst [vmem:[%s3 + $0x100] sm:$0xff] %v444
  %573 = vst [vmem:[%s3 + $0x108] sm:$0xff] %v445
  %574 = vst [vmem:[%s3 + $0x110] sm:$0xff] %v446
  %575 = vst [vmem:[%s3 + $0x118] sm:$0xff] %v447
  %576 = vst [vmem:[%s3 + $0x120] sm:$0xff] %v448
  %577 = vst [vmem:[%s3 + $0x128] sm:$0xff] %v449
  %578 = vst [vmem:[%s3 + $0x130] sm:$0xff] %v450
  %579 = vst [vmem:[%s3 + $0x138] sm:$0xff] %v451
  %580 = vst [vmem:[%s3 + $0x140] sm:$0xff] %v452
  %581 = vst [vmem:[%s3 + $0x148] sm:$0xff] %v453
  %582 = vst [vmem:[%s3 + $0x150] sm:$0xff] %v454
  %583 = vst [vmem:[%s3 + $0x158] sm:$0xff] %v455
  %584 = vst [vmem:[%s3 + $0x160] sm:$0xff] %v456
  %585 = vst [vmem:[%s3 + $0x168] sm:$0xff] %v457
  %586 = vst [vmem:[%s3 + $0x170] sm:$0xff] %v458
  %587 = vst [vmem:[%s3 + $0x178] sm:$0xff] %v459
  %588 = vst [vmem:[%s3 + $0x180] sm:$0xff] %v460
  %589 = vst [vmem:[%s3 + $0x188] sm:$0xff] %v461
  %590 = vst [vmem:[%s3 + $0x190] sm:$0xff] %v462
  %591 = vst [vmem:[%s3 + $0x198] sm:$0xff] %v463
  %592 = vst [vmem:[%s3 + $0x1a0] sm:$0xff] %v464
  %593 = vst [vmem:[%s3 + $0x1a8] sm:$0xff] %v465
  %594 = vst [vmem:[%s3 + $0x1b0] sm:$0xff] %v466
  %595 = vst [vmem:[%s3 + $0x1b8] sm:$0xff] %v467
  %596 = vst [vmem:[%s3 + $0x1c0] sm:$0xff] %v468
  %597 = vst [vmem:[%s3 + $0x1c8] sm:$0xff] %v469
  %598 = vst [vmem:[%s3 + $0x1d0] sm:$0xff] %v470
  %599 = vst [vmem:[%s3 + $0x1d8] sm:$0xff] %v471
  %600 = vst [vmem:[%s3 + $0x1e0] sm:$0xff] %v472
  %601 = vst [vmem:[%s3 + $0x1e8] sm:$0xff] %v473
  %602 = vst [vmem:[%s3 + $0x1f0] sm:$0xff] %v474
  %603 = vst [vmem:[%s3 + $0x1f8] sm:$0xff] %v475
  %604 = vst [vmem:[%s3 + $0x200] sm:$0xff] %v476
  %605 = vst [vmem:[%s3 + $0x208] sm:$0xff] %v477
  %606 = vst [vmem:[%s3 + $0x210] sm:$0xff] %v478
  %607 = vst [vmem:[%s3 + $0x218] sm:$0xff] %v479
  %608 = vst [vmem:[%s3 + $0x220] sm:$0xff] %v480
  %609 = vst [vmem:[%s3 + $0x228] sm:$0xff] %v481
  %610 = vst [vmem:[%s3 + $0x230] sm:$0xff] %v482
  %611 = vst [vmem:[%s3 + $0x238] sm:$0xff] %v483
  %612 = vst [vmem:[%s3 + $0x240] sm:$0xff] %v484
  %613 = vst [vmem:[%s3 + $0x248] sm:$0xff] %v485
  %614 = vst [vmem:[%s3 + $0x250] sm:$0xff] %v486
  %615 = vst [vmem:[%s3 + $0x258] sm:$0xff] %v487
  %616 = vst [vmem:[%s3 + $0x260] sm:$0xff] %v488
  %617 = vst [vmem:[%s3 + $0x268] sm:$0xff] %v489
  %618 = vst [vmem:[%s3 + $0x270] sm:$0xff] %v490
  %619 = vst [vmem:[%s3 + $0x278] sm:$0xff] %v491
  %620 = vst [vmem:[%s3 + $0x280] sm:$0xff] %v492
  %621 = vst [vmem:[%s3 + $0x288] sm:$0xff] %v493
  %622 = vst [vmem:[%s3 + $0x290] sm:$0xff] %v494
  %623 = vst [vmem:[%s3 + $0x298] sm:$0xff] %v495
  %624 = vst [vmem:[%s3 + $0x2a0] sm:$0xff] %v496
  %625 = vst [vmem:[%s3 + $0x2a8] sm:$0xff] %v497
  %626 = vst [vmem:[%s3 + $0x2b0] sm:$0xff] %v498
  %627 = vst [vmem:[%s3 + $0x2b8] sm:$0xff] %v499
  %628 = vst [vmem:[%s3 + $0x2c0] sm:$0xff] %v500
  %629 = vst [vmem:[%s3 + $0x2c8] sm:$0xff] %v501
  %630 = vst [vmem:[%s3 + $0x2d0] sm:$0xff] %v502
  %631 = vst [vmem:[%s3 + $0x2d8] sm:$0xff] %v503
  %632 = vst [vmem:[%s3 + $0x2e0] sm:$0xff] %v504
  %633 = vst [vmem:[%s3 + $0x2e8] sm:$0xff] %v505
  %634 = vst [vmem:[%s3 + $0x2f0] sm:$0xff] %v506
  %635 = vst [vmem:[%s3 + $0x2f8] sm:$0xff] %v507
  %636 = vst [vmem:[%s3 + $0x300] sm:$0xff] %v508
  %637 = vst [vmem:[%s3 + $0x308] sm:$0xff] %v509
  %638 = vst [vmem:[%s3 + $0x310] sm:$0xff] %v510
  %639 = vst [vmem:[%s3 + $0x318] sm:$0xff] %v511
  %640 = vst [vmem:[%s3 + $0x320] sm:$0xff] %v512
  %641 = vst [vmem:[%s3 + $0x328] sm:$0xff] %v513
  %642 = vst [vmem:[%s3 + $0x330] sm:$0xff] %v514
  %643 = vst [vmem:[%s3 + $0x338] sm:$0xff] %v515
  %644 = vst [vmem:[%s3 + $0x340] sm:$0xff] %v516
  %645 = vst [vmem:[%s3 + $0x348] sm:$0xff] %v517
  %646 = vst [vmem:[%s3 + $0x350] sm:$0xff] %v518
  %647 = vst [vmem:[%s3 + $0x358] sm:$0xff] %v519
  %648 = vst [vmem:[%s3 + $0x360] sm:$0xff] %v520
  %649 = vst [vmem:[%s3 + $0x368] sm:$0xff] %v521
  %650 = vst [vmem:[%s3 + $0x370] sm:$0xff] %v522
  %651 = vst [vmem:[%s3 + $0x378] sm:$0xff] %v523
  %652 = vst [vmem:[%s3 + $0x380] sm:$0xff] %v524
  %653 = vst [vmem:[%s3 + $0x388] sm:$0xff] %v525
  %654 = vst [vmem:[%s3 + $0x390] sm:$0xff] %v526
  %655 = vst [vmem:[%s3 + $0x398] sm:$0xff] %v527
  %656 = vst [vmem:[%s3 + $0x3a0] sm:$0xff] %v528
  %657 = vst [vmem:[%s3 + $0x3a8] sm:$0xff] %v529
  %658 = vst [vmem:[%s3 + $0x3b0] sm:$0xff] %v530
  %659 = vst [vmem:[%s3 + $0x3b8] sm:$0xff] %v531
  %660 = vst [vmem:[%s3 + $0x3c0] sm:$0xff] %v532
  %661 = vst [vmem:[%s3 + $0x3c8] sm:$0xff] %v533
  %662 = vst [vmem:[%s3 + $0x3d0] sm:$0xff] %v534
  %663 = vst [vmem:[%s3 + $0x3d8] sm:$0xff] %v535
  %664 = vst [vmem:[%s3 + $0x3e0] sm:$0xff] %v536
  %665 = vst [vmem:[%s3 + $0x3e8] sm:$0xff] %v537
  %666 = vst [vmem:[%s3 + $0x3f0] sm:$0xff] %v538
  %667 = vst [vmem:[%s3 + $0x3f8] sm:$0xff] %v539
  // Predicated region
  $region14: #{residual_block_forward.7} parent=0 // pred_check
    _
  $region15: #{residual_block_forward.7} parent=0 // pred_check_branch
    %669 = sbr.rel (0) target = $region17
  $region16: #{residual_block_forward.7} parent=0 // pred_region
    _
  $region17: #{residual_block_forward.7} parent=0 // pred_fallthru
    _
  // Predicated region
  $region18: #{residual_block_forward.7} parent=0 // pred_check
    _
  $region19: #{residual_block_forward.7} parent=0 // pred_check_branch
    %671 = sbr.rel (0) target = $region21
  $region20: #{residual_block_forward.7} parent=0 // pred_region
    _
  $region21: #{residual_block_forward.7} parent=0 // pred_fallthru
    _

// kernel: residual_block_forward.4
$region0: #{residual_block_forward.4}
  #allocation0 [shape = 'u32[]', space=smem, size = 0x4, offset = 0x4, fixed_abs, tag = 'smem constant byte address 0x4 - core index']
  #allocation1 [shape = 'u32[144,128]{1,0:T(1,128)}', space=vmem, size = 0x12000, scoped, tag = 'internal scratch']
  %s0 = inlined_call_operand.vmem [shape: bf16[2,10,10,10,128], index: 0, kind: input, shape index: {}, may-alias: {0,1,2}]
  %s1 = inlined_call_operand.vmem [shape: bf16[2,10,10,10,128], index: 1, kind: input, shape index: {}, may-alias: {0,1,2}]
  %s2 = inlined_call_operand.vmem [shape: bf16[2,10,10,10,128], index: 2, kind: input, shape index: {}, may-alias: {0,1,2}]
  %s3 = inlined_call_operand.vmem [shape: bf16[27,128,128], index: 3, kind: input, shape index: {}]
  %s4 = inlined_call_operand.vmem [shape: f32[2,8,64,128], index: 4, kind: output, shape index: {0}]
  %s5 = inlined_call_operand.vmem [shape: f32[2,8,2,128], index: 5, kind: output, shape index: {1}]
  %6 = xla_tuple %s4, %s5
  %s7 = sld [smem:[#allocation0]]
  $region57: #{residual_block_forward.4} parent=0
    _
  %s9 = ssub.s32 1, %s7
  %s10 = scalar_select 0, %s9, %s7
  loop: start=0, step=1, limit=18
  $region2: #{residual_block_forward.4} parent=0 // loop_pre_header
    _
  $region3: #{residual_block_forward.4} parent=0 // loop_header
    %s12 = sphi 0, %s16
    %p13 = scmp.ge.s32.totalorder %s12, 18
    %s19 = sphi 0, %s31
    %s20 = sphi 0, %s27
    %s21 = sphi 0, %s19
    %s22 = sphi 0, %s20
    %s23 = sphi 0, %s21
    %s24 = sphi 0, %s22
    %s36 = sphi 0, %s38
    %s39 = sphi 0, %s36
    %s40 = sphi 0, %s39
    %s56 = sphi 0, %s40
    %s66 = sphi 0, %s68
    %s69 = sphi 0, %s66
    %s70 = sphi 0, %s69
    %s86 = sphi 0, %s70
    %s96 = sphi 0, %s98
    %s99 = sphi 0, %s96
    %s100 = sphi 0, %s99
    %s116 = sphi 0, %s100
    %s120 = sphi 0, %s120
    %s122 = sphi 0, %s120
    %s123 = sphi 0, %s122
    %s137 = sphi 0, %s123
    %s145 = sphi 0, %s147
    %s148 = sphi 0, %s145
    %s149 = sphi 0, %s148
    %s165 = sphi 0, %s149
    %s173 = sphi 0, %s175
    %s176 = sphi 0, %s173
    %s177 = sphi 0, %s176
    %s193 = sphi 0, %s177
  $region4: #{residual_block_forward.4} parent=0 // loop_header_branch
    %15 = sbr.rel (%p13) target = $region8
  $region5: #{residual_block_forward.4} parent=0 // loop_body
    %s17 = ssub.s32 %s12, 1
    %s18 = ssub.s32 %s12, 2
    %s25 = sadd.s32 1, %s20
    %p26 = scmp.ge.s32.totalorder %s25, 8
    %s27 = scalar_select %p26, 0, %s25
    %s28 = sadd.s32 1, %s19
    %s29 = scalar_select %p26, %s28, %s19
    %p30 = scmp.ge.s32.totalorder %s29, 2
    %s31 = scalar_select %p30, 0, %s29
    %s32 = ssub.s32 %s19, %s31
    %s33 = ssub.s32 %s20, %s27
    %s34 = sor.u32 %s32, %s33
    %p35 = scmp.eq.s32.totalorder %s34, 0
    %s37 = sadd.s32 %s36, 1
    %s38 = scalar_select %p35, %s36, %s37
    %p41 = pneg %p35
    %p42 = scmp.eq.s32.totalorder %s12, 15
    %p43 = por %p41, %p42
    %p44 = scmp.ne.s32.totalorder %s36, %s39
    %p45 = scmp.eq.s32.totalorder %s12, 0
    %p46 = por %p44, %p45
    %p47 = scmp.ne.s32.totalorder %s36, %s39
    %p48 = scmp.eq.s32.totalorder %s17, 15
    %p49 = por %p47, %p48
    %p50 = scmp.ne.s32.totalorder %s39, %s40
    %p51 = scmp.eq.s32.totalorder %s17, 0
    %p52 = por %p50, %p51
    %p53 = scmp.ne.s32.totalorder %s39, %s40
    %p54 = scmp.eq.s32.totalorder %s18, 15
    %p55 = por %p53, %p54
    %p57 = scmp.ne.s32.totalorder %s40, %s56
    %p58 = scmp.eq.s32.totalorder %s18, 0
    %p59 = por %p57, %p58
    %s60 = sadd.s32 %s20, 1
    %s61 = sadd.s32 %s27, 1
    %s62 = ssub.s32 %s19, %s31
    %s63 = ssub.s32 %s60, %s61
    %s64 = sor.u32 %s62, %s63
    %p65 = scmp.eq.s32.totalorder %s64, 0
    %s67 = sadd.s32 %s66, 1
    %s68 = scalar_select %p65, %s66, %s67
    %p71 = pneg %p65
    %p72 = scmp.eq.s32.totalorder %s12, 15
    %p73 = por %p71, %p72
    %p74 = scmp.ne.s32.totalorder %s66, %s69
    %p75 = scmp.eq.s32.totalorder %s12, 0
    %p76 = por %p74, %p75
    %p77 = scmp.ne.s32.totalorder %s66, %s69
    %p78 = scmp.eq.s32.totalorder %s17, 15
    %p79 = por %p77, %p78
    %p80 = scmp.ne.s32.totalorder %s69, %s70
    %p81 = scmp.eq.s32.totalorder %s17, 0
    %p82 = por %p80, %p81
    %p83 = scmp.ne.s32.totalorder %s69, %s70
    %p84 = scmp.eq.s32.totalorder %s18, 15
    %p85 = por %p83, %p84
    %p87 = scmp.ne.s32.totalorder %s70, %s86
    %p88 = scmp.eq.s32.totalorder %s18, 0
    %p89 = por %p87, %p88
    %s90 = sadd.s32 %s20, 2
    %s91 = sadd.s32 %s27, 2
    %s92 = ssub.s32 %s19, %s31
    %s93 = ssub.s32 %s90, %s91
    %s94 = sor.u32 %s92, %s93
    %p95 = scmp.eq.s32.totalorder %s94, 0
    %s97 = sadd.s32 %s96, 1
    %s98 = scalar_select %p95, %s96, %s97
    %p101 = pneg %p95
    %p102 = scmp.eq.s32.totalorder %s12, 15
    %p103 = por %p101, %p102
    %p104 = scmp.ne.s32.totalorder %s96, %s99
    %p105 = scmp.eq.s32.totalorder %s12, 0
    %p106 = por %p104, %p105
    %p107 = scmp.ne.s32.totalorder %s96, %s99
    %p108 = scmp.eq.s32.totalorder %s17, 15
    %p109 = por %p107, %p108
    %p110 = scmp.ne.s32.totalorder %s99, %s100
    %p111 = scmp.eq.s32.totalorder %s17, 0
    %p112 = por %p110, %p111
    %p113 = scmp.ne.s32.totalorder %s99, %s100
    %p114 = scmp.eq.s32.totalorder %s18, 15
    %p115 = por %p113, %p114
    %p117 = scmp.ne.s32.totalorder %s100, %s116
    %p118 = scmp.eq.s32.totalorder %s18, 0
    %p119 = por %p117, %p118
    %s121 = sadd.s32 %s120, 1
    %p124 = scmp.eq.s32.totalorder %s12, 15
    %p125 = scmp.ne.s32.totalorder %s120, %s122
    %p126 = scmp.eq.s32.totalorder %s12, 0
    %p127 = por %p125, %p126
    %p128 = scmp.ne.s32.totalorder %s120, %s122
    %p129 = scmp.eq.s32.totalorder %s17, 15
    %p130 = por %p128, %p129
    %p131 = scmp.ne.s32.totalorder %s122, %s123
    %p132 = scmp.eq.s32.totalorder %s17, 0
    %p133 = por %p131, %p132
    %p134 = scmp.ne.s32.totalorder %s122, %s123
    %p135 = scmp.eq.s32.totalorder %s18, 15
    %p136 = por %p134, %p135
    %p138 = scmp.ne.s32.totalorder %s123, %s137
    %p139 = scmp.eq.s32.totalorder %s18, 0
    %p140 = por %p138, %p139
    %s141 = ssub.s32 %s19, %s31
    %s142 = ssub.s32 %s20, %s27
    %s143 = sor.u32 %s141, %s142
    %p144 = scmp.eq.s32.totalorder %s143, 0
    %s146 = sadd.s32 %s145, 1
    %s147 = scalar_select %p144, %s145, %s146
    %p150 = pneg %p144
    %p151 = scmp.eq.s32.totalorder %s12, 15
    %p152 = por %p150, %p151
    %p153 = scmp.ne.s32.totalorder %s145, %s148
    %p154 = scmp.eq.s32.totalorder %s12, 0
    %p155 = por %p153, %p154
    %p156 = scmp.ne.s32.totalorder %s145, %s148
    %p157 = scmp.eq.s32.totalorder %s17, 15
    %p158 = por %p156, %p157
    %p159 = scmp.ne.s32.totalorder %s148, %s149
    %p160 = scmp.eq.s32.totalorder %s17, 0
    %p161 = por %p159, %p160
    %p162 = scmp.ne.s32.totalorder %s148, %s149
    %p163 = scmp.eq.s32.totalorder %s18, 15
    %p164 = por %p162, %p163
    %p166 = scmp.ne.s32.totalorder %s149, %s165
    %p167 = scmp.eq.s32.totalorder %s18, 0
    %p168 = por %p166, %p167
    %s169 = ssub.s32 %s19, %s31
    %s170 = ssub.s32 %s20, %s27
    %s171 = sor.u32 %s169, %s170
    %p172 = scmp.eq.s32.totalorder %s171, 0
    %s174 = sadd.s32 %s173, 1
    %s175 = scalar_select %p172, %s173, %s174
    %p178 = pneg %p172
    %p179 = scmp.eq.s32.totalorder %s12, 15
    %p180 = por %p178, %p179
    %p181 = scmp.ne.s32.totalorder %s173, %s176
    %p182 = scmp.eq.s32.totalorder %s12, 0
    %p183 = por %p181, %p182
    %p184 = scmp.ne.s32.totalorder %s173, %s176
    %p185 = scmp.eq.s32.totalorder %s17, 15
    %p186 = por %p184, %p185
    %p187 = scmp.ne.s32.totalorder %s176, %s177
    %p188 = scmp.eq.s32.totalorder %s17, 0
    %p189 = por %p187, %p188
    %p190 = scmp.ne.s32.totalorder %s176, %s177
    %p191 = scmp.eq.s32.totalorder %s18, 15
    %p192 = por %p190, %p191
    %p194 = scmp.ne.s32.totalorder %s177, %s193
    %p195 = scmp.eq.s32.totalorder %s18, 0
    %p196 = por %p194, %p195
    %p197 = scmp.le.s32.totalorder 1, %s12
    %p198 = scmp.lt.s32.totalorder %s12, 17
    %p199 = pnand %p197, %p198
    %p200 = pneg %p199
    // Predicated region
    $region9: #{residual_block_forward.4} parent=5 // pred_check
      _
    $region10: #{residual_block_forward.4} parent=5 // pred_check_branch
      %202 = sbr.rel (%p199) target = $region12
    $region11: #{residual_block_forward.4} parent=5 // pred_region
      %s203 = ssub.s32 %s12, 1
      // Predicated region
      $region13: #{residual_block_forward.4} parent=11 // pred_check
        %p204 = pneg %p133
      $region14: #{residual_block_forward.4} parent=11 // pred_check_branch
        %206 = sbr.rel (%p204) target = $region16
      $region15: #{residual_block_forward.4} parent=11 // pred_region
        _
      $region16: #{residual_block_forward.4} parent=11 // pred_fallthru
        _
    $region12: #{residual_block_forward.4} parent=5 // pred_fallthru
      _
    %p207 = scmp.lt.s32.totalorder %s12, 16
    // Predicated region
    $region17: #{residual_block_forward.4} parent=5 // pred_check
      %p208 = pneg %p207
    $region18: #{residual_block_forward.4} parent=5 // pred_check_branch
      %210 = sbr.rel (%p208) target = $region20
    $region19: #{residual_block_forward.4} parent=5 // pred_region
      // Predicated region
      $region21: #{residual_block_forward.4} parent=19 // pred_check
        %p211 = pneg %p46
      $region22: #{residual_block_forward.4} parent=19 // pred_check_branch
        %213 = sbr.rel (%p211) target = $region24
      $region23: #{residual_block_forward.4} parent=19 // pred_region
        %p214 = scmp.lt.s32.totalorder %s19, 1
        %s215 = scalar_select %p214, %s19, 1
        %p216 = scmp.lt.s32.totalorder %s20, 9
        %s217 = scalar_select %p216, %s20, 9
        %s218 = smul.addr %s217, 20
        %s219 = smul.addr %s215, 200
        %s220 = sadd.s32 %s218, %s219
        %s221 = smul.addr %s220, 4
        %s222 = scalar_lea.vmem %s0, %s221
      $region24: #{residual_block_forward.4} parent=19 // pred_fallthru
        _
      // Predicated region
      $region25: #{residual_block_forward.4} parent=19 // pred_check
        %p223 = pneg %p76
      $region26: #{residual_block_forward.4} parent=19 // pred_check_branch
        %225 = sbr.rel (%p223) target = $region28
      $region27: #{residual_block_forward.4} parent=19 // pred_region
        %s226 = sadd.s32 %s20, 1
        %p227 = scmp.lt.s32.totalorder %s19, 1
        %s228 = scalar_select %p227, %s19, 1
        %p229 = scmp.lt.s32.totalorder %s226, 9
        %s230 = scalar_select %p229, %s226, 9
        %s231 = smul.addr %s230, 20
        %s232 = smul.addr %s228, 200
        %s233 = sadd.s32 %s231, %s232
        %s234 = smul.addr %s233, 4
        %s235 = scalar_lea.vmem %s1, %s234
        %s236 = sadd.s32 %s20, 1
      $region28: #{residual_block_forward.4} parent=19 // pred_fallthru
        _
      // Predicated region
      $region29: #{residual_block_forward.4} parent=19 // pred_check
        %p237 = pneg %p106
      $region30: #{residual_block_forward.4} parent=19 // pred_check_branch
        %239 = sbr.rel (%p237) target = $region32
      $region31: #{residual_block_forward.4} parent=19 // pred_region
        %s240 = sadd.s32 %s20, 2
        %p241 = scmp.lt.s32.totalorder %s19, 1
        %s242 = scalar_select %p241, %s19, 1
        %p243 = scmp.lt.s32.totalorder %s240, 9
        %s244 = scalar_select %p243, %s240, 9
        %s245 = smul.addr %s244, 20
        %s246 = smul.addr %s242, 200
        %s247 = sadd.s32 %s245, %s246
        %s248 = smul.addr %s247, 4
        %s249 = scalar_lea.vmem %s2, %s248
        %s250 = sadd.s32 %s20, 2
      $region32: #{residual_block_forward.4} parent=19 // pred_fallthru
        _
    $region20: #{residual_block_forward.4} parent=5 // pred_fallthru
      _
    %p251 = scmp.le.s32.totalorder 1, %s12
    %p252 = scmp.lt.s32.totalorder %s12, 17
    %p253 = pnand %p251, %p252
    %p254 = pneg %p253
    // Predicated region
    $region33: #{residual_block_forward.4} parent=5 // pred_check
      _
    $region34: #{residual_block_forward.4} parent=5 // pred_check_branch
      %256 = sbr.rel (%p253) target = $region36
    $region35: #{residual_block_forward.4} parent=5 // pred_region
      %s257 = ssub.s32 %s12, 1
      %p258 = scmp.lt.s32.totalorder %s21, 1
      %s259 = scalar_select %p258, %s21, 1
      %p260 = scmp.lt.s32.totalorder %s22, 9
      %s261 = scalar_select %p260, %s22, 9
      %s262 = smul.addr %s261, 20
      %s263 = smul.addr %s259, 200
      %s264 = sadd.s32 %s262, %s263
      %s265 = smul.addr %s264, 4
      %s266 = scalar_lea.vmem %s0, %s265
      %p267 = pneg %p52
      %p268 = pneg %p49
      %s269 = sadd.s32 %s22, 1
      %p270 = scmp.lt.s32.totalorder %s21, 1
      %s271 = scalar_select %p270, %s21, 1
      %p272 = scmp.lt.s32.totalorder %s269, 9
      %s273 = scalar_select %p272, %s269, 9
      %s274 = smul.addr %s273, 20
      %s275 = smul.addr %s271, 200
      %s276 = sadd.s32 %s274, %s275
      %s277 = smul.addr %s276, 4
      %s278 = scalar_lea.vmem %s1, %s277
      %p279 = pneg %p82
      %p280 = pneg %p79
      %s281 = sadd.s32 %s22, 2
      %p282 = scmp.lt.s32.totalorder %s21, 1
      %s283 = scalar_select %p282, %s21, 1
      %p284 = scmp.lt.s32.totalorder %s281, 9
      %s285 = scalar_select %p284, %s281, 9
      %s286 = smul.addr %s285, 20
      %s287 = smul.addr %s283, 200
      %s288 = sadd.s32 %s286, %s287
      %s289 = smul.addr %s288, 4
      %s290 = scalar_lea.vmem %s2, %s289
      %p291 = pneg %p112
      %p292 = pneg %p109
      %p293 = pneg %p133
      %p294 = pneg %p130
      %p295 = pneg %p161
      %p296 = pneg %p158
      %p297 = scmp.lt.s32.totalorder %s21, 1
      %s298 = scalar_select %p297, %s21, 1
      %p299 = scmp.lt.s32.totalorder %s22, 7
      %s300 = scalar_select %p299, %s22, 7
      %s301 = smul.addr %s300, 8
      %s302 = smul.addr %s298, 64
      %s303 = sadd.s32 %s301, %s302
      %s304 = smul.addr %s303, 8
      %s305 = scalar_lea.vmem %s4, %s304
      %p306 = pneg %p189
      %p307 = pneg %p186
      %p308 = scmp.lt.s32.totalorder %s21, 1
      %s309 = scalar_select %p308, %s21, 1
      %p310 = scmp.lt.s32.totalorder %s22, 7
      %s311 = scalar_select %p310, %s22, 7
      %s312 = smul.addr %s309, 8
      %s313 = sadd.s32 %s311, %s312
      %s314 = smul.addr %s313, 2
      %s315 = scalar_lea.vmem %s5, %s314
      %p316 = scmp.lt.s32.totalorder %s21, 1
      %s317 = scalar_select %p316, %s21, 1
      %p318 = scmp.lt.s32.totalorder %s22, 9
      %s319 = scalar_select %p318, %s22, 9
      %s320 = smul.addr %s319, 20
      %s321 = smul.addr %s317, 200
      %s322 = sadd.s32 %s320, %s321
      %s323 = smul.addr %s322, 4
      %s324 = scalar_lea.vmem %s0, %s323
      %s325 = sadd.s32 %s22, 1
      %p326 = scmp.lt.s32.totalorder %s21, 1
      %s327 = scalar_select %p326, %s21, 1
      %p328 = scmp.lt.s32.totalorder %s325, 9
      %s329 = scalar_select %p328, %s325, 9
      %s330 = smul.addr %s329, 20
      %s331 = smul.addr %s327, 200
      %s332 = sadd.s32 %s330, %s331
      %s333 = smul.addr %s332, 4
      %s334 = scalar_lea.vmem %s1, %s333
      %s335 = sadd.s32 %s22, 1
      %s336 = sadd.s32 %s22, 2
      %p337 = scmp.lt.s32.totalorder %s21, 1
      %s338 = scalar_select %p337, %s21, 1
      %p339 = scmp.lt.s32.totalorder %s336, 9
      %s340 = scalar_select %p339, %s336, 9
      %s341 = smul.addr %s340, 20
      %s342 = smul.addr %s338, 200
      %s343 = sadd.s32 %s341, %s342
      %s344 = smul.addr %s343, 4
      %s345 = scalar_lea.vmem %s2, %s344
      %s346 = sadd.s32 %s22, 2
      %p347 = scmp.lt.s32.totalorder %s21, 1
      %s348 = scalar_select %p347, %s21, 1
      %p349 = scmp.lt.s32.totalorder %s22, 7
      %s350 = scalar_select %p349, %s22, 7
      %s351 = smul.addr %s350, 8
      %s352 = smul.addr %s348, 64
      %s353 = sadd.s32 %s351, %s352
      %s354 = smul.addr %s353, 8
      %s355 = scalar_lea.vmem %s4, %s354
      %p356 = scmp.lt.s32.totalorder %s21, 1
      %s357 = scalar_select %p356, %s21, 1
      %p358 = scmp.lt.s32.totalorder %s22, 7
      %s359 = scalar_select %p358, %s22, 7
      %s360 = smul.addr %s357, 8
      %s361 = sadd.s32 %s359, %s360
      %s362 = smul.addr %s361, 2
      %s363 = scalar_lea.vmem %s5, %s362
      %v365 = vld [vmem:[%s324] sm:$0xf]
      %v366 = vld [vmem:[%s324 + $0x8] sm:$0xf]
      %v367 = vld [vmem:[%s324 + $0x10] sm:$0xf]
      %v368 = vld [vmem:[%s324 + $0x18] sm:$0xf]
      %v369 = vld [vmem:[%s324 + $0x20] sm:$0xf]
      %v370 = vld [vmem:[%s324 + $0x28] sm:$0xf]
      %v371 = vld [vmem:[%s324 + $0x30] sm:$0xf]
      %v372 = vld [vmem:[%s324 + $0x38] sm:$0xf]
      %v373 = vld [vmem:[%s3] sm:$0xf]
      %v374 = vld [vmem:[%s3 + $0x4] sm:$0xf]
      %v375 = vld [vmem:[%s3 + $0x8] sm:$0xf]
      %v376 = vld [vmem:[%s3 + $0xc] sm:$0xf]
      %v377 = vld [vmem:[%s3 + $0x10] sm:$0xf]
      %v378 = vld [vmem:[%s3 + $0x14] sm:$0xf]
      %v379 = vld [vmem:[%s3 + $0x18] sm:$0xf]
      %v380 = vld [vmem:[%s3 + $0x1c] sm:$0xf]
      %v381 = vld [vmem:[%s3 + $0x20] sm:$0xf]
      %v382 = vld [vmem:[%s3 + $0x24] sm:$0xf]
      %v383 = vld [vmem:[%s3 + $0x28] sm:$0xf]
      %v384 = vld [vmem:[%s3 + $0x2c] sm:$0xf]
      %v385 = vld [vmem:[%s3 + $0x30] sm:$0xf]
      %v386 = vld [vmem:[%s3 + $0x34] sm:$0xf]
      %v387 = vld [vmem:[%s3 + $0x38] sm:$0xf]
      %v388 = vld [vmem:[%s3 + $0x3c] sm:$0xf]
      %v389 = vld [vmem:[%s324 + $0x4] sm:$0x1]
      %v390 = vld [vmem:[%s324 + $0xc] sm:$0x1]
      %v391 = vld [vmem:[%s324 + $0x14] sm:$0x1]
      %v392 = vld [vmem:[%s324 + $0x1c] sm:$0x1]
      %v393 = vld [vmem:[%s324 + $0x24] sm:$0x1]
      %v394 = vld [vmem:[%s324 + $0x2c] sm:$0x1]
      %v395 = vld [vmem:[%s324 + $0x34] sm:$0x1]
      %v396 = vld [vmem:[%s324 + $0x3c] sm:$0x1]
      %vm397 = vsmask.f32 3328
      %vm398 = vsmask.f32 7440
      %vm399 = vmor %vm397, %vm398
      %v401 = vshrl.u32 %v365, 16
      %v403 = vrot.slane %v401, 4
      %v404 = vshll.u32 %v365, 16
      %v406 = vrot.slane %v404, 5
      %v407 = vor.u32 %v403, %v406
      %v408 = vrot.slane %v407, 4
      %v410 = vshll.u32 %v389, 16
      %v412 = vrot.slane %v410, 5
      %v413 = vsel %vm399, %v408, %v412
      %v415 = vshrl.u32 %v366, 16
      %v417 = vrot.slane %v415, 4
      %v418 = vshll.u32 %v366, 16
      %v420 = vrot.slane %v418, 5
      %v421 = vor.u32 %v417, %v420
      %v422 = vrot.slane %v421, 4
      %v424 = vshll.u32 %v390, 16
      %v426 = vrot.slane %v424, 5
      %v427 = vsel %vm399, %v422, %v426
      %v429 = vshrl.u32 %v367, 16
      %v431 = vrot.slane %v429, 4
      %v432 = vshll.u32 %v367, 16
      %v434 = vrot.slane %v432, 5
      %v435 = vor.u32 %v431, %v434
      %v436 = vrot.slane %v435, 4
      %v438 = vshll.u32 %v391, 16
      %v440 = vrot.slane %v438, 5
      %v441 = vsel %vm399, %v436, %v440
      %v443 = vshrl.u32 %v368, 16
      %v445 = vrot.slane %v443, 4
      %v446 = vshll.u32 %v368, 16
      %v448 = vrot.slane %v446, 5
      %v449 = vor.u32 %v445, %v448
      %v450 = vrot.slane %v449, 4
      %v452 = vshll.u32 %v392, 16
      %v454 = vrot.slane %v452, 5
      %v455 = vsel %vm399, %v450, %v454
      %v457 = vshrl.u32 %v369, 16
      %v459 = vrot.slane %v457, 4
      %v460 = vshll.u32 %v369, 16
      %v462 = vrot.slane %v460, 5
      %v463 = vor.u32 %v459, %v462
      %v464 = vrot.slane %v463, 4
      %v466 = vshll.u32 %v393, 16
      %v468 = vrot.slane %v466, 5
      %v469 = vsel %vm399, %v464, %v468
      %v471 = vshrl.u32 %v370, 16
      %v473 = vrot.slane %v471, 4
      %v474 = vshll.u32 %v370, 16
      %v476 = vrot.slane %v474, 5
      %v477 = vor.u32 %v473, %v476
      %v478 = vrot.slane %v477, 4
      %v480 = vshll.u32 %v394, 16
      %v482 = vrot.slane %v480, 5
      %v483 = vsel %vm399, %v478, %v482
      %v485 = vshrl.u32 %v371, 16
      %v487 = vrot.slane %v485, 4
      %v488 = vshll.u32 %v371, 16
      %v490 = vrot.slane %v488, 5
      %v491 = vor.u32 %v487, %v490
      %v492 = vrot.slane %v491, 4
      %v494 = vshll.u32 %v395, 16
      %v496 = vrot.slane %v494, 5
      %v497 = vsel %vm399, %v492, %v496
      %v499 = vshrl.u32 %v372, 16
      %v501 = vrot.slane %v499, 4
      %v502 = vshll.u32 %v372, 16
      %v504 = vrot.slane %v502, 5
      %v505 = vor.u32 %v501, %v504
      %v506 = vrot.slane %v505, 4
      %v508 = vshll.u32 %v396, 16
      %v510 = vrot.slane %v508, 5
      %v511 = vsel %vm399, %v506, %v510
      %s512 = scalar_lea.vmem %s3, 64
      %v513 = vld [vmem:[%s512] sm:$0xf]
      %v514 = vld [vmem:[%s512 + $0x4] sm:$0xf]
      %v515 = vld [vmem:[%s512 + $0x8] sm:$0xf]
      %v516 = vld [vmem:[%s512 + $0xc] sm:$0xf]
      %v517 = vld [vmem:[%s512 + $0x10] sm:$0xf]
      %v518 = vld [vmem:[%s512 + $0x14] sm:$0xf]
      %v519 = vld [vmem:[%s512 + $0x18] sm:$0xf]
      %v520 = vld [vmem:[%s512 + $0x1c] sm:$0xf]
      %v521 = vld [vmem:[%s512 + $0x20] sm:$0xf]
      %v522 = vld [vmem:[%s512 + $0x24] sm:$0xf]
      %v523 = vld [vmem:[%s512 + $0x28] sm:$0xf]
      %v524 = vld [vmem:[%s512 + $0x2c] sm:$0xf]
      %v525 = vld [vmem:[%s512 + $0x30] sm:$0xf]
      %v526 = vld [vmem:[%s512 + $0x34] sm:$0xf]
      %v527 = vld [vmem:[%s512 + $0x38] sm:$0xf]
      %v528 = vld [vmem:[%s512 + $0x3c] sm:$0xf]
      %v529 = vunpack.c.l.b16 %v413
      %v530 = vunpack.c.l.b16 %v427
      %v531 = vunpack.c.l.b16 %v441
      %v532 = vunpack.c.l.b16 %v455
      %v533 = vunpack.c.l.b16 %v469
      %v534 = vunpack.c.l.b16 %v483
      %v535 = vunpack.c.l.b16 %v497
      %v536 = vunpack.c.l.b16 %v511
      %v537 = vpack.c.b16 %v530, %v529
      %v538 = vpack.c.b16 %v532, %v531
      %v539 = vpack.c.b16 %v534, %v533
      %v540 = vpack.c.b16 %v536, %v535
      %v561 = vunpack.c.l.b16 %v513
      %v562 = vunpack.c.l.b16 %v514
      %v563 = vunpack.c.l.b16 %v515
      %v564 = vunpack.c.l.b16 %v516
      %v565 = vunpack.c.l.b16 %v517
      %v566 = vunpack.c.l.b16 %v518
      %v567 = vunpack.c.l.b16 %v519
      %v568 = vunpack.c.l.b16 %v520
      %v569 = vunpack.c.l.b16 %v521
      %v570 = vunpack.c.l.b16 %v522
      %v571 = vunpack.c.l.b16 %v523
      %v572 = vunpack.c.l.b16 %v524
      %v573 = vunpack.c.l.b16 %v525
      %v574 = vunpack.c.l.b16 %v526
      %v575 = vunpack.c.l.b16 %v527
      %v576 = vunpack.c.l.b16 %v528
      %v577 = vpack.c.b16 %v562, %v561
      %v578 = vpack.c.b16 %v564, %v563
      %v579 = vpack.c.b16 %v566, %v565
      %v580 = vpack.c.b16 %v568, %v567
      %v581 = vpack.c.b16 %v570, %v569
      %v582 = vpack.c.b16 %v572, %v571
      %v583 = vpack.c.b16 %v574, %v573
      %v584 = vpack.c.b16 %v576, %v575
      %593 = vmatprep.subr.bf16.mxu0 0
      %594 = vmatpush1.bf16.msra.mxu0 %v577
      %595 = vmatprep.subr.bf16.mxu0 0
      %596 = vmatpush1.bf16.msra.mxu0 %v578
      %597 = vmatprep.subr.bf16.mxu0 0
      %598 = vmatpush1.bf16.msra.mxu0 %v579
      %599 = vmatprep.subr.bf16.mxu0 0
      %600 = vmatpush1.bf16.msra.mxu0 %v580
      %601 = vmatprep.subr.bf16.mxu0 0
      %602 = vmatpush1.bf16.msra.mxu0 %v581
      %603 = vmatprep.subr.bf16.mxu0 0
      %604 = vmatpush1.bf16.msra.mxu0 %v582
      %605 = vmatprep.subr.bf16.mxu0 0
      %606 = vmatpush1.bf16.msra.mxu0 %v583
      %607 = vmatprep.subr.bf16.mxu0 0
      %608 = vmatpush1.bf16.msra.mxu0 %v584
      %609 = vmatprep.subr.bf16.mxu0 0
      %610 = vmatpush1.bf16.msra.mxu0 0
      %611 = vmatprep.subr.bf16.mxu0 0
      %612 = vmatpush1.bf16.msra.mxu0 0
      %613 = vmatprep.subr.bf16.mxu0 0
      %614 = vmatpush1.bf16.msra.mxu0 0
      %615 = vmatprep.subr.bf16.mxu0 0
      %616 = vmatpush1.bf16.msra.mxu0 0
      %617 = vmatprep.subr.bf16.mxu0 0
      %618 = vmatpush1.bf16.msra.mxu0 0
      %619 = vmatprep.subr.bf16.mxu0 0
      %620 = vmatpush1.bf16.msra.mxu0 0
      %621 = vmatprep.subr.bf16.mxu0 0
      %622 = vmatpush1.bf16.msra.mxu0 0
      %623 = vmatprep.subr.bf16.mxu0 0
      %624 = vmatpush1.bf16.msra.mxu0 0
      %625 = vmatprep.mubr.bf16.mxu0 0
      %626 = vmatmul.mubr.bf16.gmra.mrb[0].mxu0 %v537
      %v627 = vpop.f32.mrb[0].mxu0
      %v628 = vadd.f32 0.0, %v627
      %v629 = vpop.f32.mrb[0].mxu0
      %v630 = vpop.f32.mrb[0].mxu0
      %v631 = vadd.f32 0.0, %v630
      %v632 = vpop.f32.mrb[0].mxu0
      %633 = vmatprep.mubr.bf16.mxu0 0
      %634 = vmatmul.mubr.bf16.gmra.mrb[0].mxu0 %v538
      %v635 = vpop.f32.mrb[0].mxu0
      %v636 = vadd.f32 0.0, %v635
      %v637 = vpop.f32.mrb[0].mxu0
      %v638 = vpop.f32.mrb[0].mxu0
      %v639 = vadd.f32 0.0, %v638
      %v640 = vpop.f32.mrb[0].mxu0
      %641 = vmatprep.mubr.bf16.mxu0 0
      %642 = vmatmul.mubr.bf16.gmra.mrb[0].mxu0 %v539
      %v643 = vpop.f32.mrb[0].mxu0
      %v644 = vadd.f32 0.0, %v643
      %v645 = vpop.f32.mrb[0].mxu0
      %v646 = vpop.f32.mrb[0].mxu0
      %v647 = vadd.f32 0.0, %v646
      %v648 = vpop.f32.mrb[0].mxu0
      %649 = vmatprep.mubr.bf16.mxu0 0
      %650 = vmatmul.mubr.bf16.gmra.mrb[0].mxu0 %v540
      %v651 = vpop.f32.mrb[0].mxu0
      %v652 = vadd.f32 0.0, %v651
      %v653 = vpop.f32.mrb[0].mxu0
      %v654 = vpop.f32.mrb[0].mxu0
      %v655 = vadd.f32 0.0, %v654
      %v656 = vpop.f32.mrb[0].mxu0
      %657 = vdwg.mxu0
      %v666 = vunpack.c.l.b16 %v365
      %v667 = vunpack.c.l.b16 %v366
      %v668 = vunpack.c.l.b16 %v367
      %v669 = vunpack.c.l.b16 %v368
      %v670 = vunpack.c.l.b16 %v369
      %v671 = vunpack.c.l.b16 %v370
      %v672 = vunpack.c.l.b16 %v371
      %v673 = vunpack.c.l.b16 %v372
      %v674 = vpack.c.b16 %v667, %v666
      %v675 = vpack.c.b16 %v669, %v668
      %v676 = vpack.c.b16 %v671, %v670
      %v677 = vpack.c.b16 %v673, %v672
      %v698 = vunpack.c.l.b16 %v373
      %v699 = vunpack.c.l.b16 %v374
      %v700 = vunpack.c.l.b16 %v375
      %v701 = vunpack.c.l.b16 %v376
      %v702 = vunpack.c.l.b16 %v377
      %v703 = vunpack.c.l.b16 %v378
      %v704 = vunpack.c.l.b16 %v379
      %v705 = vunpack.c.l.b16 %v380
      %v706 = vunpack.c.l.b16 %v381
      %v707 = vunpack.c.l.b16 %v382
      %v708 = vunpack.c.l.b16 %v383
      %v709 = vunpack.c.l.b16 %v384
      %v710 = vunpack.c.l.b16 %v385
      %v711 = vunpack.c.l.b16 %v386
      %v712 = vunpack.c.l.b16 %v387
      %v713 = vunpack.c.l.b16 %v388
      %v714 = vpack.c.b16 %v699, %v698
      %v715 = vpack.c.b16 %v701, %v700
      %v716 = vpack.c.b16 %v703, %v702
      %v717 = vpack.c.b16 %v705, %v704
      %v718 = vpack.c.b16 %v707, %v706
      %v719 = vpack.c.b16 %v709, %v708
      %v720 = vpack.c.b16 %v711, %v710
      %v721 = vpack.c.b16 %v713, %v712
      %730 = vmatprep.subr.bf16.mxu0 0
      %731 = vmatpush1.bf16.msra.mxu0 %v714
      %732 = vmatprep.subr.bf16.mxu0 0
      %733 = vmatpush1.bf16.msra.mxu0 %v715
      %734 = vmatprep.subr.bf16.mxu0 0
      %735 = vmatpush1.bf16.msra.mxu0 %v716
      %736 = vmatprep.subr.bf16.mxu0 0
      %737 = vmatpush1.bf16.msra.mxu0 %v717
      %738 = vmatprep.subr.bf16.mxu0 0
      %739 = vmatpush1.bf16.msra.mxu0 %v718
      %740 = vmatprep.subr.bf16.mxu0 0
      %741 = vmatpush1.bf16.msra.mxu0 %v719
      %742 = vmatprep.subr.bf16.mxu0 0
      %743 = vmatpush1.bf16.msra.mxu0 %v720
      %744 = vmatprep.subr.bf16.mxu0 0
      %745 = vmatpush1.bf16.msra.mxu0 %v721
      %746 = vmatprep.subr.bf16.mxu0 0
      %747 = vmatpush1.bf16.msra.mxu0 0
      %748 = vmatprep.subr.bf16.mxu0 0
      %749 = vmatpush1.bf16.msra.mxu0 0
      %750 = vmatprep.subr.bf16.mxu0 0
      %751 = vmatpush1.bf16.msra.mxu0 0
      %752 = vmatprep.subr.bf16.mxu0 0
      %753 = vmatpush1.bf16.msra.mxu0 0
      %754 = vmatprep.subr.bf16.mxu0 0
      %755 = vmatpush1.bf16.msra.mxu0 0
      %756 = vmatprep.subr.bf16.mxu0 0
      %757 = vmatpush1.bf16.msra.mxu0 0
      %758 = vmatprep.subr.bf16.mxu0 0
      %759 = vmatpush1.bf16.msra.mxu0 0
      %760 = vmatprep.subr.bf16.mxu0 0
      %761 = vmatpush1.bf16.msra.mxu0 0
      %762 = vmatprep.mubr.bf16.mxu0 0
      %763 = vmatmul.mubr.bf16.gmra.mrb[0].mxu0 %v674
      %v764 = vpop.f32.mrb[0].mxu0
      %v765 = vadd.f32 %v628, %v764
      %v766 = vpop.f32.mrb[0].mxu0
      %v767 = vpop.f32.mrb[0].mxu0
      %v768 = vadd.f32 %v631, %v767
      %v769 = vpop.f32.mrb[0].mxu0
      %770 = vmatprep.mubr.bf16.mxu0 0
      %771 = vmatmul.mubr.bf16.gmra.mrb[0].mxu0 %v675
      %v772 = vpop.f32.mrb[0].mxu0
      %v773 = vadd.f32 %v636, %v772
      %v774 = vpop.f32.mrb[0].mxu0
      %v775 = vpop.f32.mrb[0].mxu0
      %v776 = vadd.f32 %v639, %v775
      %v777 = vpop.f32.mrb[0].mxu0
      %778 = vmatprep.mubr.bf16.mxu0 0
      %779 = vmatmul.mubr.bf16.gmra.mrb[0].mxu0 %v676
      %v780 = vpop.f32.mrb[0].mxu0
      %v781 = vadd.f32 %v644, %v780
      %v782 = vpop.f32.mrb[0].mxu0
      %v783 = vpop.f32.mrb[0].mxu0
      %v784 = vadd.f32 %v647, %v783
      %v785 = vpop.f32.mrb[0].mxu0
      %786 = vmatprep.mubr.bf16.mxu0 0
      %787 = vmatmul.mubr.bf16.gmra.mrb[0].mxu0 %v677
      %v788 = vpop.f32.mrb[0].mxu0
      %v789 = vadd.f32 %v652, %v788
      %v790 = vpop.f32.mrb[0].mxu0
      %v791 = vpop.f32.mrb[0].mxu0
      %v792 = vadd.f32 %v655, %v791
      %v793 = vpop.f32.mrb[0].mxu0
      %794 = vdwg.mxu0
      %v795 = vld [vmem:[%s324] sm:$0xe]
      %v796 = vld [vmem:[%s324 + $0x8] sm:$0xe]
      %v797 = vld [vmem:[%s324 + $0x10] sm:$0xe]
      %v798 = vld [vmem:[%s324 + $0x18] sm:$0xe]
      %v799 = vld [vmem:[%s324 + $0x20] sm:$0xe]
      %v800 = vld [vmem:[%s324 + $0x28] sm:$0xe]
      %v801 = vld [vmem:[%s324 + $0x30] sm:$0xe]
      %v802 = vld [vmem:[%s324 + $0x38] sm:$0xe]
      %vm819 = vcmask 1042432
      %vm820 = vcmask 1046532
      %vm821 = vmor %vm819, %vm820
      %v822 = vrot.slane %v795, 5
      %v823 = vrot.slane %v822, 4
      %v824 = vrot.slane %v389, 5
      %v825 = vsel %vm821, %v823, %v824
      %v826 = vrot.slane %v796, 5
      %v827 = vrot.slane %v826, 4
      %v828 = vrot.slane %v390, 5
      %v829 = vsel %vm821, %v827, %v828
      %v830 = vrot.slane %v797, 5
      %v831 = vrot.slane %v830, 4
      %v832 = vrot.slane %v391, 5
      %v833 = vsel %vm821, %v831, %v832
      %v834 = vrot.slane %v798, 5
      %v835 = vrot.slane %v834, 4
      %v836 = vrot.slane %v392, 5
      %v837 = vsel %vm821, %v835, %v836
      %v838 = vrot.slane %v799, 5
      %v839 = vrot.slane %v838, 4
      %v840 = vrot.slane %v393, 5
      %v841 = vsel %vm821, %v839, %v840
      %v842 = vrot.slane %v800, 5
      %v843 = vrot.slane %v842, 4
      %v844 = vrot.slane %v394, 5
      %v845 = vsel %vm821, %v843, %v844
      %v846 = vrot.slane %v801, 5
      %v847 = vrot.slane %v846, 4
      %v848 = vrot.slane %v395, 5
      %v849 = vsel %vm821, %v847, %v848
      %v850 = vrot.slane %v802, 5
      %v851 = vrot.slane %v850, 4
      %v852 = vrot.slane %v396, 5
      %v853 = vsel %vm821, %v851, %v852
      %s854 = scalar_lea.vmem %s3, 128
      %v855 = vld [vmem:[%s854] sm:$0xf]
      %v856 = vld [vmem:[%s854 + $0x4] sm:$0xf]
      %v857 = vld [vmem:[%s854 + $0x8] sm:$0xf]
      %v858 = vld [vmem:[%s854 + $0xc] sm:$0xf]
      %v859 = vld [vmem:[%s854 + $0x10] sm:$0xf]
      %v860 = vld [vmem:[%s854 + $0x14] sm:$0xf]
      %v861 = vld [vmem:[%s854 + $0x18] sm:$0xf]
      %v862 = vld [vmem:[%s854 + $0x1c] sm:$0xf]
      %v863 = vld [vmem:[%s854 + $0x20] sm:$0xf]
      %v864 = vld [vmem:[%s854 + $0x24] sm:$0xf]
      %v865 = vld [vmem:[%s854 + $0x28] sm:$0xf]
      %v866 = vld [vmem:[%s854 + $0x2c] sm:$0xf]
      %v867 = vld [vmem:[%s854 + $0x30] sm:$0xf]
      %v868 = vld [vmem:[%s854 + $0x34] sm:$0xf]
      %v869 = vld [vmem:[%s854 + $0x38] sm:$0xf]
      %v870 = vld [vmem:[%s854 + $0x3c] sm:$0xf]
      %v871 = vunpack.c.l.b16 %v825
      %v872 = vunpack.c.l.b16 %v829
      %v873 = vunpack.c.l.b16 %v833
      %v874 = vunpack.c.l.b16 %v837
      %v875 = vunpack.c.l.b16 %v841
      %v876 = vunpack.c.l.b16 %v845
      %v877 = vunpack.c.l.b16 %v849
      %v878 = vunpack.c.l.b16 %v853
      %v879 = vpack.c.b16 %v872, %v871
      %v880 = vpack.c.b16 %v874, %v873
      %v881 = vpack.c.b16 %v876, %v875
      %v882 = vpack.c.b16 %v878, %v877
      %v903 = vunpack.c.l.b16 %v855
      %v904 = vunpack.c.l.b16 %v856
      %v905 = vunpack.c.l.b16 %v857
      %v906 = vunpack.c.l.b16 %v858
      %v907 = vunpack.c.l.b16 %v859
      %v908 = vunpack.c.l.b16 %v860
      %v909 = vunpack.c.l.b16 %v861
      %v910 = vunpack.c.l.b16 %v862
      %v911 = vunpack.c.l.b16 %v863
      %v912 = vunpack.c.l.b16 %v864
      %v913 = vunpack.c.l.b16 %v865
      %v914 = vunpack.c.l.b16 %v866
      %v915 = vunpack.c.l.b16 %v867
      %v916 = vunpack.c.l.b16 %v868
      %v917 = vunpack.c.l.b16 %v869
      %v918 = vunpack.c.l.b16 %v870
      %v919 = vpack.c.b16 %v904, %v903
      %v920 = vpack.c.b16 %v906, %v905
      %v921 = vpack.c.b16 %v908, %v907
      %v922 = vpack.c.b16 %v910, %v909
      %v923 = vpack.c.b16 %v912, %v911
      %v924 = vpack.c.b16 %v914, %v913
      %v925 = vpack.c.b16 %v916, %v915
      %v926 = vpack.c.b16 %v918, %v917
      %935 = vmatprep.subr.bf16.mxu0 0
      %936 = vmatpush1.bf16.msra.mxu0 %v919
      %937 = vmatprep.subr.bf16.mxu0 0
      %938 = vmatpush1.bf16.msra.mxu0 %v920
      %939 = vmatprep.subr.bf16.mxu0 0
      %940 = vmatpush1.bf16.msra.mxu0 %v921
      %941 = vmatprep.subr.bf16.mxu0 0
      %942 = vmatpush1.bf16.msra.mxu0 %v922
      %943 = vmatprep.subr.bf16.mxu0 0
      %944 = vmatpush1.bf16.msra.mxu0 %v923
      %945 = vmatprep.subr.bf16.mxu0 0
      %946 = vmatpush1.bf16.msra.mxu0 %v924
      %947 = vmatprep.subr.bf16.mxu0 0
      %948 = vmatpush1.bf16.msra.mxu0 %v925
      %949 = vmatprep.subr.bf16.mxu0 0
      %950 = vmatpush1.bf16.msra.mxu0 %v926
      %951 = vmatprep.subr.bf16.mxu0 0
      %952 = vmatpush1.bf16.msra.mxu0 0
      %953 = vmatprep.subr.bf16.mxu0 0
      %954 = vmatpush1.bf16.msra.mxu0 0
      %955 = vmatprep.subr.bf16.mxu0 0
      %956 = vmatpush1.bf16.msra.mxu0 0
      %957 = vmatprep.subr.bf16.mxu0 0
      %958 = vmatpush1.bf16.msra.mxu0 0
      %959 = vmatprep.subr.bf16.mxu0 0
      %960 = vmatpush1.bf16.msra.mxu0 0
      %961 = vmatprep.subr.bf16.mxu0 0
      %962 = vmatpush1.bf16.msra.mxu0 0
      %963 = vmatprep.subr.bf16.mxu0 0
      %964 = vmatpush1.bf16.msra.mxu0 0
      %965 = vmatprep.subr.bf16.mxu0 0
      %966 = vmatpush1.bf16.msra.mxu0 0
      %967 = vmatprep.mubr.bf16.mxu0 0
      %968 = vmatmul.mubr.bf16.gmra.mrb[0].mxu0 %v879
      %v969 = vpop.f32.mrb[0].mxu0
      %v970 = vadd.f32 0.0, %v969
      %v971 = vpop.f32.mrb[0].mxu0
      %v972 = vpop.f32.mrb[0].mxu0
      %v973 = vadd.f32 0.0, %v972
      %v974 = vpop.f32.mrb[0].mxu0
      %975 = vmatprep.mubr.bf16.mxu0 0
      %976 = vmatmul.mubr.bf16.gmra.mrb[0].mxu0 %v880
      %v977 = vpop.f32.mrb[0].mxu0
      %v978 = vadd.f32 0.0, %v977
      %v979 = vpop.f32.mrb[0].mxu0
      %v980 = vpop.f32.mrb[0].mxu0
      %v981 = vadd.f32 0.0, %v980
      %v982 = vpop.f32.mrb[0].mxu0
      %983 = vmatprep.mubr.bf16.mxu0 0
      %984 = vmatmul.mubr.bf16.gmra.mrb[0].mxu0 %v881
      %v985 = vpop.f32.mrb[0].mxu0
      %v986 = vadd.f32 0.0, %v985
      %v987 = vpop.f32.mrb[0].mxu0
      %v988 = vpop.f32.mrb[0].mxu0
      %v989 = vadd.f32 0.0, %v988
      %v990 = vpop.f32.mrb[0].mxu0
      %991 = vmatprep.mubr.bf16.mxu0 0
      %992 = vmatmul.mubr.bf16.gmra.mrb[0].mxu0 %v882
      %v993 = vpop.f32.mrb[0].mxu0
      %v994 = vadd.f32 0.0, %v993
      %v995 = vpop.f32.mrb[0].mxu0
      %v996 = vpop.f32.mrb[0].mxu0
      %v997 = vadd.f32 0.0, %v996
      %v998 = vpop.f32.mrb[0].mxu0
      %999 = vdwg.mxu0
      %v1000 = vadd.f32 %v765, %v970
      %v1001 = vadd.f32 %v768, %v973
      %v1002 = vadd.f32 %v773, %v978
      %v1003 = vadd.f32 %v776, %v981
      %v1004 = vadd.f32 %v781, %v986
      %v1005 = vadd.f32 %v784, %v989
      %v1006 = vadd.f32 %v789, %v994
      %v1007 = vadd.f32 %v792, %v997
      %s1008 = scalar_lea.vmem %s324, 8
      %v1009 = vld [vmem:[%s1008] sm:$0xf]
      %v1010 = vld [vmem:[%s1008 + $0x8] sm:$0xf]
      %v1011 = vld [vmem:[%s1008 + $0x10] sm:$0xf]
      %v1012 = vld [vmem:[%s1008 + $0x18] sm:$0xf]
      %v1013 = vld [vmem:[%s1008 + $0x20] sm:$0xf]
      %v1014 = vld [vmem:[%s1008 + $0x28] sm:$0xf]
      %v1015 = vld [vmem:[%s1008 + $0x30] sm:$0xf]
      %v1016 = vld [vmem:[%s1008 + $0x38] sm:$0xf]
      %s1017 = scalar_lea.vmem %s3, 192
      %v1018 = vld [vmem:[%s1017] sm:$0xf]
      %v1019 = vld [vmem:[%s1017 + $0x4] sm:$0xf]
      %v1020 = vld [vmem:[%s1017 + $0x8] sm:$0xf]
      %v1021 = vld [vmem:[%s1017 + $0xc] sm:$0xf]
      %v1022 = vld [vmem:[%s1017 + $0x10] sm:$0xf]
      %v1023 = vld [vmem:[%s1017 + $0x14] sm:$0xf]
      %v1024 = vld [vmem:[%s1017 + $0x18] sm:$0xf]
      %v1025 = vld [vmem:[%s1017 + $0x1c] sm:$0xf]
      %v1026 = vld [vmem:[%s1017 + $0x20] sm:$0xf]
      %v1027 = vld [vmem:[%s1017 + $0x24] sm:$0xf]
      %v1028 = vld [vmem:[%s1017 + $0x28] sm:$0xf]
      %v1029 = vld [vmem:[%s1017 + $0x2c] sm:$0xf]
      %v1030 = vld [vmem:[%s1017 + $0x30] sm:$0xf]
      %v1031 = vld [vmem:[%s1017 + $0x34] sm:$0xf]
      %v1032 = vld [vmem:[%s1017 + $0x38] sm:$0xf]
      %v1033 = vld [vmem:[%s1017 + $0x3c] sm:$0xf]
      %v1042 = vunpack.c.l.b16 %v1009
      %v1043 = vunpack.c.l.b16 %v1010
      %v1044 = vunpack.c.l.b16 %v1011
      %v1045 = vunpack.c.l.b16 %v1012
      %v1046 = vunpack.c.l.b16 %v1013
      %v1047 = vunpack.c.l.b16 %v1014
      %v1048 = vunpack.c.l.b16 %v1015
      %v1049 = vunpack.c.l.b16 %v1016
      %v1050 = vpack.c.b16 %v1043, %v1042
      %v1051 = vpack.c.b16 %v1045, %v1044
      %v1052 = vpack.c.b16 %v1047, %v1046
      %v1053 = vpack.c.b16 %v1049, %v1048
      %v1074 = vunpack.c.l.b16 %v1018
      %v1075 = vunpack.c.l.b16 %v1019
      %v1076 = vunpack.c.l.b16 %v1020
      %v1077 = vunpack.c.l.b16 %v1021
      %v1078 = vunpack.c.l.b16 %v1022
      %v1079 = vunpack.c.l.b16 %v1023
      %v1080 = vunpack.c.l.b16 %v1024
      %v1081 = vunpack.c.l.b16 %v1025
      %v1082 = vunpack.c.l.b16 %v1026
      %v1083 = vunpack.c.l.b16 %v1027
      %v1084 = vunpack.c.l.b16 %v1028
      %v1085 = vunpack.c.l.b16 %v1029
      %v1086 = vunpack.c.l.b16 %v1030
      %v1087 = vunpack.c.l.b16 %v1031
      %v1088 = vunpack.c.l.b16 %v1032
      %v1089 = vunpack.c.l.b16 %v1033
      %v1090 = vpack.c.b16 %v1075, %v1074
      %v1091 = vpack.c.b16 %v1077, %v1076
      %v1092 = vpack.c.b16 %v1079, %v1078
      %v1093 = vpack.c.b16 %v1081, %v1080
      %v1094 = vpack.c.b16 %v1083, %v1082
      %v1095 = vpack.c.b16 %v1085, %v1084
      %v1096 = vpack.c.b16 %v1087, %v1086
      %v1097 = vpack.c.b16 %v1089, %v1088
      %1106 = vmatprep.subr.bf16.mxu0 0
      %1107 = vmatpush1.bf16.msra.mxu0 %v1090
      %1108 = vmatprep.subr.bf16.mxu0 0
      %1109 = vmatpush1.bf16.msra.mxu0 %v1091
      %1110 = vmatprep.subr.bf16.mxu0 0
      %1111 = vmatpush1.bf16.msra.mxu0 %v1092
      %1112 = vmatprep.subr.bf16.mxu0 0
      %1113 = vmatpush1.bf16.msra.mxu0 %v1093
      %1114 = vmatprep.subr.bf16.mxu0 0
      %1115 = vmatpush1.bf16.msra.mxu0 %v1094
      %1116 = vmatprep.subr.bf16.mxu0 0
      %1117 = vmatpush1.bf16.msra.mxu0 %v1095
      %1118 = vmatprep.subr.bf16.mxu0 0
      %1119 = vmatpush1.bf16.msra.mxu0 %v1096
      %1120 = vmatprep.subr.bf16.mxu0 0
      %1121 = vmatpush1.bf16.msra.mxu0 %v1097
      %1122 = vmatprep.subr.bf16.mxu0 0
      %1123 = vmatpush1.bf16.msra.mxu0 0
      %1124 = vmatprep.subr.bf16.mxu0 0
      %1125 = vmatpush1.bf16.msra.mxu0 0
      %1126 = vmatprep.subr.bf16.mxu0 0
      %1127 = vmatpush1.bf16.msra.mxu0 0
      %1128 = vmatprep.subr.bf16.mxu0 0
      %1129 = vmatpush1.bf16.msra.mxu0 0
      %1130 = vmatprep.subr.bf16.mxu0 0
      %1131 = vmatpush1.bf16.msra.mxu0 0
      %1132 = vmatprep.subr.bf16.mxu0 0
      %1133 = vmatpush1.bf16.msra.mxu0 0
      %1134 = vmatprep.subr.bf16.mxu0 0
      %1135 = vmatpush1.bf16.msra.mxu0 0
      %1136 = vmatprep.subr.bf16.mxu0 0
      %1137 = vmatpush1.bf16.msra.mxu0 0
      %1138 = vmatprep.mubr.bf16.mxu0 0
      %1139 = vmatmul.mubr.bf16.gmra.mrb[0].mxu0 %v1050
      %v1140 = vpop.f32.mrb[0].mxu0
      %v1141 = vadd.f32 0.0, %v1140
      %v1142 = vpop.f32.mrb[0].mxu0
      %v1143 = vpop.f32.mrb[0].mxu0
      %v1144 = vadd.f32 0.0, %v1143
      %v1145 = vpop.f32.mrb[0].mxu0
      %1146 = vmatprep.mubr.bf16.mxu0 0
      %1147 = vmatmul.mubr.bf16.gmra.mrb[0].mxu0 %v1051
      %v1148 = vpop.f32.mrb[0].mxu0
      %v1149 = vadd.f32 0.0, %v1148
      %v1150 = vpop.f32.mrb[0].mxu0
      %v1151 = vpop.f32.mrb[0].mxu0
      %v1152 = vadd.f32 0.0, %v1151
      %v1153 = vpop.f32.mrb[0].mxu0
      %1154 = vmatprep.mubr.bf16.mxu0 0
      %1155 = vmatmul.mubr.bf16.gmra.mrb[0].mxu0 %v1052
      %v1156 = vpop.f32.mrb[0].mxu0
      %v1157 = vadd.f32 0.0, %v1156
      %v1158 = vpop.f32.mrb[0].mxu0
      %v1159 = vpop.f32.mrb[0].mxu0
      %v1160 = vadd.f32 0.0, %v1159
      %v1161 = vpop.f32.mrb[0].mxu0
      %1162 = vmatprep.mubr.bf16.mxu0 0
      %1163 = vmatmul.mubr.bf16.gmra.mrb[0].mxu0 %v1053
      %v1164 = vpop.f32.mrb[0].mxu0
      %v1165 = vadd.f32 0.0, %v1164
      %v1166 = vpop.f32.mrb[0].mxu0
      %v1167 = vpop.f32.mrb[0].mxu0
      %v1168 = vadd.f32 0.0, %v1167
      %v1169 = vpop.f32.mrb[0].mxu0
      %1170 = vdwg.mxu0
      %v1171 = vadd.f32 %v1000, %v1141
      %v1172 = vadd.f32 %v1001, %v1144
      %v1173 = vadd.f32 %v1002, %v1149
      %v1174 = vadd.f32 %v1003, %v1152
      %v1175 = vadd.f32 %v1004, %v1157
      %v1176 = vadd.f32 %v1005, %v1160
      %v1177 = vadd.f32 %v1006, %v1165
      %v1178 = vadd.f32 %v1007, %v1168
      %v1179 = vld [vmem:[%s1008] sm:$0xf]
      %v1180 = vld [vmem:[%s1008 + $0x4] sm:$0x1]
      %v1181 = vld [vmem:[%s1008 + $0x8] sm:$0xf]
      %v1182 = vld [vmem:[%s1008 + $0xc] sm:$0x1]
      %v1183 = vld [vmem:[%s1008 + $0x10] sm:$0xf]
      %v1184 = vld [vmem:[%s1008 + $0x14] sm:$0x1]
      %v1185 = vld [vmem:[%s1008 + $0x18] sm:$0xf]
      %v1186 = vld [vmem:[%s1008 + $0x1c] sm:$0x1]
      %v1187 = vld [vmem:[%s1008 + $0x20] sm:$0xf]
      %v1188 = vld [vmem:[%s1008 + $0x24] sm:$0x1]
      %v1189 = vld [vmem:[%s1008 + $0x28] sm:$0xf]
      %v1190 = vld [vmem:[%s1008 + $0x2c] sm:$0x1]
      %v1191 = vld [vmem:[%s1008 + $0x30] sm:$0xf]
      %v1192 = vld [vmem:[%s1008 + $0x34] sm:$0x1]
      %v1193 = vld [vmem:[%s1008 + $0x38] sm:$0xf]
      %v1194 = vld [vmem:[%s1008 + $0x3c] sm:$0x1]
      %v1196 = vshrl.u32 %v1179, 16
      %v1198 = vrot.slane %v1196, 4
      %v1199 = vshll.u32 %v1179, 16
      %v1201 = vrot.slane %v1199, 5
      %v1202 = vor.u32 %v1198, %v1201
      %v1203 = vrot.slane %v1202, 4
      %v1205 = vshll.u32 %v1180, 16
      %v1207 = vrot.slane %v1205, 5
      %v1208 = vsel %vm399, %v1203, %v1207
      %v1210 = vshrl.u32 %v1181, 16
      %v1212 = vrot.slane %v1210, 4
      %v1213 = vshll.u32 %v1181, 16
      %v1215 = vrot.slane %v1213, 5
      %v1216 = vor.u32 %v1212, %v1215
      %v1217 = vrot.slane %v1216, 4
      %v1219 = vshll.u32 %v1182, 16
      %v1221 = vrot.slane %v1219, 5
      %v1222 = vsel %vm399, %v1217, %v1221
      %v1224 = vshrl.u32 %v1183, 16
      %v1226 = vrot.slane %v1224, 4
      %v1227 = vshll.u32 %v1183, 16
      %v1229 = vrot.slane %v1227, 5
      %v1230 = vor.u32 %v1226, %v1229
      %v1231 = vrot.slane %v1230, 4
      %v1233 = vshll.u32 %v1184, 16
      %v1235 = vrot.slane %v1233, 5
      %v1236 = vsel %vm399, %v1231, %v1235
      %v1238 = vshrl.u32 %v1185, 16
      %v1240 = vrot.slane %v1238, 4
      %v1241 = vshll.u32 %v1185, 16
      %v1243 = vrot.slane %v1241, 5
      %v1244 = vor.u32 %v1240, %v1243
      %v1245 = vrot.slane %v1244, 4
      %v1247 = vshll.u32 %v1186, 16
      %v1249 = vrot.slane %v1247, 5
      %v1250 = vsel %vm399, %v1245, %v1249
      %v1252 = vshrl.u32 %v1187, 16
      %v1254 = vrot.slane %v1252, 4
      %v1255 = vshll.u32 %v1187, 16
      %v1257 = vrot.slane %v1255, 5
      %v1258 = vor.u32 %v1254, %v1257
      %v1259 = vrot.slane %v1258, 4
      %v1261 = vshll.u32 %v1188, 16
      %v1263 = vrot.slane %v1261, 5
      %v1264 = vsel %vm399, %v1259, %v1263
      %v1266 = vshrl.u32 %v1189, 16
      %v1268 = vrot.slane %v1266, 4
      %v1269 = vshll.u32 %v1189, 16
      %v1271 = vrot.slane %v1269, 5
      %v1272 = vor.u32 %v1268, %v1271
      %v1273 = vrot.slane %v1272, 4
      %v1275 = vshll.u32 %v1190, 16
      %v1277 = vrot.slane %v1275, 5
      %v1278 = vsel %vm399, %v1273, %v1277
      %v1280 = vshrl.u32 %v1191, 16
      %v1282 = vrot.slane %v1280, 4
      %v1283 = vshll.u32 %v1191, 16
      %v1285 = vrot.slane %v1283, 5
      %v1286 = vor.u32 %v1282, %v1285
      %v1287 = vrot.slane %v1286, 4
      %v1289 = vshll.u32 %v1192, 16
      %v1291 = vrot.slane %v1289, 5
      %v1292 = vsel %vm399, %v1287, %v1291
      %v1294 = vshrl.u32 %v1193, 16
      %v1296 = vrot.slane %v1294, 4
      %v1297 = vshll.u32 %v1193, 16
      %v1299 = vrot.slane %v1297, 5
      %v1300 = vor.u32 %v1296, %v1299
      %v1301 = vrot.slane %v1300, 4
      %v1303 = vshll.u32 %v1194, 16
      %v1305 = vrot.slane %v1303, 5
      %v1306 = vsel %vm399, %v1301, %v1305
      %s1307 = scalar_lea.vmem %s3, 256
      %v1308 = vld [vmem:[%s1307] sm:$0xf]
      %v1309 = vld [vmem:[%s1307 + $0x4] sm:$0xf]
      %v1310 = vld [vmem:[%s1307 + $0x8] sm:$0xf]
      %v1311 = vld [vmem:[%s1307 + $0xc] sm:$0xf]
      %v1312 = vld [vmem:[%s1307 + $0x10] sm:$0xf]
      %v1313 = vld [vmem:[%s1307 + $0x14] sm:$0xf]
      %v1314 = vld [vmem:[%s1307 + $0x18] sm:$0xf]
      %v1315 = vld [vmem:[%s1307 + $0x1c] sm:$0xf]
      %v1316 = vld [vmem:[%s1307 + $0x20] sm:$0xf]
      %v1317 = vld [vmem:[%s1307 + $0x24] sm:$0xf]
      %v1318 = vld [vmem:[%s1307 + $0x28] sm:$0xf]
      %v1319 = vld [vmem:[%s1307 + $0x2c] sm:$0xf]
      %v1320 = vld [vmem:[%s1307 + $0x30] sm:$0xf]
      %v1321 = vld [vmem:[%s1307 + $0x34] sm:$0xf]
      %v1322 = vld [vmem:[%s1307 + $0x38] sm:$0xf]
      %v1323 = vld [vmem:[%s1307 + $0x3c] sm:$0xf]
      %v1324 = vunpack.c.l.b16 %v1208
      %v1325 = vunpack.c.l.b16 %v1222
      %v1326 = vunpack.c.l.b16 %v1236
      %v1327 = vunpack.c.l.b16 %v1250
      %v1328 = vunpack.c.l.b16 %v1264
      %v1329 = vunpack.c.l.b16 %v1278
      %v1330 = vunpack.c.l.b16 %v1292
      %v1331 = vunpack.c.l.b16 %v1306
      %v1332 = vpack.c.b16 %v1325, %v1324
      %v1333 = vpack.c.b16 %v1327, %v1326
      %v1334 = vpack.c.b16 %v1329, %v1328
      %v1335 = vpack.c.b16 %v1331, %v1330
      %v1356 = vunpack.c.l.b16 %v1308
      %v1357 = vunpack.c.l.b16 %v1309
      %v1358 = vunpack.c.l.b16 %v1310
      %v1359 = vunpack.c.l.b16 %v1311
      %v1360 = vunpack.c.l.b16 %v1312
      %v1361 = vunpack.c.l.b16 %v1313
      %v1362 = vunpack.c.l.b16 %v1314
      %v1363 = vunpack.c.l.b16 %v1315
      %v1364 = vunpack.c.l.b16 %v1316
      %v1365 = vunpack.c.l.b16 %v1317
      %v1366 = vunpack.c.l.b16 %v1318
      %v1367 = vunpack.c.l.b16 %v1319
      %v1368 = vunpack.c.l.b16 %v1320
      %v1369 = vunpack.c.l.b16 %v1321
      %v1370 = vunpack.c.l.b16 %v1322
      %v1371 = vunpack.c.l.b16 %v1323
      %v1372 = vpack.c.b16 %v1357, %v1356
      %v1373 = vpack.c.b16 %v1359, %v1358
      %v1374 = vpack.c.b16 %v1361, %v1360
      %v1375 = vpack.c.b16 %v1363, %v1362
      %v1376 = vpack.c.b16 %v1365, %v1364
      %v1377 = vpack.c.b16 %v1367, %v1366
      %v1378 = vpack.c.b16 %v1369, %v1368
      %v1379 = vpack.c.b16 %v1371, %v1370
      %1388 = vmatprep.subr.bf16.mxu0 0
      %1389 = vmatpush1.bf16.msra.mxu0 %v1372
      %1390 = vmatprep.subr.bf16.mxu0 0
      %1391 = vmatpush1.bf16.msra.mxu0 %v1373
      %1392 = vmatprep.subr.bf16.mxu0 0
      %1393 = vmatpush1.bf16.msra.mxu0 %v1374
      %1394 = vmatprep.subr.bf16.mxu0 0
      %1395 = vmatpush1.bf16.msra.mxu0 %v1375
      %1396 = vmatprep.subr.bf16.mxu0 0
      %1397 = vmatpush1.bf16.msra.mxu0 %v1376
      %1398 = vmatprep.subr.bf16.mxu0 0
      %1399 = vmatpush1.bf16.msra.mxu0 %v1377
      %1400 = vmatprep.subr.bf16.mxu0 0
      %1401 = vmatpush1.bf16.msra.mxu0 %v1378
      %1402 = vmatprep.subr.bf16.mxu0 0
      %1403 = vmatpush1.bf16.msra.mxu0 %v1379
      %1404 = vmatprep.subr.bf16.mxu0 0
      %1405 = vmatpush1.bf16.msra.mxu0 0
      %1406 = vmatprep.subr.bf16.mxu0 0
      %1407 = vmatpush1.bf16.msra.mxu0 0
      %1408 = vmatprep.subr.bf16.mxu0 0
      %1409 = vmatpush1.bf16.msra.mxu0 0
      %1410 = vmatprep.subr.bf16.mxu0 0
      %1411 = vmatpush1.bf16.msra.mxu0 0
      %1412 = vmatprep.subr.bf16.mxu0 0
      %1413 = vmatpush1.bf16.msra.mxu0 0
      %1414 = vmatprep.subr.bf16.mxu0 0
      %1415 = vmatpush1.bf16.msra.mxu0 0
      %1416 = vmatprep.subr.bf16.mxu0 0
      %1417 = vmatpush1.bf16.msra.mxu0 0
      %1418 = vmatprep.subr.bf16.mxu0 0
      %1419 = vmatpush1.bf16.msra.mxu0 0
      %1420 = vmatprep.mubr.bf16.mxu0 0
      %1421 = vmatmul.mubr.bf16.gmra.mrb[0].mxu0 %v1332
      %v1422 = vpop.f32.mrb[0].mxu0
      %v1423 = vadd.f32 0.0, %v1422
      %v1424 = vpop.f32.mrb[0].mxu0
      %v1425 = vpop.f32.mrb[0].mxu0
      %v1426 = vadd.f32 0.0, %v1425
      %v1427 = vpop.f32.mrb[0].mxu0
      %1428 = vmatprep.mubr.bf16.mxu0 0
      %1429 = vmatmul.mubr.bf16.gmra.mrb[0].mxu0 %v1333
      %v1430 = vpop.f32.mrb[0].mxu0
      %v1431 = vadd.f32 0.0, %v1430
      %v1432 = vpop.f32.mrb[0].mxu0
      %v1433 = vpop.f32.mrb[0].mxu0
      %v1434 = vadd.f32 0.0, %v1433
      %v1435 = vpop.f32.mrb[0].mxu0
      %1436 = vmatprep.mubr.bf16.mxu0 0
      %1437 = vmatmul.mubr.bf16.gmra.mrb[0].mxu0 %v1334
      %v1438 = vpop.f32.mrb[0].mxu0
      %v1439 = vadd.f32 0.0, %v1438
      %v1440 = vpop.f32.mrb[0].mxu0
      %v1441 = vpop.f32.mrb[0].mxu0
      %v1442 = vadd.f32 0.0, %v1441
      %v1443 = vpop.f32.mrb[0].mxu0
      %1444 = vmatprep.mubr.bf16.mxu0 0
      %1445 = vmatmul.mubr.bf16.gmra.mrb[0].mxu0 %v1335
      %v1446 = vpop.f32.mrb[0].mxu0
      %v1447 = vadd.f32 0.0, %v1446
      %v1448 = vpop.f32.mrb[0].mxu0
      %v1449 = vpop.f32.mrb[0].mxu0
      %v1450 = vadd.f32 0.0, %v1449
      %v1451 = vpop.f32.mrb[0].mxu0
      %1452 = vdwg.mxu0
      %v1453 = vadd.f32 %v1171, %v1423
      %v1454 = vadd.f32 %v1172, %v1426
      %v1455 = vadd.f32 %v1173, %v1431
      %v1456 = vadd.f32 %v1174, %v1434
      %v1457 = vadd.f32 %v1175, %v1439
      %v1458 = vadd.f32 %v1176, %v1442
      %v1459 = vadd.f32 %v1177, %v1447
      %v1460 = vadd.f32 %v1178, %v1450
      %v1461 = vld [vmem:[%s1008] sm:$0xe]
      %v1462 = vld [vmem:[%s1008 + $0x8] sm:$0xe]
      %v1463 = vld [vmem:[%s1008 + $0x10] sm:$0xe]
      %v1464 = vld [vmem:[%s1008 + $0x18] sm:$0xe]
      %v1465 = vld [vmem:[%s1008 + $0x20] sm:$0xe]
      %v1466 = vld [vmem:[%s1008 + $0x28] sm:$0xe]
      %v1467 = vld [vmem:[%s1008 + $0x30] sm:$0xe]
      %v1468 = vld [vmem:[%s1008 + $0x38] sm:$0xe]
      %v1485 = vrot.slane %v1461, 5
      %v1486 = vrot.slane %v1485, 4
      %v1487 = vrot.slane %v1180, 5
      %v1488 = vsel %vm821, %v1486, %v1487
      %v1489 = vrot.slane %v1462, 5
      %v1490 = vrot.slane %v1489, 4
      %v1491 = vrot.slane %v1182, 5
      %v1492 = vsel %vm821, %v1490, %v1491
      %v1493 = vrot.slane %v1463, 5
      %v1494 = vrot.slane %v1493, 4
      %v1495 = vrot.slane %v1184, 5
      %v1496 = vsel %vm821, %v1494, %v1495
      %v1497 = vrot.slane %v1464, 5
      %v1498 = vrot.slane %v1497, 4
      %v1499 = vrot.slane %v1186, 5
      %v1500 = vsel %vm821, %v1498, %v1499
      %v1501 = vrot.slane %v1465, 5
      %v1502 = vrot.slane %v1501, 4
      %v1503 = vrot.slane %v1188, 5
      %v1504 = vsel %vm821, %v1502, %v1503
      %v1505 = vrot.slane %v1466, 5
      %v1506 = vrot.slane %v1505, 4
      %v1507 = vrot.slane %v1190, 5
      %v1508 = vsel %vm821, %v1506, %v1507
      %v1509 = vrot.slane %v1467, 5
      %v1510 = vrot.slane %v1509, 4
      %v1511 = vrot.slane %v1192, 5
      %v1512 = vsel %vm821, %v1510, %v1511
      %v1513 = vrot.slane %v1468, 5
      %v1514 = vrot.slane %v1513, 4
      %v1515 = vrot.slane %v1194, 5
      %v1516 = vsel %vm821, %v1514, %v1515
      %s1517 = scalar_lea.vmem %s3, 320
      %v1518 = vld [vmem:[%s1517] sm:$0xf]
      %v1519 = vld [vmem:[%s1517 + $0x4] sm:$0xf]
      %v1520 = vld [vmem:[%s1517 + $0x8] sm:$0xf]
      %v1521 = vld [vmem:[%s1517 + $0xc] sm:$0xf]
      %v1522 = vld [vmem:[%s1517 + $0x10] sm:$0xf]
      %v1523 = vld [vmem:[%s1517 + $0x14] sm:$0xf]
      %v1524 = vld [vmem:[%s1517 + $0x18] sm:$0xf]
      %v1525 = vld [vmem:[%s1517 + $0x1c] sm:$0xf]
      %v1526 = vld [vmem:[%s1517 + $0x20] sm:$0xf]
      %v1527 = vld [vmem:[%s1517 + $0x24] sm:$0xf]
      %v1528 = vld [vmem:[%s1517 + $0x28] sm:$0xf]
      %v1529 = vld [vmem:[%s1517 + $0x2c] sm:$0xf]
      %v1530 = vld [vmem:[%s1517 + $0x30] sm:$0xf]
      %v1531 = vld [vmem:[%s1517 + $0x34] sm:$0xf]
      %v1532 = vld [vmem:[%s1517 + $0x38] sm:$0xf]
      %v1533 = vld [vmem:[%s1517 + $0x3c] sm:$0xf]
      %v1534 = vunpack.c.l.b16 %v1488
      %v1535 = vunpack.c.l.b16 %v1492
      %v1536 = vunpack.c.l.b16 %v1496
      %v1537 = vunpack.c.l.b16 %v1500
      %v1538 = vunpack.c.l.b16 %v1504
      %v1539 = vunpack.c.l.b16 %v1508
      %v1540 = vunpack.c.l.b16 %v1512
      %v1541 = vunpack.c.l.b16 %v1516
      %v1542 = vpack.c.b16 %v1535, %v1534
      %v1543 = vpack.c.b16 %v1537, %v1536
      %v1544 = vpack.c.b16 %v1539, %v1538
      %v1545 = vpack.c.b16 %v1541, %v1540
      %v1566 = vunpack.c.l.b16 %v1518
      %v1567 = vunpack.c.l.b16 %v1519
      %v1568 = vunpack.c.l.b16 %v1520
      %v1569 = vunpack.c.l.b16 %v1521
      %v1570 = vunpack.c.l.b16 %v1522
      %v1571 = vunpack.c.l.b16 %v1523
      %v1572 = vunpack.c.l.b16 %v1524
      %v1573 = vunpack.c.l.b16 %v1525
      %v1574 = vunpack.c.l.b16 %v1526
      %v1575 = vunpack.c.l.b16 %v1527
      %v1576 = vunpack.c.l.b16 %v1528
      %v1577 = vunpack.c.l.b16 %v1529
      %v1578 = vunpack.c.l.b16 %v1530
      %v1579 = vunpack.c.l.b16 %v1531
      %v1580 = vunpack.c.l.b16 %v1532
      %v1581 = vunpack.c.l.b16 %v1533
      %v1582 = vpack.c.b16 %v1567, %v1566
      %v1583 = vpack.c.b16 %v1569, %v1568
      %v1584 = vpack.c.b16 %v1571, %v1570
      %v1585 = vpack.c.b16 %v1573, %v1572
      %v1586 = vpack.c.b16 %v1575, %v1574
      %v1587 = vpack.c.b16 %v1577, %v1576
      %v1588 = vpack.c.b16 %v1579, %v1578
      %v1589 = vpack.c.b16 %v1581, %v1580
      %1598 = vmatprep.subr.bf16.mxu0 0
      %1599 = vmatpush1.bf16.msra.mxu0 %v1582
      %1600 = vmatprep.subr.bf16.mxu0 0
      %1601 = vmatpush1.bf16.msra.mxu0 %v1583
      %1602 = vmatprep.subr.bf16.mxu0 0
      %1603 = vmatpush1.bf16.msra.mxu0 %v1584
      %1604 = vmatprep.subr.bf16.mxu0 0
      %1605 = vmatpush1.bf16.msra.mxu0 %v1585
      %1606 = vmatprep.subr.bf16.mxu0 0
      %1607 = vmatpush1.bf16.msra.mxu0 %v1586
      %1608 = vmatprep.subr.bf16.mxu0 0
      %1609 = vmatpush1.bf16.msra.mxu0 %v1587
      %1610 = vmatprep.subr.bf16.mxu0 0
      %1611 = vmatpush1.bf16.msra.mxu0 %v1588
      %1612 = vmatprep.subr.bf16.mxu0 0
      %1613 = vmatpush1.bf16.msra.mxu0 %v1589
      %1614 = vmatprep.subr.bf16.mxu0 0
      %1615 = vmatpush1.bf16.msra.mxu0 0
      %1616 = vmatprep.subr.bf16.mxu0 0
      %1617 = vmatpush1.bf16.msra.mxu0 0
      %1618 = vmatprep.subr.bf16.mxu0 0
      %1619 = vmatpush1.bf16.msra.mxu0 0
      %1620 = vmatprep.subr.bf16.mxu0 0
      %1621 = vmatpush1.bf16.msra.mxu0 0
      %1622 = vmatprep.subr.bf16.mxu0 0
      %1623 = vmatpush1.bf16.msra.mxu0 0
      %1624 = vmatprep.subr.bf16.mxu0 0
      %1625 = vmatpush1.bf16.msra.mxu0 0
      %1626 = vmatprep.subr.bf16.mxu0 0
      %1627 = vmatpush1.bf16.msra.mxu0 0
      %1628 = vmatprep.subr.bf16.mxu0 0
      %1629 = vmatpush1.bf16.msra.mxu0 0
      %1630 = vmatprep.mubr.bf16.mxu0 0
      %1631 = vmatmul.mubr.bf16.gmra.mrb[0].mxu0 %v1542
      %v1632 = vpop.f32.mrb[0].mxu0
      %v1633 = vadd.f32 0.0, %v1632
      %v1634 = vpop.f32.mrb[0].mxu0
      %v1635 = vpop.f32.mrb[0].mxu0
      %v1636 = vadd.f32 0.0, %v1635
      %v1637 = vpop.f32.mrb[0].mxu0
      %1638 = vmatprep.mubr.bf16.mxu0 0
      %1639 = vmatmul.mubr.bf16.gmra.mrb[0].mxu0 %v1543
      %v1640 = vpop.f32.mrb[0].mxu0
      %v1641 = vadd.f32 0.0, %v1640
      %v1642 = vpop.f32.mrb[0].mxu0
      %v1643 = vpop.f32.mrb[0].mxu0
      %v1644 = vadd.f32 0.0, %v1643
      %v1645 = vpop.f32.mrb[0].mxu0
      %1646 = vmatprep.mubr.bf16.mxu0 0
      %1647 = vmatmul.mubr.bf16.gmra.mrb[0].mxu0 %v1544
      %v1648 = vpop.f32.mrb[0].mxu0
      %v1649 = vadd.f32 0.0, %v1648
      %v1650 = vpop.f32.mrb[0].mxu0
      %v1651 = vpop.f32.mrb[0].mxu0
      %v1652 = vadd.f32 0.0, %v1651
      %v1653 = vpop.f32.mrb[0].mxu0
      %1654 = vmatprep.mubr.bf16.mxu0 0
      %1655 = vmatmul.mubr.bf16.gmra.mrb[0].mxu0 %v1545
      %v1656 = vpop.f32.mrb[0].mxu0
      %v1657 = vadd.f32 0.0, %v1656
      %v1658 = vpop.f32.mrb[0].mxu0
      %v1659 = vpop.f32.mrb[0].mxu0
      %v1660 = vadd.f32 0.0, %v1659
      %v1661 = vpop.f32.mrb[0].mxu0
      %1662 = vdwg.mxu0
      %v1663 = vadd.f32 %v1453, %v1633
      %v1664 = vadd.f32 %v1454, %v1636
      %v1665 = vadd.f32 %v1455, %v1641
      %v1666 = vadd.f32 %v1456, %v1644
      %v1667 = vadd.f32 %v1457, %v1649
      %v1668 = vadd.f32 %v1458, %v1652
      %v1669 = vadd.f32 %v1459, %v1657
      %v1670 = vadd.f32 %v1460, %v1660
      %s1671 = scalar_lea.vmem %s324, 16
      %v1672 = vld [vmem:[%s1671] sm:$0xf]
      %v1673 = vld [vmem:[%s1671 + $0x8] sm:$0xf]
      %v1674 = vld [vmem:[%s1671 + $0x10] sm:$0xf]
      %v1675 = vld [vmem:[%s1671 + $0x18] sm:$0xf]
      %v1676 = vld [vmem:[%s1671 + $0x20] sm:$0xf]
      %v1677 = vld [vmem:[%s1671 + $0x28] sm:$0xf]
      %v1678 = vld [vmem:[%s1671 + $0x30] sm:$0xf]
      %v1679 = vld [vmem:[%s1671 + $0x38] sm:$0xf]
      %s1680 = scalar_lea.vmem %s3, 384
      %v1681 = vld [vmem:[%s1680] sm:$0xf]
      %v1682 = vld [vmem:[%s1680 + $0x4] sm:$0xf]
      %v1683 = vld [vmem:[%s1680 + $0x8] sm:$0xf]
      %v1684 = vld [vmem:[%s1680 + $0xc] sm:$0xf]
      %v1685 = vld [vmem:[%s1680 + $0x10] sm:$0xf]
      %v1686 = vld [vmem:[%s1680 + $0x14] sm:$0xf]
      %v1687 = vld [vmem:[%s1680 + $0x18] sm:$0xf]
      %v1688 = vld [vmem:[%s1680 + $0x1c] sm:$0xf]
      %v1689 = vld [vmem:[%s1680 + $0x20] sm:$0xf]
      %v1690 = vld [vmem:[%s1680 + $0x24] sm:$0xf]
      %v1691 = vld [vmem:[%s1680 + $0x28] sm:$0xf]
      %v1692 = vld [vmem:[%s1680 + $0x2c] sm:$0xf]
      %v1693 = vld [vmem:[%s1680 + $0x30] sm:$0xf]
      %v1694 = vld [vmem:[%s1680 + $0x34] sm:$0xf]
      %v1695 = vld [vmem:[%s1680 + $0x38] sm:$0xf]
      %v1696 = vld [vmem:[%s1680 + $0x3c] sm:$0xf]
      %v1705 = vunpack.c.l.b16 %v1672
      %v1706 = vunpack.c.l.b16 %v1673
      %v1707 = vunpack.c.l.b16 %v1674
      %v1708 = vunpack.c.l.b16 %v1675
      %v1709 = vunpack.c.l.b16 %v1676
      %v1710 = vunpack.c.l.b16 %v1677
      %v1711 = vunpack.c.l.b16 %v1678
      %v1712 = vunpack.c.l.b16 %v1679
      %v1713 = vpack.c.b16 %v1706, %v1705
      %v1714 = vpack.c.b16 %v1708, %v1707
      %v1715 = vpack.c.b16 %v1710, %v1709
      %v1716 = vpack.c.b16 %v1712, %v1711
      %v1737 = vunpack.c.l.b16 %v1681
      %v1738 = vunpack.c.l.b16 %v1682
      %v1739 = vunpack.c.l.b16 %v1683
      %v1740 = vunpack.c.l.b16 %v1684
      %v1741 = vunpack.c.l.b16 %v1685
      %v1742 = vunpack.c.l.b16 %v1686
      %v1743 = vunpack.c.l.b16 %v1687
      %v1744 = vunpack.c.l.b16 %v1688
      %v1745 = vunpack.c.l.b16 %v1689
      %v1746 = vunpack.c.l.b16 %v1690
      %v1747 = vunpack.c.l.b16 %v1691
      %v1748 = vunpack.c.l.b16 %v1692
      %v1749 = vunpack.c.l.b16 %v1693
      %v1750 = vunpack.c.l.b16 %v1694
      %v1751 = vunpack.c.l.b16 %v1695
      %v1752 = vunpack.c.l.b16 %v1696
      %v1753 = vpack.c.b16 %v1738, %v1737
      %v1754 = vpack.c.b16 %v1740, %v1739
      %v1755 = vpack.c.b16 %v1742, %v1741
      %v1756 = vpack.c.b16 %v1744, %v1743
      %v1757 = vpack.c.b16 %v1746, %v1745
      %v1758 = vpack.c.b16 %v1748, %v1747
      %v1759 = vpack.c.b16 %v1750, %v1749
      %v1760 = vpack.c.b16 %v1752, %v1751
      %1769 = vmatprep.subr.bf16.mxu0 0
      %1770 = vmatpush1.bf16.msra.mxu0 %v1753
      %1771 = vmatprep.subr.bf16.mxu0 0
      %1772 = vmatpush1.bf16.msra.mxu0 %v1754
      %1773 = vmatprep.subr.bf16.mxu0 0
      %1774 = vmatpush1.bf16.msra.mxu0 %v1755
      %1775 = vmatprep.subr.bf16.mxu0 0
      %1776 = vmatpush1.bf16.msra.mxu0 %v1756
      %1777 = vmatprep.subr.bf16.mxu0 0
      %1778 = vmatpush1.bf16.msra.mxu0 %v1757
      %1779 = vmatprep.subr.bf16.mxu0 0
      %1780 = vmatpush1.bf16.msra.mxu0 %v1758
      %1781 = vmatprep.subr.bf16.mxu0 0
      %1782 = vmatpush1.bf16.msra.mxu0 %v1759
      %1783 = vmatprep.subr.bf16.mxu0 0
      %1784 = vmatpush1.bf16.msra.mxu0 %v1760
      %1785 = vmatprep.subr.bf16.mxu0 0
      %1786 = vmatpush1.bf16.msra.mxu0 0
      %1787 = vmatprep.subr.bf16.mxu0 0
      %1788 = vmatpush1.bf16.msra.mxu0 0
      %1789 = vmatprep.subr.bf16.mxu0 0
      %1790 = vmatpush1.bf16.msra.mxu0 0
      %1791 = vmatprep.subr.bf16.mxu0 0
      %1792 = vmatpush1.bf16.msra.mxu0 0
      %1793 = vmatprep.subr.bf16.mxu0 0
      %1794 = vmatpush1.bf16.msra.mxu0 0
      %1795 = vmatprep.subr.bf16.mxu0 0
      %1796 = vmatpush1.bf16.msra.mxu0 0
      %1797 = vmatprep.subr.bf16.mxu0 0
      %1798 = vmatpush1.bf16.msra.mxu0 0
      %1799 = vmatprep.subr.bf16.mxu0 0
      %1800 = vmatpush1.bf16.msra.mxu0 0
      %1801 = vmatprep.mubr.bf16.mxu0 0
      %1802 = vmatmul.mubr.bf16.gmra.mrb[0].mxu0 %v1713
      %v1803 = vpop.f32.mrb[0].mxu0
      %v1804 = vadd.f32 0.0, %v1803
      %v1805 = vpop.f32.mrb[0].mxu0
      %v1806 = vpop.f32.mrb[0].mxu0
      %v1807 = vadd.f32 0.0, %v1806
      %v1808 = vpop.f32.mrb[0].mxu0
      %1809 = vmatprep.mubr.bf16.mxu0 0
      %1810 = vmatmul.mubr.bf16.gmra.mrb[0].mxu0 %v1714
      %v1811 = vpop.f32.mrb[0].mxu0
      %v1812 = vadd.f32 0.0, %v1811
      %v1813 = vpop.f32.mrb[0].mxu0
      %v1814 = vpop.f32.mrb[0].mxu0
      %v1815 = vadd.f32 0.0, %v1814
      %v1816 = vpop.f32.mrb[0].mxu0
      %1817 = vmatprep.mubr.bf16.mxu0 0
      %1818 = vmatmul.mubr.bf16.gmra.mrb[0].mxu0 %v1715
      %v1819 = vpop.f32.mrb[0].mxu0
      %v1820 = vadd.f32 0.0, %v1819
      %v1821 = vpop.f32.mrb[0].mxu0
      %v1822 = vpop.f32.mrb[0].mxu0
      %v1823 = vadd.f32 0.0, %v1822
      %v1824 = vpop.f32.mrb[0].mxu0
      %1825 = vmatprep.mubr.bf16.mxu0 0
      %1826 = vmatmul.mubr.bf16.gmra.mrb[0].mxu0 %v1716
      %v1827 = vpop.f32.mrb[0].mxu0
      %v1828 = vadd.f32 0.0, %v1827
      %v1829 = vpop.f32.mrb[0].mxu0
      %v1830 = vpop.f32.mrb[0].mxu0
      %v1831 = vadd.f32 0.0, %v1830
      %v1832 = vpop.f32.mrb[0].mxu0
      %1833 = vdwg.mxu0
      %v1834 = vadd.f32 %v1663, %v1804
      %v1835 = vadd.f32 %v1664, %v1807
      %v1836 = vadd.f32 %v1665, %v1812
      %v1837 = vadd.f32 %v1666, %v1815
      %v1838 = vadd.f32 %v1667, %v1820
      %v1839 = vadd.f32 %v1668, %v1823
      %v1840 = vadd.f32 %v1669, %v1828
      %v1841 = vadd.f32 %v1670, %v1831
      %v1842 = vld [vmem:[%s1671] sm:$0xf]
      %v1843 = vld [vmem:[%s1671 + $0x4] sm:$0x1]
      %v1844 = vld [vmem:[%s1671 + $0x8] sm:$0xf]
      %v1845 = vld [vmem:[%s1671 + $0xc] sm:$0x1]
      %v1846 = vld [vmem:[%s1671 + $0x10] sm:$0xf]
      %v1847 = vld [vmem:[%s1671 + $0x14] sm:$0x1]
      %v1848 = vld [vmem:[%s1671 + $0x18] sm:$0xf]
      %v1849 = vld [vmem:[%s1671 + $0x1c] sm:$0x1]
      %v1850 = vld [vmem:[%s1671 + $0x20] sm:$0xf]
      %v1851 = vld [vmem:[%s1671 + $0x24] sm:$0x1]
      %v1852 = vld [vmem:[%s1671 + $0x28] sm:$0xf]
      %v1853 = vld [vmem:[%s1671 + $0x2c] sm:$0x1]
      %v1854 = vld [vmem:[%s1671 + $0x30] sm:$0xf]
      %v1855 = vld [vmem:[%s1671 + $0x34] sm:$0x1]
      %v1856 = vld [vmem:[%s1671 + $0x38] sm:$0xf]
      %v1857 = vld [vmem:[%s1671 + $0x3c] sm:$0x1]
      %v1859 = vshrl.u32 %v1842, 16
      %v1861 = vrot.slane %v1859, 4
      %v1862 = vshll.u32 %v1842, 16
      %v1864 = vrot.slane %v1862, 5
      %v1865 = vor.u32 %v1861, %v1864
      %v1866 = vrot.slane %v1865, 4
      %v1868 = vshll.u32 %v1843, 16
      %v1870 = vrot.slane %v1868, 5
      %v1871 = vsel %vm399, %v1866, %v1870
      %v1873 = vshrl.u32 %v1844, 16
      %v1875 = vrot.slane %v1873, 4
      %v1876 = vshll.u32 %v1844, 16
      %v1878 = vrot.slane %v1876, 5
      %v1879 = vor.u32 %v1875, %v1878
      %v1880 = vrot.slane %v1879, 4
      %v1882 = vshll.u32 %v1845, 16
      %v1884 = vrot.slane %v1882, 5
      %v1885 = vsel %vm399, %v1880, %v1884
      %v1887 = vshrl.u32 %v1846, 16
      %v1889 = vrot.slane %v1887, 4
      %v1890 = vshll.u32 %v1846, 16
      %v1892 = vrot.slane %v1890, 5
      %v1893 = vor.u32 %v1889, %v1892
      %v1894 = vrot.slane %v1893, 4
      %v1896 = vshll.u32 %v1847, 16
      %v1898 = vrot.slane %v1896, 5
      %v1899 = vsel %vm399, %v1894, %v1898
      %v1901 = vshrl.u32 %v1848, 16
      %v1903 = vrot.slane %v1901, 4
      %v1904 = vshll.u32 %v1848, 16
      %v1906 = vrot.slane %v1904, 5
      %v1907 = vor.u32 %v1903, %v1906
      %v1908 = vrot.slane %v1907, 4
      %v1910 = vshll.u32 %v1849, 16
      %v1912 = vrot.slane %v1910, 5
      %v1913 = vsel %vm399, %v1908, %v1912
      %v1915 = vshrl.u32 %v1850, 16
      %v1917 = vrot.slane %v1915, 4
      %v1918 = vshll.u32 %v1850, 16
      %v1920 = vrot.slane %v1918, 5
      %v1921 = vor.u32 %v1917, %v1920
      %v1922 = vrot.slane %v1921, 4
      %v1924 = vshll.u32 %v1851, 16
      %v1926 = vrot.slane %v1924, 5
      %v1927 = vsel %vm399, %v1922, %v1926
      %v1929 = vshrl.u32 %v1852, 16
      %v1931 = vrot.slane %v1929, 4
      %v1932 = vshll.u32 %v1852, 16
      %v1934 = vrot.slane %v1932, 5
      %v1935 = vor.u32 %v1931, %v1934
      %v1936 = vrot.slane %v1935, 4
      %v1938 = vshll.u32 %v1853, 16
      %v1940 = vrot.slane %v1938, 5
      %v1941 = vsel %vm399, %v1936, %v1940
      %v1943 = vshrl.u32 %v1854, 16
      %v1945 = vrot.slane %v1943, 4
      %v1946 = vshll.u32 %v1854, 16
      %v1948 = vrot.slane %v1946, 5
      %v1949 = vor.u32 %v1945, %v1948
      %v1950 = vrot.slane %v1949, 4
      %v1952 = vshll.u32 %v1855, 16
      %v1954 = vrot.slane %v1952, 5
      %v1955 = vsel %vm399, %v1950, %v1954
      %v1957 = vshrl.u32 %v1856, 16
      %v1959 = vrot.slane %v1957, 4
      %v1960 = vshll.u32 %v1856, 16
      %v1962 = vrot.slane %v1960, 5
      %v1963 = vor.u32 %v1959, %v1962
      %v1964 = vrot.slane %v1963, 4
      %v1966 = vshll.u32 %v1857, 16
      %v1968 = vrot.slane %v1966, 5
      %v1969 = vsel %vm399, %v1964, %v1968
      %s1970 = scalar_lea.vmem %s3, 448
      %v1971 = vld [vmem:[%s1970] sm:$0xf]
      %v1972 = vld [vmem:[%s1970 + $0x4] sm:$0xf]
      %v1973 = vld [vmem:[%s1970 + $0x8] sm:$0xf]
      %v1974 = vld [vmem:[%s1970 + $0xc] sm:$0xf]
      %v1975 = vld [vmem:[%s1970 + $0x10] sm:$0xf]
      %v1976 = vld [vmem:[%s1970 + $0x14] sm:$0xf]
      %v1977 = vld [vmem:[%s1970 + $0x18] sm:$0xf]
      %v1978 = vld [vmem:[%s1970 + $0x1c] sm:$0xf]
      %v1979 = vld [vmem:[%s1970 + $0x20] sm:$0xf]
      %v1980 = vld [vmem:[%s1970 + $0x24] sm:$0xf]
      %v1981 = vld [vmem:[%s1970 + $0x28] sm:$0xf]
      %v1982 = vld [vmem:[%s1970 + $0x2c] sm:$0xf]
      %v1983 = vld [vmem:[%s1970 + $0x30] sm:$0xf]
      %v1984 = vld [vmem:[%s1970 + $0x34] sm:$0xf]
      %v1985 = vld [vmem:[%s1970 + $0x38] sm:$0xf]
      %v1986 = vld [vmem:[%s1970 + $0x3c] sm:$0xf]
      %v1987 = vunpack.c.l.b16 %v1871
      %v1988 = vunpack.c.l.b16 %v1885
      %v1989 = vunpack.c.l.b16 %v1899
      %v1990 = vunpack.c.l.b16 %v1913
      %v1991 = vunpack.c.l.b16 %v1927
      %v1992 = vunpack.c.l.b16 %v1941
      %v1993 = vunpack.c.l.b16 %v1955
      %v1994 = vunpack.c.l.b16 %v1969
      %v1995 = vpack.c.b16 %v1988, %v1987
      %v1996 = vpack.c.b16 %v1990, %v1989
      %v1997 = vpack.c.b16 %v1992, %v1991
      %v1998 = vpack.c.b16 %v1994, %v1993
      %v2019 = vunpack.c.l.b16 %v1971
      %v2020 = vunpack.c.l.b16 %v1972
      %v2021 = vunpack.c.l.b16 %v1973
      %v2022 = vunpack.c.l.b16 %v1974
      %v2023 = vunpack.c.l.b16 %v1975
      %v2024 = vunpack.c.l.b16 %v1976
      %v2025 = vunpack.c.l.b16 %v1977
      %v2026 = vunpack.c.l.b16 %v1978
      %v2027 = vunpack.c.l.b16 %v1979
      %v2028 = vunpack.c.l.b16 %v1980
      %v2029 = vunpack.c.l.b16 %v1981
      %v2030 = vunpack.c.l.b16 %v1982
      %v2031 = vunpack.c.l.b16 %v1983
      %v2032 = vunpack.c.l.b16 %v1984
      %v2033 = vunpack.c.l.b16 %v1985
      %v2034 = vunpack.c.l.b16 %v1986
      %v2035 = vpack.c.b16 %v2020, %v2019
      %v2036 = vpack.c.b16 %v2022, %v2021
      %v2037 = vpack.c.b16 %v2024, %v2023
      %v2038 = vpack.c.b16 %v2026, %v2025
      %v2039 = vpack.c.b16 %v2028, %v2027
      %v2040 = vpack.c.b16 %v2030, %v2029
      %v2041 = vpack.c.b16 %v2032, %v2031
      %v2042 = vpack.c.b16 %v2034, %v2033
      %2051 = vmatprep.subr.bf16.mxu0 0
      %2052 = vmatpush1.bf16.msra.mxu0 %v2035
      %2053 = vmatprep.subr.bf16.mxu0 0
      %2054 = vmatpush1.bf16.msra.mxu0 %v2036
      %2055 = vmatprep.subr.bf16.mxu0 0
      %2056 = vmatpush1.bf16.msra.mxu0 %v2037
      %2057 = vmatprep.subr.bf16.mxu0 0
      %2058 = vmatpush1.bf16.msra.mxu0 %v2038
      %2059 = vmatprep.subr.bf16.mxu0 0
      %2060 = vmatpush1.bf16.msra.mxu0 %v2039
      %2061 = vmatprep.subr.bf16.mxu0 0
      %2062 = vmatpush1.bf16.msra.mxu0 %v2040
      %2063 = vmatprep.subr.bf16.mxu0 0
      %2064 = vmatpush1.bf16.msra.mxu0 %v2041
      %2065 = vmatprep.subr.bf16.mxu0 0
      %2066 = vmatpush1.bf16.msra.mxu0 %v2042
      %2067 = vmatprep.subr.bf16.mxu0 0
      %2068 = vmatpush1.bf16.msra.mxu0 0
      %2069 = vmatprep.subr.bf16.mxu0 0
      %2070 = vmatpush1.bf16.msra.mxu0 0
      %2071 = vmatprep.subr.bf16.mxu0 0
      %2072 = vmatpush1.bf16.msra.mxu0 0
      %2073 = vmatprep.subr.bf16.mxu0 0
      %2074 = vmatpush1.bf16.msra.mxu0 0
      %2075 = vmatprep.subr.bf16.mxu0 0
      %2076 = vmatpush1.bf16.msra.mxu0 0
      %2077 = vmatprep.subr.bf16.mxu0 0
      %2078 = vmatpush1.bf16.msra.mxu0 0
      %2079 = vmatprep.subr.bf16.mxu0 0
      %2080 = vmatpush1.bf16.msra.mxu0 0
      %2081 = vmatprep.subr.bf16.mxu0 0
      %2082 = vmatpush1.bf16.msra.mxu0 0
      %2083 = vmatprep.mubr.bf16.mxu0 0
      %2084 = vmatmul.mubr.bf16.gmra.mrb[0].mxu0 %v1995
      %v2085 = vpop.f32.mrb[0].mxu0
      %v2086 = vadd.f32 0.0, %v2085
      %v2087 = vpop.f32.mrb[0].mxu0
      %v2088 = vpop.f32.mrb[0].mxu0
      %v2089 = vadd.f32 0.0, %v2088
      %v2090 = vpop.f32.mrb[0].mxu0
      %2091 = vmatprep.mubr.bf16.mxu0 0
      %2092 = vmatmul.mubr.bf16.gmra.mrb[0].mxu0 %v1996
      %v2093 = vpop.f32.mrb[0].mxu0
      %v2094 = vadd.f32 0.0, %v2093
      %v2095 = vpop.f32.mrb[0].mxu0
      %v2096 = vpop.f32.mrb[0].mxu0
      %v2097 = vadd.f32 0.0, %v2096
      %v2098 = vpop.f32.mrb[0].mxu0
      %2099 = vmatprep.mubr.bf16.mxu0 0
      %2100 = vmatmul.mubr.bf16.gmra.mrb[0].mxu0 %v1997
      %v2101 = vpop.f32.mrb[0].mxu0
      %v2102 = vadd.f32 0.0, %v2101
      %v2103 = vpop.f32.mrb[0].mxu0
      %v2104 = vpop.f32.mrb[0].mxu0
      %v2105 = vadd.f32 0.0, %v2104
      %v2106 = vpop.f32.mrb[0].mxu0
      %2107 = vmatprep.mubr.bf16.mxu0 0
      %2108 = vmatmul.mubr.bf16.gmra.mrb[0].mxu0 %v1998
      %v2109 = vpop.f32.mrb[0].mxu0
      %v2110 = vadd.f32 0.0, %v2109
      %v2111 = vpop.f32.mrb[0].mxu0
      %v2112 = vpop.f32.mrb[0].mxu0
      %v2113 = vadd.f32 0.0, %v2112
      %v2114 = vpop.f32.mrb[0].mxu0
      %2115 = vdwg.mxu0
      %v2116 = vadd.f32 %v1834, %v2086
      %v2117 = vadd.f32 %v1835, %v2089
      %v2118 = vadd.f32 %v1836, %v2094
      %v2119 = vadd.f32 %v1837, %v2097
      %v2120 = vadd.f32 %v1838, %v2102
      %v2121 = vadd.f32 %v1839, %v2105
      %v2122 = vadd.f32 %v1840, %v2110
      %v2123 = vadd.f32 %v1841, %v2113
      %v2124 = vld [vmem:[%s1671] sm:$0xe]
      %v2125 = vld [vmem:[%s1671 + $0x8] sm:$0xe]
      %v2126 = vld [vmem:[%s1671 + $0x10] sm:$0xe]
      %v2127 = vld [vmem:[%s1671 + $0x18] sm:$0xe]
      %v2128 = vld [vmem:[%s1671 + $0x20] sm:$0xe]
      %v2129 = vld [vmem:[%s1671 + $0x28] sm:$0xe]
      %v2130 = vld [vmem:[%s1671 + $0x30] sm:$0xe]
      %v2131 = vld [vmem:[%s1671 + $0x38] sm:$0xe]
      %v2148 = vrot.slane %v2124, 5
      %v2149 = vrot.slane %v2148, 4
      %v2150 = vrot.slane %v1843, 5
      %v2151 = vsel %vm821, %v2149, %v2150
      %v2152 = vrot.slane %v2125, 5
      %v2153 = vrot.slane %v2152, 4
      %v2154 = vrot.slane %v1845, 5
      %v2155 = vsel %vm821, %v2153, %v2154
      %v2156 = vrot.slane %v2126, 5
      %v2157 = vrot.slane %v2156, 4
      %v2158 = vrot.slane %v1847, 5
      %v2159 = vsel %vm821, %v2157, %v2158
      %v2160 = vrot.slane %v2127, 5
      %v2161 = vrot.slane %v2160, 4
      %v2162 = vrot.slane %v1849, 5
      %v2163 = vsel %vm821, %v2161, %v2162
      %v2164 = vrot.slane %v2128, 5
      %v2165 = vrot.slane %v2164, 4
      %v2166 = vrot.slane %v1851, 5
      %v2167 = vsel %vm821, %v2165, %v2166
      %v2168 = vrot.slane %v2129, 5
      %v2169 = vrot.slane %v2168, 4
      %v2170 = vrot.slane %v1853, 5
      %v2171 = vsel %vm821, %v2169, %v2170
      %v2172 = vrot.slane %v2130, 5
      %v2173 = vrot.slane %v2172, 4
      %v2174 = vrot.slane %v1855, 5
      %v2175 = vsel %vm821, %v2173, %v2174
      %v2176 = vrot.slane %v2131, 5
      %v2177 = vrot.slane %v2176, 4
      %v2178 = vrot.slane %v1857, 5
      %v2179 = vsel %vm821, %v2177, %v2178
      %s2180 = scalar_lea.vmem %s3, 512
      %v2181 = vld [vmem:[%s2180] sm:$0xf]
      %v2182 = vld [vmem:[%s2180 + $0x4] sm:$0xf]
      %v2183 = vld [vmem:[%s2180 + $0x8] sm:$0xf]
      %v2184 = vld [vmem:[%s2180 + $0xc] sm:$0xf]
      %v2185 = vld [vmem:[%s2180 + $0x10] sm:$0xf]
      %v2186 = vld [vmem:[%s2180 + $0x14] sm:$0xf]
      %v2187 = vld [vmem:[%s2180 + $0x18] sm:$0xf]
      %v2188 = vld [vmem:[%s2180 + $0x1c] sm:$0xf]
      %v2189 = vld [vmem:[%s2180 + $0x20] sm:$0xf]
      %v2190 = vld [vmem:[%s2180 + $0x24] sm:$0xf]
      %v2191 = vld [vmem:[%s2180 + $0x28] sm:$0xf]
      %v2192 = vld [vmem:[%s2180 + $0x2c] sm:$0xf]
      %v2193 = vld [vmem:[%s2180 + $0x30] sm:$0xf]
      %v2194 = vld [vmem:[%s2180 + $0x34] sm:$0xf]
      %v2195 = vld [vmem:[%s2180 + $0x38] sm:$0xf]
      %v2196 = vld [vmem:[%s2180 + $0x3c] sm:$0xf]
      %v2197 = vunpack.c.l.b16 %v2151
      %v2198 = vunpack.c.l.b16 %v2155
      %v2199 = vunpack.c.l.b16 %v2159
      %v2200 = vunpack.c.l.b16 %v2163
      %v2201 = vunpack.c.l.b16 %v2167
      %v2202 = vunpack.c.l.b16 %v2171
      %v2203 = vunpack.c.l.b16 %v2175
      %v2204 = vunpack.c.l.b16 %v2179
      %v2205 = vpack.c.b16 %v2198, %v2197
      %v2206 = vpack.c.b16 %v2200, %v2199
      %v2207 = vpack.c.b16 %v2202, %v2201
      %v2208 = vpack.c.b16 %v2204, %v2203
      %v2229 = vunpack.c.l.b16 %v2181
      %v2230 = vunpack.c.l.b16 %v2182
      %v2231 = vunpack.c.l.b16 %v2183
      %v2232 = vunpack.c.l.b16 %v2184
      %v2233 = vunpack.c.l.b16 %v2185
      %v2234 = vunpack.c.l.b16 %v2186
      %v2235 = vunpack.c.l.b16 %v2187
      %v2236 = vunpack.c.l.b16 %v2188
      %v2237 = vunpack.c.l.b16 %v2189
      %v2238 = vunpack.c.l.b16 %v2190
      %v2239 = vunpack.c.l.b16 %v2191
      %v2240 = vunpack.c.l.b16 %v2192
      %v2241 = vunpack.c.l.b16 %v2193
      %v2242 = vunpack.c.l.b16 %v2194
      %v2243 = vunpack.c.l.b16 %v2195
      %v2244 = vunpack.c.l.b16 %v2196
      %v2245 = vpack.c.b16 %v2230, %v2229
      %v2246 = vpack.c.b16 %v2232, %v2231
      %v2247 = vpack.c.b16 %v2234, %v2233
      %v2248 = vpack.c.b16 %v2236, %v2235
      %v2249 = vpack.c.b16 %v2238, %v2237
      %v2250 = vpack.c.b16 %v2240, %v2239
      %v2251 = vpack.c.b16 %v2242, %v2241
      %v2252 = vpack.c.b16 %v2244, %v2243
      %2261 = vmatprep.subr.bf16.mxu0 0
      %2262 = vmatpush1.bf16.msra.mxu0 %v2245
      %2263 = vmatprep.subr.bf16.mxu0 0
      %2264 = vmatpush1.bf16.msra.mxu0 %v2246
      %2265 = vmatprep.subr.bf16.mxu0 0
      %2266 = vmatpush1.bf16.msra.mxu0 %v2247
      %2267 = vmatprep.subr.bf16.mxu0 0
      %2268 = vmatpush1.bf16.msra.mxu0 %v2248
      %2269 = vmatprep.subr.bf16.mxu0 0
      %2270 = vmatpush1.bf16.msra.mxu0 %v2249
      %2271 = vmatprep.subr.bf16.mxu0 0
      %2272 = vmatpush1.bf16.msra.mxu0 %v2250
      %2273 = vmatprep.subr.bf16.mxu0 0
      %2274 = vmatpush1.bf16.msra.mxu0 %v2251
      %2275 = vmatprep.subr.bf16.mxu0 0
      %2276 = vmatpush1.bf16.msra.mxu0 %v2252
      %2277 = vmatprep.subr.bf16.mxu0 0
      %2278 = vmatpush1.bf16.msra.mxu0 0
      %2279 = vmatprep.subr.bf16.mxu0 0
      %2280 = vmatpush1.bf16.msra.mxu0 0
      %2281 = vmatprep.subr.bf16.mxu0 0
      %2282 = vmatpush1.bf16.msra.mxu0 0
      %2283 = vmatprep.subr.bf16.mxu0 0
      %2284 = vmatpush1.bf16.msra.mxu0 0
      %2285 = vmatprep.subr.bf16.mxu0 0
      %2286 = vmatpush1.bf16.msra.mxu0 0
      %2287 = vmatprep.subr.bf16.mxu0 0
      %2288 = vmatpush1.bf16.msra.mxu0 0
      %2289 = vmatprep.subr.bf16.mxu0 0
      %2290 = vmatpush1.bf16.msra.mxu0 0
      %2291 = vmatprep.subr.bf16.mxu0 0
      %2292 = vmatpush1.bf16.msra.mxu0 0
      %2293 = vmatprep.mubr.bf16.mxu0 0
      %2294 = vmatmul.mubr.bf16.gmra.mrb[0].mxu0 %v2205
      %v2295 = vpop.f32.mrb[0].mxu0
      %v2296 = vadd.f32 0.0, %v2295
      %v2297 = vpop.f32.mrb[0].mxu0
      %v2298 = vpop.f32.mrb[0].mxu0
      %v2299 = vadd.f32 0.0, %v2298
      %v2300 = vpop.f32.mrb[0].mxu0
      %2301 = vmatprep.mubr.bf16.mxu0 0
      %2302 = vmatmul.mubr.bf16.gmra.mrb[0].mxu0 %v2206
      %v2303 = vpop.f32.mrb[0].mxu0
      %v2304 = vadd.f32 0.0, %v2303
      %v2305 = vpop.f32.mrb[0].mxu0
      %v2306 = vpop.f32.mrb[0].mxu0
      %v2307 = vadd.f32 0.0, %v2306
      %v2308 = vpop.f32.mrb[0].mxu0
      %2309 = vmatprep.mubr.bf16.mxu0 0
      %2310 = vmatmul.mubr.bf16.gmra.mrb[0].mxu0 %v2207
      %v2311 = vpop.f32.mrb[0].mxu0
      %v2312 = vadd.f32 0.0, %v2311
      %v2313 = vpop.f32.mrb[0].mxu0
      %v2314 = vpop.f32.mrb[0].mxu0
      %v2315 = vadd.f32 0.0, %v2314
      %v2316 = vpop.f32.mrb[0].mxu0
      %2317 = vmatprep.mubr.bf16.mxu0 0
      %2318 = vmatmul.mubr.bf16.gmra.mrb[0].mxu0 %v2208
      %v2319 = vpop.f32.mrb[0].mxu0
      %v2320 = vadd.f32 0.0, %v2319
      %v2321 = vpop.f32.mrb[0].mxu0
      %v2322 = vpop.f32.mrb[0].mxu0
      %v2323 = vadd.f32 0.0, %v2322
      %v2324 = vpop.f32.mrb[0].mxu0
      %2325 = vdwg.mxu0
      %v2326 = vadd.f32 %v2116, %v2296
      %v2327 = vadd.f32 %v2117, %v2299
      %v2328 = vadd.f32 %v2118, %v2304
      %v2329 = vadd.f32 %v2119, %v2307
      %v2330 = vadd.f32 %v2120, %v2312
      %v2331 = vadd.f32 %v2121, %v2315
      %v2332 = vadd.f32 %v2122, %v2320
      %v2333 = vadd.f32 %v2123, %v2323
      %v2334 = vld [vmem:[%s334] sm:$0xf]
      %v2335 = vld [vmem:[%s334 + $0x8] sm:$0xf]
      %v2336 = vld [vmem:[%s334 + $0x10] sm:$0xf]
      %v2337 = vld [vmem:[%s334 + $0x18] sm:$0xf]
      %v2338 = vld [vmem:[%s334 + $0x20] sm:$0xf]
      %v2339 = vld [vmem:[%s334 + $0x28] sm:$0xf]
      %v2340 = vld [vmem:[%s334 + $0x30] sm:$0xf]
      %v2341 = vld [vmem:[%s334 + $0x38] sm:$0xf]
      %s2342 = scalar_lea.vmem %s3, 576
      %v2343 = vld [vmem:[%s2342] sm:$0xf]
      %v2344 = vld [vmem:[%s2342 + $0x4] sm:$0xf]
      %v2345 = vld [vmem:[%s2342 + $0x8] sm:$0xf]
      %v2346 = vld [vmem:[%s2342 + $0xc] sm:$0xf]
      %v2347 = vld [vmem:[%s2342 + $0x10] sm:$0xf]
      %v2348 = vld [vmem:[%s2342 + $0x14] sm:$0xf]
      %v2349 = vld [vmem:[%s2342 + $0x18] sm:$0xf]
      %v2350 = vld [vmem:[%s2342 + $0x1c] sm:$0xf]
      %v2351 = vld [vmem:[%s2342 + $0x20] sm:$0xf]
      %v2352 = vld [vmem:[%s2342 + $0x24] sm:$0xf]
      %v2353 = vld [vmem:[%s2342 + $0x28] sm:$0xf]
      %v2354 = vld [vmem:[%s2342 + $0x2c] sm:$0xf]
      %v2355 = vld [vmem:[%s2342 + $0x30] sm:$0xf]
      %v2356 = vld [vmem:[%s2342 + $0x34] sm:$0xf]
      %v2357 = vld [vmem:[%s2342 + $0x38] sm:$0xf]
      %v2358 = vld [vmem:[%s2342 + $0x3c] sm:$0xf]
      %v2367 = vunpack.c.l.b16 %v2334
      %v2368 = vunpack.c.l.b16 %v2335
      %v2369 = vunpack.c.l.b16 %v2336
      %v2370 = vunpack.c.l.b16 %v2337
      %v2371 = vunpack.c.l.b16 %v2338
      %v2372 = vunpack.c.l.b16 %v2339
      %v2373 = vunpack.c.l.b16 %v2340
      %v2374 = vunpack.c.l.b16 %v2341
      %v2375 = vpack.c.b16 %v2368, %v2367
      %v2376 = vpack.c.b16 %v2370, %v2369
      %v2377 = vpack.c.b16 %v2372, %v2371
      %v2378 = vpack.c.b16 %v2374, %v2373
      %v2399 = vunpack.c.l.b16 %v2343
      %v2400 = vunpack.c.l.b16 %v2344
      %v2401 = vunpack.c.l.b16 %v2345
      %v2402 = vunpack.c.l.b16 %v2346
      %v2403 = vunpack.c.l.b16 %v2347
      %v2404 = vunpack.c.l.b16 %v2348
      %v2405 = vunpack.c.l.b16 %v2349
      %v2406 = vunpack.c.l.b16 %v2350
      %v2407 = vunpack.c.l.b16 %v2351
      %v2408 = vunpack.c.l.b16 %v2352
      %v2409 = vunpack.c.l.b16 %v2353
      %v2410 = vunpack.c.l.b16 %v2354
      %v2411 = vunpack.c.l.b16 %v2355
      %v2412 = vunpack.c.l.b16 %v2356
      %v2413 = vunpack.c.l.b16 %v2357
      %v2414 = vunpack.c.l.b16 %v2358
      %v2415 = vpack.c.b16 %v2400, %v2399
      %v2416 = vpack.c.b16 %v2402, %v2401
      %v2417 = vpack.c.b16 %v2404, %v2403
      %v2418 = vpack.c.b16 %v2406, %v2405
      %v2419 = vpack.c.b16 %v2408, %v2407
      %v2420 = vpack.c.b16 %v2410, %v2409
      %v2421 = vpack.c.b16 %v2412, %v2411
      %v2422 = vpack.c.b16 %v2414, %v2413
      %2431 = vmatprep.subr.bf16.mxu0 0
      %2432 = vmatpush1.bf16.msra.mxu0 %v2415
      %2433 = vmatprep.subr.bf16.mxu0 0
      %2434 = vmatpush1.bf16.msra.mxu0 %v2416
      %2435 = vmatprep.subr.bf16.mxu0 0
      %2436 = vmatpush1.bf16.msra.mxu0 %v2417
      %2437 = vmatprep.subr.bf16.mxu0 0
      %2438 = vmatpush1.bf16.msra.mxu0 %v2418
      %2439 = vmatprep.subr.bf16.mxu0 0
      %2440 = vmatpush1.bf16.msra.mxu0 %v2419
      %2441 = vmatprep.subr.bf16.mxu0 0
      %2442 = vmatpush1.bf16.msra.mxu0 %v2420
      %2443 = vmatprep.subr.bf16.mxu0 0
      %2444 = vmatpush1.bf16.msra.mxu0 %v2421
      %2445 = vmatprep.subr.bf16.mxu0 0
      %2446 = vmatpush1.bf16.msra.mxu0 %v2422
      %2447 = vmatprep.subr.bf16.mxu0 0
      %2448 = vmatpush1.bf16.msra.mxu0 0
      %2449 = vmatprep.subr.bf16.mxu0 0
      %2450 = vmatpush1.bf16.msra.mxu0 0
      %2451 = vmatprep.subr.bf16.mxu0 0
      %2452 = vmatpush1.bf16.msra.mxu0 0
      %2453 = vmatprep.subr.bf16.mxu0 0
      %2454 = vmatpush1.bf16.msra.mxu0 0
      %2455 = vmatprep.subr.bf16.mxu0 0
      %2456 = vmatpush1.bf16.msra.mxu0 0
      %2457 = vmatprep.subr.bf16.mxu0 0
      %2458 = vmatpush1.bf16.msra.mxu0 0
      %2459 = vmatprep.subr.bf16.mxu0 0
      %2460 = vmatpush1.bf16.msra.mxu0 0
      %2461 = vmatprep.subr.bf16.mxu0 0
      %2462 = vmatpush1.bf16.msra.mxu0 0
      %2463 = vmatprep.mubr.bf16.mxu0 0
      %2464 = vmatmul.mubr.bf16.gmra.mrb[0].mxu0 %v2375
      %v2465 = vpop.f32.mrb[0].mxu0
      %v2466 = vadd.f32 0.0, %v2465
      %v2467 = vpop.f32.mrb[0].mxu0
      %v2468 = vpop.f32.mrb[0].mxu0
      %v2469 = vadd.f32 0.0, %v2468
      %v2470 = vpop.f32.mrb[0].mxu0
      %2471 = vmatprep.mubr.bf16.mxu0 0
      %2472 = vmatmul.mubr.bf16.gmra.mrb[0].mxu0 %v2376
      %v2473 = vpop.f32.mrb[0].mxu0
      %v2474 = vadd.f32 0.0, %v2473
      %v2475 = vpop.f32.mrb[0].mxu0
      %v2476 = vpop.f32.mrb[0].mxu0
      %v2477 = vadd.f32 0.0, %v2476
      %v2478 = vpop.f32.mrb[0].mxu0
      %2479 = vmatprep.mubr.bf16.mxu0 0
      %2480 = vmatmul.mubr.bf16.gmra.mrb[0].mxu0 %v2377
      %v2481 = vpop.f32.mrb[0].mxu0
      %v2482 = vadd.f32 0.0, %v2481
      %v2483 = vpop.f32.mrb[0].mxu0
      %v2484 = vpop.f32.mrb[0].mxu0
      %v2485 = vadd.f32 0.0, %v2484
      %v2486 = vpop.f32.mrb[0].mxu0
      %2487 = vmatprep.mubr.bf16.mxu0 0
      %2488 = vmatmul.mubr.bf16.gmra.mrb[0].mxu0 %v2378
      %v2489 = vpop.f32.mrb[0].mxu0
      %v2490 = vadd.f32 0.0, %v2489
      %v2491 = vpop.f32.mrb[0].mxu0
      %v2492 = vpop.f32.mrb[0].mxu0
      %v2493 = vadd.f32 0.0, %v2492
      %v2494 = vpop.f32.mrb[0].mxu0
      %2495 = vdwg.mxu0
      %v2496 = vadd.f32 %v2326, %v2466
      %v2497 = vadd.f32 %v2327, %v2469
      %v2498 = vadd.f32 %v2328, %v2474
      %v2499 = vadd.f32 %v2329, %v2477
      %v2500 = vadd.f32 %v2330, %v2482
      %v2501 = vadd.f32 %v2331, %v2485
      %v2502 = vadd.f32 %v2332, %v2490
      %v2503 = vadd.f32 %v2333, %v2493
      %v2504 = vld [vmem:[%s334] sm:$0xf]
      %v2505 = vld [vmem:[%s334 + $0x4] sm:$0x1]
      %v2506 = vld [vmem:[%s334 + $0x8] sm:$0xf]
      %v2507 = vld [vmem:[%s334 + $0xc] sm:$0x1]
      %v2508 = vld [vmem:[%s334 + $0x10] sm:$0xf]
      %v2509 = vld [vmem:[%s334 + $0x14] sm:$0x1]
      %v2510 = vld [vmem:[%s334 + $0x18] sm:$0xf]
      %v2511 = vld [vmem:[%s334 + $0x1c] sm:$0x1]
      %v2512 = vld [vmem:[%s334 + $0x20] sm:$0xf]
      %v2513 = vld [vmem:[%s334 + $0x24] sm:$0x1]
      %v2514 = vld [vmem:[%s334 + $0x28] sm:$0xf]
      %v2515 = vld [vmem:[%s334 + $0x2c] sm:$0x1]
      %v2516 = vld [vmem:[%s334 + $0x30] sm:$0xf]
      %v2517 = vld [vmem:[%s334 + $0x34] sm:$0x1]
      %v2518 = vld [vmem:[%s334 + $0x38] sm:$0xf]
      %v2519 = vld [vmem:[%s334 + $0x3c] sm:$0x1]
      %v2521 = vshrl.u32 %v2504, 16
      %v2523 = vrot.slane %v2521, 4
      %v2524 = vshll.u32 %v2504, 16
      %v2526 = vrot.slane %v2524, 5
      %v2527 = vor.u32 %v2523, %v2526
      %v2528 = vrot.slane %v2527, 4
      %v2530 = vshll.u32 %v2505, 16
      %v2532 = vrot.slane %v2530, 5
      %v2533 = vsel %vm399, %v2528, %v2532
      %v2535 = vshrl.u32 %v2506, 16
      %v2537 = vrot.slane %v2535, 4
      %v2538 = vshll.u32 %v2506, 16
      %v2540 = vrot.slane %v2538, 5
      %v2541 = vor.u32 %v2537, %v2540
      %v2542 = vrot.slane %v2541, 4
      %v2544 = vshll.u32 %v2507, 16
      %v2546 = vrot.slane %v2544, 5
      %v2547 = vsel %vm399, %v2542, %v2546
      %v2549 = vshrl.u32 %v2508, 16
      %v2551 = vrot.slane %v2549, 4
      %v2552 = vshll.u32 %v2508, 16
      %v2554 = vrot.slane %v2552, 5
      %v2555 = vor.u32 %v2551, %v2554
      %v2556 = vrot.slane %v2555, 4
      %v2558 = vshll.u32 %v2509, 16
      %v2560 = vrot.slane %v2558, 5
      %v2561 = vsel %vm399, %v2556, %v2560
      %v2563 = vshrl.u32 %v2510, 16
      %v2565 = vrot.slane %v2563, 4
      %v2566 = vshll.u32 %v2510, 16
      %v2568 = vrot.slane %v2566, 5
      %v2569 = vor.u32 %v2565, %v2568
      %v2570 = vrot.slane %v2569, 4
      %v2572 = vshll.u32 %v2511, 16
      %v2574 = vrot.slane %v2572, 5
      %v2575 = vsel %vm399, %v2570, %v2574
      %v2577 = vshrl.u32 %v2512, 16
      %v2579 = vrot.slane %v2577, 4
      %v2580 = vshll.u32 %v2512, 16
      %v2582 = vrot.slane %v2580, 5
      %v2583 = vor.u32 %v2579, %v2582
      %v2584 = vrot.slane %v2583, 4
      %v2586 = vshll.u32 %v2513, 16
      %v2588 = vrot.slane %v2586, 5
      %v2589 = vsel %vm399, %v2584, %v2588
      %v2591 = vshrl.u32 %v2514, 16
      %v2593 = vrot.slane %v2591, 4
      %v2594 = vshll.u32 %v2514, 16
      %v2596 = vrot.slane %v2594, 5
      %v2597 = vor.u32 %v2593, %v2596
      %v2598 = vrot.slane %v2597, 4
      %v2600 = vshll.u32 %v2515, 16
      %v2602 = vrot.slane %v2600, 5
      %v2603 = vsel %vm399, %v2598, %v2602
      %v2605 = vshrl.u32 %v2516, 16
      %v2607 = vrot.slane %v2605, 4
      %v2608 = vshll.u32 %v2516, 16
      %v2610 = vrot.slane %v2608, 5
      %v2611 = vor.u32 %v2607, %v2610
      %v2612 = vrot.slane %v2611, 4
      %v2614 = vshll.u32 %v2517, 16
      %v2616 = vrot.slane %v2614, 5
      %v2617 = vsel %vm399, %v2612, %v2616
      %v2619 = vshrl.u32 %v2518, 16
      %v2621 = vrot.slane %v2619, 4
      %v2622 = vshll.u32 %v2518, 16
      %v2624 = vrot.slane %v2622, 5
      %v2625 = vor.u32 %v2621, %v2624
      %v2626 = vrot.slane %v2625, 4
      %v2628 = vshll.u32 %v2519, 16
      %v2630 = vrot.slane %v2628, 5
      %v2631 = vsel %vm399, %v2626, %v2630
      %s2632 = scalar_lea.vmem %s3, 640
      %v2633 = vld [vmem:[%s2632] sm:$0xf]
      %v2634 = vld [vmem:[%s2632 + $0x4] sm:$0xf]
      %v2635 = vld [vmem:[%s2632 + $0x8] sm:$0xf]
      %v2636 = vld [vmem:[%s2632 + $0xc] sm:$0xf]
      %v2637 = vld [vmem:[%s2632 + $0x10] sm:$0xf]
      %v2638 = vld [vmem:[%s2632 + $0x14] sm:$0xf]
      %v2639 = vld [vmem:[%s2632 + $0x18] sm:$0xf]
      %v2640 = vld [vmem:[%s2632 + $0x1c] sm:$0xf]
      %v2641 = vld [vmem:[%s2632 + $0x20] sm:$0xf]
      %v2642 = vld [vmem:[%s2632 + $0x24] sm:$0xf]
      %v2643 = vld [vmem:[%s2632 + $0x28] sm:$0xf]
      %v2644 = vld [vmem:[%s2632 + $0x2c] sm:$0xf]
      %v2645 = vld [vmem:[%s2632 + $0x30] sm:$0xf]
      %v2646 = vld [vmem:[%s2632 + $0x34] sm:$0xf]
      %v2647 = vld [vmem:[%s2632 + $0x38] sm:$0xf]
      %v2648 = vld [vmem:[%s2632 + $0x3c] sm:$0xf]
      %v2649 = vunpack.c.l.b16 %v2533
      %v2650 = vunpack.c.l.b16 %v2547
      %v2651 = vunpack.c.l.b16 %v2561
      %v2652 = vunpack.c.l.b16 %v2575
      %v2653 = vunpack.c.l.b16 %v2589
      %v2654 = vunpack.c.l.b16 %v2603
      %v2655 = vunpack.c.l.b16 %v2617
      %v2656 = vunpack.c.l.b16 %v2631
      %v2657 = vpack.c.b16 %v2650, %v2649
      %v2658 = vpack.c.b16 %v2652, %v2651
      %v2659 = vpack.c.b16 %v2654, %v2653
      %v2660 = vpack.c.b16 %v2656, %v2655
      %v2681 = vunpack.c.l.b16 %v2633
      %v2682 = vunpack.c.l.b16 %v2634
      %v2683 = vunpack.c.l.b16 %v2635
      %v2684 = vunpack.c.l.b16 %v2636
      %v2685 = vunpack.c.l.b16 %v2637
      %v2686 = vunpack.c.l.b16 %v2638
      %v2687 = vunpack.c.l.b16 %v2639
      %v2688 = vunpack.c.l.b16 %v2640
      %v2689 = vunpack.c.l.b16 %v2641
      %v2690 = vunpack.c.l.b16 %v2642
      %v2691 = vunpack.c.l.b16 %v2643
      %v2692 = vunpack.c.l.b16 %v2644
      %v2693 = vunpack.c.l.b16 %v2645
      %v2694 = vunpack.c.l.b16 %v2646
      %v2695 = vunpack.c.l.b16 %v2647
      %v2696 = vunpack.c.l.b16 %v2648
      %v2697 = vpack.c.b16 %v2682, %v2681
      %v2698 = vpack.c.b16 %v2684, %v2683
      %v2699 = vpack.c.b16 %v2686, %v2685
      %v2700 = vpack.c.b16 %v2688, %v2687
      %v2701 = vpack.c.b16 %v2690, %v2689
      %v2702 = vpack.c.b16 %v2692, %v2691
      %v2703 = vpack.c.b16 %v2694, %v2693
      %v2704 = vpack.c.b16 %v2696, %v2695
      %2713 = vmatprep.subr.bf16.mxu0 0
      %2714 = vmatpush1.bf16.msra.mxu0 %v2697
      %2715 = vmatprep.subr.bf16.mxu0 0
      %2716 = vmatpush1.bf16.msra.mxu0 %v2698
      %2717 = vmatprep.subr.bf16.mxu0 0
      %2718 = vmatpush1.bf16.msra.mxu0 %v2699
      %2719 = vmatprep.subr.bf16.mxu0 0
      %2720 = vmatpush1.bf16.msra.mxu0 %v2700
      %2721 = vmatprep.subr.bf16.mxu0 0
      %2722 = vmatpush1.bf16.msra.mxu0 %v2701
      %2723 = vmatprep.subr.bf16.mxu0 0
      %2724 = vmatpush1.bf16.msra.mxu0 %v2702
      %2725 = vmatprep.subr.bf16.mxu0 0
      %2726 = vmatpush1.bf16.msra.mxu0 %v2703
      %2727 = vmatprep.subr.bf16.mxu0 0
      %2728 = vmatpush1.bf16.msra.mxu0 %v2704
      %2729 = vmatprep.subr.bf16.mxu0 0
      %2730 = vmatpush1.bf16.msra.mxu0 0
      %2731 = vmatprep.subr.bf16.mxu0 0
      %2732 = vmatpush1.bf16.msra.mxu0 0
      %2733 = vmatprep.subr.bf16.mxu0 0
      %2734 = vmatpush1.bf16.msra.mxu0 0
      %2735 = vmatprep.subr.bf16.mxu0 0
      %2736 = vmatpush1.bf16.msra.mxu0 0
      %2737 = vmatprep.subr.bf16.mxu0 0
      %2738 = vmatpush1.bf16.msra.mxu0 0
      %2739 = vmatprep.subr.bf16.mxu0 0
      %2740 = vmatpush1.bf16.msra.mxu0 0
      %2741 = vmatprep.subr.bf16.mxu0 0
      %2742 = vmatpush1.bf16.msra.mxu0 0
      %2743 = vmatprep.subr.bf16.mxu0 0
      %2744 = vmatpush1.bf16.msra.mxu0 0
      %2745 = vmatprep.mubr.bf16.mxu0 0
      %2746 = vmatmul.mubr.bf16.gmra.mrb[0].mxu0 %v2657
      %v2747 = vpop.f32.mrb[0].mxu0
      %v2748 = vadd.f32 0.0, %v2747
      %v2749 = vpop.f32.mrb[0].mxu0
      %v2750 = vpop.f32.mrb[0].mxu0
      %v2751 = vadd.f32 0.0, %v2750
      %v2752 = vpop.f32.mrb[0].mxu0
      %2753 = vmatprep.mubr.bf16.mxu0 0
      %2754 = vmatmul.mubr.bf16.gmra.mrb[0].mxu0 %v2658
      %v2755 = vpop.f32.mrb[0].mxu0
      %v2756 = vadd.f32 0.0, %v2755
      %v2757 = vpop.f32.mrb[0].mxu0
      %v2758 = vpop.f32.mrb[0].mxu0
      %v2759 = vadd.f32 0.0, %v2758
      %v2760 = vpop.f32.mrb[0].mxu0
      %2761 = vmatprep.mubr.bf16.mxu0 0
      %2762 = vmatmul.mubr.bf16.gmra.mrb[0].mxu0 %v2659
      %v2763 = vpop.f32.mrb[0].mxu0
      %v2764 = vadd.f32 0.0, %v2763
      %v2765 = vpop.f32.mrb[0].mxu0
      %v2766 = vpop.f32.mrb[0].mxu0
      %v2767 = vadd.f32 0.0, %v2766
      %v2768 = vpop.f32.mrb[0].mxu0
      %2769 = vmatprep.mubr.bf16.mxu0 0
      %2770 = vmatmul.mubr.bf16.gmra.mrb[0].mxu0 %v2660
      %v2771 = vpop.f32.mrb[0].mxu0
      %v2772 = vadd.f32 0.0, %v2771
      %v2773 = vpop.f32.mrb[0].mxu0
      %v2774 = vpop.f32.mrb[0].mxu0
      %v2775 = vadd.f32 0.0, %v2774
      %v2776 = vpop.f32.mrb[0].mxu0
      %2777 = vdwg.mxu0
      %v2778 = vadd.f32 %v2496, %v2748
      %v2779 = vadd.f32 %v2497, %v2751
      %v2780 = vadd.f32 %v2498, %v2756
      %v2781 = vadd.f32 %v2499, %v2759
      %v2782 = vadd.f32 %v2500, %v2764
      %v2783 = vadd.f32 %v2501, %v2767
      %v2784 = vadd.f32 %v2502, %v2772
      %v2785 = vadd.f32 %v2503, %v2775
      %v2786 = vld [vmem:[%s334] sm:$0xe]
      %v2787 = vld [vmem:[%s334 + $0x8] sm:$0xe]
      %v2788 = vld [vmem:[%s334 + $0x10] sm:$0xe]
      %v2789 = vld [vmem:[%s334 + $0x18] sm:$0xe]
      %v2790 = vld [vmem:[%s334 + $0x20] sm:$0xe]
      %v2791 = vld [vmem:[%s334 + $0x28] sm:$0xe]
      %v2792 = vld [vmem:[%s334 + $0x30] sm:$0xe]
      %v2793 = vld [vmem:[%s334 + $0x38] sm:$0xe]
      %v2810 = vrot.slane %v2786, 5
      %v2811 = vrot.slane %v2810, 4
      %v2812 = vrot.slane %v2505, 5
      %v2813 = vsel %vm821, %v2811, %v2812
      %v2814 = vrot.slane %v2787, 5
      %v2815 = vrot.slane %v2814, 4
      %v2816 = vrot.slane %v2507, 5
      %v2817 = vsel %vm821, %v2815, %v2816
      %v2818 = vrot.slane %v2788, 5
      %v2819 = vrot.slane %v2818, 4
      %v2820 = vrot.slane %v2509, 5
      %v2821 = vsel %vm821, %v2819, %v2820
      %v2822 = vrot.slane %v2789, 5
      %v2823 = vrot.slane %v2822, 4
      %v2824 = vrot.slane %v2511, 5
      %v2825 = vsel %vm821, %v2823, %v2824
      %v2826 = vrot.slane %v2790, 5
      %v2827 = vrot.slane %v2826, 4
      %v2828 = vrot.slane %v2513, 5
      %v2829 = vsel %vm821, %v2827, %v2828
      %v2830 = vrot.slane %v2791, 5
      %v2831 = vrot.slane %v2830, 4
      %v2832 = vrot.slane %v2515, 5
      %v2833 = vsel %vm821, %v2831, %v2832
      %v2834 = vrot.slane %v2792, 5
      %v2835 = vrot.slane %v2834, 4
      %v2836 = vrot.slane %v2517, 5
      %v2837 = vsel %vm821, %v2835, %v2836
      %v2838 = vrot.slane %v2793, 5
      %v2839 = vrot.slane %v2838, 4
      %v2840 = vrot.slane %v2519, 5
      %v2841 = vsel %vm821, %v2839, %v2840
      %s2842 = scalar_lea.vmem %s3, 704
      %v2843 = vld [vmem:[%s2842] sm:$0xf]
      %v2844 = vld [vmem:[%s2842 + $0x4] sm:$0xf]
      %v2845 = vld [vmem:[%s2842 + $0x8] sm:$0xf]
      %v2846 = vld [vmem:[%s2842 + $0xc] sm:$0xf]
      %v2847 = vld [vmem:[%s2842 + $0x10] sm:$0xf]
      %v2848 = vld [vmem:[%s2842 + $0x14] sm:$0xf]
      %v2849 = vld [vmem:[%s2842 + $0x18] sm:$0xf]
      %v2850 = vld [vmem:[%s2842 + $0x1c] sm:$0xf]
      %v2851 = vld [vmem:[%s2842 + $0x20] sm:$0xf]
      %v2852 = vld [vmem:[%s2842 + $0x24] sm:$0xf]
      %v2853 = vld [vmem:[%s2842 + $0x28] sm:$0xf]
      %v2854 = vld [vmem:[%s2842 + $0x2c] sm:$0xf]
      %v2855 = vld [vmem:[%s2842 + $0x30] sm:$0xf]
      %v2856 = vld [vmem:[%s2842 + $0x34] sm:$0xf]
      %v2857 = vld [vmem:[%s2842 + $0x38] sm:$0xf]
      %v2858 = vld [vmem:[%s2842 + $0x3c] sm:$0xf]
      %v2859 = vunpack.c.l.b16 %v2813
      %v2860 = vunpack.c.l.b16 %v2817
      %v2861 = vunpack.c.l.b16 %v2821
      %v2862 = vunpack.c.l.b16 %v2825
      %v2863 = vunpack.c.l.b16 %v2829
      %v2864 = vunpack.c.l.b16 %v2833
      %v2865 = vunpack.c.l.b16 %v2837
      %v2866 = vunpack.c.l.b16 %v2841
      %v2867 = vpack.c.b16 %v2860, %v2859
      %v2868 = vpack.c.b16 %v2862, %v2861
      %v2869 = vpack.c.b16 %v2864, %v2863
      %v2870 = vpack.c.b16 %v2866, %v2865
      %v2891 = vunpack.c.l.b16 %v2843
      %v2892 = vunpack.c.l.b16 %v2844
      %v2893 = vunpack.c.l.b16 %v2845
      %v2894 = vunpack.c.l.b16 %v2846
      %v2895 = vunpack.c.l.b16 %v2847
      %v2896 = vunpack.c.l.b16 %v2848
      %v2897 = vunpack.c.l.b16 %v2849
      %v2898 = vunpack.c.l.b16 %v2850
      %v2899 = vunpack.c.l.b16 %v2851
      %v2900 = vunpack.c.l.b16 %v2852
      %v2901 = vunpack.c.l.b16 %v2853
      %v2902 = vunpack.c.l.b16 %v2854
      %v2903 = vunpack.c.l.b16 %v2855
      %v2904 = vunpack.c.l.b16 %v2856
      %v2905 = vunpack.c.l.b16 %v2857
      %v2906 = vunpack.c.l.b16 %v2858
      %v2907 = vpack.c.b16 %v2892, %v2891
      %v2908 = vpack.c.b16 %v2894, %v2893
      %v2909 = vpack.c.b16 %v2896, %v2895
      %v2910 = vpack.c.b16 %v2898, %v2897
      %v2911 = vpack.c.b16 %v2900, %v2899
      %v2912 = vpack.c.b16 %v2902, %v2901
      %v2913 = vpack.c.b16 %v2904, %v2903
      %v2914 = vpack.c.b16 %v2906, %v2905
      %2923 = vmatprep.subr.bf16.mxu0 0
      %2924 = vmatpush1.bf16.msra.mxu0 %v2907
      %2925 = vmatprep.subr.bf16.mxu0 0
      %2926 = vmatpush1.bf16.msra.mxu0 %v2908
      %2927 = vmatprep.subr.bf16.mxu0 0
      %2928 = vmatpush1.bf16.msra.mxu0 %v2909
      %2929 = vmatprep.subr.bf16.mxu0 0
      %2930 = vmatpush1.bf16.msra.mxu0 %v2910
      %2931 = vmatprep.subr.bf16.mxu0 0
      %2932 = vmatpush1.bf16.msra.mxu0 %v2911
      %2933 = vmatprep.subr.bf16.mxu0 0
      %2934 = vmatpush1.bf16.msra.mxu0 %v2912
      %2935 = vmatprep.subr.bf16.mxu0 0
      %2936 = vmatpush1.bf16.msra.mxu0 %v2913
      %2937 = vmatprep.subr.bf16.mxu0 0
      %2938 = vmatpush1.bf16.msra.mxu0 %v2914
      %2939 = vmatprep.subr.bf16.mxu0 0
      %2940 = vmatpush1.bf16.msra.mxu0 0
      %2941 = vmatprep.subr.bf16.mxu0 0
      %2942 = vmatpush1.bf16.msra.mxu0 0
      %2943 = vmatprep.subr.bf16.mxu0 0
      %2944 = vmatpush1.bf16.msra.mxu0 0
      %2945 = vmatprep.subr.bf16.mxu0 0
      %2946 = vmatpush1.bf16.msra.mxu0 0
      %2947 = vmatprep.subr.bf16.mxu0 0
      %2948 = vmatpush1.bf16.msra.mxu0 0
      %2949 = vmatprep.subr.bf16.mxu0 0
      %2950 = vmatpush1.bf16.msra.mxu0 0
      %2951 = vmatprep.subr.bf16.mxu0 0
      %2952 = vmatpush1.bf16.msra.mxu0 0
      %2953 = vmatprep.subr.bf16.mxu0 0
      %2954 = vmatpush1.bf16.msra.mxu0 0
      %2955 = vmatprep.mubr.bf16.mxu0 0
      %2956 = vmatmul.mubr.bf16.gmra.mrb[0].mxu0 %v2867
      %v2957 = vpop.f32.mrb[0].mxu0
      %v2958 = vadd.f32 0.0, %v2957
      %v2959 = vpop.f32.mrb[0].mxu0
      %v2960 = vpop.f32.mrb[0].mxu0
      %v2961 = vadd.f32 0.0, %v2960
      %v2962 = vpop.f32.mrb[0].mxu0
      %2963 = vmatprep.mubr.bf16.mxu0 0
      %2964 = vmatmul.mubr.bf16.gmra.mrb[0].mxu0 %v2868
      %v2965 = vpop.f32.mrb[0].mxu0
      %v2966 = vadd.f32 0.0, %v2965
      %v2967 = vpop.f32.mrb[0].mxu0
      %v2968 = vpop.f32.mrb[0].mxu0
      %v2969 = vadd.f32 0.0, %v2968
      %v2970 = vpop.f32.mrb[0].mxu0
      %2971 = vmatprep.mubr.bf16.mxu0 0
      %2972 = vmatmul.mubr.bf16.gmra.mrb[0].mxu0 %v2869
      %v2973 = vpop.f32.mrb[0].mxu0
      %v2974 = vadd.f32 0.0, %v2973
      %v2975 = vpop.f32.mrb[0].mxu0
      %v2976 = vpop.f32.mrb[0].mxu0
      %v2977 = vadd.f32 0.0, %v2976
      %v2978 = vpop.f32.mrb[0].mxu0
      %2979 = vmatprep.mubr.bf16.mxu0 0
      %2980 = vmatmul.mubr.bf16.gmra.mrb[0].mxu0 %v2870
      %v2981 = vpop.f32.mrb[0].mxu0
      %v2982 = vadd.f32 0.0, %v2981
      %v2983 = vpop.f32.mrb[0].mxu0
      %v2984 = vpop.f32.mrb[0].mxu0
      %v2985 = vadd.f32 0.0, %v2984
      %v2986 = vpop.f32.mrb[0].mxu0
      %2987 = vdwg.mxu0
      %v2988 = vadd.f32 %v2778, %v2958
      %v2989 = vadd.f32 %v2779, %v2961
      %v2990 = vadd.f32 %v2780, %v2966
      %v2991 = vadd.f32 %v2781, %v2969
      %v2992 = vadd.f32 %v2782, %v2974
      %v2993 = vadd.f32 %v2783, %v2977
      %v2994 = vadd.f32 %v2784, %v2982
      %v2995 = vadd.f32 %v2785, %v2985
      %s2996 = scalar_lea.vmem %s334, 8
      %v2997 = vld [vmem:[%s2996] sm:$0xf]
      %v2998 = vld [vmem:[%s2996 + $0x8] sm:$0xf]
      %v2999 = vld [vmem:[%s2996 + $0x10] sm:$0xf]
      %v3000 = vld [vmem:[%s2996 + $0x18] sm:$0xf]
      %v3001 = vld [vmem:[%s2996 + $0x20] sm:$0xf]
      %v3002 = vld [vmem:[%s2996 + $0x28] sm:$0xf]
      %v3003 = vld [vmem:[%s2996 + $0x30] sm:$0xf]
      %v3004 = vld [vmem:[%s2996 + $0x38] sm:$0xf]
      %s3005 = scalar_lea.vmem %s3, 768
      %v3006 = vld [vmem:[%s3005] sm:$0xf]
      %v3007 = vld [vmem:[%s3005 + $0x4] sm:$0xf]
      %v3008 = vld [vmem:[%s3005 + $0x8] sm:$0xf]
      %v3009 = vld [vmem:[%s3005 + $0xc] sm:$0xf]
      %v3010 = vld [vmem:[%s3005 + $0x10] sm:$0xf]
      %v3011 = vld [vmem:[%s3005 + $0x14] sm:$0xf]
      %v3012 = vld [vmem:[%s3005 + $0x18] sm:$0xf]
      %v3013 = vld [vmem:[%s3005 + $0x1c] sm:$0xf]
      %v3014 = vld [vmem:[%s3005 + $0x20] sm:$0xf]
      %v3015 = vld [vmem:[%s3005 + $0x24] sm:$0xf]
      %v3016 = vld [vmem:[%s3005 + $0x28] sm:$0xf]
      %v3017 = vld [vmem:[%s3005 + $0x2c] sm:$0xf]
      %v3018 = vld [vmem:[%s3005 + $0x30] sm:$0xf]
      %v3019 = vld [vmem:[%s3005 + $0x34] sm:$0xf]
      %v3020 = vld [vmem:[%s3005 + $0x38] sm:$0xf]
      %v3021 = vld [vmem:[%s3005 + $0x3c] sm:$0xf]
      %v3030 = vunpack.c.l.b16 %v2997
      %v3031 = vunpack.c.l.b16 %v2998
      %v3032 = vunpack.c.l.b16 %v2999
      %v3033 = vunpack.c.l.b16 %v3000
      %v3034 = vunpack.c.l.b16 %v3001
      %v3035 = vunpack.c.l.b16 %v3002
      %v3036 = vunpack.c.l.b16 %v3003
      %v3037 = vunpack.c.l.b16 %v3004
      %v3038 = vpack.c.b16 %v3031, %v3030
      %v3039 = vpack.c.b16 %v3033, %v3032
      %v3040 = vpack.c.b16 %v3035, %v3034
      %v3041 = vpack.c.b16 %v3037, %v3036
      %v3062 = vunpack.c.l.b16 %v3006
      %v3063 = vunpack.c.l.b16 %v3007
      %v3064 = vunpack.c.l.b16 %v3008
      %v3065 = vunpack.c.l.b16 %v3009
      %v3066 = vunpack.c.l.b16 %v3010
      %v3067 = vunpack.c.l.b16 %v3011
      %v3068 = vunpack.c.l.b16 %v3012
      %v3069 = vunpack.c.l.b16 %v3013
      %v3070 = vunpack.c.l.b16 %v3014
      %v3071 = vunpack.c.l.b16 %v3015
      %v3072 = vunpack.c.l.b16 %v3016
      %v3073 = vunpack.c.l.b16 %v3017
      %v3074 = vunpack.c.l.b16 %v3018
      %v3075 = vunpack.c.l.b16 %v3019
      %v3076 = vunpack.c.l.b16 %v3020
      %v3077 = vunpack.c.l.b16 %v3021
      %v3078 = vpack.c.b16 %v3063, %v3062
      %v3079 = vpack.c.b16 %v3065, %v3064
      %v3080 = vpack.c.b16 %v3067, %v3066
      %v3081 = vpack.c.b16 %v3069, %v3068
      %v3082 = vpack.c.b16 %v3071, %v3070
      %v3083 = vpack.c.b16 %v3073, %v3072
      %v3084 = vpack.c.b16 %v3075, %v3074
      %v3085 = vpack.c.b16 %v3077, %v3076
      %3094 = vmatprep.subr.bf16.mxu0 0
      %3095 = vmatpush1.bf16.msra.mxu0 %v3078
      %3096 = vmatprep.subr.bf16.mxu0 0
      %3097 = vmatpush1.bf16.msra.mxu0 %v3079
      %3098 = vmatprep.subr.bf16.mxu0 0
      %3099 = vmatpush1.bf16.msra.mxu0 %v3080
      %3100 = vmatprep.subr.bf16.mxu0 0
      %3101 = vmatpush1.bf16.msra.mxu0 %v3081
      %3102 = vmatprep.subr.bf16.mxu0 0
      %3103 = vmatpush1.bf16.msra.mxu0 %v3082
      %3104 = vmatprep.subr.bf16.mxu0 0
      %3105 = vmatpush1.bf16.msra.mxu0 %v3083
      %3106 = vmatprep.subr.bf16.mxu0 0
      %3107 = vmatpush1.bf16.msra.mxu0 %v3084
      %3108 = vmatprep.subr.bf16.mxu0 0
      %3109 = vmatpush1.bf16.msra.mxu0 %v3085
      %3110 = vmatprep.subr.bf16.mxu0 0
      %3111 = vmatpush1.bf16.msra.mxu0 0
      %3112 = vmatprep.subr.bf16.mxu0 0
      %3113 = vmatpush1.bf16.msra.mxu0 0
      %3114 = vmatprep.subr.bf16.mxu0 0
      %3115 = vmatpush1.bf16.msra.mxu0 0
      %3116 = vmatprep.subr.bf16.mxu0 0
      %3117 = vmatpush1.bf16.msra.mxu0 0
      %3118 = vmatprep.subr.bf16.mxu0 0
      %3119 = vmatpush1.bf16.msra.mxu0 0
      %3120 = vmatprep.subr.bf16.mxu0 0
      %3121 = vmatpush1.bf16.msra.mxu0 0
      %3122 = vmatprep.subr.bf16.mxu0 0
      %3123 = vmatpush1.bf16.msra.mxu0 0
      %3124 = vmatprep.subr.bf16.mxu0 0
      %3125 = vmatpush1.bf16.msra.mxu0 0
      %3126 = vmatprep.mubr.bf16.mxu0 0
      %3127 = vmatmul.mubr.bf16.gmra.mrb[0].mxu0 %v3038
      %v3128 = vpop.f32.mrb[0].mxu0
      %v3129 = vadd.f32 0.0, %v3128
      %v3130 = vpop.f32.mrb[0].mxu0
      %v3131 = vpop.f32.mrb[0].mxu0
      %v3132 = vadd.f32 0.0, %v3131
      %v3133 = vpop.f32.mrb[0].mxu0
      %3134 = vmatprep.mubr.bf16.mxu0 0
      %3135 = vmatmul.mubr.bf16.gmra.mrb[0].mxu0 %v3039
      %v3136 = vpop.f32.mrb[0].mxu0
      %v3137 = vadd.f32 0.0, %v3136
      %v3138 = vpop.f32.mrb[0].mxu0
      %v3139 = vpop.f32.mrb[0].mxu0
      %v3140 = vadd.f32 0.0, %v3139
      %v3141 = vpop.f32.mrb[0].mxu0
      %3142 = vmatprep.mubr.bf16.mxu0 0
      %3143 = vmatmul.mubr.bf16.gmra.mrb[0].mxu0 %v3040
      %v3144 = vpop.f32.mrb[0].mxu0
      %v3145 = vadd.f32 0.0, %v3144
      %v3146 = vpop.f32.mrb[0].mxu0
      %v3147 = vpop.f32.mrb[0].mxu0
      %v3148 = vadd.f32 0.0, %v3147
      %v3149 = vpop.f32.mrb[0].mxu0
      %3150 = vmatprep.mubr.bf16.mxu0 0
      %3151 = vmatmul.mubr.bf16.gmra.mrb[0].mxu0 %v3041
      %v3152 = vpop.f32.mrb[0].mxu0
      %v3153 = vadd.f32 0.0, %v3152
      %v3154 = vpop.f32.mrb[0].mxu0
      %v3155 = vpop.f32.mrb[0].mxu0
      %v3156 = vadd.f32 0.0, %v3155
      %v3157 = vpop.f32.mrb[0].mxu0
      %3158 = vdwg.mxu0
      %v3159 = vadd.f32 %v2988, %v3129
      %v3160 = vadd.f32 %v2989, %v3132
      %v3161 = vadd.f32 %v2990, %v3137
      %v3162 = vadd.f32 %v2991, %v3140
      %v3163 = vadd.f32 %v2992, %v3145
      %v3164 = vadd.f32 %v2993, %v3148
      %v3165 = vadd.f32 %v2994, %v3153
      %v3166 = vadd.f32 %v2995, %v3156
      %v3167 = vld [vmem:[%s2996] sm:$0xf]
      %v3168 = vld [vmem:[%s2996 + $0x4] sm:$0x1]
      %v3169 = vld [vmem:[%s2996 + $0x8] sm:$0xf]
      %v3170 = vld [vmem:[%s2996 + $0xc] sm:$0x1]
      %v3171 = vld [vmem:[%s2996 + $0x10] sm:$0xf]
      %v3172 = vld [vmem:[%s2996 + $0x14] sm:$0x1]
      %v3173 = vld [vmem:[%s2996 + $0x18] sm:$0xf]
      %v3174 = vld [vmem:[%s2996 + $0x1c] sm:$0x1]
      %v3175 = vld [vmem:[%s2996 + $0x20] sm:$0xf]
      %v3176 = vld [vmem:[%s2996 + $0x24] sm:$0x1]
      %v3177 = vld [vmem:[%s2996 + $0x28] sm:$0xf]
      %v3178 = vld [vmem:[%s2996 + $0x2c] sm:$0x1]
      %v3179 = vld [vmem:[%s2996 + $0x30] sm:$0xf]
      %v3180 = vld [vmem:[%s2996 + $0x34] sm:$0x1]
      %v3181 = vld [vmem:[%s2996 + $0x38] sm:$0xf]
      %v3182 = vld [vmem:[%s2996 + $0x3c] sm:$0x1]
      %v3184 = vshrl.u32 %v3167, 16
      %v3186 = vrot.slane %v3184, 4
      %v3187 = vshll.u32 %v3167, 16
      %v3189 = vrot.slane %v3187, 5
      %v3190 = vor.u32 %v3186, %v3189
      %v3191 = vrot.slane %v3190, 4
      %v3193 = vshll.u32 %v3168, 16
      %v3195 = vrot.slane %v3193, 5
      %v3196 = vsel %vm399, %v3191, %v3195
      %v3198 = vshrl.u32 %v3169, 16
      %v3200 = vrot.slane %v3198, 4
      %v3201 = vshll.u32 %v3169, 16
      %v3203 = vrot.slane %v3201, 5
      %v3204 = vor.u32 %v3200, %v3203
      %v3205 = vrot.slane %v3204, 4
      %v3207 = vshll.u32 %v3170, 16
      %v3209 = vrot.slane %v3207, 5
      %v3210 = vsel %vm399, %v3205, %v3209
      %v3212 = vshrl.u32 %v3171, 16
      %v3214 = vrot.slane %v3212, 4
      %v3215 = vshll.u32 %v3171, 16
      %v3217 = vrot.slane %v3215, 5
      %v3218 = vor.u32 %v3214, %v3217
      %v3219 = vrot.slane %v3218, 4
      %v3221 = vshll.u32 %v3172, 16
      %v3223 = vrot.slane %v3221, 5
      %v3224 = vsel %vm399, %v3219, %v3223
      %v3226 = vshrl.u32 %v3173, 16
      %v3228 = vrot.slane %v3226, 4
      %v3229 = vshll.u32 %v3173, 16
      %v3231 = vrot.slane %v3229, 5
      %v3232 = vor.u32 %v3228, %v3231
      %v3233 = vrot.slane %v3232, 4
      %v3235 = vshll.u32 %v3174, 16
      %v3237 = vrot.slane %v3235, 5
      %v3238 = vsel %vm399, %v3233, %v3237
      %v3240 = vshrl.u32 %v3175, 16
      %v3242 = vrot.slane %v3240, 4
      %v3243 = vshll.u32 %v3175, 16
      %v3245 = vrot.slane %v3243, 5
      %v3246 = vor.u32 %v3242, %v3245
      %v3247 = vrot.slane %v3246, 4
      %v3249 = vshll.u32 %v3176, 16
      %v3251 = vrot.slane %v3249, 5
      %v3252 = vsel %vm399, %v3247, %v3251
      %v3254 = vshrl.u32 %v3177, 16
      %v3256 = vrot.slane %v3254, 4
      %v3257 = vshll.u32 %v3177, 16
      %v3259 = vrot.slane %v3257, 5
      %v3260 = vor.u32 %v3256, %v3259
      %v3261 = vrot.slane %v3260, 4
      %v3263 = vshll.u32 %v3178, 16
      %v3265 = vrot.slane %v3263, 5
      %v3266 = vsel %vm399, %v3261, %v3265
      %v3268 = vshrl.u32 %v3179, 16
      %v3270 = vrot.slane %v3268, 4
      %v3271 = vshll.u32 %v3179, 16
      %v3273 = vrot.slane %v3271, 5
      %v3274 = vor.u32 %v3270, %v3273
      %v3275 = vrot.slane %v3274, 4
      %v3277 = vshll.u32 %v3180, 16
      %v3279 = vrot.slane %v3277, 5
      %v3280 = vsel %vm399, %v3275, %v3279
      %v3282 = vshrl.u32 %v3181, 16
      %v3284 = vrot.slane %v3282, 4
      %v3285 = vshll.u32 %v3181, 16
      %v3287 = vrot.slane %v3285, 5
      %v3288 = vor.u32 %v3284, %v3287
      %v3289 = vrot.slane %v3288, 4
      %v3291 = vshll.u32 %v3182, 16
      %v3293 = vrot.slane %v3291, 5
      %v3294 = vsel %vm399, %v3289, %v3293
      %s3295 = scalar_lea.vmem %s3, 832
      %v3296 = vld [vmem:[%s3295] sm:$0xf]
      %v3297 = vld [vmem:[%s3295 + $0x4] sm:$0xf]
      %v3298 = vld [vmem:[%s3295 + $0x8] sm:$0xf]
      %v3299 = vld [vmem:[%s3295 + $0xc] sm:$0xf]
      %v3300 = vld [vmem:[%s3295 + $0x10] sm:$0xf]
      %v3301 = vld [vmem:[%s3295 + $0x14] sm:$0xf]
      %v3302 = vld [vmem:[%s3295 + $0x18] sm:$0xf]
      %v3303 = vld [vmem:[%s3295 + $0x1c] sm:$0xf]
      %v3304 = vld [vmem:[%s3295 + $0x20] sm:$0xf]
      %v3305 = vld [vmem:[%s3295 + $0x24] sm:$0xf]
      %v3306 = vld [vmem:[%s3295 + $0x28] sm:$0xf]
      %v3307 = vld [vmem:[%s3295 + $0x2c] sm:$0xf]
      %v3308 = vld [vmem:[%s3295 + $0x30] sm:$0xf]
      %v3309 = vld [vmem:[%s3295 + $0x34] sm:$0xf]
      %v3310 = vld [vmem:[%s3295 + $0x38] sm:$0xf]
      %v3311 = vld [vmem:[%s3295 + $0x3c] sm:$0xf]
      %v3312 = vunpack.c.l.b16 %v3196
      %v3313 = vunpack.c.l.b16 %v3210
      %v3314 = vunpack.c.l.b16 %v3224
      %v3315 = vunpack.c.l.b16 %v3238
      %v3316 = vunpack.c.l.b16 %v3252
      %v3317 = vunpack.c.l.b16 %v3266
      %v3318 = vunpack.c.l.b16 %v3280
      %v3319 = vunpack.c.l.b16 %v3294
      %v3320 = vpack.c.b16 %v3313, %v3312
      %v3321 = vpack.c.b16 %v3315, %v3314
      %v3322 = vpack.c.b16 %v3317, %v3316
      %v3323 = vpack.c.b16 %v3319, %v3318
      %v3344 = vunpack.c.l.b16 %v3296
      %v3345 = vunpack.c.l.b16 %v3297
      %v3346 = vunpack.c.l.b16 %v3298
      %v3347 = vunpack.c.l.b16 %v3299
      %v3348 = vunpack.c.l.b16 %v3300
      %v3349 = vunpack.c.l.b16 %v3301
      %v3350 = vunpack.c.l.b16 %v3302
      %v3351 = vunpack.c.l.b16 %v3303
      %v3352 = vunpack.c.l.b16 %v3304
      %v3353 = vunpack.c.l.b16 %v3305
      %v3354 = vunpack.c.l.b16 %v3306
      %v3355 = vunpack.c.l.b16 %v3307
      %v3356 = vunpack.c.l.b16 %v3308
      %v3357 = vunpack.c.l.b16 %v3309
      %v3358 = vunpack.c.l.b16 %v3310
      %v3359 = vunpack.c.l.b16 %v3311
      %v3360 = vpack.c.b16 %v3345, %v3344
      %v3361 = vpack.c.b16 %v3347, %v3346
      %v3362 = vpack.c.b16 %v3349, %v3348
      %v3363 = vpack.c.b16 %v3351, %v3350
      %v3364 = vpack.c.b16 %v3353, %v3352
      %v3365 = vpack.c.b16 %v3355, %v3354
      %v3366 = vpack.c.b16 %v3357, %v3356
      %v3367 = vpack.c.b16 %v3359, %v3358
      %3376 = vmatprep.subr.bf16.mxu0 0
      %3377 = vmatpush1.bf16.msra.mxu0 %v3360
      %3378 = vmatprep.subr.bf16.mxu0 0
      %3379 = vmatpush1.bf16.msra.mxu0 %v3361
      %3380 = vmatprep.subr.bf16.mxu0 0
      %3381 = vmatpush1.bf16.msra.mxu0 %v3362
      %3382 = vmatprep.subr.bf16.mxu0 0
      %3383 = vmatpush1.bf16.msra.mxu0 %v3363
      %3384 = vmatprep.subr.bf16.mxu0 0
      %3385 = vmatpush1.bf16.msra.mxu0 %v3364
      %3386 = vmatprep.subr.bf16.mxu0 0
      %3387 = vmatpush1.bf16.msra.mxu0 %v3365
      %3388 = vmatprep.subr.bf16.mxu0 0
      %3389 = vmatpush1.bf16.msra.mxu0 %v3366
      %3390 = vmatprep.subr.bf16.mxu0 0
      %3391 = vmatpush1.bf16.msra.mxu0 %v3367
      %3392 = vmatprep.subr.bf16.mxu0 0
      %3393 = vmatpush1.bf16.msra.mxu0 0
      %3394 = vmatprep.subr.bf16.mxu0 0
      %3395 = vmatpush1.bf16.msra.mxu0 0
      %3396 = vmatprep.subr.bf16.mxu0 0
      %3397 = vmatpush1.bf16.msra.mxu0 0
      %3398 = vmatprep.subr.bf16.mxu0 0
      %3399 = vmatpush1.bf16.msra.mxu0 0
      %3400 = vmatprep.subr.bf16.mxu0 0
      %3401 = vmatpush1.bf16.msra.mxu0 0
      %3402 = vmatprep.subr.bf16.mxu0 0
      %3403 = vmatpush1.bf16.msra.mxu0 0
      %3404 = vmatprep.subr.bf16.mxu0 0
      %3405 = vmatpush1.bf16.msra.mxu0 0
      %3406 = vmatprep.subr.bf16.mxu0 0
      %3407 = vmatpush1.bf16.msra.mxu0 0
      %3408 = vmatprep.mubr.bf16.mxu0 0
      %3409 = vmatmul.mubr.bf16.gmra.mrb[0].mxu0 %v3320
      %v3410 = vpop.f32.mrb[0].mxu0
      %v3411 = vadd.f32 0.0, %v3410
      %v3412 = vpop.f32.mrb[0].mxu0
      %v3413 = vpop.f32.mrb[0].mxu0
      %v3414 = vadd.f32 0.0, %v3413
      %v3415 = vpop.f32.mrb[0].mxu0
      %3416 = vmatprep.mubr.bf16.mxu0 0
      %3417 = vmatmul.mubr.bf16.gmra.mrb[0].mxu0 %v3321
      %v3418 = vpop.f32.mrb[0].mxu0
      %v3419 = vadd.f32 0.0, %v3418
      %v3420 = vpop.f32.mrb[0].mxu0
      %v3421 = vpop.f32.mrb[0].mxu0
      %v3422 = vadd.f32 0.0, %v3421
      %v3423 = vpop.f32.mrb[0].mxu0
      %3424 = vmatprep.mubr.bf16.mxu0 0
      %3425 = vmatmul.mubr.bf16.gmra.mrb[0].mxu0 %v3322
      %v3426 = vpop.f32.mrb[0].mxu0
      %v3427 = vadd.f32 0.0, %v3426
      %v3428 = vpop.f32.mrb[0].mxu0
      %v3429 = vpop.f32.mrb[0].mxu0
      %v3430 = vadd.f32 0.0, %v3429
      %v3431 = vpop.f32.mrb[0].mxu0
      %3432 = vmatprep.mubr.bf16.mxu0 0
      %3433 = vmatmul.mubr.bf16.gmra.mrb[0].mxu0 %v3323
      %v3434 = vpop.f32.mrb[0].mxu0
      %v3435 = vadd.f32 0.0, %v3434
      %v3436 = vpop.f32.mrb[0].mxu0
      %v3437 = vpop.f32.mrb[0].mxu0
      %v3438 = vadd.f32 0.0, %v3437
      %v3439 = vpop.f32.mrb[0].mxu0
      %3440 = vdwg.mxu0
      %v3441 = vadd.f32 %v3159, %v3411
      %v3442 = vadd.f32 %v3160, %v3414
      %v3443 = vadd.f32 %v3161, %v3419
      %v3444 = vadd.f32 %v3162, %v3422
      %v3445 = vadd.f32 %v3163, %v3427
      %v3446 = vadd.f32 %v3164, %v3430
      %v3447 = vadd.f32 %v3165, %v3435
      %v3448 = vadd.f32 %v3166, %v3438
      %v3449 = vld [vmem:[%s2996] sm:$0xe]
      %v3450 = vld [vmem:[%s2996 + $0x8] sm:$0xe]
      %v3451 = vld [vmem:[%s2996 + $0x10] sm:$0xe]
      %v3452 = vld [vmem:[%s2996 + $0x18] sm:$0xe]
      %v3453 = vld [vmem:[%s2996 + $0x20] sm:$0xe]
      %v3454 = vld [vmem:[%s2996 + $0x28] sm:$0xe]
      %v3455 = vld [vmem:[%s2996 + $0x30] sm:$0xe]
      %v3456 = vld [vmem:[%s2996 + $0x38] sm:$0xe]
      %v3473 = vrot.slane %v3449, 5
      %v3474 = vrot.slane %v3473, 4
      %v3475 = vrot.slane %v3168, 5
      %v3476 = vsel %vm821, %v3474, %v3475
      %v3477 = vrot.slane %v3450, 5
      %v3478 = vrot.slane %v3477, 4
      %v3479 = vrot.slane %v3170, 5
      %v3480 = vsel %vm821, %v3478, %v3479
      %v3481 = vrot.slane %v3451, 5
      %v3482 = vrot.slane %v3481, 4
      %v3483 = vrot.slane %v3172, 5
      %v3484 = vsel %vm821, %v3482, %v3483
      %v3485 = vrot.slane %v3452, 5
      %v3486 = vrot.slane %v3485, 4
      %v3487 = vrot.slane %v3174, 5
      %v3488 = vsel %vm821, %v3486, %v3487
      %v3489 = vrot.slane %v3453, 5
      %v3490 = vrot.slane %v3489, 4
      %v3491 = vrot.slane %v3176, 5
      %v3492 = vsel %vm821, %v3490, %v3491
      %v3493 = vrot.slane %v3454, 5
      %v3494 = vrot.slane %v3493, 4
      %v3495 = vrot.slane %v3178, 5
      %v3496 = vsel %vm821, %v3494, %v3495
      %v3497 = vrot.slane %v3455, 5
      %v3498 = vrot.slane %v3497, 4
      %v3499 = vrot.slane %v3180, 5
      %v3500 = vsel %vm821, %v3498, %v3499
      %v3501 = vrot.slane %v3456, 5
      %v3502 = vrot.slane %v3501, 4
      %v3503 = vrot.slane %v3182, 5
      %v3504 = vsel %vm821, %v3502, %v3503
      %s3505 = scalar_lea.vmem %s3, 896
      %v3506 = vld [vmem:[%s3505] sm:$0xf]
      %v3507 = vld [vmem:[%s3505 + $0x4] sm:$0xf]
      %v3508 = vld [vmem:[%s3505 + $0x8] sm:$0xf]
      %v3509 = vld [vmem:[%s3505 + $0xc] sm:$0xf]
      %v3510 = vld [vmem:[%s3505 + $0x10] sm:$0xf]
      %v3511 = vld [vmem:[%s3505 + $0x14] sm:$0xf]
      %v3512 = vld [vmem:[%s3505 + $0x18] sm:$0xf]
      %v3513 = vld [vmem:[%s3505 + $0x1c] sm:$0xf]
      %v3514 = vld [vmem:[%s3505 + $0x20] sm:$0xf]
      %v3515 = vld [vmem:[%s3505 + $0x24] sm:$0xf]
      %v3516 = vld [vmem:[%s3505 + $0x28] sm:$0xf]
      %v3517 = vld [vmem:[%s3505 + $0x2c] sm:$0xf]
      %v3518 = vld [vmem:[%s3505 + $0x30] sm:$0xf]
      %v3519 = vld [vmem:[%s3505 + $0x34] sm:$0xf]
      %v3520 = vld [vmem:[%s3505 + $0x38] sm:$0xf]
      %v3521 = vld [vmem:[%s3505 + $0x3c] sm:$0xf]
      %v3522 = vunpack.c.l.b16 %v3476
      %v3523 = vunpack.c.l.b16 %v3480
      %v3524 = vunpack.c.l.b16 %v3484
      %v3525 = vunpack.c.l.b16 %v3488
      %v3526 = vunpack.c.l.b16 %v3492
      %v3527 = vunpack.c.l.b16 %v3496
      %v3528 = vunpack.c.l.b16 %v3500
      %v3529 = vunpack.c.l.b16 %v3504
      %v3530 = vpack.c.b16 %v3523, %v3522
      %v3531 = vpack.c.b16 %v3525, %v3524
      %v3532 = vpack.c.b16 %v3527, %v3526
      %v3533 = vpack.c.b16 %v3529, %v3528
      %v3554 = vunpack.c.l.b16 %v3506
      %v3555 = vunpack.c.l.b16 %v3507
      %v3556 = vunpack.c.l.b16 %v3508
      %v3557 = vunpack.c.l.b16 %v3509
      %v3558 = vunpack.c.l.b16 %v3510
      %v3559 = vunpack.c.l.b16 %v3511
      %v3560 = vunpack.c.l.b16 %v3512
      %v3561 = vunpack.c.l.b16 %v3513
      %v3562 = vunpack.c.l.b16 %v3514
      %v3563 = vunpack.c.l.b16 %v3515
      %v3564 = vunpack.c.l.b16 %v3516
      %v3565 = vunpack.c.l.b16 %v3517
      %v3566 = vunpack.c.l.b16 %v3518
      %v3567 = vunpack.c.l.b16 %v3519
      %v3568 = vunpack.c.l.b16 %v3520
      %v3569 = vunpack.c.l.b16 %v3521
      %v3570 = vpack.c.b16 %v3555, %v3554
      %v3571 = vpack.c.b16 %v3557, %v3556
      %v3572 = vpack.c.b16 %v3559, %v3558
      %v3573 = vpack.c.b16 %v3561, %v3560
      %v3574 = vpack.c.b16 %v3563, %v3562
      %v3575 = vpack.c.b16 %v3565, %v3564
      %v3576 = vpack.c.b16 %v3567, %v3566
      %v3577 = vpack.c.b16 %v3569, %v3568
      %3586 = vmatprep.subr.bf16.mxu0 0
      %3587 = vmatpush1.bf16.msra.mxu0 %v3570
      %3588 = vmatprep.subr.bf16.mxu0 0
      %3589 = vmatpush1.bf16.msra.mxu0 %v3571
      %3590 = vmatprep.subr.bf16.mxu0 0
      %3591 = vmatpush1.bf16.msra.mxu0 %v3572
      %3592 = vmatprep.subr.bf16.mxu0 0
      %3593 = vmatpush1.bf16.msra.mxu0 %v3573
      %3594 = vmatprep.subr.bf16.mxu0 0
      %3595 = vmatpush1.bf16.msra.mxu0 %v3574
      %3596 = vmatprep.subr.bf16.mxu0 0
      %3597 = vmatpush1.bf16.msra.mxu0 %v3575
      %3598 = vmatprep.subr.bf16.mxu0 0
      %3599 = vmatpush1.bf16.msra.mxu0 %v3576
      %3600 = vmatprep.subr.bf16.mxu0 0
      %3601 = vmatpush1.bf16.msra.mxu0 %v3577
      %3602 = vmatprep.subr.bf16.mxu0 0
      %3603 = vmatpush1.bf16.msra.mxu0 0
      %3604 = vmatprep.subr.bf16.mxu0 0
      %3605 = vmatpush1.bf16.msra.mxu0 0
      %3606 = vmatprep.subr.bf16.mxu0 0
      %3607 = vmatpush1.bf16.msra.mxu0 0
      %3608 = vmatprep.subr.bf16.mxu0 0
      %3609 = vmatpush1.bf16.msra.mxu0 0
      %3610 = vmatprep.subr.bf16.mxu0 0
      %3611 = vmatpush1.bf16.msra.mxu0 0
      %3612 = vmatprep.subr.bf16.mxu0 0
      %3613 = vmatpush1.bf16.msra.mxu0 0
      %3614 = vmatprep.subr.bf16.mxu0 0
      %3615 = vmatpush1.bf16.msra.mxu0 0
      %3616 = vmatprep.subr.bf16.mxu0 0
      %3617 = vmatpush1.bf16.msra.mxu0 0
      %3618 = vmatprep.mubr.bf16.mxu0 0
      %3619 = vmatmul.mubr.bf16.gmra.mrb[0].mxu0 %v3530
      %v3620 = vpop.f32.mrb[0].mxu0
      %v3621 = vadd.f32 0.0, %v3620
      %v3622 = vpop.f32.mrb[0].mxu0
      %v3623 = vpop.f32.mrb[0].mxu0
      %v3624 = vadd.f32 0.0, %v3623
      %v3625 = vpop.f32.mrb[0].mxu0
      %3626 = vmatprep.mubr.bf16.mxu0 0
      %3627 = vmatmul.mubr.bf16.gmra.mrb[0].mxu0 %v3531
      %v3628 = vpop.f32.mrb[0].mxu0
      %v3629 = vadd.f32 0.0, %v3628
      %v3630 = vpop.f32.mrb[0].mxu0
      %v3631 = vpop.f32.mrb[0].mxu0
      %v3632 = vadd.f32 0.0, %v3631
      %v3633 = vpop.f32.mrb[0].mxu0
      %3634 = vmatprep.mubr.bf16.mxu0 0
      %3635 = vmatmul.mubr.bf16.gmra.mrb[0].mxu0 %v3532
      %v3636 = vpop.f32.mrb[0].mxu0
      %v3637 = vadd.f32 0.0, %v3636
      %v3638 = vpop.f32.mrb[0].mxu0
      %v3639 = vpop.f32.mrb[0].mxu0
      %v3640 = vadd.f32 0.0, %v3639
      %v3641 = vpop.f32.mrb[0].mxu0
      %3642 = vmatprep.mubr.bf16.mxu0 0
      %3643 = vmatmul.mubr.bf16.gmra.mrb[0].mxu0 %v3533
      %v3644 = vpop.f32.mrb[0].mxu0
      %v3645 = vadd.f32 0.0, %v3644
      %v3646 = vpop.f32.mrb[0].mxu0
      %v3647 = vpop.f32.mrb[0].mxu0
      %v3648 = vadd.f32 0.0, %v3647
      %v3649 = vpop.f32.mrb[0].mxu0
      %3650 = vdwg.mxu0
      %v3651 = vadd.f32 %v3441, %v3621
      %v3652 = vadd.f32 %v3442, %v3624
      %v3653 = vadd.f32 %v3443, %v3629
      %v3654 = vadd.f32 %v3444, %v3632
      %v3655 = vadd.f32 %v3445, %v3637
      %v3656 = vadd.f32 %v3446, %v3640
      %v3657 = vadd.f32 %v3447, %v3645
      %v3658 = vadd.f32 %v3448, %v3648
      %s3659 = scalar_lea.vmem %s334, 16
      %v3660 = vld [vmem:[%s3659] sm:$0xf]
      %v3661 = vld [vmem:[%s3659 + $0x8] sm:$0xf]
      %v3662 = vld [vmem:[%s3659 + $0x10] sm:$0xf]
      %v3663 = vld [vmem:[%s3659 + $0x18] sm:$0xf]
      %v3664 = vld [vmem:[%s3659 + $0x20] sm:$0xf]
      %v3665 = vld [vmem:[%s3659 + $0x28] sm:$0xf]
      %v3666 = vld [vmem:[%s3659 + $0x30] sm:$0xf]
      %v3667 = vld [vmem:[%s3659 + $0x38] sm:$0xf]
      %s3668 = scalar_lea.vmem %s3, 960
      %v3669 = vld [vmem:[%s3668] sm:$0xf]
      %v3670 = vld [vmem:[%s3668 + $0x4] sm:$0xf]
      %v3671 = vld [vmem:[%s3668 + $0x8] sm:$0xf]
      %v3672 = vld [vmem:[%s3668 + $0xc] sm:$0xf]
      %v3673 = vld [vmem:[%s3668 + $0x10] sm:$0xf]
      %v3674 = vld [vmem:[%s3668 + $0x14] sm:$0xf]
      %v3675 = vld [vmem:[%s3668 + $0x18] sm:$0xf]
      %v3676 = vld [vmem:[%s3668 + $0x1c] sm:$0xf]
      %v3677 = vld [vmem:[%s3668 + $0x20] sm:$0xf]
      %v3678 = vld [vmem:[%s3668 + $0x24] sm:$0xf]
      %v3679 = vld [vmem:[%s3668 + $0x28] sm:$0xf]
      %v3680 = vld [vmem:[%s3668 + $0x2c] sm:$0xf]
      %v3681 = vld [vmem:[%s3668 + $0x30] sm:$0xf]
      %v3682 = vld [vmem:[%s3668 + $0x34] sm:$0xf]
      %v3683 = vld [vmem:[%s3668 + $0x38] sm:$0xf]
      %v3684 = vld [vmem:[%s3668 + $0x3c] sm:$0xf]
      %v3693 = vunpack.c.l.b16 %v3660
      %v3694 = vunpack.c.l.b16 %v3661
      %v3695 = vunpack.c.l.b16 %v3662
      %v3696 = vunpack.c.l.b16 %v3663
      %v3697 = vunpack.c.l.b16 %v3664
      %v3698 = vunpack.c.l.b16 %v3665
      %v3699 = vunpack.c.l.b16 %v3666
      %v3700 = vunpack.c.l.b16 %v3667
      %v3701 = vpack.c.b16 %v3694, %v3693
      %v3702 = vpack.c.b16 %v3696, %v3695
      %v3703 = vpack.c.b16 %v3698, %v3697
      %v3704 = vpack.c.b16 %v3700, %v3699
      %v3725 = vunpack.c.l.b16 %v3669
      %v3726 = vunpack.c.l.b16 %v3670
      %v3727 = vunpack.c.l.b16 %v3671
      %v3728 = vunpack.c.l.b16 %v3672
      %v3729 = vunpack.c.l.b16 %v3673
      %v3730 = vunpack.c.l.b16 %v3674
      %v3731 = vunpack.c.l.b16 %v3675
      %v3732 = vunpack.c.l.b16 %v3676
      %v3733 = vunpack.c.l.b16 %v3677
      %v3734 = vunpack.c.l.b16 %v3678
      %v3735 = vunpack.c.l.b16 %v3679
      %v3736 = vunpack.c.l.b16 %v3680
      %v3737 = vunpack.c.l.b16 %v3681
      %v3738 = vunpack.c.l.b16 %v3682
      %v3739 = vunpack.c.l.b16 %v3683
      %v3740 = vunpack.c.l.b16 %v3684
      %v3741 = vpack.c.b16 %v3726, %v3725
      %v3742 = vpack.c.b16 %v3728, %v3727
      %v3743 = vpack.c.b16 %v3730, %v3729
      %v3744 = vpack.c.b16 %v3732, %v3731
      %v3745 = vpack.c.b16 %v3734, %v3733
      %v3746 = vpack.c.b16 %v3736, %v3735
      %v3747 = vpack.c.b16 %v3738, %v3737
      %v3748 = vpack.c.b16 %v3740, %v3739
      %3757 = vmatprep.subr.bf16.mxu0 0
      %3758 = vmatpush1.bf16.msra.mxu0 %v3741
      %3759 = vmatprep.subr.bf16.mxu0 0
      %3760 = vmatpush1.bf16.msra.mxu0 %v3742
      %3761 = vmatprep.subr.bf16.mxu0 0
      %3762 = vmatpush1.bf16.msra.mxu0 %v3743
      %3763 = vmatprep.subr.bf16.mxu0 0
      %3764 = vmatpush1.bf16.msra.mxu0 %v3744
      %3765 = vmatprep.subr.bf16.mxu0 0
      %3766 = vmatpush1.bf16.msra.mxu0 %v3745
      %3767 = vmatprep.subr.bf16.mxu0 0
      %3768 = vmatpush1.bf16.msra.mxu0 %v3746
      %3769 = vmatprep.subr.bf16.mxu0 0
      %3770 = vmatpush1.bf16.msra.mxu0 %v3747
      %3771 = vmatprep.subr.bf16.mxu0 0
      %3772 = vmatpush1.bf16.msra.mxu0 %v3748
      %3773 = vmatprep.subr.bf16.mxu0 0
      %3774 = vmatpush1.bf16.msra.mxu0 0
      %3775 = vmatprep.subr.bf16.mxu0 0
      %3776 = vmatpush1.bf16.msra.mxu0 0
      %3777 = vmatprep.subr.bf16.mxu0 0
      %3778 = vmatpush1.bf16.msra.mxu0 0
      %3779 = vmatprep.subr.bf16.mxu0 0
      %3780 = vmatpush1.bf16.msra.mxu0 0
      %3781 = vmatprep.subr.bf16.mxu0 0
      %3782 = vmatpush1.bf16.msra.mxu0 0
      %3783 = vmatprep.subr.bf16.mxu0 0
      %3784 = vmatpush1.bf16.msra.mxu0 0
      %3785 = vmatprep.subr.bf16.mxu0 0
      %3786 = vmatpush1.bf16.msra.mxu0 0
      %3787 = vmatprep.subr.bf16.mxu0 0
      %3788 = vmatpush1.bf16.msra.mxu0 0
      %3789 = vmatprep.mubr.bf16.mxu0 0
      %3790 = vmatmul.mubr.bf16.gmra.mrb[0].mxu0 %v3701
      %v3791 = vpop.f32.mrb[0].mxu0
      %v3792 = vadd.f32 0.0, %v3791
      %v3793 = vpop.f32.mrb[0].mxu0
      %v3794 = vpop.f32.mrb[0].mxu0
      %v3795 = vadd.f32 0.0, %v3794
      %v3796 = vpop.f32.mrb[0].mxu0
      %3797 = vmatprep.mubr.bf16.mxu0 0
      %3798 = vmatmul.mubr.bf16.gmra.mrb[0].mxu0 %v3702
      %v3799 = vpop.f32.mrb[0].mxu0
      %v3800 = vadd.f32 0.0, %v3799
      %v3801 = vpop.f32.mrb[0].mxu0
      %v3802 = vpop.f32.mrb[0].mxu0
      %v3803 = vadd.f32 0.0, %v3802
      %v3804 = vpop.f32.mrb[0].mxu0
      %3805 = vmatprep.mubr.bf16.mxu0 0
      %3806 = vmatmul.mubr.bf16.gmra.mrb[0].mxu0 %v3703
      %v3807 = vpop.f32.mrb[0].mxu0
      %v3808 = vadd.f32 0.0, %v3807
      %v3809 = vpop.f32.mrb[0].mxu0
      %v3810 = vpop.f32.mrb[0].mxu0
      %v3811 = vadd.f32 0.0, %v3810
      %v3812 = vpop.f32.mrb[0].mxu0
      %3813 = vmatprep.mubr.bf16.mxu0 0
      %3814 = vmatmul.mubr.bf16.gmra.mrb[0].mxu0 %v3704
      %v3815 = vpop.f32.mrb[0].mxu0
      %v3816 = vadd.f32 0.0, %v3815
      %v3817 = vpop.f32.mrb[0].mxu0
      %v3818 = vpop.f32.mrb[0].mxu0
      %v3819 = vadd.f32 0.0, %v3818
      %v3820 = vpop.f32.mrb[0].mxu0
      %3821 = vdwg.mxu0
      %v3822 = vadd.f32 %v3651, %v3792
      %v3823 = vadd.f32 %v3652, %v3795
      %v3824 = vadd.f32 %v3653, %v3800
      %v3825 = vadd.f32 %v3654, %v3803
      %v3826 = vadd.f32 %v3655, %v3808
      %v3827 = vadd.f32 %v3656, %v3811
      %v3828 = vadd.f32 %v3657, %v3816
      %v3829 = vadd.f32 %v3658, %v3819
      %v3830 = vld [vmem:[%s3659] sm:$0xf]
      %v3831 = vld [vmem:[%s3659 + $0x4] sm:$0x1]
      %v3832 = vld [vmem:[%s3659 + $0x8] sm:$0xf]
      %v3833 = vld [vmem:[%s3659 + $0xc] sm:$0x1]
      %v3834 = vld [vmem:[%s3659 + $0x10] sm:$0xf]
      %v3835 = vld [vmem:[%s3659 + $0x14] sm:$0x1]
      %v3836 = vld [vmem:[%s3659 + $0x18] sm:$0xf]
      %v3837 = vld [vmem:[%s3659 + $0x1c] sm:$0x1]
      %v3838 = vld [vmem:[%s3659 + $0x20] sm:$0xf]
      %v3839 = vld [vmem:[%s3659 + $0x24] sm:$0x1]
      %v3840 = vld [vmem:[%s3659 + $0x28] sm:$0xf]
      %v3841 = vld [vmem:[%s3659 + $0x2c] sm:$0x1]
      %v3842 = vld [vmem:[%s3659 + $0x30] sm:$0xf]
      %v3843 = vld [vmem:[%s3659 + $0x34] sm:$0x1]
      %v3844 = vld [vmem:[%s3659 + $0x38] sm:$0xf]
      %v3845 = vld [vmem:[%s3659 + $0x3c] sm:$0x1]
      %v3847 = vshrl.u32 %v3830, 16
      %v3849 = vrot.slane %v3847, 4
      %v3850 = vshll.u32 %v3830, 16
      %v3852 = vrot.slane %v3850, 5
      %v3853 = vor.u32 %v3849, %v3852
      %v3854 = vrot.slane %v3853, 4
      %v3856 = vshll.u32 %v3831, 16
      %v3858 = vrot.slane %v3856, 5
      %v3859 = vsel %vm399, %v3854, %v3858
      %v3861 = vshrl.u32 %v3832, 16
      %v3863 = vrot.slane %v3861, 4
      %v3864 = vshll.u32 %v3832, 16
      %v3866 = vrot.slane %v3864, 5
      %v3867 = vor.u32 %v3863, %v3866
      %v3868 = vrot.slane %v3867, 4
      %v3870 = vshll.u32 %v3833, 16
      %v3872 = vrot.slane %v3870, 5
      %v3873 = vsel %vm399, %v3868, %v3872
      %v3875 = vshrl.u32 %v3834, 16
      %v3877 = vrot.slane %v3875, 4
      %v3878 = vshll.u32 %v3834, 16
      %v3880 = vrot.slane %v3878, 5
      %v3881 = vor.u32 %v3877, %v3880
      %v3882 = vrot.slane %v3881, 4
      %v3884 = vshll.u32 %v3835, 16
      %v3886 = vrot.slane %v3884, 5
      %v3887 = vsel %vm399, %v3882, %v3886
      %v3889 = vshrl.u32 %v3836, 16
      %v3891 = vrot.slane %v3889, 4
      %v3892 = vshll.u32 %v3836, 16
      %v3894 = vrot.slane %v3892, 5
      %v3895 = vor.u32 %v3891, %v3894
      %v3896 = vrot.slane %v3895, 4
      %v3898 = vshll.u32 %v3837, 16
      %v3900 = vrot.slane %v3898, 5
      %v3901 = vsel %vm399, %v3896, %v3900
      %v3903 = vshrl.u32 %v3838, 16
      %v3905 = vrot.slane %v3903, 4
      %v3906 = vshll.u32 %v3838, 16
      %v3908 = vrot.slane %v3906, 5
      %v3909 = vor.u32 %v3905, %v3908
      %v3910 = vrot.slane %v3909, 4
      %v3912 = vshll.u32 %v3839, 16
      %v3914 = vrot.slane %v3912, 5
      %v3915 = vsel %vm399, %v3910, %v3914
      %v3917 = vshrl.u32 %v3840, 16
      %v3919 = vrot.slane %v3917, 4
      %v3920 = vshll.u32 %v3840, 16
      %v3922 = vrot.slane %v3920, 5
      %v3923 = vor.u32 %v3919, %v3922
      %v3924 = vrot.slane %v3923, 4
      %v3926 = vshll.u32 %v3841, 16
      %v3928 = vrot.slane %v3926, 5
      %v3929 = vsel %vm399, %v3924, %v3928
      %v3931 = vshrl.u32 %v3842, 16
      %v3933 = vrot.slane %v3931, 4
      %v3934 = vshll.u32 %v3842, 16
      %v3936 = vrot.slane %v3934, 5
      %v3937 = vor.u32 %v3933, %v3936
      %v3938 = vrot.slane %v3937, 4
      %v3940 = vshll.u32 %v3843, 16
      %v3942 = vrot.slane %v3940, 5
      %v3943 = vsel %vm399, %v3938, %v3942
      %v3945 = vshrl.u32 %v3844, 16
      %v3947 = vrot.slane %v3945, 4
      %v3948 = vshll.u32 %v3844, 16
      %v3950 = vrot.slane %v3948, 5
      %v3951 = vor.u32 %v3947, %v3950
      %v3952 = vrot.slane %v3951, 4
      %v3954 = vshll.u32 %v3845, 16
      %v3956 = vrot.slane %v3954, 5
      %v3957 = vsel %vm399, %v3952, %v3956
      %s3958 = scalar_lea.vmem %s3, 1024
      %v3959 = vld [vmem:[%s3958] sm:$0xf]
      %v3960 = vld [vmem:[%s3958 + $0x4] sm:$0xf]
      %v3961 = vld [vmem:[%s3958 + $0x8] sm:$0xf]
      %v3962 = vld [vmem:[%s3958 + $0xc] sm:$0xf]
      %v3963 = vld [vmem:[%s3958 + $0x10] sm:$0xf]
      %v3964 = vld [vmem:[%s3958 + $0x14] sm:$0xf]
      %v3965 = vld [vmem:[%s3958 + $0x18] sm:$0xf]
      %v3966 = vld [vmem:[%s3958 + $0x1c] sm:$0xf]
      %v3967 = vld [vmem:[%s3958 + $0x20] sm:$0xf]
      %v3968 = vld [vmem:[%s3958 + $0x24] sm:$0xf]
      %v3969 = vld [vmem:[%s3958 + $0x28] sm:$0xf]
      %v3970 = vld [vmem:[%s3958 + $0x2c] sm:$0xf]
      %v3971 = vld [vmem:[%s3958 + $0x30] sm:$0xf]
      %v3972 = vld [vmem:[%s3958 + $0x34] sm:$0xf]
      %v3973 = vld [vmem:[%s3958 + $0x38] sm:$0xf]
      %v3974 = vld [vmem:[%s3958 + $0x3c] sm:$0xf]
      %v3975 = vunpack.c.l.b16 %v3859
      %v3976 = vunpack.c.l.b16 %v3873
      %v3977 = vunpack.c.l.b16 %v3887
      %v3978 = vunpack.c.l.b16 %v3901
      %v3979 = vunpack.c.l.b16 %v3915
      %v3980 = vunpack.c.l.b16 %v3929
      %v3981 = vunpack.c.l.b16 %v3943
      %v3982 = vunpack.c.l.b16 %v3957
      %v3983 = vpack.c.b16 %v3976, %v3975
      %v3984 = vpack.c.b16 %v3978, %v3977
      %v3985 = vpack.c.b16 %v3980, %v3979
      %v3986 = vpack.c.b16 %v3982, %v3981
      %v4007 = vunpack.c.l.b16 %v3959
      %v4008 = vunpack.c.l.b16 %v3960
      %v4009 = vunpack.c.l.b16 %v3961
      %v4010 = vunpack.c.l.b16 %v3962
      %v4011 = vunpack.c.l.b16 %v3963
      %v4012 = vunpack.c.l.b16 %v3964
      %v4013 = vunpack.c.l.b16 %v3965
      %v4014 = vunpack.c.l.b16 %v3966
      %v4015 = vunpack.c.l.b16 %v3967
      %v4016 = vunpack.c.l.b16 %v3968
      %v4017 = vunpack.c.l.b16 %v3969
      %v4018 = vunpack.c.l.b16 %v3970
      %v4019 = vunpack.c.l.b16 %v3971
      %v4020 = vunpack.c.l.b16 %v3972
      %v4021 = vunpack.c.l.b16 %v3973
      %v4022 = vunpack.c.l.b16 %v3974
      %v4023 = vpack.c.b16 %v4008, %v4007
      %v4024 = vpack.c.b16 %v4010, %v4009
      %v4025 = vpack.c.b16 %v4012, %v4011
      %v4026 = vpack.c.b16 %v4014, %v4013
      %v4027 = vpack.c.b16 %v4016, %v4015
      %v4028 = vpack.c.b16 %v4018, %v4017
      %v4029 = vpack.c.b16 %v4020, %v4019
      %v4030 = vpack.c.b16 %v4022, %v4021
      %4039 = vmatprep.subr.bf16.mxu0 0
      %4040 = vmatpush1.bf16.msra.mxu0 %v4023
      %4041 = vmatprep.subr.bf16.mxu0 0
      %4042 = vmatpush1.bf16.msra.mxu0 %v4024
      %4043 = vmatprep.subr.bf16.mxu0 0
      %4044 = vmatpush1.bf16.msra.mxu0 %v4025
      %4045 = vmatprep.subr.bf16.mxu0 0
      %4046 = vmatpush1.bf16.msra.mxu0 %v4026
      %4047 = vmatprep.subr.bf16.mxu0 0
      %4048 = vmatpush1.bf16.msra.mxu0 %v4027
      %4049 = vmatprep.subr.bf16.mxu0 0
      %4050 = vmatpush1.bf16.msra.mxu0 %v4028
      %4051 = vmatprep.subr.bf16.mxu0 0
      %4052 = vmatpush1.bf16.msra.mxu0 %v4029
      %4053 = vmatprep.subr.bf16.mxu0 0
      %4054 = vmatpush1.bf16.msra.mxu0 %v4030
      %4055 = vmatprep.subr.bf16.mxu0 0
      %4056 = vmatpush1.bf16.msra.mxu0 0
      %4057 = vmatprep.subr.bf16.mxu0 0
      %4058 = vmatpush1.bf16.msra.mxu0 0
      %4059 = vmatprep.subr.bf16.mxu0 0
      %4060 = vmatpush1.bf16.msra.mxu0 0
      %4061 = vmatprep.subr.bf16.mxu0 0
      %4062 = vmatpush1.bf16.msra.mxu0 0
      %4063 = vmatprep.subr.bf16.mxu0 0
      %4064 = vmatpush1.bf16.msra.mxu0 0
      %4065 = vmatprep.subr.bf16.mxu0 0
      %4066 = vmatpush1.bf16.msra.mxu0 0
      %4067 = vmatprep.subr.bf16.mxu0 0
      %4068 = vmatpush1.bf16.msra.mxu0 0
      %4069 = vmatprep.subr.bf16.mxu0 0
      %4070 = vmatpush1.bf16.msra.mxu0 0
      %4071 = vmatprep.mubr.bf16.mxu0 0
      %4072 = vmatmul.mubr.bf16.gmra.mrb[0].mxu0 %v3983
      %v4073 = vpop.f32.mrb[0].mxu0
      %v4074 = vadd.f32 0.0, %v4073
      %v4075 = vpop.f32.mrb[0].mxu0
      %v4076 = vpop.f32.mrb[0].mxu0
      %v4077 = vadd.f32 0.0, %v4076
      %v4078 = vpop.f32.mrb[0].mxu0
      %4079 = vmatprep.mubr.bf16.mxu0 0
      %4080 = vmatmul.mubr.bf16.gmra.mrb[0].mxu0 %v3984
      %v4081 = vpop.f32.mrb[0].mxu0
      %v4082 = vadd.f32 0.0, %v4081
      %v4083 = vpop.f32.mrb[0].mxu0
      %v4084 = vpop.f32.mrb[0].mxu0
      %v4085 = vadd.f32 0.0, %v4084
      %v4086 = vpop.f32.mrb[0].mxu0
      %4087 = vmatprep.mubr.bf16.mxu0 0
      %4088 = vmatmul.mubr.bf16.gmra.mrb[0].mxu0 %v3985
      %v4089 = vpop.f32.mrb[0].mxu0
      %v4090 = vadd.f32 0.0, %v4089
      %v4091 = vpop.f32.mrb[0].mxu0
      %v4092 = vpop.f32.mrb[0].mxu0
      %v4093 = vadd.f32 0.0, %v4092
      %v4094 = vpop.f32.mrb[0].mxu0
      %4095 = vmatprep.mubr.bf16.mxu0 0
      %4096 = vmatmul.mubr.bf16.gmra.mrb[0].mxu0 %v3986
      %v4097 = vpop.f32.mrb[0].mxu0
      %v4098 = vadd.f32 0.0, %v4097
      %v4099 = vpop.f32.mrb[0].mxu0
      %v4100 = vpop.f32.mrb[0].mxu0
      %v4101 = vadd.f32 0.0, %v4100
      %v4102 = vpop.f32.mrb[0].mxu0
      %4103 = vdwg.mxu0
      %v4104 = vadd.f32 %v3822, %v4074
      %v4105 = vadd.f32 %v3823, %v4077
      %v4106 = vadd.f32 %v3824, %v4082
      %v4107 = vadd.f32 %v3825, %v4085
      %v4108 = vadd.f32 %v3826, %v4090
      %v4109 = vadd.f32 %v3827, %v4093
      %v4110 = vadd.f32 %v3828, %v4098
      %v4111 = vadd.f32 %v3829, %v4101
      %v4112 = vld [vmem:[%s3659] sm:$0xe]
      %v4113 = vld [vmem:[%s3659 + $0x8] sm:$0xe]
      %v4114 = vld [vmem:[%s3659 + $0x10] sm:$0xe]
      %v4115 = vld [vmem:[%s3659 + $0x18] sm:$0xe]
      %v4116 = vld [vmem:[%s3659 + $0x20] sm:$0xe]
      %v4117 = vld [vmem:[%s3659 + $0x28] sm:$0xe]
      %v4118 = vld [vmem:[%s3659 + $0x30] sm:$0xe]
      %v4119 = vld [vmem:[%s3659 + $0x38] sm:$0xe]
      %v4136 = vrot.slane %v4112, 5
      %v4137 = vrot.slane %v4136, 4
      %v4138 = vrot.slane %v3831, 5
      %v4139 = vsel %vm821, %v4137, %v4138
      %v4140 = vrot.slane %v4113, 5
      %v4141 = vrot.slane %v4140, 4
      %v4142 = vrot.slane %v3833, 5
      %v4143 = vsel %vm821, %v4141, %v4142
      %v4144 = vrot.slane %v4114, 5
      %v4145 = vrot.slane %v4144, 4
      %v4146 = vrot.slane %v3835, 5
      %v4147 = vsel %vm821, %v4145, %v4146
      %v4148 = vrot.slane %v4115, 5
      %v4149 = vrot.slane %v4148, 4
      %v4150 = vrot.slane %v3837, 5
      %v4151 = vsel %vm821, %v4149, %v4150
      %v4152 = vrot.slane %v4116, 5
      %v4153 = vrot.slane %v4152, 4
      %v4154 = vrot.slane %v3839, 5
      %v4155 = vsel %vm821, %v4153, %v4154
      %v4156 = vrot.slane %v4117, 5
      %v4157 = vrot.slane %v4156, 4
      %v4158 = vrot.slane %v3841, 5
      %v4159 = vsel %vm821, %v4157, %v4158
      %v4160 = vrot.slane %v4118, 5
      %v4161 = vrot.slane %v4160, 4
      %v4162 = vrot.slane %v3843, 5
      %v4163 = vsel %vm821, %v4161, %v4162
      %v4164 = vrot.slane %v4119, 5
      %v4165 = vrot.slane %v4164, 4
      %v4166 = vrot.slane %v3845, 5
      %v4167 = vsel %vm821, %v4165, %v4166
      %s4168 = scalar_lea.vmem %s3, 1088
      %v4169 = vld [vmem:[%s4168] sm:$0xf]
      %v4170 = vld [vmem:[%s4168 + $0x4] sm:$0xf]
      %v4171 = vld [vmem:[%s4168 + $0x8] sm:$0xf]
      %v4172 = vld [vmem:[%s4168 + $0xc] sm:$0xf]
      %v4173 = vld [vmem:[%s4168 + $0x10] sm:$0xf]
      %v4174 = vld [vmem:[%s4168 + $0x14] sm:$0xf]
      %v4175 = vld [vmem:[%s4168 + $0x18] sm:$0xf]
      %v4176 = vld [vmem:[%s4168 + $0x1c] sm:$0xf]
      %v4177 = vld [vmem:[%s4168 + $0x20] sm:$0xf]
      %v4178 = vld [vmem:[%s4168 + $0x24] sm:$0xf]
      %v4179 = vld [vmem:[%s4168 + $0x28] sm:$0xf]
      %v4180 = vld [vmem:[%s4168 + $0x2c] sm:$0xf]
      %v4181 = vld [vmem:[%s4168 + $0x30] sm:$0xf]
      %v4182 = vld [vmem:[%s4168 + $0x34] sm:$0xf]
      %v4183 = vld [vmem:[%s4168 + $0x38] sm:$0xf]
      %v4184 = vld [vmem:[%s4168 + $0x3c] sm:$0xf]
      %v4185 = vunpack.c.l.b16 %v4139
      %v4186 = vunpack.c.l.b16 %v4143
      %v4187 = vunpack.c.l.b16 %v4147
      %v4188 = vunpack.c.l.b16 %v4151
      %v4189 = vunpack.c.l.b16 %v4155
      %v4190 = vunpack.c.l.b16 %v4159
      %v4191 = vunpack.c.l.b16 %v4163
      %v4192 = vunpack.c.l.b16 %v4167
      %v4193 = vpack.c.b16 %v4186, %v4185
      %v4194 = vpack.c.b16 %v4188, %v4187
      %v4195 = vpack.c.b16 %v4190, %v4189
      %v4196 = vpack.c.b16 %v4192, %v4191
      %v4217 = vunpack.c.l.b16 %v4169
      %v4218 = vunpack.c.l.b16 %v4170
      %v4219 = vunpack.c.l.b16 %v4171
      %v4220 = vunpack.c.l.b16 %v4172
      %v4221 = vunpack.c.l.b16 %v4173
      %v4222 = vunpack.c.l.b16 %v4174
      %v4223 = vunpack.c.l.b16 %v4175
      %v4224 = vunpack.c.l.b16 %v4176
      %v4225 = vunpack.c.l.b16 %v4177
      %v4226 = vunpack.c.l.b16 %v4178
      %v4227 = vunpack.c.l.b16 %v4179
      %v4228 = vunpack.c.l.b16 %v4180
      %v4229 = vunpack.c.l.b16 %v4181
      %v4230 = vunpack.c.l.b16 %v4182
      %v4231 = vunpack.c.l.b16 %v4183
      %v4232 = vunpack.c.l.b16 %v4184
      %v4233 = vpack.c.b16 %v4218, %v4217
      %v4234 = vpack.c.b16 %v4220, %v4219
      %v4235 = vpack.c.b16 %v4222, %v4221
      %v4236 = vpack.c.b16 %v4224, %v4223
      %v4237 = vpack.c.b16 %v4226, %v4225
      %v4238 = vpack.c.b16 %v4228, %v4227
      %v4239 = vpack.c.b16 %v4230, %v4229
      %v4240 = vpack.c.b16 %v4232, %v4231
      %4249 = vmatprep.subr.bf16.mxu0 0
      %4250 = vmatpush1.bf16.msra.mxu0 %v4233
      %4251 = vmatprep.subr.bf16.mxu0 0
      %4252 = vmatpush1.bf16.msra.mxu0 %v4234
      %4253 = vmatprep.subr.bf16.mxu0 0
      %4254 = vmatpush1.bf16.msra.mxu0 %v4235
      %4255 = vmatprep.subr.bf16.mxu0 0
      %4256 = vmatpush1.bf16.msra.mxu0 %v4236
      %4257 = vmatprep.subr.bf16.mxu0 0
      %4258 = vmatpush1.bf16.msra.mxu0 %v4237
      %4259 = vmatprep.subr.bf16.mxu0 0
      %4260 = vmatpush1.bf16.msra.mxu0 %v4238
      %4261 = vmatprep.subr.bf16.mxu0 0
      %4262 = vmatpush1.bf16.msra.mxu0 %v4239
      %4263 = vmatprep.subr.bf16.mxu0 0
      %4264 = vmatpush1.bf16.msra.mxu0 %v4240
      %4265 = vmatprep.subr.bf16.mxu0 0
      %4266 = vmatpush1.bf16.msra.mxu0 0
      %4267 = vmatprep.subr.bf16.mxu0 0
      %4268 = vmatpush1.bf16.msra.mxu0 0
      %4269 = vmatprep.subr.bf16.mxu0 0
      %4270 = vmatpush1.bf16.msra.mxu0 0
      %4271 = vmatprep.subr.bf16.mxu0 0
      %4272 = vmatpush1.bf16.msra.mxu0 0
      %4273 = vmatprep.subr.bf16.mxu0 0
      %4274 = vmatpush1.bf16.msra.mxu0 0
      %4275 = vmatprep.subr.bf16.mxu0 0
      %4276 = vmatpush1.bf16.msra.mxu0 0
      %4277 = vmatprep.subr.bf16.mxu0 0
      %4278 = vmatpush1.bf16.msra.mxu0 0
      %4279 = vmatprep.subr.bf16.mxu0 0
      %4280 = vmatpush1.bf16.msra.mxu0 0
      %4281 = vmatprep.mubr.bf16.mxu0 0
      %4282 = vmatmul.mubr.bf16.gmra.mrb[0].mxu0 %v4193
      %v4283 = vpop.f32.mrb[0].mxu0
      %v4284 = vadd.f32 0.0, %v4283
      %v4285 = vpop.f32.mrb[0].mxu0
      %v4286 = vpop.f32.mrb[0].mxu0
      %v4287 = vadd.f32 0.0, %v4286
      %v4288 = vpop.f32.mrb[0].mxu0
      %4289 = vmatprep.mubr.bf16.mxu0 0
      %4290 = vmatmul.mubr.bf16.gmra.mrb[0].mxu0 %v4194
      %v4291 = vpop.f32.mrb[0].mxu0
      %v4292 = vadd.f32 0.0, %v4291
      %v4293 = vpop.f32.mrb[0].mxu0
      %v4294 = vpop.f32.mrb[0].mxu0
      %v4295 = vadd.f32 0.0, %v4294
      %v4296 = vpop.f32.mrb[0].mxu0
      %4297 = vmatprep.mubr.bf16.mxu0 0
      %4298 = vmatmul.mubr.bf16.gmra.mrb[0].mxu0 %v4195
      %v4299 = vpop.f32.mrb[0].mxu0
      %v4300 = vadd.f32 0.0, %v4299
      %v4301 = vpop.f32.mrb[0].mxu0
      %v4302 = vpop.f32.mrb[0].mxu0
      %v4303 = vadd.f32 0.0, %v4302
      %v4304 = vpop.f32.mrb[0].mxu0
      %4305 = vmatprep.mubr.bf16.mxu0 0
      %4306 = vmatmul.mubr.bf16.gmra.mrb[0].mxu0 %v4196
      %v4307 = vpop.f32.mrb[0].mxu0
      %v4308 = vadd.f32 0.0, %v4307
      %v4309 = vpop.f32.mrb[0].mxu0
      %v4310 = vpop.f32.mrb[0].mxu0
      %v4311 = vadd.f32 0.0, %v4310
      %v4312 = vpop.f32.mrb[0].mxu0
      %4313 = vdwg.mxu0
      %v4314 = vadd.f32 %v4104, %v4284
      %v4315 = vadd.f32 %v4105, %v4287
      %v4316 = vadd.f32 %v4106, %v4292
      %v4317 = vadd.f32 %v4107, %v4295
      %v4318 = vadd.f32 %v4108, %v4300
      %v4319 = vadd.f32 %v4109, %v4303
      %v4320 = vadd.f32 %v4110, %v4308
      %v4321 = vadd.f32 %v4111, %v4311
      %v4322 = vld [vmem:[%s345] sm:$0xf]
      %v4323 = vld [vmem:[%s345 + $0x8] sm:$0xf]
      %v4324 = vld [vmem:[%s345 + $0x10] sm:$0xf]
      %v4325 = vld [vmem:[%s345 + $0x18] sm:$0xf]
      %v4326 = vld [vmem:[%s345 + $0x20] sm:$0xf]
      %v4327 = vld [vmem:[%s345 + $0x28] sm:$0xf]
      %v4328 = vld [vmem:[%s345 + $0x30] sm:$0xf]
      %v4329 = vld [vmem:[%s345 + $0x38] sm:$0xf]
      %s4330 = scalar_lea.vmem %s3, 1152
      %v4331 = vld [vmem:[%s4330] sm:$0xf]
      %v4332 = vld [vmem:[%s4330 + $0x4] sm:$0xf]
      %v4333 = vld [vmem:[%s4330 + $0x8] sm:$0xf]
      %v4334 = vld [vmem:[%s4330 + $0xc] sm:$0xf]
      %v4335 = vld [vmem:[%s4330 + $0x10] sm:$0xf]
      %v4336 = vld [vmem:[%s4330 + $0x14] sm:$0xf]
      %v4337 = vld [vmem:[%s4330 + $0x18] sm:$0xf]
      %v4338 = vld [vmem:[%s4330 + $0x1c] sm:$0xf]
      %v4339 = vld [vmem:[%s4330 + $0x20] sm:$0xf]
      %v4340 = vld [vmem:[%s4330 + $0x24] sm:$0xf]
      %v4341 = vld [vmem:[%s4330 + $0x28] sm:$0xf]
      %v4342 = vld [vmem:[%s4330 + $0x2c] sm:$0xf]
      %v4343 = vld [vmem:[%s4330 + $0x30] sm:$0xf]
      %v4344 = vld [vmem:[%s4330 + $0x34] sm:$0xf]
      %v4345 = vld [vmem:[%s4330 + $0x38] sm:$0xf]
      %v4346 = vld [vmem:[%s4330 + $0x3c] sm:$0xf]
      %v4355 = vunpack.c.l.b16 %v4322
      %v4356 = vunpack.c.l.b16 %v4323
      %v4357 = vunpack.c.l.b16 %v4324
      %v4358 = vunpack.c.l.b16 %v4325
      %v4359 = vunpack.c.l.b16 %v4326
      %v4360 = vunpack.c.l.b16 %v4327
      %v4361 = vunpack.c.l.b16 %v4328
      %v4362 = vunpack.c.l.b16 %v4329
      %v4363 = vpack.c.b16 %v4356, %v4355
      %v4364 = vpack.c.b16 %v4358, %v4357
      %v4365 = vpack.c.b16 %v4360, %v4359
      %v4366 = vpack.c.b16 %v4362, %v4361
      %v4387 = vunpack.c.l.b16 %v4331
      %v4388 = vunpack.c.l.b16 %v4332
      %v4389 = vunpack.c.l.b16 %v4333
      %v4390 = vunpack.c.l.b16 %v4334
      %v4391 = vunpack.c.l.b16 %v4335
      %v4392 = vunpack.c.l.b16 %v4336
      %v4393 = vunpack.c.l.b16 %v4337
      %v4394 = vunpack.c.l.b16 %v4338
      %v4395 = vunpack.c.l.b16 %v4339
      %v4396 = vunpack.c.l.b16 %v4340
      %v4397 = vunpack.c.l.b16 %v4341
      %v4398 = vunpack.c.l.b16 %v4342
      %v4399 = vunpack.c.l.b16 %v4343
      %v4400 = vunpack.c.l.b16 %v4344
      %v4401 = vunpack.c.l.b16 %v4345
      %v4402 = vunpack.c.l.b16 %v4346
      %v4403 = vpack.c.b16 %v4388, %v4387
      %v4404 = vpack.c.b16 %v4390, %v4389
      %v4405 = vpack.c.b16 %v4392, %v4391
      %v4406 = vpack.c.b16 %v4394, %v4393
      %v4407 = vpack.c.b16 %v4396, %v4395
      %v4408 = vpack.c.b16 %v4398, %v4397
      %v4409 = vpack.c.b16 %v4400, %v4399
      %v4410 = vpack.c.b16 %v4402, %v4401
      %4419 = vmatprep.subr.bf16.mxu0 0
      %4420 = vmatpush1.bf16.msra.mxu0 %v4403
      %4421 = vmatprep.subr.bf16.mxu0 0
      %4422 = vmatpush1.bf16.msra.mxu0 %v4404
      %4423 = vmatprep.subr.bf16.mxu0 0
      %4424 = vmatpush1.bf16.msra.mxu0 %v4405
      %4425 = vmatprep.subr.bf16.mxu0 0
      %4426 = vmatpush1.bf16.msra.mxu0 %v4406
      %4427 = vmatprep.subr.bf16.mxu0 0
      %4428 = vmatpush1.bf16.msra.mxu0 %v4407
      %4429 = vmatprep.subr.bf16.mxu0 0
      %4430 = vmatpush1.bf16.msra.mxu0 %v4408
      %4431 = vmatprep.subr.bf16.mxu0 0
      %4432 = vmatpush1.bf16.msra.mxu0 %v4409
      %4433 = vmatprep.subr.bf16.mxu0 0
      %4434 = vmatpush1.bf16.msra.mxu0 %v4410
      %4435 = vmatprep.subr.bf16.mxu0 0
      %4436 = vmatpush1.bf16.msra.mxu0 0
      %4437 = vmatprep.subr.bf16.mxu0 0
      %4438 = vmatpush1.bf16.msra.mxu0 0
      %4439 = vmatprep.subr.bf16.mxu0 0
      %4440 = vmatpush1.bf16.msra.mxu0 0
      %4441 = vmatprep.subr.bf16.mxu0 0
      %4442 = vmatpush1.bf16.msra.mxu0 0
      %4443 = vmatprep.subr.bf16.mxu0 0
      %4444 = vmatpush1.bf16.msra.mxu0 0
      %4445 = vmatprep.subr.bf16.mxu0 0
      %4446 = vmatpush1.bf16.msra.mxu0 0
      %4447 = vmatprep.subr.bf16.mxu0 0
      %4448 = vmatpush1.bf16.msra.mxu0 0
      %4449 = vmatprep.subr.bf16.mxu0 0
      %4450 = vmatpush1.bf16.msra.mxu0 0
      %4451 = vmatprep.mubr.bf16.mxu0 0
      %4452 = vmatmul.mubr.bf16.gmra.mrb[0].mxu0 %v4363
      %v4453 = vpop.f32.mrb[0].mxu0
      %v4454 = vadd.f32 0.0, %v4453
      %v4455 = vpop.f32.mrb[0].mxu0
      %v4456 = vpop.f32.mrb[0].mxu0
      %v4457 = vadd.f32 0.0, %v4456
      %v4458 = vpop.f32.mrb[0].mxu0
      %4459 = vmatprep.mubr.bf16.mxu0 0
      %4460 = vmatmul.mubr.bf16.gmra.mrb[0].mxu0 %v4364
      %v4461 = vpop.f32.mrb[0].mxu0
      %v4462 = vadd.f32 0.0, %v4461
      %v4463 = vpop.f32.mrb[0].mxu0
      %v4464 = vpop.f32.mrb[0].mxu0
      %v4465 = vadd.f32 0.0, %v4464
      %v4466 = vpop.f32.mrb[0].mxu0
      %4467 = vmatprep.mubr.bf16.mxu0 0
      %4468 = vmatmul.mubr.bf16.gmra.mrb[0].mxu0 %v4365
      %v4469 = vpop.f32.mrb[0].mxu0
      %v4470 = vadd.f32 0.0, %v4469
      %v4471 = vpop.f32.mrb[0].mxu0
      %v4472 = vpop.f32.mrb[0].mxu0
      %v4473 = vadd.f32 0.0, %v4472
      %v4474 = vpop.f32.mrb[0].mxu0
      %4475 = vmatprep.mubr.bf16.mxu0 0
      %4476 = vmatmul.mubr.bf16.gmra.mrb[0].mxu0 %v4366
      %v4477 = vpop.f32.mrb[0].mxu0
      %v4478 = vadd.f32 0.0, %v4477
      %v4479 = vpop.f32.mrb[0].mxu0
      %v4480 = vpop.f32.mrb[0].mxu0
      %v4481 = vadd.f32 0.0, %v4480
      %v4482 = vpop.f32.mrb[0].mxu0
      %4483 = vdwg.mxu0
      %v4484 = vadd.f32 %v4314, %v4454
      %v4485 = vadd.f32 %v4315, %v4457
      %v4486 = vadd.f32 %v4316, %v4462
      %v4487 = vadd.f32 %v4317, %v4465
      %v4488 = vadd.f32 %v4318, %v4470
      %v4489 = vadd.f32 %v4319, %v4473
      %v4490 = vadd.f32 %v4320, %v4478
      %v4491 = vadd.f32 %v4321, %v4481
      %v4492 = vld [vmem:[%s345] sm:$0xf]
      %v4493 = vld [vmem:[%s345 + $0x4] sm:$0x1]
      %v4494 = vld [vmem:[%s345 + $0x8] sm:$0xf]
      %v4495 = vld [vmem:[%s345 + $0xc] sm:$0x1]
      %v4496 = vld [vmem:[%s345 + $0x10] sm:$0xf]
      %v4497 = vld [vmem:[%s345 + $0x14] sm:$0x1]
      %v4498 = vld [vmem:[%s345 + $0x18] sm:$0xf]
      %v4499 = vld [vmem:[%s345 + $0x1c] sm:$0x1]
      %v4500 = vld [vmem:[%s345 + $0x20] sm:$0xf]
      %v4501 = vld [vmem:[%s345 + $0x24] sm:$0x1]
      %v4502 = vld [vmem:[%s345 + $0x28] sm:$0xf]
      %v4503 = vld [vmem:[%s345 + $0x2c] sm:$0x1]
      %v4504 = vld [vmem:[%s345 + $0x30] sm:$0xf]
      %v4505 = vld [vmem:[%s345 + $0x34] sm:$0x1]
      %v4506 = vld [vmem:[%s345 + $0x38] sm:$0xf]
      %v4507 = vld [vmem:[%s345 + $0x3c] sm:$0x1]
      %v4509 = vshrl.u32 %v4492, 16
      %v4511 = vrot.slane %v4509, 4
      %v4512 = vshll.u32 %v4492, 16
      %v4514 = vrot.slane %v4512, 5
      %v4515 = vor.u32 %v4511, %v4514
      %v4516 = vrot.slane %v4515, 4
      %v4518 = vshll.u32 %v4493, 16
      %v4520 = vrot.slane %v4518, 5
      %v4521 = vsel %vm399, %v4516, %v4520
      %v4523 = vshrl.u32 %v4494, 16
      %v4525 = vrot.slane %v4523, 4
      %v4526 = vshll.u32 %v4494, 16
      %v4528 = vrot.slane %v4526, 5
      %v4529 = vor.u32 %v4525, %v4528
      %v4530 = vrot.slane %v4529, 4
      %v4532 = vshll.u32 %v4495, 16
      %v4534 = vrot.slane %v4532, 5
      %v4535 = vsel %vm399, %v4530, %v4534
      %v4537 = vshrl.u32 %v4496, 16
      %v4539 = vrot.slane %v4537, 4
      %v4540 = vshll.u32 %v4496, 16
      %v4542 = vrot.slane %v4540, 5
      %v4543 = vor.u32 %v4539, %v4542
      %v4544 = vrot.slane %v4543, 4
      %v4546 = vshll.u32 %v4497, 16
      %v4548 = vrot.slane %v4546, 5
      %v4549 = vsel %vm399, %v4544, %v4548
      %v4551 = vshrl.u32 %v4498, 16
      %v4553 = vrot.slane %v4551, 4
      %v4554 = vshll.u32 %v4498, 16
      %v4556 = vrot.slane %v4554, 5
      %v4557 = vor.u32 %v4553, %v4556
      %v4558 = vrot.slane %v4557, 4
      %v4560 = vshll.u32 %v4499, 16
      %v4562 = vrot.slane %v4560, 5
      %v4563 = vsel %vm399, %v4558, %v4562
      %v4565 = vshrl.u32 %v4500, 16
      %v4567 = vrot.slane %v4565, 4
      %v4568 = vshll.u32 %v4500, 16
      %v4570 = vrot.slane %v4568, 5
      %v4571 = vor.u32 %v4567, %v4570
      %v4572 = vrot.slane %v4571, 4
      %v4574 = vshll.u32 %v4501, 16
      %v4576 = vrot.slane %v4574, 5
      %v4577 = vsel %vm399, %v4572, %v4576
      %v4579 = vshrl.u32 %v4502, 16
      %v4581 = vrot.slane %v4579, 4
      %v4582 = vshll.u32 %v4502, 16
      %v4584 = vrot.slane %v4582, 5
      %v4585 = vor.u32 %v4581, %v4584
      %v4586 = vrot.slane %v4585, 4
      %v4588 = vshll.u32 %v4503, 16
      %v4590 = vrot.slane %v4588, 5
      %v4591 = vsel %vm399, %v4586, %v4590
      %v4593 = vshrl.u32 %v4504, 16
      %v4595 = vrot.slane %v4593, 4
      %v4596 = vshll.u32 %v4504, 16
      %v4598 = vrot.slane %v4596, 5
      %v4599 = vor.u32 %v4595, %v4598
      %v4600 = vrot.slane %v4599, 4
      %v4602 = vshll.u32 %v4505, 16
      %v4604 = vrot.slane %v4602, 5
      %v4605 = vsel %vm399, %v4600, %v4604
      %v4607 = vshrl.u32 %v4506, 16
      %v4609 = vrot.slane %v4607, 4
      %v4610 = vshll.u32 %v4506, 16
      %v4612 = vrot.slane %v4610, 5
      %v4613 = vor.u32 %v4609, %v4612
      %v4614 = vrot.slane %v4613, 4
      %v4616 = vshll.u32 %v4507, 16
      %v4618 = vrot.slane %v4616, 5
      %v4619 = vsel %vm399, %v4614, %v4618
      %s4620 = scalar_lea.vmem %s3, 1216
      %v4621 = vld [vmem:[%s4620] sm:$0xf]
      %v4622 = vld [vmem:[%s4620 + $0x4] sm:$0xf]
      %v4623 = vld [vmem:[%s4620 + $0x8] sm:$0xf]
      %v4624 = vld [vmem:[%s4620 + $0xc] sm:$0xf]
      %v4625 = vld [vmem:[%s4620 + $0x10] sm:$0xf]
      %v4626 = vld [vmem:[%s4620 + $0x14] sm:$0xf]
      %v4627 = vld [vmem:[%s4620 + $0x18] sm:$0xf]
      %v4628 = vld [vmem:[%s4620 + $0x1c] sm:$0xf]
      %v4629 = vld [vmem:[%s4620 + $0x20] sm:$0xf]
      %v4630 = vld [vmem:[%s4620 + $0x24] sm:$0xf]
      %v4631 = vld [vmem:[%s4620 + $0x28] sm:$0xf]
      %v4632 = vld [vmem:[%s4620 + $0x2c] sm:$0xf]
      %v4633 = vld [vmem:[%s4620 + $0x30] sm:$0xf]
      %v4634 = vld [vmem:[%s4620 + $0x34] sm:$0xf]
      %v4635 = vld [vmem:[%s4620 + $0x38] sm:$0xf]
      %v4636 = vld [vmem:[%s4620 + $0x3c] sm:$0xf]
      %v4637 = vunpack.c.l.b16 %v4521
      %v4638 = vunpack.c.l.b16 %v4535
      %v4639 = vunpack.c.l.b16 %v4549
      %v4640 = vunpack.c.l.b16 %v4563
      %v4641 = vunpack.c.l.b16 %v4577
      %v4642 = vunpack.c.l.b16 %v4591
      %v4643 = vunpack.c.l.b16 %v4605
      %v4644 = vunpack.c.l.b16 %v4619
      %v4645 = vpack.c.b16 %v4638, %v4637
      %v4646 = vpack.c.b16 %v4640, %v4639
      %v4647 = vpack.c.b16 %v4642, %v4641
      %v4648 = vpack.c.b16 %v4644, %v4643
      %v4669 = vunpack.c.l.b16 %v4621
      %v4670 = vunpack.c.l.b16 %v4622
      %v4671 = vunpack.c.l.b16 %v4623
      %v4672 = vunpack.c.l.b16 %v4624
      %v4673 = vunpack.c.l.b16 %v4625
      %v4674 = vunpack.c.l.b16 %v4626
      %v4675 = vunpack.c.l.b16 %v4627
      %v4676 = vunpack.c.l.b16 %v4628
      %v4677 = vunpack.c.l.b16 %v4629
      %v4678 = vunpack.c.l.b16 %v4630
      %v4679 = vunpack.c.l.b16 %v4631
      %v4680 = vunpack.c.l.b16 %v4632
      %v4681 = vunpack.c.l.b16 %v4633
      %v4682 = vunpack.c.l.b16 %v4634
      %v4683 = vunpack.c.l.b16 %v4635
      %v4684 = vunpack.c.l.b16 %v4636
      %v4685 = vpack.c.b16 %v4670, %v4669
      %v4686 = vpack.c.b16 %v4672, %v4671
      %v4687 = vpack.c.b16 %v4674, %v4673
      %v4688 = vpack.c.b16 %v4676, %v4675
      %v4689 = vpack.c.b16 %v4678, %v4677
      %v4690 = vpack.c.b16 %v4680, %v4679
      %v4691 = vpack.c.b16 %v4682, %v4681
      %v4692 = vpack.c.b16 %v4684, %v4683
      %4701 = vmatprep.subr.bf16.mxu0 0
      %4702 = vmatpush1.bf16.msra.mxu0 %v4685
      %4703 = vmatprep.subr.bf16.mxu0 0
      %4704 = vmatpush1.bf16.msra.mxu0 %v4686
      %4705 = vmatprep.subr.bf16.mxu0 0
      %4706 = vmatpush1.bf16.msra.mxu0 %v4687
      %4707 = vmatprep.subr.bf16.mxu0 0
      %4708 = vmatpush1.bf16.msra.mxu0 %v4688
      %4709 = vmatprep.subr.bf16.mxu0 0
      %4710 = vmatpush1.bf16.msra.mxu0 %v4689
      %4711 = vmatprep.subr.bf16.mxu0 0
      %4712 = vmatpush1.bf16.msra.mxu0 %v4690
      %4713 = vmatprep.subr.bf16.mxu0 0
      %4714 = vmatpush1.bf16.msra.mxu0 %v4691
      %4715 = vmatprep.subr.bf16.mxu0 0
      %4716 = vmatpush1.bf16.msra.mxu0 %v4692
      %4717 = vmatprep.subr.bf16.mxu0 0
      %4718 = vmatpush1.bf16.msra.mxu0 0
      %4719 = vmatprep.subr.bf16.mxu0 0
      %4720 = vmatpush1.bf16.msra.mxu0 0
      %4721 = vmatprep.subr.bf16.mxu0 0
      %4722 = vmatpush1.bf16.msra.mxu0 0
      %4723 = vmatprep.subr.bf16.mxu0 0
      %4724 = vmatpush1.bf16.msra.mxu0 0
      %4725 = vmatprep.subr.bf16.mxu0 0
      %4726 = vmatpush1.bf16.msra.mxu0 0
      %4727 = vmatprep.subr.bf16.mxu0 0
      %4728 = vmatpush1.bf16.msra.mxu0 0
      %4729 = vmatprep.subr.bf16.mxu0 0
      %4730 = vmatpush1.bf16.msra.mxu0 0
      %4731 = vmatprep.subr.bf16.mxu0 0
      %4732 = vmatpush1.bf16.msra.mxu0 0
      %4733 = vmatprep.mubr.bf16.mxu0 0
      %4734 = vmatmul.mubr.bf16.gmra.mrb[0].mxu0 %v4645
      %v4735 = vpop.f32.mrb[0].mxu0
      %v4736 = vadd.f32 0.0, %v4735
      %v4737 = vpop.f32.mrb[0].mxu0
      %v4738 = vpop.f32.mrb[0].mxu0
      %v4739 = vadd.f32 0.0, %v4738
      %v4740 = vpop.f32.mrb[0].mxu0
      %4741 = vmatprep.mubr.bf16.mxu0 0
      %4742 = vmatmul.mubr.bf16.gmra.mrb[0].mxu0 %v4646
      %v4743 = vpop.f32.mrb[0].mxu0
      %v4744 = vadd.f32 0.0, %v4743
      %v4745 = vpop.f32.mrb[0].mxu0
      %v4746 = vpop.f32.mrb[0].mxu0
      %v4747 = vadd.f32 0.0, %v4746
      %v4748 = vpop.f32.mrb[0].mxu0
      %4749 = vmatprep.mubr.bf16.mxu0 0
      %4750 = vmatmul.mubr.bf16.gmra.mrb[0].mxu0 %v4647
      %v4751 = vpop.f32.mrb[0].mxu0
      %v4752 = vadd.f32 0.0, %v4751
      %v4753 = vpop.f32.mrb[0].mxu0
      %v4754 = vpop.f32.mrb[0].mxu0
      %v4755 = vadd.f32 0.0, %v4754
      %v4756 = vpop.f32.mrb[0].mxu0
      %4757 = vmatprep.mubr.bf16.mxu0 0
      %4758 = vmatmul.mubr.bf16.gmra.mrb[0].mxu0 %v4648
      %v4759 = vpop.f32.mrb[0].mxu0
      %v4760 = vadd.f32 0.0, %v4759
      %v4761 = vpop.f32.mrb[0].mxu0
      %v4762 = vpop.f32.mrb[0].mxu0
      %v4763 = vadd.f32 0.0, %v4762
      %v4764 = vpop.f32.mrb[0].mxu0
      %4765 = vdwg.mxu0
      %v4766 = vadd.f32 %v4484, %v4736
      %v4767 = vadd.f32 %v4485, %v4739
      %v4768 = vadd.f32 %v4486, %v4744
      %v4769 = vadd.f32 %v4487, %v4747
      %v4770 = vadd.f32 %v4488, %v4752
      %v4771 = vadd.f32 %v4489, %v4755
      %v4772 = vadd.f32 %v4490, %v4760
      %v4773 = vadd.f32 %v4491, %v4763
      %v4774 = vld [vmem:[%s345] sm:$0xe]
      %v4775 = vld [vmem:[%s345 + $0x8] sm:$0xe]
      %v4776 = vld [vmem:[%s345 + $0x10] sm:$0xe]
      %v4777 = vld [vmem:[%s345 + $0x18] sm:$0xe]
      %v4778 = vld [vmem:[%s345 + $0x20] sm:$0xe]
      %v4779 = vld [vmem:[%s345 + $0x28] sm:$0xe]
      %v4780 = vld [vmem:[%s345 + $0x30] sm:$0xe]
      %v4781 = vld [vmem:[%s345 + $0x38] sm:$0xe]
      %v4798 = vrot.slane %v4774, 5
      %v4799 = vrot.slane %v4798, 4
      %v4800 = vrot.slane %v4493, 5
      %v4801 = vsel %vm821, %v4799, %v4800
      %v4802 = vrot.slane %v4775, 5
      %v4803 = vrot.slane %v4802, 4
      %v4804 = vrot.slane %v4495, 5
      %v4805 = vsel %vm821, %v4803, %v4804
      %v4806 = vrot.slane %v4776, 5
      %v4807 = vrot.slane %v4806, 4
      %v4808 = vrot.slane %v4497, 5
      %v4809 = vsel %vm821, %v4807, %v4808
      %v4810 = vrot.slane %v4777, 5
      %v4811 = vrot.slane %v4810, 4
      %v4812 = vrot.slane %v4499, 5
      %v4813 = vsel %vm821, %v4811, %v4812
      %v4814 = vrot.slane %v4778, 5
      %v4815 = vrot.slane %v4814, 4
      %v4816 = vrot.slane %v4501, 5
      %v4817 = vsel %vm821, %v4815, %v4816
      %v4818 = vrot.slane %v4779, 5
      %v4819 = vrot.slane %v4818, 4
      %v4820 = vrot.slane %v4503, 5
      %v4821 = vsel %vm821, %v4819, %v4820
      %v4822 = vrot.slane %v4780, 5
      %v4823 = vrot.slane %v4822, 4
      %v4824 = vrot.slane %v4505, 5
      %v4825 = vsel %vm821, %v4823, %v4824
      %v4826 = vrot.slane %v4781, 5
      %v4827 = vrot.slane %v4826, 4
      %v4828 = vrot.slane %v4507, 5
      %v4829 = vsel %vm821, %v4827, %v4828
      %s4830 = scalar_lea.vmem %s3, 1280
      %v4831 = vld [vmem:[%s4830] sm:$0xf]
      %v4832 = vld [vmem:[%s4830 + $0x4] sm:$0xf]
      %v4833 = vld [vmem:[%s4830 + $0x8] sm:$0xf]
      %v4834 = vld [vmem:[%s4830 + $0xc] sm:$0xf]
      %v4835 = vld [vmem:[%s4830 + $0x10] sm:$0xf]
      %v4836 = vld [vmem:[%s4830 + $0x14] sm:$0xf]
      %v4837 = vld [vmem:[%s4830 + $0x18] sm:$0xf]
      %v4838 = vld [vmem:[%s4830 + $0x1c] sm:$0xf]
      %v4839 = vld [vmem:[%s4830 + $0x20] sm:$0xf]
      %v4840 = vld [vmem:[%s4830 + $0x24] sm:$0xf]
      %v4841 = vld [vmem:[%s4830 + $0x28] sm:$0xf]
      %v4842 = vld [vmem:[%s4830 + $0x2c] sm:$0xf]
      %v4843 = vld [vmem:[%s4830 + $0x30] sm:$0xf]
      %v4844 = vld [vmem:[%s4830 + $0x34] sm:$0xf]
      %v4845 = vld [vmem:[%s4830 + $0x38] sm:$0xf]
      %v4846 = vld [vmem:[%s4830 + $0x3c] sm:$0xf]
      %v4847 = vunpack.c.l.b16 %v4801
      %v4848 = vunpack.c.l.b16 %v4805
      %v4849 = vunpack.c.l.b16 %v4809
      %v4850 = vunpack.c.l.b16 %v4813
      %v4851 = vunpack.c.l.b16 %v4817
      %v4852 = vunpack.c.l.b16 %v4821
      %v4853 = vunpack.c.l.b16 %v4825
      %v4854 = vunpack.c.l.b16 %v4829
      %v4855 = vpack.c.b16 %v4848, %v4847
      %v4856 = vpack.c.b16 %v4850, %v4849
      %v4857 = vpack.c.b16 %v4852, %v4851
      %v4858 = vpack.c.b16 %v4854, %v4853
      %v4879 = vunpack.c.l.b16 %v4831
      %v4880 = vunpack.c.l.b16 %v4832
      %v4881 = vunpack.c.l.b16 %v4833
      %v4882 = vunpack.c.l.b16 %v4834
      %v4883 = vunpack.c.l.b16 %v4835
      %v4884 = vunpack.c.l.b16 %v4836
      %v4885 = vunpack.c.l.b16 %v4837
      %v4886 = vunpack.c.l.b16 %v4838
      %v4887 = vunpack.c.l.b16 %v4839
      %v4888 = vunpack.c.l.b16 %v4840
      %v4889 = vunpack.c.l.b16 %v4841
      %v4890 = vunpack.c.l.b16 %v4842
      %v4891 = vunpack.c.l.b16 %v4843
      %v4892 = vunpack.c.l.b16 %v4844
      %v4893 = vunpack.c.l.b16 %v4845
      %v4894 = vunpack.c.l.b16 %v4846
      %v4895 = vpack.c.b16 %v4880, %v4879
      %v4896 = vpack.c.b16 %v4882, %v4881
      %v4897 = vpack.c.b16 %v4884, %v4883
      %v4898 = vpack.c.b16 %v4886, %v4885
      %v4899 = vpack.c.b16 %v4888, %v4887
      %v4900 = vpack.c.b16 %v4890, %v4889
      %v4901 = vpack.c.b16 %v4892, %v4891
      %v4902 = vpack.c.b16 %v4894, %v4893
      %4911 = vmatprep.subr.bf16.mxu0 0
      %4912 = vmatpush1.bf16.msra.mxu0 %v4895
      %4913 = vmatprep.subr.bf16.mxu0 0
      %4914 = vmatpush1.bf16.msra.mxu0 %v4896
      %4915 = vmatprep.subr.bf16.mxu0 0
      %4916 = vmatpush1.bf16.msra.mxu0 %v4897
      %4917 = vmatprep.subr.bf16.mxu0 0
      %4918 = vmatpush1.bf16.msra.mxu0 %v4898
      %4919 = vmatprep.subr.bf16.mxu0 0
      %4920 = vmatpush1.bf16.msra.mxu0 %v4899
      %4921 = vmatprep.subr.bf16.mxu0 0
      %4922 = vmatpush1.bf16.msra.mxu0 %v4900
      %4923 = vmatprep.subr.bf16.mxu0 0
      %4924 = vmatpush1.bf16.msra.mxu0 %v4901
      %4925 = vmatprep.subr.bf16.mxu0 0
      %4926 = vmatpush1.bf16.msra.mxu0 %v4902
      %4927 = vmatprep.subr.bf16.mxu0 0
      %4928 = vmatpush1.bf16.msra.mxu0 0
      %4929 = vmatprep.subr.bf16.mxu0 0
      %4930 = vmatpush1.bf16.msra.mxu0 0
      %4931 = vmatprep.subr.bf16.mxu0 0
      %4932 = vmatpush1.bf16.msra.mxu0 0
      %4933 = vmatprep.subr.bf16.mxu0 0
      %4934 = vmatpush1.bf16.msra.mxu0 0
      %4935 = vmatprep.subr.bf16.mxu0 0
      %4936 = vmatpush1.bf16.msra.mxu0 0
      %4937 = vmatprep.subr.bf16.mxu0 0
      %4938 = vmatpush1.bf16.msra.mxu0 0
      %4939 = vmatprep.subr.bf16.mxu0 0
      %4940 = vmatpush1.bf16.msra.mxu0 0
      %4941 = vmatprep.subr.bf16.mxu0 0
      %4942 = vmatpush1.bf16.msra.mxu0 0
      %4943 = vmatprep.mubr.bf16.mxu0 0
      %4944 = vmatmul.mubr.bf16.gmra.mrb[0].mxu0 %v4855
      %v4945 = vpop.f32.mrb[0].mxu0
      %v4946 = vadd.f32 0.0, %v4945
      %v4947 = vpop.f32.mrb[0].mxu0
      %v4948 = vpop.f32.mrb[0].mxu0
      %v4949 = vadd.f32 0.0, %v4948
      %v4950 = vpop.f32.mrb[0].mxu0
      %4951 = vmatprep.mubr.bf16.mxu0 0
      %4952 = vmatmul.mubr.bf16.gmra.mrb[0].mxu0 %v4856
      %v4953 = vpop.f32.mrb[0].mxu0
      %v4954 = vadd.f32 0.0, %v4953
      %v4955 = vpop.f32.mrb[0].mxu0
      %v4956 = vpop.f32.mrb[0].mxu0
      %v4957 = vadd.f32 0.0, %v4956
      %v4958 = vpop.f32.mrb[0].mxu0
      %4959 = vmatprep.mubr.bf16.mxu0 0
      %4960 = vmatmul.mubr.bf16.gmra.mrb[0].mxu0 %v4857
      %v4961 = vpop.f32.mrb[0].mxu0
      %v4962 = vadd.f32 0.0, %v4961
      %v4963 = vpop.f32.mrb[0].mxu0
      %v4964 = vpop.f32.mrb[0].mxu0
      %v4965 = vadd.f32 0.0, %v4964
      %v4966 = vpop.f32.mrb[0].mxu0
      %4967 = vmatprep.mubr.bf16.mxu0 0
      %4968 = vmatmul.mubr.bf16.gmra.mrb[0].mxu0 %v4858
      %v4969 = vpop.f32.mrb[0].mxu0
      %v4970 = vadd.f32 0.0, %v4969
      %v4971 = vpop.f32.mrb[0].mxu0
      %v4972 = vpop.f32.mrb[0].mxu0
      %v4973 = vadd.f32 0.0, %v4972
      %v4974 = vpop.f32.mrb[0].mxu0
      %4975 = vdwg.mxu0
      %v4976 = vadd.f32 %v4766, %v4946
      %v4977 = vadd.f32 %v4767, %v4949
      %v4978 = vadd.f32 %v4768, %v4954
      %v4979 = vadd.f32 %v4769, %v4957
      %v4980 = vadd.f32 %v4770, %v4962
      %v4981 = vadd.f32 %v4771, %v4965
      %v4982 = vadd.f32 %v4772, %v4970
      %v4983 = vadd.f32 %v4773, %v4973
      %s4984 = scalar_lea.vmem %s345, 8
      %v4985 = vld [vmem:[%s4984] sm:$0xf]
      %v4986 = vld [vmem:[%s4984 + $0x8] sm:$0xf]
      %v4987 = vld [vmem:[%s4984 + $0x10] sm:$0xf]
      %v4988 = vld [vmem:[%s4984 + $0x18] sm:$0xf]
      %v4989 = vld [vmem:[%s4984 + $0x20] sm:$0xf]
      %v4990 = vld [vmem:[%s4984 + $0x28] sm:$0xf]
      %v4991 = vld [vmem:[%s4984 + $0x30] sm:$0xf]
      %v4992 = vld [vmem:[%s4984 + $0x38] sm:$0xf]
      %s4993 = scalar_lea.vmem %s3, 1344
      %v4994 = vld [vmem:[%s4993] sm:$0xf]
      %v4995 = vld [vmem:[%s4993 + $0x4] sm:$0xf]
      %v4996 = vld [vmem:[%s4993 + $0x8] sm:$0xf]
      %v4997 = vld [vmem:[%s4993 + $0xc] sm:$0xf]
      %v4998 = vld [vmem:[%s4993 + $0x10] sm:$0xf]
      %v4999 = vld [vmem:[%s4993 + $0x14] sm:$0xf]
      %v5000 = vld [vmem:[%s4993 + $0x18] sm:$0xf]
      %v5001 = vld [vmem:[%s4993 + $0x1c] sm:$0xf]
      %v5002 = vld [vmem:[%s4993 + $0x20] sm:$0xf]
      %v5003 = vld [vmem:[%s4993 + $0x24] sm:$0xf]
      %v5004 = vld [vmem:[%s4993 + $0x28] sm:$0xf]
      %v5005 = vld [vmem:[%s4993 + $0x2c] sm:$0xf]
      %v5006 = vld [vmem:[%s4993 + $0x30] sm:$0xf]
      %v5007 = vld [vmem:[%s4993 + $0x34] sm:$0xf]
      %v5008 = vld [vmem:[%s4993 + $0x38] sm:$0xf]
      %v5009 = vld [vmem:[%s4993 + $0x3c] sm:$0xf]
      %v5018 = vunpack.c.l.b16 %v4985
      %v5019 = vunpack.c.l.b16 %v4986
      %v5020 = vunpack.c.l.b16 %v4987
      %v5021 = vunpack.c.l.b16 %v4988
      %v5022 = vunpack.c.l.b16 %v4989
      %v5023 = vunpack.c.l.b16 %v4990
      %v5024 = vunpack.c.l.b16 %v4991
      %v5025 = vunpack.c.l.b16 %v4992
      %v5026 = vpack.c.b16 %v5019, %v5018
      %v5027 = vpack.c.b16 %v5021, %v5020
      %v5028 = vpack.c.b16 %v5023, %v5022
      %v5029 = vpack.c.b16 %v5025, %v5024
      %v5050 = vunpack.c.l.b16 %v4994
      %v5051 = vunpack.c.l.b16 %v4995
      %v5052 = vunpack.c.l.b16 %v4996
      %v5053 = vunpack.c.l.b16 %v4997
      %v5054 = vunpack.c.l.b16 %v4998
      %v5055 = vunpack.c.l.b16 %v4999
      %v5056 = vunpack.c.l.b16 %v5000
      %v5057 = vunpack.c.l.b16 %v5001
      %v5058 = vunpack.c.l.b16 %v5002
      %v5059 = vunpack.c.l.b16 %v5003
      %v5060 = vunpack.c.l.b16 %v5004
      %v5061 = vunpack.c.l.b16 %v5005
      %v5062 = vunpack.c.l.b16 %v5006
      %v5063 = vunpack.c.l.b16 %v5007
      %v5064 = vunpack.c.l.b16 %v5008
      %v5065 = vunpack.c.l.b16 %v5009
      %v5066 = vpack.c.b16 %v5051, %v5050
      %v5067 = vpack.c.b16 %v5053, %v5052
      %v5068 = vpack.c.b16 %v5055, %v5054
      %v5069 = vpack.c.b16 %v5057, %v5056
      %v5070 = vpack.c.b16 %v5059, %v5058
      %v5071 = vpack.c.b16 %v5061, %v5060
      %v5072 = vpack.c.b16 %v5063, %v5062
      %v5073 = vpack.c.b16 %v5065, %v5064
      %5082 = vmatprep.subr.bf16.mxu0 0
      %5083 = vmatpush1.bf16.msra.mxu0 %v5066
      %5084 = vmatprep.subr.bf16.mxu0 0
      %5085 = vmatpush1.bf16.msra.mxu0 %v5067
      %5086 = vmatprep.subr.bf16.mxu0 0
      %5087 = vmatpush1.bf16.msra.mxu0 %v5068
      %5088 = vmatprep.subr.bf16.mxu0 0
      %5089 = vmatpush1.bf16.msra.mxu0 %v5069
      %5090 = vmatprep.subr.bf16.mxu0 0
      %5091 = vmatpush1.bf16.msra.mxu0 %v5070
      %5092 = vmatprep.subr.bf16.mxu0 0
      %5093 = vmatpush1.bf16.msra.mxu0 %v5071
      %5094 = vmatprep.subr.bf16.mxu0 0
      %5095 = vmatpush1.bf16.msra.mxu0 %v5072
      %5096 = vmatprep.subr.bf16.mxu0 0
      %5097 = vmatpush1.bf16.msra.mxu0 %v5073
      %5098 = vmatprep.subr.bf16.mxu0 0
      %5099 = vmatpush1.bf16.msra.mxu0 0
      %5100 = vmatprep.subr.bf16.mxu0 0
      %5101 = vmatpush1.bf16.msra.mxu0 0
      %5102 = vmatprep.subr.bf16.mxu0 0
      %5103 = vmatpush1.bf16.msra.mxu0 0
      %5104 = vmatprep.subr.bf16.mxu0 0
      %5105 = vmatpush1.bf16.msra.mxu0 0
      %5106 = vmatprep.subr.bf16.mxu0 0
      %5107 = vmatpush1.bf16.msra.mxu0 0
      %5108 = vmatprep.subr.bf16.mxu0 0
      %5109 = vmatpush1.bf16.msra.mxu0 0
      %5110 = vmatprep.subr.bf16.mxu0 0
      %5111 = vmatpush1.bf16.msra.mxu0 0
      %5112 = vmatprep.subr.bf16.mxu0 0
      %5113 = vmatpush1.bf16.msra.mxu0 0
      %5114 = vmatprep.mubr.bf16.mxu0 0
      %5115 = vmatmul.mubr.bf16.gmra.mrb[0].mxu0 %v5026
      %v5116 = vpop.f32.mrb[0].mxu0
      %v5117 = vadd.f32 0.0, %v5116
      %v5118 = vpop.f32.mrb[0].mxu0
      %v5119 = vpop.f32.mrb[0].mxu0
      %v5120 = vadd.f32 0.0, %v5119
      %v5121 = vpop.f32.mrb[0].mxu0
      %5122 = vmatprep.mubr.bf16.mxu0 0
      %5123 = vmatmul.mubr.bf16.gmra.mrb[0].mxu0 %v5027
      %v5124 = vpop.f32.mrb[0].mxu0
      %v5125 = vadd.f32 0.0, %v5124
      %v5126 = vpop.f32.mrb[0].mxu0
      %v5127 = vpop.f32.mrb[0].mxu0
      %v5128 = vadd.f32 0.0, %v5127
      %v5129 = vpop.f32.mrb[0].mxu0
      %5130 = vmatprep.mubr.bf16.mxu0 0
      %5131 = vmatmul.mubr.bf16.gmra.mrb[0].mxu0 %v5028
      %v5132 = vpop.f32.mrb[0].mxu0
      %v5133 = vadd.f32 0.0, %v5132
      %v5134 = vpop.f32.mrb[0].mxu0
      %v5135 = vpop.f32.mrb[0].mxu0
      %v5136 = vadd.f32 0.0, %v5135
      %v5137 = vpop.f32.mrb[0].mxu0
      %5138 = vmatprep.mubr.bf16.mxu0 0
      %5139 = vmatmul.mubr.bf16.gmra.mrb[0].mxu0 %v5029
      %v5140 = vpop.f32.mrb[0].mxu0
      %v5141 = vadd.f32 0.0, %v5140
      %v5142 = vpop.f32.mrb[0].mxu0
      %v5143 = vpop.f32.mrb[0].mxu0
      %v5144 = vadd.f32 0.0, %v5143
      %v5145 = vpop.f32.mrb[0].mxu0
      %5146 = vdwg.mxu0
      %v5147 = vadd.f32 %v4976, %v5117
      %v5148 = vadd.f32 %v4977, %v5120
      %v5149 = vadd.f32 %v4978, %v5125
      %v5150 = vadd.f32 %v4979, %v5128
      %v5151 = vadd.f32 %v4980, %v5133
      %v5152 = vadd.f32 %v4981, %v5136
      %v5153 = vadd.f32 %v4982, %v5141
      %v5154 = vadd.f32 %v4983, %v5144
      %v5155 = vld [vmem:[%s4984] sm:$0xf]
      %v5156 = vld [vmem:[%s4984 + $0x4] sm:$0x1]
      %v5157 = vld [vmem:[%s4984 + $0x8] sm:$0xf]
      %v5158 = vld [vmem:[%s4984 + $0xc] sm:$0x1]
      %v5159 = vld [vmem:[%s4984 + $0x10] sm:$0xf]
      %v5160 = vld [vmem:[%s4984 + $0x14] sm:$0x1]
      %v5161 = vld [vmem:[%s4984 + $0x18] sm:$0xf]
      %v5162 = vld [vmem:[%s4984 + $0x1c] sm:$0x1]
      %v5163 = vld [vmem:[%s4984 + $0x20] sm:$0xf]
      %v5164 = vld [vmem:[%s4984 + $0x24] sm:$0x1]
      %v5165 = vld [vmem:[%s4984 + $0x28] sm:$0xf]
      %v5166 = vld [vmem:[%s4984 + $0x2c] sm:$0x1]
      %v5167 = vld [vmem:[%s4984 + $0x30] sm:$0xf]
      %v5168 = vld [vmem:[%s4984 + $0x34] sm:$0x1]
      %v5169 = vld [vmem:[%s4984 + $0x38] sm:$0xf]
      %v5170 = vld [vmem:[%s4984 + $0x3c] sm:$0x1]
      %v5172 = vshrl.u32 %v5155, 16
      %v5174 = vrot.slane %v5172, 4
      %v5175 = vshll.u32 %v5155, 16
      %v5177 = vrot.slane %v5175, 5
      %v5178 = vor.u32 %v5174, %v5177
      %v5179 = vrot.slane %v5178, 4
      %v5181 = vshll.u32 %v5156, 16
      %v5183 = vrot.slane %v5181, 5
      %v5184 = vsel %vm399, %v5179, %v5183
      %v5186 = vshrl.u32 %v5157, 16
      %v5188 = vrot.slane %v5186, 4
      %v5189 = vshll.u32 %v5157, 16
      %v5191 = vrot.slane %v5189, 5
      %v5192 = vor.u32 %v5188, %v5191
      %v5193 = vrot.slane %v5192, 4
      %v5195 = vshll.u32 %v5158, 16
      %v5197 = vrot.slane %v5195, 5
      %v5198 = vsel %vm399, %v5193, %v5197
      %v5200 = vshrl.u32 %v5159, 16
      %v5202 = vrot.slane %v5200, 4
      %v5203 = vshll.u32 %v5159, 16
      %v5205 = vrot.slane %v5203, 5
      %v5206 = vor.u32 %v5202, %v5205
      %v5207 = vrot.slane %v5206, 4
      %v5209 = vshll.u32 %v5160, 16
      %v5211 = vrot.slane %v5209, 5
      %v5212 = vsel %vm399, %v5207, %v5211
      %v5214 = vshrl.u32 %v5161, 16
      %v5216 = vrot.slane %v5214, 4
      %v5217 = vshll.u32 %v5161, 16
      %v5219 = vrot.slane %v5217, 5
      %v5220 = vor.u32 %v5216, %v5219
      %v5221 = vrot.slane %v5220, 4
      %v5223 = vshll.u32 %v5162, 16
      %v5225 = vrot.slane %v5223, 5
      %v5226 = vsel %vm399, %v5221, %v5225
      %v5228 = vshrl.u32 %v5163, 16
      %v5230 = vrot.slane %v5228, 4
      %v5231 = vshll.u32 %v5163, 16
      %v5233 = vrot.slane %v5231, 5
      %v5234 = vor.u32 %v5230, %v5233
      %v5235 = vrot.slane %v5234, 4
      %v5237 = vshll.u32 %v5164, 16
      %v5239 = vrot.slane %v5237, 5
      %v5240 = vsel %vm399, %v5235, %v5239
      %v5242 = vshrl.u32 %v5165, 16
      %v5244 = vrot.slane %v5242, 4
      %v5245 = vshll.u32 %v5165, 16
      %v5247 = vrot.slane %v5245, 5
      %v5248 = vor.u32 %v5244, %v5247
      %v5249 = vrot.slane %v5248, 4
      %v5251 = vshll.u32 %v5166, 16
      %v5253 = vrot.slane %v5251, 5
      %v5254 = vsel %vm399, %v5249, %v5253
      %v5256 = vshrl.u32 %v5167, 16
      %v5258 = vrot.slane %v5256, 4
      %v5259 = vshll.u32 %v5167, 16
      %v5261 = vrot.slane %v5259, 5
      %v5262 = vor.u32 %v5258, %v5261
      %v5263 = vrot.slane %v5262, 4
      %v5265 = vshll.u32 %v5168, 16
      %v5267 = vrot.slane %v5265, 5
      %v5268 = vsel %vm399, %v5263, %v5267
      %v5270 = vshrl.u32 %v5169, 16
      %v5272 = vrot.slane %v5270, 4
      %v5273 = vshll.u32 %v5169, 16
      %v5275 = vrot.slane %v5273, 5
      %v5276 = vor.u32 %v5272, %v5275
      %v5277 = vrot.slane %v5276, 4
      %v5279 = vshll.u32 %v5170, 16
      %v5281 = vrot.slane %v5279, 5
      %v5282 = vsel %vm399, %v5277, %v5281
      %s5283 = scalar_lea.vmem %s3, 1408
      %v5284 = vld [vmem:[%s5283] sm:$0xf]
      %v5285 = vld [vmem:[%s5283 + $0x4] sm:$0xf]
      %v5286 = vld [vmem:[%s5283 + $0x8] sm:$0xf]
      %v5287 = vld [vmem:[%s5283 + $0xc] sm:$0xf]
      %v5288 = vld [vmem:[%s5283 + $0x10] sm:$0xf]
      %v5289 = vld [vmem:[%s5283 + $0x14] sm:$0xf]
      %v5290 = vld [vmem:[%s5283 + $0x18] sm:$0xf]
      %v5291 = vld [vmem:[%s5283 + $0x1c] sm:$0xf]
      %v5292 = vld [vmem:[%s5283 + $0x20] sm:$0xf]
      %v5293 = vld [vmem:[%s5283 + $0x24] sm:$0xf]
      %v5294 = vld [vmem:[%s5283 + $0x28] sm:$0xf]
      %v5295 = vld [vmem:[%s5283 + $0x2c] sm:$0xf]
      %v5296 = vld [vmem:[%s5283 + $0x30] sm:$0xf]
      %v5297 = vld [vmem:[%s5283 + $0x34] sm:$0xf]
      %v5298 = vld [vmem:[%s5283 + $0x38] sm:$0xf]
      %v5299 = vld [vmem:[%s5283 + $0x3c] sm:$0xf]
      %v5300 = vunpack.c.l.b16 %v5184
      %v5301 = vunpack.c.l.b16 %v5198
      %v5302 = vunpack.c.l.b16 %v5212
      %v5303 = vunpack.c.l.b16 %v5226
      %v5304 = vunpack.c.l.b16 %v5240
      %v5305 = vunpack.c.l.b16 %v5254
      %v5306 = vunpack.c.l.b16 %v5268
      %v5307 = vunpack.c.l.b16 %v5282
      %v5308 = vpack.c.b16 %v5301, %v5300
      %v5309 = vpack.c.b16 %v5303, %v5302
      %v5310 = vpack.c.b16 %v5305, %v5304
      %v5311 = vpack.c.b16 %v5307, %v5306
      %v5332 = vunpack.c.l.b16 %v5284
      %v5333 = vunpack.c.l.b16 %v5285
      %v5334 = vunpack.c.l.b16 %v5286
      %v5335 = vunpack.c.l.b16 %v5287
      %v5336 = vunpack.c.l.b16 %v5288
      %v5337 = vunpack.c.l.b16 %v5289
      %v5338 = vunpack.c.l.b16 %v5290
      %v5339 = vunpack.c.l.b16 %v5291
      %v5340 = vunpack.c.l.b16 %v5292
      %v5341 = vunpack.c.l.b16 %v5293
      %v5342 = vunpack.c.l.b16 %v5294
      %v5343 = vunpack.c.l.b16 %v5295
      %v5344 = vunpack.c.l.b16 %v5296
      %v5345 = vunpack.c.l.b16 %v5297
      %v5346 = vunpack.c.l.b16 %v5298
      %v5347 = vunpack.c.l.b16 %v5299
      %v5348 = vpack.c.b16 %v5333, %v5332
      %v5349 = vpack.c.b16 %v5335, %v5334
      %v5350 = vpack.c.b16 %v5337, %v5336
      %v5351 = vpack.c.b16 %v5339, %v5338
      %v5352 = vpack.c.b16 %v5341, %v5340
      %v5353 = vpack.c.b16 %v5343, %v5342
      %v5354 = vpack.c.b16 %v5345, %v5344
      %v5355 = vpack.c.b16 %v5347, %v5346
      %5364 = vmatprep.subr.bf16.mxu0 0
      %5365 = vmatpush1.bf16.msra.mxu0 %v5348
      %5366 = vmatprep.subr.bf16.mxu0 0
      %5367 = vmatpush1.bf16.msra.mxu0 %v5349
      %5368 = vmatprep.subr.bf16.mxu0 0
      %5369 = vmatpush1.bf16.msra.mxu0 %v5350
      %5370 = vmatprep.subr.bf16.mxu0 0
      %5371 = vmatpush1.bf16.msra.mxu0 %v5351
      %5372 = vmatprep.subr.bf16.mxu0 0
      %5373 = vmatpush1.bf16.msra.mxu0 %v5352
      %5374 = vmatprep.subr.bf16.mxu0 0
      %5375 = vmatpush1.bf16.msra.mxu0 %v5353
      %5376 = vmatprep.subr.bf16.mxu0 0
      %5377 = vmatpush1.bf16.msra.mxu0 %v5354
      %5378 = vmatprep.subr.bf16.mxu0 0
      %5379 = vmatpush1.bf16.msra.mxu0 %v5355
      %5380 = vmatprep.subr.bf16.mxu0 0
      %5381 = vmatpush1.bf16.msra.mxu0 0
      %5382 = vmatprep.subr.bf16.mxu0 0
      %5383 = vmatpush1.bf16.msra.mxu0 0
      %5384 = vmatprep.subr.bf16.mxu0 0
      %5385 = vmatpush1.bf16.msra.mxu0 0
      %5386 = vmatprep.subr.bf16.mxu0 0
      %5387 = vmatpush1.bf16.msra.mxu0 0
      %5388 = vmatprep.subr.bf16.mxu0 0
      %5389 = vmatpush1.bf16.msra.mxu0 0
      %5390 = vmatprep.subr.bf16.mxu0 0
      %5391 = vmatpush1.bf16.msra.mxu0 0
      %5392 = vmatprep.subr.bf16.mxu0 0
      %5393 = vmatpush1.bf16.msra.mxu0 0
      %5394 = vmatprep.subr.bf16.mxu0 0
      %5395 = vmatpush1.bf16.msra.mxu0 0
      %5396 = vmatprep.mubr.bf16.mxu0 0
      %5397 = vmatmul.mubr.bf16.gmra.mrb[0].mxu0 %v5308
      %v5398 = vpop.f32.mrb[0].mxu0
      %v5399 = vadd.f32 0.0, %v5398
      %v5400 = vpop.f32.mrb[0].mxu0
      %v5401 = vpop.f32.mrb[0].mxu0
      %v5402 = vadd.f32 0.0, %v5401
      %v5403 = vpop.f32.mrb[0].mxu0
      %5404 = vmatprep.mubr.bf16.mxu0 0
      %5405 = vmatmul.mubr.bf16.gmra.mrb[0].mxu0 %v5309
      %v5406 = vpop.f32.mrb[0].mxu0
      %v5407 = vadd.f32 0.0, %v5406
      %v5408 = vpop.f32.mrb[0].mxu0
      %v5409 = vpop.f32.mrb[0].mxu0
      %v5410 = vadd.f32 0.0, %v5409
      %v5411 = vpop.f32.mrb[0].mxu0
      %5412 = vmatprep.mubr.bf16.mxu0 0
      %5413 = vmatmul.mubr.bf16.gmra.mrb[0].mxu0 %v5310
      %v5414 = vpop.f32.mrb[0].mxu0
      %v5415 = vadd.f32 0.0, %v5414
      %v5416 = vpop.f32.mrb[0].mxu0
      %v5417 = vpop.f32.mrb[0].mxu0
      %v5418 = vadd.f32 0.0, %v5417
      %v5419 = vpop.f32.mrb[0].mxu0
      %5420 = vmatprep.mubr.bf16.mxu0 0
      %5421 = vmatmul.mubr.bf16.gmra.mrb[0].mxu0 %v5311
      %v5422 = vpop.f32.mrb[0].mxu0
      %v5423 = vadd.f32 0.0, %v5422
      %v5424 = vpop.f32.mrb[0].mxu0
      %v5425 = vpop.f32.mrb[0].mxu0
      %v5426 = vadd.f32 0.0, %v5425
      %v5427 = vpop.f32.mrb[0].mxu0
      %5428 = vdwg.mxu0
      %v5429 = vadd.f32 %v5147, %v5399
      %v5430 = vadd.f32 %v5148, %v5402
      %v5431 = vadd.f32 %v5149, %v5407
      %v5432 = vadd.f32 %v5150, %v5410
      %v5433 = vadd.f32 %v5151, %v5415
      %v5434 = vadd.f32 %v5152, %v5418
      %v5435 = vadd.f32 %v5153, %v5423
      %v5436 = vadd.f32 %v5154, %v5426
      %v5437 = vld [vmem:[%s4984] sm:$0xe]
      %v5438 = vld [vmem:[%s4984 + $0x8] sm:$0xe]
      %v5439 = vld [vmem:[%s4984 + $0x10] sm:$0xe]
      %v5440 = vld [vmem:[%s4984 + $0x18] sm:$0xe]
      %v5441 = vld [vmem:[%s4984 + $0x20] sm:$0xe]
      %v5442 = vld [vmem:[%s4984 + $0x28] sm:$0xe]
      %v5443 = vld [vmem:[%s4984 + $0x30] sm:$0xe]
      %v5444 = vld [vmem:[%s4984 + $0x38] sm:$0xe]
      %v5461 = vrot.slane %v5437, 5
      %v5462 = vrot.slane %v5461, 4
      %v5463 = vrot.slane %v5156, 5
      %v5464 = vsel %vm821, %v5462, %v5463
      %v5465 = vrot.slane %v5438, 5
      %v5466 = vrot.slane %v5465, 4
      %v5467 = vrot.slane %v5158, 5
      %v5468 = vsel %vm821, %v5466, %v5467
      %v5469 = vrot.slane %v5439, 5
      %v5470 = vrot.slane %v5469, 4
      %v5471 = vrot.slane %v5160, 5
      %v5472 = vsel %vm821, %v5470, %v5471
      %v5473 = vrot.slane %v5440, 5
      %v5474 = vrot.slane %v5473, 4
      %v5475 = vrot.slane %v5162, 5
      %v5476 = vsel %vm821, %v5474, %v5475
      %v5477 = vrot.slane %v5441, 5
      %v5478 = vrot.slane %v5477, 4
      %v5479 = vrot.slane %v5164, 5
      %v5480 = vsel %vm821, %v5478, %v5479
      %v5481 = vrot.slane %v5442, 5
      %v5482 = vrot.slane %v5481, 4
      %v5483 = vrot.slane %v5166, 5
      %v5484 = vsel %vm821, %v5482, %v5483
      %v5485 = vrot.slane %v5443, 5
      %v5486 = vrot.slane %v5485, 4
      %v5487 = vrot.slane %v5168, 5
      %v5488 = vsel %vm821, %v5486, %v5487
      %v5489 = vrot.slane %v5444, 5
      %v5490 = vrot.slane %v5489, 4
      %v5491 = vrot.slane %v5170, 5
      %v5492 = vsel %vm821, %v5490, %v5491
      %s5493 = scalar_lea.vmem %s3, 1472
      %v5494 = vld [vmem:[%s5493] sm:$0xf]
      %v5495 = vld [vmem:[%s5493 + $0x4] sm:$0xf]
      %v5496 = vld [vmem:[%s5493 + $0x8] sm:$0xf]
      %v5497 = vld [vmem:[%s5493 + $0xc] sm:$0xf]
      %v5498 = vld [vmem:[%s5493 + $0x10] sm:$0xf]
      %v5499 = vld [vmem:[%s5493 + $0x14] sm:$0xf]
      %v5500 = vld [vmem:[%s5493 + $0x18] sm:$0xf]
      %v5501 = vld [vmem:[%s5493 + $0x1c] sm:$0xf]
      %v5502 = vld [vmem:[%s5493 + $0x20] sm:$0xf]
      %v5503 = vld [vmem:[%s5493 + $0x24] sm:$0xf]
      %v5504 = vld [vmem:[%s5493 + $0x28] sm:$0xf]
      %v5505 = vld [vmem:[%s5493 + $0x2c] sm:$0xf]
      %v5506 = vld [vmem:[%s5493 + $0x30] sm:$0xf]
      %v5507 = vld [vmem:[%s5493 + $0x34] sm:$0xf]
      %v5508 = vld [vmem:[%s5493 + $0x38] sm:$0xf]
      %v5509 = vld [vmem:[%s5493 + $0x3c] sm:$0xf]
      %v5510 = vunpack.c.l.b16 %v5464
      %v5511 = vunpack.c.l.b16 %v5468
      %v5512 = vunpack.c.l.b16 %v5472
      %v5513 = vunpack.c.l.b16 %v5476
      %v5514 = vunpack.c.l.b16 %v5480
      %v5515 = vunpack.c.l.b16 %v5484
      %v5516 = vunpack.c.l.b16 %v5488
      %v5517 = vunpack.c.l.b16 %v5492
      %v5518 = vpack.c.b16 %v5511, %v5510
      %v5519 = vpack.c.b16 %v5513, %v5512
      %v5520 = vpack.c.b16 %v5515, %v5514
      %v5521 = vpack.c.b16 %v5517, %v5516
      %v5542 = vunpack.c.l.b16 %v5494
      %v5543 = vunpack.c.l.b16 %v5495
      %v5544 = vunpack.c.l.b16 %v5496
      %v5545 = vunpack.c.l.b16 %v5497
      %v5546 = vunpack.c.l.b16 %v5498
      %v5547 = vunpack.c.l.b16 %v5499
      %v5548 = vunpack.c.l.b16 %v5500
      %v5549 = vunpack.c.l.b16 %v5501
      %v5550 = vunpack.c.l.b16 %v5502
      %v5551 = vunpack.c.l.b16 %v5503
      %v5552 = vunpack.c.l.b16 %v5504
      %v5553 = vunpack.c.l.b16 %v5505
      %v5554 = vunpack.c.l.b16 %v5506
      %v5555 = vunpack.c.l.b16 %v5507
      %v5556 = vunpack.c.l.b16 %v5508
      %v5557 = vunpack.c.l.b16 %v5509
      %v5558 = vpack.c.b16 %v5543, %v5542
      %v5559 = vpack.c.b16 %v5545, %v5544
      %v5560 = vpack.c.b16 %v5547, %v5546
      %v5561 = vpack.c.b16 %v5549, %v5548
      %v5562 = vpack.c.b16 %v5551, %v5550
      %v5563 = vpack.c.b16 %v5553, %v5552
      %v5564 = vpack.c.b16 %v5555, %v5554
      %v5565 = vpack.c.b16 %v5557, %v5556
      %5574 = vmatprep.subr.bf16.mxu0 0
      %5575 = vmatpush1.bf16.msra.mxu0 %v5558
      %5576 = vmatprep.subr.bf16.mxu0 0
      %5577 = vmatpush1.bf16.msra.mxu0 %v5559
      %5578 = vmatprep.subr.bf16.mxu0 0
      %5579 = vmatpush1.bf16.msra.mxu0 %v5560
      %5580 = vmatprep.subr.bf16.mxu0 0
      %5581 = vmatpush1.bf16.msra.mxu0 %v5561
      %5582 = vmatprep.subr.bf16.mxu0 0
      %5583 = vmatpush1.bf16.msra.mxu0 %v5562
      %5584 = vmatprep.subr.bf16.mxu0 0
      %5585 = vmatpush1.bf16.msra.mxu0 %v5563
      %5586 = vmatprep.subr.bf16.mxu0 0
      %5587 = vmatpush1.bf16.msra.mxu0 %v5564
      %5588 = vmatprep.subr.bf16.mxu0 0
      %5589 = vmatpush1.bf16.msra.mxu0 %v5565
      %5590 = vmatprep.subr.bf16.mxu0 0
      %5591 = vmatpush1.bf16.msra.mxu0 0
      %5592 = vmatprep.subr.bf16.mxu0 0
      %5593 = vmatpush1.bf16.msra.mxu0 0
      %5594 = vmatprep.subr.bf16.mxu0 0
      %5595 = vmatpush1.bf16.msra.mxu0 0
      %5596 = vmatprep.subr.bf16.mxu0 0
      %5597 = vmatpush1.bf16.msra.mxu0 0
      %5598 = vmatprep.subr.bf16.mxu0 0
      %5599 = vmatpush1.bf16.msra.mxu0 0
      %5600 = vmatprep.subr.bf16.mxu0 0
      %5601 = vmatpush1.bf16.msra.mxu0 0
      %5602 = vmatprep.subr.bf16.mxu0 0
      %5603 = vmatpush1.bf16.msra.mxu0 0
      %5604 = vmatprep.subr.bf16.mxu0 0
      %5605 = vmatpush1.bf16.msra.mxu0 0
      %5606 = vmatprep.mubr.bf16.mxu0 0
      %5607 = vmatmul.mubr.bf16.gmra.mrb[0].mxu0 %v5518
      %v5608 = vpop.f32.mrb[0].mxu0
      %v5609 = vadd.f32 0.0, %v5608
      %v5610 = vpop.f32.mrb[0].mxu0
      %v5611 = vpop.f32.mrb[0].mxu0
      %v5612 = vadd.f32 0.0, %v5611
      %v5613 = vpop.f32.mrb[0].mxu0
      %5614 = vmatprep.mubr.bf16.mxu0 0
      %5615 = vmatmul.mubr.bf16.gmra.mrb[0].mxu0 %v5519
      %v5616 = vpop.f32.mrb[0].mxu0
      %v5617 = vadd.f32 0.0, %v5616
      %v5618 = vpop.f32.mrb[0].mxu0
      %v5619 = vpop.f32.mrb[0].mxu0
      %v5620 = vadd.f32 0.0, %v5619
      %v5621 = vpop.f32.mrb[0].mxu0
      %5622 = vmatprep.mubr.bf16.mxu0 0
      %5623 = vmatmul.mubr.bf16.gmra.mrb[0].mxu0 %v5520
      %v5624 = vpop.f32.mrb[0].mxu0
      %v5625 = vadd.f32 0.0, %v5624
      %v5626 = vpop.f32.mrb[0].mxu0
      %v5627 = vpop.f32.mrb[0].mxu0
      %v5628 = vadd.f32 0.0, %v5627
      %v5629 = vpop.f32.mrb[0].mxu0
      %5630 = vmatprep.mubr.bf16.mxu0 0
      %5631 = vmatmul.mubr.bf16.gmra.mrb[0].mxu0 %v5521
      %v5632 = vpop.f32.mrb[0].mxu0
      %v5633 = vadd.f32 0.0, %v5632
      %v5634 = vpop.f32.mrb[0].mxu0
      %v5635 = vpop.f32.mrb[0].mxu0
      %v5636 = vadd.f32 0.0, %v5635
      %v5637 = vpop.f32.mrb[0].mxu0
      %5638 = vdwg.mxu0
      %v5639 = vadd.f32 %v5429, %v5609
      %v5640 = vadd.f32 %v5430, %v5612
      %v5641 = vadd.f32 %v5431, %v5617
      %v5642 = vadd.f32 %v5432, %v5620
      %v5643 = vadd.f32 %v5433, %v5625
      %v5644 = vadd.f32 %v5434, %v5628
      %v5645 = vadd.f32 %v5435, %v5633
      %v5646 = vadd.f32 %v5436, %v5636
      %s5647 = scalar_lea.vmem %s345, 16
      %v5648 = vld [vmem:[%s5647] sm:$0xf]
      %v5649 = vld [vmem:[%s5647 + $0x8] sm:$0xf]
      %v5650 = vld [vmem:[%s5647 + $0x10] sm:$0xf]
      %v5651 = vld [vmem:[%s5647 + $0x18] sm:$0xf]
      %v5652 = vld [vmem:[%s5647 + $0x20] sm:$0xf]
      %v5653 = vld [vmem:[%s5647 + $0x28] sm:$0xf]
      %v5654 = vld [vmem:[%s5647 + $0x30] sm:$0xf]
      %v5655 = vld [vmem:[%s5647 + $0x38] sm:$0xf]
      %s5656 = scalar_lea.vmem %s3, 1536
      %v5657 = vld [vmem:[%s5656] sm:$0xf]
      %v5658 = vld [vmem:[%s5656 + $0x4] sm:$0xf]
      %v5659 = vld [vmem:[%s5656 + $0x8] sm:$0xf]
      %v5660 = vld [vmem:[%s5656 + $0xc] sm:$0xf]
      %v5661 = vld [vmem:[%s5656 + $0x10] sm:$0xf]
      %v5662 = vld [vmem:[%s5656 + $0x14] sm:$0xf]
      %v5663 = vld [vmem:[%s5656 + $0x18] sm:$0xf]
      %v5664 = vld [vmem:[%s5656 + $0x1c] sm:$0xf]
      %v5665 = vld [vmem:[%s5656 + $0x20] sm:$0xf]
      %v5666 = vld [vmem:[%s5656 + $0x24] sm:$0xf]
      %v5667 = vld [vmem:[%s5656 + $0x28] sm:$0xf]
      %v5668 = vld [vmem:[%s5656 + $0x2c] sm:$0xf]
      %v5669 = vld [vmem:[%s5656 + $0x30] sm:$0xf]
      %v5670 = vld [vmem:[%s5656 + $0x34] sm:$0xf]
      %v5671 = vld [vmem:[%s5656 + $0x38] sm:$0xf]
      %v5672 = vld [vmem:[%s5656 + $0x3c] sm:$0xf]
      %v5681 = vunpack.c.l.b16 %v5648
      %v5682 = vunpack.c.l.b16 %v5649
      %v5683 = vunpack.c.l.b16 %v5650
      %v5684 = vunpack.c.l.b16 %v5651
      %v5685 = vunpack.c.l.b16 %v5652
      %v5686 = vunpack.c.l.b16 %v5653
      %v5687 = vunpack.c.l.b16 %v5654
      %v5688 = vunpack.c.l.b16 %v5655
      %v5689 = vpack.c.b16 %v5682, %v5681
      %v5690 = vpack.c.b16 %v5684, %v5683
      %v5691 = vpack.c.b16 %v5686, %v5685
      %v5692 = vpack.c.b16 %v5688, %v5687
      %v5713 = vunpack.c.l.b16 %v5657
      %v5714 = vunpack.c.l.b16 %v5658
      %v5715 = vunpack.c.l.b16 %v5659
      %v5716 = vunpack.c.l.b16 %v5660
      %v5717 = vunpack.c.l.b16 %v5661
      %v5718 = vunpack.c.l.b16 %v5662
      %v5719 = vunpack.c.l.b16 %v5663
      %v5720 = vunpack.c.l.b16 %v5664
      %v5721 = vunpack.c.l.b16 %v5665
      %v5722 = vunpack.c.l.b16 %v5666
      %v5723 = vunpack.c.l.b16 %v5667
      %v5724 = vunpack.c.l.b16 %v5668
      %v5725 = vunpack.c.l.b16 %v5669
      %v5726 = vunpack.c.l.b16 %v5670
      %v5727 = vunpack.c.l.b16 %v5671
      %v5728 = vunpack.c.l.b16 %v5672
      %v5729 = vpack.c.b16 %v5714, %v5713
      %v5730 = vpack.c.b16 %v5716, %v5715
      %v5731 = vpack.c.b16 %v5718, %v5717
      %v5732 = vpack.c.b16 %v5720, %v5719
      %v5733 = vpack.c.b16 %v5722, %v5721
      %v5734 = vpack.c.b16 %v5724, %v5723
      %v5735 = vpack.c.b16 %v5726, %v5725
      %v5736 = vpack.c.b16 %v5728, %v5727
      %5745 = vmatprep.subr.bf16.mxu0 0
      %5746 = vmatpush1.bf16.msra.mxu0 %v5729
      %5747 = vmatprep.subr.bf16.mxu0 0
      %5748 = vmatpush1.bf16.msra.mxu0 %v5730
      %5749 = vmatprep.subr.bf16.mxu0 0
      %5750 = vmatpush1.bf16.msra.mxu0 %v5731
      %5751 = vmatprep.subr.bf16.mxu0 0
      %5752 = vmatpush1.bf16.msra.mxu0 %v5732
      %5753 = vmatprep.subr.bf16.mxu0 0
      %5754 = vmatpush1.bf16.msra.mxu0 %v5733
      %5755 = vmatprep.subr.bf16.mxu0 0
      %5756 = vmatpush1.bf16.msra.mxu0 %v5734
      %5757 = vmatprep.subr.bf16.mxu0 0
      %5758 = vmatpush1.bf16.msra.mxu0 %v5735
      %5759 = vmatprep.subr.bf16.mxu0 0
      %5760 = vmatpush1.bf16.msra.mxu0 %v5736
      %5761 = vmatprep.subr.bf16.mxu0 0
      %5762 = vmatpush1.bf16.msra.mxu0 0
      %5763 = vmatprep.subr.bf16.mxu0 0
      %5764 = vmatpush1.bf16.msra.mxu0 0
      %5765 = vmatprep.subr.bf16.mxu0 0
      %5766 = vmatpush1.bf16.msra.mxu0 0
      %5767 = vmatprep.subr.bf16.mxu0 0
      %5768 = vmatpush1.bf16.msra.mxu0 0
      %5769 = vmatprep.subr.bf16.mxu0 0
      %5770 = vmatpush1.bf16.msra.mxu0 0
      %5771 = vmatprep.subr.bf16.mxu0 0
      %5772 = vmatpush1.bf16.msra.mxu0 0
      %5773 = vmatprep.subr.bf16.mxu0 0
      %5774 = vmatpush1.bf16.msra.mxu0 0
      %5775 = vmatprep.subr.bf16.mxu0 0
      %5776 = vmatpush1.bf16.msra.mxu0 0
      %5777 = vmatprep.mubr.bf16.mxu0 0
      %5778 = vmatmul.mubr.bf16.gmra.mrb[0].mxu0 %v5689
      %v5779 = vpop.f32.mrb[0].mxu0
      %v5780 = vadd.f32 0.0, %v5779
      %v5781 = vpop.f32.mrb[0].mxu0
      %v5782 = vpop.f32.mrb[0].mxu0
      %v5783 = vadd.f32 0.0, %v5782
      %v5784 = vpop.f32.mrb[0].mxu0
      %5785 = vmatprep.mubr.bf16.mxu0 0
      %5786 = vmatmul.mubr.bf16.gmra.mrb[0].mxu0 %v5690
      %v5787 = vpop.f32.mrb[0].mxu0
      %v5788 = vadd.f32 0.0, %v5787
      %v5789 = vpop.f32.mrb[0].mxu0
      %v5790 = vpop.f32.mrb[0].mxu0
      %v5791 = vadd.f32 0.0, %v5790
      %v5792 = vpop.f32.mrb[0].mxu0
      %5793 = vmatprep.mubr.bf16.mxu0 0
      %5794 = vmatmul.mubr.bf16.gmra.mrb[0].mxu0 %v5691
      %v5795 = vpop.f32.mrb[0].mxu0
      %v5796 = vadd.f32 0.0, %v5795
      %v5797 = vpop.f32.mrb[0].mxu0
      %v5798 = vpop.f32.mrb[0].mxu0
      %v5799 = vadd.f32 0.0, %v5798
      %v5800 = vpop.f32.mrb[0].mxu0
      %5801 = vmatprep.mubr.bf16.mxu0 0
      %5802 = vmatmul.mubr.bf16.gmra.mrb[0].mxu0 %v5692
      %v5803 = vpop.f32.mrb[0].mxu0
      %v5804 = vadd.f32 0.0, %v5803
      %v5805 = vpop.f32.mrb[0].mxu0
      %v5806 = vpop.f32.mrb[0].mxu0
      %v5807 = vadd.f32 0.0, %v5806
      %v5808 = vpop.f32.mrb[0].mxu0
      %5809 = vdwg.mxu0
      %v5810 = vadd.f32 %v5639, %v5780
      %v5811 = vadd.f32 %v5640, %v5783
      %v5812 = vadd.f32 %v5641, %v5788
      %v5813 = vadd.f32 %v5642, %v5791
      %v5814 = vadd.f32 %v5643, %v5796
      %v5815 = vadd.f32 %v5644, %v5799
      %v5816 = vadd.f32 %v5645, %v5804
      %v5817 = vadd.f32 %v5646, %v5807
      %v5818 = vld [vmem:[%s5647] sm:$0xf]
      %v5819 = vld [vmem:[%s5647 + $0x4] sm:$0x1]
      %v5820 = vld [vmem:[%s5647 + $0x8] sm:$0xf]
      %v5821 = vld [vmem:[%s5647 + $0xc] sm:$0x1]
      %v5822 = vld [vmem:[%s5647 + $0x10] sm:$0xf]
      %v5823 = vld [vmem:[%s5647 + $0x14] sm:$0x1]
      %v5824 = vld [vmem:[%s5647 + $0x18] sm:$0xf]
      %v5825 = vld [vmem:[%s5647 + $0x1c] sm:$0x1]
      %v5826 = vld [vmem:[%s5647 + $0x20] sm:$0xf]
      %v5827 = vld [vmem:[%s5647 + $0x24] sm:$0x1]
      %v5828 = vld [vmem:[%s5647 + $0x28] sm:$0xf]
      %v5829 = vld [vmem:[%s5647 + $0x2c] sm:$0x1]
      %v5830 = vld [vmem:[%s5647 + $0x30] sm:$0xf]
      %v5831 = vld [vmem:[%s5647 + $0x34] sm:$0x1]
      %v5832 = vld [vmem:[%s5647 + $0x38] sm:$0xf]
      %v5833 = vld [vmem:[%s5647 + $0x3c] sm:$0x1]
      %v5835 = vshrl.u32 %v5818, 16
      %v5837 = vrot.slane %v5835, 4
      %v5838 = vshll.u32 %v5818, 16
      %v5840 = vrot.slane %v5838, 5
      %v5841 = vor.u32 %v5837, %v5840
      %v5842 = vrot.slane %v5841, 4
      %v5844 = vshll.u32 %v5819, 16
      %v5846 = vrot.slane %v5844, 5
      %v5847 = vsel %vm399, %v5842, %v5846
      %v5849 = vshrl.u32 %v5820, 16
      %v5851 = vrot.slane %v5849, 4
      %v5852 = vshll.u32 %v5820, 16
      %v5854 = vrot.slane %v5852, 5
      %v5855 = vor.u32 %v5851, %v5854
      %v5856 = vrot.slane %v5855, 4
      %v5858 = vshll.u32 %v5821, 16
      %v5860 = vrot.slane %v5858, 5
      %v5861 = vsel %vm399, %v5856, %v5860
      %v5863 = vshrl.u32 %v5822, 16
      %v5865 = vrot.slane %v5863, 4
      %v5866 = vshll.u32 %v5822, 16
      %v5868 = vrot.slane %v5866, 5
      %v5869 = vor.u32 %v5865, %v5868
      %v5870 = vrot.slane %v5869, 4
      %v5872 = vshll.u32 %v5823, 16
      %v5874 = vrot.slane %v5872, 5
      %v5875 = vsel %vm399, %v5870, %v5874
      %v5877 = vshrl.u32 %v5824, 16
      %v5879 = vrot.slane %v5877, 4
      %v5880 = vshll.u32 %v5824, 16
      %v5882 = vrot.slane %v5880, 5
      %v5883 = vor.u32 %v5879, %v5882
      %v5884 = vrot.slane %v5883, 4
      %v5886 = vshll.u32 %v5825, 16
      %v5888 = vrot.slane %v5886, 5
      %v5889 = vsel %vm399, %v5884, %v5888
      %v5891 = vshrl.u32 %v5826, 16
      %v5893 = vrot.slane %v5891, 4
      %v5894 = vshll.u32 %v5826, 16
      %v5896 = vrot.slane %v5894, 5
      %v5897 = vor.u32 %v5893, %v5896
      %v5898 = vrot.slane %v5897, 4
      %v5900 = vshll.u32 %v5827, 16
      %v5902 = vrot.slane %v5900, 5
      %v5903 = vsel %vm399, %v5898, %v5902
      %v5905 = vshrl.u32 %v5828, 16
      %v5907 = vrot.slane %v5905, 4
      %v5908 = vshll.u32 %v5828, 16
      %v5910 = vrot.slane %v5908, 5
      %v5911 = vor.u32 %v5907, %v5910
      %v5912 = vrot.slane %v5911, 4
      %v5914 = vshll.u32 %v5829, 16
      %v5916 = vrot.slane %v5914, 5
      %v5917 = vsel %vm399, %v5912, %v5916
      %v5919 = vshrl.u32 %v5830, 16
      %v5921 = vrot.slane %v5919, 4
      %v5922 = vshll.u32 %v5830, 16
      %v5924 = vrot.slane %v5922, 5
      %v5925 = vor.u32 %v5921, %v5924
      %v5926 = vrot.slane %v5925, 4
      %v5928 = vshll.u32 %v5831, 16
      %v5930 = vrot.slane %v5928, 5
      %v5931 = vsel %vm399, %v5926, %v5930
      %v5933 = vshrl.u32 %v5832, 16
      %v5935 = vrot.slane %v5933, 4
      %v5936 = vshll.u32 %v5832, 16
      %v5938 = vrot.slane %v5936, 5
      %v5939 = vor.u32 %v5935, %v5938
      %v5940 = vrot.slane %v5939, 4
      %v5942 = vshll.u32 %v5833, 16
      %v5944 = vrot.slane %v5942, 5
      %v5945 = vsel %vm399, %v5940, %v5944
      %s5946 = scalar_lea.vmem %s3, 1600
      %v5947 = vld [vmem:[%s5946] sm:$0xf]
      %v5948 = vld [vmem:[%s5946 + $0x4] sm:$0xf]
      %v5949 = vld [vmem:[%s5946 + $0x8] sm:$0xf]
      %v5950 = vld [vmem:[%s5946 + $0xc] sm:$0xf]
      %v5951 = vld [vmem:[%s5946 + $0x10] sm:$0xf]
      %v5952 = vld [vmem:[%s5946 + $0x14] sm:$0xf]
      %v5953 = vld [vmem:[%s5946 + $0x18] sm:$0xf]
      %v5954 = vld [vmem:[%s5946 + $0x1c] sm:$0xf]
      %v5955 = vld [vmem:[%s5946 + $0x20] sm:$0xf]
      %v5956 = vld [vmem:[%s5946 + $0x24] sm:$0xf]
      %v5957 = vld [vmem:[%s5946 + $0x28] sm:$0xf]
      %v5958 = vld [vmem:[%s5946 + $0x2c] sm:$0xf]
      %v5959 = vld [vmem:[%s5946 + $0x30] sm:$0xf]
      %v5960 = vld [vmem:[%s5946 + $0x34] sm:$0xf]
      %v5961 = vld [vmem:[%s5946 + $0x38] sm:$0xf]
      %v5962 = vld [vmem:[%s5946 + $0x3c] sm:$0xf]
      %v5963 = vunpack.c.l.b16 %v5847
      %v5964 = vunpack.c.l.b16 %v5861
      %v5965 = vunpack.c.l.b16 %v5875
      %v5966 = vunpack.c.l.b16 %v5889
      %v5967 = vunpack.c.l.b16 %v5903
      %v5968 = vunpack.c.l.b16 %v5917
      %v5969 = vunpack.c.l.b16 %v5931
      %v5970 = vunpack.c.l.b16 %v5945
      %v5971 = vpack.c.b16 %v5964, %v5963
      %v5972 = vpack.c.b16 %v5966, %v5965
      %v5973 = vpack.c.b16 %v5968, %v5967
      %v5974 = vpack.c.b16 %v5970, %v5969
      %v5995 = vunpack.c.l.b16 %v5947
      %v5996 = vunpack.c.l.b16 %v5948
      %v5997 = vunpack.c.l.b16 %v5949
      %v5998 = vunpack.c.l.b16 %v5950
      %v5999 = vunpack.c.l.b16 %v5951
      %v6000 = vunpack.c.l.b16 %v5952
      %v6001 = vunpack.c.l.b16 %v5953
      %v6002 = vunpack.c.l.b16 %v5954
      %v6003 = vunpack.c.l.b16 %v5955
      %v6004 = vunpack.c.l.b16 %v5956
      %v6005 = vunpack.c.l.b16 %v5957
      %v6006 = vunpack.c.l.b16 %v5958
      %v6007 = vunpack.c.l.b16 %v5959
      %v6008 = vunpack.c.l.b16 %v5960
      %v6009 = vunpack.c.l.b16 %v5961
      %v6010 = vunpack.c.l.b16 %v5962
      %v6011 = vpack.c.b16 %v5996, %v5995
      %v6012 = vpack.c.b16 %v5998, %v5997
      %v6013 = vpack.c.b16 %v6000, %v5999
      %v6014 = vpack.c.b16 %v6002, %v6001
      %v6015 = vpack.c.b16 %v6004, %v6003
      %v6016 = vpack.c.b16 %v6006, %v6005
      %v6017 = vpack.c.b16 %v6008, %v6007
      %v6018 = vpack.c.b16 %v6010, %v6009
      %6027 = vmatprep.subr.bf16.mxu0 0
      %6028 = vmatpush1.bf16.msra.mxu0 %v6011
      %6029 = vmatprep.subr.bf16.mxu0 0
      %6030 = vmatpush1.bf16.msra.mxu0 %v6012
      %6031 = vmatprep.subr.bf16.mxu0 0
      %6032 = vmatpush1.bf16.msra.mxu0 %v6013
      %6033 = vmatprep.subr.bf16.mxu0 0
      %6034 = vmatpush1.bf16.msra.mxu0 %v6014
      %6035 = vmatprep.subr.bf16.mxu0 0
      %6036 = vmatpush1.bf16.msra.mxu0 %v6015
      %6037 = vmatprep.subr.bf16.mxu0 0
      %6038 = vmatpush1.bf16.msra.mxu0 %v6016
      %6039 = vmatprep.subr.bf16.mxu0 0
      %6040 = vmatpush1.bf16.msra.mxu0 %v6017
      %6041 = vmatprep.subr.bf16.mxu0 0
      %6042 = vmatpush1.bf16.msra.mxu0 %v6018
      %6043 = vmatprep.subr.bf16.mxu0 0
      %6044 = vmatpush1.bf16.msra.mxu0 0
      %6045 = vmatprep.subr.bf16.mxu0 0
      %6046 = vmatpush1.bf16.msra.mxu0 0
      %6047 = vmatprep.subr.bf16.mxu0 0
      %6048 = vmatpush1.bf16.msra.mxu0 0
      %6049 = vmatprep.subr.bf16.mxu0 0
      %6050 = vmatpush1.bf16.msra.mxu0 0
      %6051 = vmatprep.subr.bf16.mxu0 0
      %6052 = vmatpush1.bf16.msra.mxu0 0
      %6053 = vmatprep.subr.bf16.mxu0 0
      %6054 = vmatpush1.bf16.msra.mxu0 0
      %6055 = vmatprep.subr.bf16.mxu0 0
      %6056 = vmatpush1.bf16.msra.mxu0 0
      %6057 = vmatprep.subr.bf16.mxu0 0
      %6058 = vmatpush1.bf16.msra.mxu0 0
      %6059 = vmatprep.mubr.bf16.mxu0 0
      %6060 = vmatmul.mubr.bf16.gmra.mrb[0].mxu0 %v5971
      %v6061 = vpop.f32.mrb[0].mxu0
      %v6062 = vadd.f32 0.0, %v6061
      %v6063 = vpop.f32.mrb[0].mxu0
      %v6064 = vpop.f32.mrb[0].mxu0
      %v6065 = vadd.f32 0.0, %v6064
      %v6066 = vpop.f32.mrb[0].mxu0
      %6067 = vmatprep.mubr.bf16.mxu0 0
      %6068 = vmatmul.mubr.bf16.gmra.mrb[0].mxu0 %v5972
      %v6069 = vpop.f32.mrb[0].mxu0
      %v6070 = vadd.f32 0.0, %v6069
      %v6071 = vpop.f32.mrb[0].mxu0
      %v6072 = vpop.f32.mrb[0].mxu0
      %v6073 = vadd.f32 0.0, %v6072
      %v6074 = vpop.f32.mrb[0].mxu0
      %6075 = vmatprep.mubr.bf16.mxu0 0
      %6076 = vmatmul.mubr.bf16.gmra.mrb[0].mxu0 %v5973
      %v6077 = vpop.f32.mrb[0].mxu0
      %v6078 = vadd.f32 0.0, %v6077
      %v6079 = vpop.f32.mrb[0].mxu0
      %v6080 = vpop.f32.mrb[0].mxu0
      %v6081 = vadd.f32 0.0, %v6080
      %v6082 = vpop.f32.mrb[0].mxu0
      %6083 = vmatprep.mubr.bf16.mxu0 0
      %6084 = vmatmul.mubr.bf16.gmra.mrb[0].mxu0 %v5974
      %v6085 = vpop.f32.mrb[0].mxu0
      %v6086 = vadd.f32 0.0, %v6085
      %v6087 = vpop.f32.mrb[0].mxu0
      %v6088 = vpop.f32.mrb[0].mxu0
      %v6089 = vadd.f32 0.0, %v6088
      %v6090 = vpop.f32.mrb[0].mxu0
      %6091 = vdwg.mxu0
      %v6092 = vadd.f32 %v5810, %v6062
      %v6093 = vadd.f32 %v5811, %v6065
      %v6094 = vadd.f32 %v5812, %v6070
      %v6095 = vadd.f32 %v5813, %v6073
      %v6096 = vadd.f32 %v5814, %v6078
      %v6097 = vadd.f32 %v5815, %v6081
      %v6098 = vadd.f32 %v5816, %v6086
      %v6099 = vadd.f32 %v5817, %v6089
      %v6100 = vld [vmem:[%s5647] sm:$0xe]
      %v6101 = vld [vmem:[%s5647 + $0x8] sm:$0xe]
      %v6102 = vld [vmem:[%s5647 + $0x10] sm:$0xe]
      %v6103 = vld [vmem:[%s5647 + $0x18] sm:$0xe]
      %v6104 = vld [vmem:[%s5647 + $0x20] sm:$0xe]
      %v6105 = vld [vmem:[%s5647 + $0x28] sm:$0xe]
      %v6106 = vld [vmem:[%s5647 + $0x30] sm:$0xe]
      %v6107 = vld [vmem:[%s5647 + $0x38] sm:$0xe]
      %v6124 = vrot.slane %v6100, 5
      %v6125 = vrot.slane %v6124, 4
      %v6126 = vrot.slane %v5819, 5
      %v6127 = vsel %vm821, %v6125, %v6126
      %v6128 = vrot.slane %v6101, 5
      %v6129 = vrot.slane %v6128, 4
      %v6130 = vrot.slane %v5821, 5
      %v6131 = vsel %vm821, %v6129, %v6130
      %v6132 = vrot.slane %v6102, 5
      %v6133 = vrot.slane %v6132, 4
      %v6134 = vrot.slane %v5823, 5
      %v6135 = vsel %vm821, %v6133, %v6134
      %v6136 = vrot.slane %v6103, 5
      %v6137 = vrot.slane %v6136, 4
      %v6138 = vrot.slane %v5825, 5
      %v6139 = vsel %vm821, %v6137, %v6138
      %v6140 = vrot.slane %v6104, 5
      %v6141 = vrot.slane %v6140, 4
      %v6142 = vrot.slane %v5827, 5
      %v6143 = vsel %vm821, %v6141, %v6142
      %v6144 = vrot.slane %v6105, 5
      %v6145 = vrot.slane %v6144, 4
      %v6146 = vrot.slane %v5829, 5
      %v6147 = vsel %vm821, %v6145, %v6146
      %v6148 = vrot.slane %v6106, 5
      %v6149 = vrot.slane %v6148, 4
      %v6150 = vrot.slane %v5831, 5
      %v6151 = vsel %vm821, %v6149, %v6150
      %v6152 = vrot.slane %v6107, 5
      %v6153 = vrot.slane %v6152, 4
      %v6154 = vrot.slane %v5833, 5
      %v6155 = vsel %vm821, %v6153, %v6154
      %s6156 = scalar_lea.vmem %s3, 1664
      %v6157 = vld [vmem:[%s6156] sm:$0xf]
      %v6158 = vld [vmem:[%s6156 + $0x4] sm:$0xf]
      %v6159 = vld [vmem:[%s6156 + $0x8] sm:$0xf]
      %v6160 = vld [vmem:[%s6156 + $0xc] sm:$0xf]
      %v6161 = vld [vmem:[%s6156 + $0x10] sm:$0xf]
      %v6162 = vld [vmem:[%s6156 + $0x14] sm:$0xf]
      %v6163 = vld [vmem:[%s6156 + $0x18] sm:$0xf]
      %v6164 = vld [vmem:[%s6156 + $0x1c] sm:$0xf]
      %v6165 = vld [vmem:[%s6156 + $0x20] sm:$0xf]
      %v6166 = vld [vmem:[%s6156 + $0x24] sm:$0xf]
      %v6167 = vld [vmem:[%s6156 + $0x28] sm:$0xf]
      %v6168 = vld [vmem:[%s6156 + $0x2c] sm:$0xf]
      %v6169 = vld [vmem:[%s6156 + $0x30] sm:$0xf]
      %v6170 = vld [vmem:[%s6156 + $0x34] sm:$0xf]
      %v6171 = vld [vmem:[%s6156 + $0x38] sm:$0xf]
      %v6172 = vld [vmem:[%s6156 + $0x3c] sm:$0xf]
      %v6173 = vunpack.c.l.b16 %v6127
      %v6174 = vunpack.c.l.b16 %v6131
      %v6175 = vunpack.c.l.b16 %v6135
      %v6176 = vunpack.c.l.b16 %v6139
      %v6177 = vunpack.c.l.b16 %v6143
      %v6178 = vunpack.c.l.b16 %v6147
      %v6179 = vunpack.c.l.b16 %v6151
      %v6180 = vunpack.c.l.b16 %v6155
      %v6181 = vpack.c.b16 %v6174, %v6173
      %v6182 = vpack.c.b16 %v6176, %v6175
      %v6183 = vpack.c.b16 %v6178, %v6177
      %v6184 = vpack.c.b16 %v6180, %v6179
      %v6205 = vunpack.c.l.b16 %v6157
      %v6206 = vunpack.c.l.b16 %v6158
      %v6207 = vunpack.c.l.b16 %v6159
      %v6208 = vunpack.c.l.b16 %v6160
      %v6209 = vunpack.c.l.b16 %v6161
      %v6210 = vunpack.c.l.b16 %v6162
      %v6211 = vunpack.c.l.b16 %v6163
      %v6212 = vunpack.c.l.b16 %v6164
      %v6213 = vunpack.c.l.b16 %v6165
      %v6214 = vunpack.c.l.b16 %v6166
      %v6215 = vunpack.c.l.b16 %v6167
      %v6216 = vunpack.c.l.b16 %v6168
      %v6217 = vunpack.c.l.b16 %v6169
      %v6218 = vunpack.c.l.b16 %v6170
      %v6219 = vunpack.c.l.b16 %v6171
      %v6220 = vunpack.c.l.b16 %v6172
      %v6221 = vpack.c.b16 %v6206, %v6205
      %v6222 = vpack.c.b16 %v6208, %v6207
      %v6223 = vpack.c.b16 %v6210, %v6209
      %v6224 = vpack.c.b16 %v6212, %v6211
      %v6225 = vpack.c.b16 %v6214, %v6213
      %v6226 = vpack.c.b16 %v6216, %v6215
      %v6227 = vpack.c.b16 %v6218, %v6217
      %v6228 = vpack.c.b16 %v6220, %v6219
      %6237 = vmatprep.subr.bf16.mxu0 0
      %6238 = vmatpush1.bf16.msra.mxu0 %v6221
      %6239 = vmatprep.subr.bf16.mxu0 0
      %6240 = vmatpush1.bf16.msra.mxu0 %v6222
      %6241 = vmatprep.subr.bf16.mxu0 0
      %6242 = vmatpush1.bf16.msra.mxu0 %v6223
      %6243 = vmatprep.subr.bf16.mxu0 0
      %6244 = vmatpush1.bf16.msra.mxu0 %v6224
      %6245 = vmatprep.subr.bf16.mxu0 0
      %6246 = vmatpush1.bf16.msra.mxu0 %v6225
      %6247 = vmatprep.subr.bf16.mxu0 0
      %6248 = vmatpush1.bf16.msra.mxu0 %v6226
      %6249 = vmatprep.subr.bf16.mxu0 0
      %6250 = vmatpush1.bf16.msra.mxu0 %v6227
      %6251 = vmatprep.subr.bf16.mxu0 0
      %6252 = vmatpush1.bf16.msra.mxu0 %v6228
      %6253 = vmatprep.subr.bf16.mxu0 0
      %6254 = vmatpush1.bf16.msra.mxu0 0
      %6255 = vmatprep.subr.bf16.mxu0 0
      %6256 = vmatpush1.bf16.msra.mxu0 0
      %6257 = vmatprep.subr.bf16.mxu0 0
      %6258 = vmatpush1.bf16.msra.mxu0 0
      %6259 = vmatprep.subr.bf16.mxu0 0
      %6260 = vmatpush1.bf16.msra.mxu0 0
      %6261 = vmatprep.subr.bf16.mxu0 0
      %6262 = vmatpush1.bf16.msra.mxu0 0
      %6263 = vmatprep.subr.bf16.mxu0 0
      %6264 = vmatpush1.bf16.msra.mxu0 0
      %6265 = vmatprep.subr.bf16.mxu0 0
      %6266 = vmatpush1.bf16.msra.mxu0 0
      %6267 = vmatprep.subr.bf16.mxu0 0
      %6268 = vmatpush1.bf16.msra.mxu0 0
      %6269 = vmatprep.mubr.bf16.mxu0 0
      %6270 = vmatmul.mubr.bf16.gmra.mrb[0].mxu0 %v6181
      %v6271 = vpop.f32.mrb[0].mxu0
      %v6272 = vadd.f32 0.0, %v6271
      %v6273 = vpop.f32.mrb[0].mxu0
      %v6274 = vpop.f32.mrb[0].mxu0
      %v6275 = vadd.f32 0.0, %v6274
      %v6276 = vpop.f32.mrb[0].mxu0
      %6277 = vmatprep.mubr.bf16.mxu0 0
      %6278 = vmatmul.mubr.bf16.gmra.mrb[0].mxu0 %v6182
      %v6279 = vpop.f32.mrb[0].mxu0
      %v6280 = vadd.f32 0.0, %v6279
      %v6281 = vpop.f32.mrb[0].mxu0
      %v6282 = vpop.f32.mrb[0].mxu0
      %v6283 = vadd.f32 0.0, %v6282
      %v6284 = vpop.f32.mrb[0].mxu0
      %6285 = vmatprep.mubr.bf16.mxu0 0
      %6286 = vmatmul.mubr.bf16.gmra.mrb[0].mxu0 %v6183
      %v6287 = vpop.f32.mrb[0].mxu0
      %v6288 = vadd.f32 0.0, %v6287
      %v6289 = vpop.f32.mrb[0].mxu0
      %v6290 = vpop.f32.mrb[0].mxu0
      %v6291 = vadd.f32 0.0, %v6290
      %v6292 = vpop.f32.mrb[0].mxu0
      %6293 = vmatprep.mubr.bf16.mxu0 0
      %6294 = vmatmul.mubr.bf16.gmra.mrb[0].mxu0 %v6184
      %v6295 = vpop.f32.mrb[0].mxu0
      %v6296 = vadd.f32 0.0, %v6295
      %v6297 = vpop.f32.mrb[0].mxu0
      %v6298 = vpop.f32.mrb[0].mxu0
      %v6299 = vadd.f32 0.0, %v6298
      %v6300 = vpop.f32.mrb[0].mxu0
      %6301 = vdwg.mxu0
      %v6302 = vadd.f32 %v6092, %v6272
      %v6303 = vadd.f32 %v6093, %v6275
      %v6304 = vadd.f32 %v6094, %v6280
      %v6305 = vadd.f32 %v6095, %v6283
      %v6306 = vadd.f32 %v6096, %v6288
      %v6307 = vadd.f32 %v6097, %v6291
      %v6308 = vadd.f32 %v6098, %v6296
      %v6309 = vadd.f32 %v6099, %v6299
      %6310 = vst [vmem:[%s355] sm:$0xff] %v6302
      %6311 = vst [vmem:[%s355 + $0x8] sm:$0xff] %v6303
      %6312 = vst [vmem:[%s355 + $0x10] sm:$0xff] %v6304
      %6313 = vst [vmem:[%s355 + $0x18] sm:$0xff] %v6305
      %6314 = vst [vmem:[%s355 + $0x20] sm:$0xff] %v6306
      %6315 = vst [vmem:[%s355 + $0x28] sm:$0xff] %v6307
      %6316 = vst [vmem:[%s355 + $0x30] sm:$0xff] %v6308
      %6317 = vst [vmem:[%s355 + $0x38] sm:$0xff] %v6309
      %v6318 = vadd.f32 %v6302, %v6303
      %v6319 = vadd.f32 %v6318, %v6304
      %v6320 = vadd.f32 %v6319, %v6305
      %v6321 = vadd.f32 %v6320, %v6306
      %v6322 = vadd.f32 %v6321, %v6307
      %v6323 = vadd.f32 %v6322, %v6308
      %v6324 = vadd.f32 %v6323, %v6309
      %v6325 = vrot.slane %v6324, 4
      %v6326 = vadd.f32 %v6324, %v6325
      %v6327 = vrot.slane %v6326, 2
      %v6328 = vadd.f32 %v6326, %v6327
      %v6329 = vrot.slane %v6328, 1
      %v6330 = vadd.f32 %v6328, %v6329
      %v6331 = vmul.f32 %v6302, %v6302
      %v6332 = vmul.f32 %v6303, %v6303
      %v6333 = vmul.f32 %v6304, %v6304
      %v6334 = vmul.f32 %v6305, %v6305
      %v6335 = vmul.f32 %v6306, %v6306
      %v6336 = vmul.f32 %v6307, %v6307
      %v6337 = vmul.f32 %v6308, %v6308
      %v6338 = vmul.f32 %v6309, %v6309
      %v6339 = vadd.f32 %v6331, %v6332
      %v6340 = vadd.f32 %v6339, %v6333
      %v6341 = vadd.f32 %v6340, %v6334
      %v6342 = vadd.f32 %v6341, %v6335
      %v6343 = vadd.f32 %v6342, %v6336
      %v6344 = vadd.f32 %v6343, %v6337
      %v6345 = vadd.f32 %v6344, %v6338
      %v6346 = vrot.slane %v6345, 4
      %v6347 = vadd.f32 %v6345, %v6346
      %v6348 = vrot.slane %v6347, 2
      %v6349 = vadd.f32 %v6347, %v6348
      %v6350 = vrot.slane %v6349, 1
      %v6351 = vadd.f32 %v6349, %v6350
      %vm6352 = vcmask 1040384
      %v6353 = vsel %vm6352, %v6330, %v6351
      %6354 = vst [vmem:[%s363] sm:$0x3] %v6353
      %p6355 = scmp.lt.s32.totalorder %s21, 1
      %s6356 = scalar_select %p6355, %s21, 1
      %p6357 = scmp.lt.s32.totalorder %s22, 7
      %s6358 = scalar_select %p6357, %s22, 7
      %s6359 = smul.addr %s6358, 8
      %s6360 = smul.addr %s6356, 64
      %s6361 = sadd.s32 %s6359, %s6360
      %s6362 = smul.addr %s6361, 8
      %s6363 = scalar_lea.vmem %s4, %s6362
      %p6364 = scmp.lt.s32.totalorder %s21, 1
      %s6365 = scalar_select %p6364, %s21, 1
      %p6366 = scmp.lt.s32.totalorder %s22, 7
      %s6367 = scalar_select %p6366, %s22, 7
      %s6368 = smul.addr %s6365, 8
      %s6369 = sadd.s32 %s6367, %s6368
      %s6370 = smul.addr %s6369, 2
      %s6371 = scalar_lea.vmem %s5, %s6370
      // Predicated region
      $region37: #{residual_block_forward.4} parent=35 // pred_check
        %p6372 = pneg %p158
      $region38: #{residual_block_forward.4} parent=35 // pred_check_branch
        %6374 = sbr.rel (%p6372) target = $region40
      $region39: #{residual_block_forward.4} parent=35 // pred_region
        _
      $region40: #{residual_block_forward.4} parent=35 // pred_fallthru
        _
      // Predicated region
      $region41: #{residual_block_forward.4} parent=35 // pred_check
        %p6375 = pneg %p186
      $region42: #{residual_block_forward.4} parent=35 // pred_check_branch
        %6377 = sbr.rel (%p6375) target = $region44
      $region43: #{residual_block_forward.4} parent=35 // pred_region
        _
      $region44: #{residual_block_forward.4} parent=35 // pred_fallthru
        _
    $region36: #{residual_block_forward.4} parent=5 // pred_fallthru
      _
    %p6378 = scmp.le.s32.totalorder 2, %s12
    // Predicated region
    $region45: #{residual_block_forward.4} parent=5 // pred_check
      %p6379 = pneg %p6378
    $region46: #{residual_block_forward.4} parent=5 // pred_check_branch
      %6381 = sbr.rel (%p6379) target = $region48
    $region47: #{residual_block_forward.4} parent=5 // pred_region
      %s6382 = ssub.s32 %s12, 2
      // Predicated region
      $region49: #{residual_block_forward.4} parent=47 // pred_check
        %p6383 = pneg %p164
      $region50: #{residual_block_forward.4} parent=47 // pred_check_branch
        %6385 = sbr.rel (%p6383) target = $region52
      $region51: #{residual_block_forward.4} parent=47 // pred_region
        %p6386 = scmp.lt.s32.totalorder %s23, 1
        %s6387 = scalar_select %p6386, %s23, 1
        %p6388 = scmp.lt.s32.totalorder %s24, 7
        %s6389 = scalar_select %p6388, %s24, 7
        %s6390 = smul.addr %s6389, 8
        %s6391 = smul.addr %s6387, 64
        %s6392 = sadd.s32 %s6390, %s6391
        %s6393 = smul.addr %s6392, 8
        %s6394 = scalar_lea.vmem %s4, %s6393
      $region52: #{residual_block_forward.4} parent=47 // pred_fallthru
        _
      // Predicated region
      $region53: #{residual_block_forward.4} parent=47 // pred_check
        %p6395 = pneg %p192
      $region54: #{residual_block_forward.4} parent=47 // pred_check_branch
        %6397 = sbr.rel (%p6395) target = $region56
      $region55: #{residual_block_forward.4} parent=47 // pred_region
        %p6398 = scmp.lt.s32.totalorder %s23, 1
        %s6399 = scalar_select %p6398, %s23, 1
        %p6400 = scmp.lt.s32.totalorder %s24, 7
        %s6401 = scalar_select %p6400, %s24, 7
        %s6402 = smul.addr %s6399, 8
        %s6403 = sadd.s32 %s6401, %s6402
        %s6404 = smul.addr %s6403, 2
        %s6405 = scalar_lea.vmem %s5, %s6404
      $region56: #{residual_block_forward.4} parent=47 // pred_fallthru
        _
    $region48: #{residual_block_forward.4} parent=5 // pred_fallthru
      _
  $region6: #{residual_block_forward.4} parent=0 // loop_footer
    %s16 = sadd.s32 1, %s12
  $region7: #{residual_block_forward.4} parent=0 // loop_footer_branch
    %11 = sbr.rel target = $region3
  $region8: #{residual_block_forward.4} parent=0 // loop_exit
    _

</llo_original>
